<compile_context>
chip_gen: v6e
topology: v6e:2x2x1
jax: 0.10.0
libtpu: 0.0.40
codegen_flags: <defaults>
</compile_context>

<pallas_src>
import functools

import jax
import jax.numpy as jnp
from jax import lax
from jax.experimental import pallas as pl
from jax.experimental.pallas import tpu as pltpu

EPS = 1e-5
_VMEM_LIMIT_BYTES = 48 * 1024 * 1024   # explicit; leaves headroom on v7x (64 MiB VMEM)
_VMEM_TH_BUDGET = 20 * 1024 * 1024     # per-step working-set target when picking TH
_MAX_BAND_M = 4096                     # cap on TH*W (MXU M dim / f32 accumulator rows)


def _pick_band_rows(H, W, cin, co, k, override=None):
    """Pick the largest row-band height TH that divides H, keeps M = TH*W <= _MAX_BAND_M
    and keeps the estimated per-step VMEM working set under budget (v7x-safe)."""
    if override is not None:
        if H % override:
            raise ValueError("band_rows must divide H")
        return override
    pad = (k - 1) // 2
    best = 1
    for th in range(1, H + 1):
        if H % th:
            continue
        if th * W > _MAX_BAND_M:
            continue
        est = 4 * ((th + 2 * pad) * (W + 2 * pad) * cin * 3   # input band (2x dbuf) + z
                   + th * W * co * 3                          # y (2x dbuf) + f32 acc
                   + th * W * cin * 2)                        # live tap slices
        est += 2 * (k * k * cin * co) * 2                     # bf16 weights (2x buf)
        if est > _VMEM_TH_BUDGET:
            continue
        best = th
    return best


# ---------------------------------------------------------------------------
# Pallas kernels
# ---------------------------------------------------------------------------
def _conv_band_kernel(aff_ref, x_ref, w_ref, y_ref, stats_ref, *, k, pad, TH, H, W):
    """One (batch, row-band) grid step:
       fused previous-BN affine -> ReLU -> k x k conv (tap-accumulated MXU matmuls with
       M = TH*W) -> one per-band BN partial (sum, sum_sq) for this stage."""
    cin = w_ref.shape[1]
    co = w_ref.shape[-1]

    scale = aff_ref[0:1, :]          # (1, Cin) previous-stage BN scale (identity stage 1)
    shift = aff_ref[1:2, :]          # (1, Cin) previous-stage BN shift

    if k == 1:
        x = x_ref[0]                                             # (TH, W, Cin) f32
        z = jnp.maximum(x * scale + shift, 0.0).astype(jnp.bfloat16)
        acc = jnp.dot(z.reshape(TH * W, cin), w_ref[0],
                      preferred_element_type=jnp.float32)        # (TH*W, Co)
    else:
        wp = W + 2 * pad
        band = x_ref[0]                                          # (TH+2p, Wp, Cin) f32
        # Fused BN-affine + ReLU once per band (was once per dy tap).
        z = jnp.maximum(band * scale + shift, 0.0)
        # The conv's 'same' zero padding applies to the *post* BN+ReLU activation, so
        # explicitly zero the image-border halo after the affine.  Interior band halos
        # are real neighbor rows and must stay untouched -> mask on global row index.
        col = lax.broadcasted_iota(jnp.int32, (1, wp, 1), 1)
        row = (lax.broadcasted_iota(jnp.int32, (TH + 2 * pad, 1, 1), 0)
               + pl.program_id(1) * TH)
        valid = ((col >= pad) & (col < W + pad) & (row >= pad) & (row < H + pad))
        z = jnp.where(valid, z, 0.0)

        acc = jnp.zeros((TH * W, co), jnp.float32)
        for dy in range(k):
            zdy = z[dy:dy + TH]                                  # (TH, Wp, Cin) f32
            for dx in range(k):
                xs = zdy[:, dx:dx + W, :].reshape(TH * W, cin)
                acc = acc + jnp.dot(xs.astype(jnp.bfloat16),     # bf16 operands, f32 acc
                                    w_ref[dy * k + dx],
                                    preferred_element_type=jnp.float32)
    # NOTE: no conv bias here -- the training-mode BN that follows subtracts the batch
    # mean, which cancels any per-channel bias exactly.

    y_ref[0] = acc.reshape(TH, W, co).astype(y_ref.dtype)
    s1 = jnp.sum(acc, axis=0, keepdims=True)                     # (1, Co)
    s2 = jnp.sum(acc * acc, axis=0, keepdims=True)               # (1, Co)
    stats_ref[0] = jnp.concatenate([s1, s2], axis=0)             # (2, Co)


def _finalize_band_kernel(aff_ref, y_ref, x_ref, *rest, skip_is_conv, TH, W):
    """Apply the final stage's BN affine and add the skip branch over one row band.
    When the skip is a 1x1 projection conv it is computed in-kernel from the raw input
    band (bf16 MXU operands, +bias), so the skip tensor never touches HBM."""
    if skip_is_conv:
        wskip_ref, bskip_ref, o_ref = rest
    else:
        (o_ref,) = rest

    out = y_ref[0] * aff_ref[0:1, :] + aff_ref[1:2, :]           # (TH, W, Co)
    if skip_is_conv:
        cin = x_ref.shape[-1]
        co = y_ref.shape[-1]
        xs = x_ref[0].reshape(TH * W, cin).astype(jnp.bfloat16)
        s = jnp.dot(xs, wskip_ref[...], preferred_element_type=jnp.float32)
        s = (s + bskip_ref[...]).reshape(TH, W, co)
    else:
        s = x_ref[0]                                             # identity skip
    o_ref[0] = (out + s).astype(o_ref.dtype)


# ---------------------------------------------------------------------------
# pallas_call wrappers
# ---------------------------------------------------------------------------
def _make_bands(x, TH, pad):
    """(N, H, W, C) -> (N * H//TH, TH+2p, W+2p, C) overlapping, halo-padded row bands.
    One fused XLA pad+gather pass; the kernel then reads each band exactly once
    (replaces the k overlapping per-row tap DMAs of the previous version)."""
    N, H, W, C = x.shape
    nb = H // TH
    xp = jnp.pad(x, ((0, 0), (pad, pad), (pad, pad), (0, 0)))
    bands = [lax.dynamic_slice_in_dim(xp, i * TH, TH + 2 * pad, axis=1)
             for i in range(nb)]
    xb = jnp.stack(bands, axis=1)                    # (N, nb, TH+2p, Wp, C)
    return xb.reshape(N * nb, TH + 2 * pad, W + 2 * pad, C)


def conv_stage(x, aff, w_oihw, *, k, band_rows=None):
    """x: (N, H, W, Cin) f32 pre-BN activation of the previous stage;
    aff: (2, Cin) previous BN (scale, shift); w_oihw: (Co, Cin, k, k) f32.  Returns
       y       (N, H, W, Co)     f32  pre-BN conv output of this stage
       partial (N*nb, 2, Co)     f32  per-band (sum, sum_sq) partials for this BN."""
    N, H, W, cin = x.shape
    pad = (k - 1) // 2
    co = w_oihw.shape[0]
    TH = _pick_band_rows(H, W, cin, co, k, band_rows)
    nb = H // TH

    # (Co, Cin, k, k) -> (k*k, Cin, Co) in (dy, dx) tap order, bf16 MXU operands.
    w_taps = jnp.transpose(w_oihw, (2, 3, 1, 0)).reshape(k * k, cin, co)
    w_taps = w_taps.astype(jnp.bfloat16)

    if pad:
        xin = _make_bands(x, TH, pad)
        x_spec = pl.BlockSpec((1, TH + 2 * pad, W + 2 * pad, cin),
                              lambda n, i: (n * nb + i, 0, 0, 0))
    else:  # 1x1 conv: bands are non-overlapping -> index the activation directly.
        xin = x
        x_spec = pl.BlockSpec((1, TH, W, cin), lambda n, i: (n, i, 0, 0))

    in_specs = [pl.BlockSpec((2, cin), lambda n, i: (0, 0)),              # resident
                x_spec,
                pl.BlockSpec((k * k, cin, co), lambda n, i: (0, 0, 0))]   # resident

    out_shape = [jax.ShapeDtypeStruct((N, H, W, co), jnp.float32),
                 jax.ShapeDtypeStruct((N * nb, 2, co), jnp.float32)]
    out_specs = [pl.BlockSpec((1, TH, W, co), lambda n, i: (n, i, 0, 0)),
                 pl.BlockSpec((1, 2, co), lambda n, i: (n * nb + i, 0, 0))]

    y, partial = pl.pallas_call(
        functools.partial(_conv_band_kernel, k=k, pad=pad, TH=TH, H=H, W=W),
        grid=(N, nb),
        in_specs=in_specs,
        out_specs=out_specs,
        out_shape=out_shape,
        compiler_params=pltpu.CompilerParams(
            dimension_semantics=("parallel", "parallel"),
            vmem_limit_bytes=_VMEM_LIMIT_BYTES),
    )(aff, xin, w_taps)
    return y, partial


def finalize_stage(y, aff, x, skip_w=None, skip_b=None, band_rows=None):
    """out = (y * scale + shift) + skip(x), tiled over (batch, row-band)."""
    N, H, W, co = y.shape
    cin = x.shape[-1]
    skip_is_conv = skip_w is not None
    TH = _pick_band_rows(H, W, max(cin, co), co, 1, band_rows)
    nb = H // TH

    in_specs = [pl.BlockSpec((2, co), lambda n, i: (0, 0)),
                pl.BlockSpec((1, TH, W, co), lambda n, i: (n, i, 0, 0)),
                pl.BlockSpec((1, TH, W, cin), lambda n, i: (n, i, 0, 0))]
    inputs = [aff, y, x]
    if skip_is_conv:
        in_specs += [pl.BlockSpec((cin, co), lambda n, i: (0, 0)),
                     pl.BlockSpec((1, co), lambda n, i: (0, 0))]
        inputs += [skip_w, skip_b]

    return pl.pallas_call(
        functools.partial(_finalize_band_kernel, skip_is_conv=skip_is_conv, TH=TH, W=W),
        grid=(N, nb),
        in_specs=in_specs,
        out_specs=pl.BlockSpec((1, TH, W, co), lambda n, i: (n, i, 0, 0)),
        out_shape=jax.ShapeDtypeStruct((N, H, W, co), jnp.float32),
        compiler_params=pltpu.CompilerParams(
            dimension_semantics=("parallel", "parallel"),
            vmem_limit_bytes=_VMEM_LIMIT_BYTES),
    )(*inputs)


# ---------------------------------------------------------------------------
# Parameters & forward pass
# ---------------------------------------------------------------------------
def init_params(key, in_planes, out_planes, architecture):
    if architecture not in ("encoder", "decoder"):
        raise ValueError('"architecture" can only have either "decoder" or "encoder" value')
    hidden = out_planes // 4
    ksizes = (3, 3, 3, 1) if architecture == "encoder" else (1, 3, 3, 3)
    chans = [(in_planes, hidden), (hidden, hidden), (hidden, hidden), (hidden, out_planes)]

    params = {"ksizes": ksizes, "in_planes": in_planes, "out_planes": out_planes,
              "w": [], "b": [], "gamma": [], "beta": []}
    for (ci, co), k in zip(chans, ksizes):
        key, k1, k2, k3, k4 = jax.random.split(key, 5)
        std = 1.0 / (ci * k * k) ** 0.5
        params["w"].append(jax.random.normal(k1, (co, ci, k, k), jnp.float32) * std)
        params["b"].append(0.1 * jax.random.normal(k2, (co,), jnp.float32))
        params["gamma"].append(1.0 + 0.1 * jax.random.normal(k3, (co,), jnp.float32))
        params["beta"].append(0.1 * jax.random.normal(k4, (co,), jnp.float32))

    if in_planes != out_planes:
        # TODO(synk): PyTorch Bottleneck.forward() creates a *fresh randomly initialized*
        # 1x1 skip conv on every call; we use one fixed deterministic skip conv instead
        # (the per-call nondeterminism has no clean equivalent).
        key, k1 = jax.random.split(key)
        params["skip_w"] = jax.random.normal(
            k1, (out_planes, in_planes, 1, 1), jnp.float32) / in_planes ** 0.5
        params["skip_b"] = jnp.zeros((out_planes,), jnp.float32)
    return params


def bottleneck_forward(x_nchw, params, band_rows=None):
    """NCHW in / NCHW out, matching the PyTorch module's forward()."""
    N, cin, H, W = x_nchw.shape
    x = jnp.transpose(x_nchw, (0, 2, 3, 1)).astype(jnp.float32)   # NHWC
    M = N * H * W

    # (scale, shift) applied to the *input* of the next conv stage.  Stage 1 consumes
    # the raw activation (module applies only ReLU), so start from the identity affine.
    aff = jnp.concatenate([jnp.ones((1, cin), jnp.float32),
                           jnp.zeros((1, cin), jnp.float32)], axis=0)
    cur = x
    for i, k in enumerate(params["ksizes"]):
        y, partial = conv_stage(cur, aff, params["w"][i], k=k, band_rows=band_rows)
        # Two-pass BN: reduce the per-band partials, then fold gamma/beta/mean/var into
        # a per-channel affine consumed by the next kernel.  (Single-pass E[x^2]-E[x]^2
        # in f32 -- fine at these scales, revisit if tolerances tighten at huge M.)
        stats = jnp.sum(partial, axis=0)                          # (2, Co)
        mean = stats[0:1, :] / M
        var = stats[1:2, :] / M - mean * mean                     # biased variance
        scale = params["gamma"][i].reshape(1, -1) * lax.rsqrt(var + EPS)
        shift = params["beta"][i].reshape(1, -1) - scale * mean
        aff = jnp.concatenate([scale, shift], axis=0)             # (2, Co)
        cur = y

    if params["in_planes"] != params["out_planes"]:
        skip_w = jnp.transpose(params["skip_w"][:, :, 0, 0], (1, 0)).astype(jnp.bfloat16)
        out = finalize_stage(cur, aff, x, skip_w, params["skip_b"].reshape(1, -1),
                             band_rows=band_rows)
    else:
        out = finalize_stage(cur, aff, x, band_rows=band_rows)

    return jnp.transpose(out, (0, 3, 1, 2))                       # back to NCHW


# ---------------------------------------------------------------------------
# Pure-JAX references (NCHW, lax.conv) for correctness checks
# ---------------------------------------------------------------------------
def reference_forward(x, params, operand_dtype=jnp.float32):
    """operand_dtype=jnp.bfloat16 mirrors the kernel's MXU operand precision
    (bf16 inputs, f32 accumulation); jnp.float32 gives the exact module numerics."""
    def conv(h, w, b, k):
        pad = (k - 1) // 2
        y = lax.conv_general_dilated(
            h.astype(operand_dtype), w.astype(operand_dtype), (1, 1),
            [(pad, pad), (pad, pad)],
            dimension_numbers=("NCHW", "OIHW", "NCHW"),
            preferred_element_type=jnp.float32,
            precision=lax.Precision.HIGHEST)
        return y + b.reshape(1, -1, 1, 1)

    def bn(y, g, be):
        mean = jnp.mean(y, axis=(0, 2, 3), keepdims=True)
        var = jnp.mean(jnp.square(y - mean), axis=(0, 2, 3), keepdims=True)
        return (g.reshape(1, -1, 1, 1) * (y - mean) * lax.rsqrt(var + EPS)
                + be.reshape(1, -1, 1, 1))

    h = x.astype(jnp.float32)
    for i, k in enumerate(params["ksizes"]):
        h = jnp.maximum(h, 0.0)
        h = conv(h, params["w"][i], params["b"][i], k)
        h = bn(h, params["gamma"][i], params["beta"][i])

    if params["in_planes"] != params["out_planes"]:
        skip = conv(x.astype(jnp.float32), params["skip_w"], params["skip_b"], 1)
    else:
        skip = x.astype(jnp.float32)
    return skip + h


if __name__ == "__main__":
    key = jax.random.PRNGKey(0)

    configs = [
        ("encoder", 8, 16),    # projection (1x1 conv) skip branch
        ("decoder", 16, 16),   # identity skip branch
    ]
    for arch, cin, cout in configs:
        key, kx, kp = jax.random.split(key, 3)
        x = jax.random.normal(kx, (2, cin, 16, 16), jnp.float32)  # NCHW like PyTorch
        params = init_params(kp, cin, cout, arch)

        ref_bf16 = reference_forward(x, params, operand_dtype=jnp.bfloat16)
        ref_f32 = reference_forward(x, params, operand_dtype=jnp.float32)

        # band_rows=None: auto band height (single band at this size, M = 256);
        # band_rows=4: forced multi-band path (exercises cross-band halo handling).
        for band_rows in (None, 4):
            fwd = jax.jit(lambda v, p=params, br=band_rows: bottleneck_forward(v, p, br))
            out = jax.block_until_ready(fwd(x))
            assert out.shape == (2, cout, 16, 16), out.shape

            # Implementation check: reference with matched MXU operand precision (bf16
            # operands, f32 accumulation -- the native TPU matmul path used by the kernel).
            err_m = float(jnp.max(jnp.abs(out - ref_bf16)))
            assert jnp.allclose(out, ref_bf16, atol=5e-3, rtol=5e-3), (arch, band_rows, err_m)

            # Precision sanity bound against the exact f32 module semantics (bounds the
            # deliberate bf16-operand rounding accumulated through 4 BN stages).
            err_e = float(jnp.max(jnp.abs(out - ref_f32)))
            assert jnp.allclose(out, ref_f32, atol=8e-2, rtol=8e-2), (arch, band_rows, err_e)

    print("KERNEL_OK")
</pallas_src>

<mosaic_0001>
module attributes {stable_mosaic.version = 11 : i64} {
  func.func @_conv_band_kernel(%arg0: i32, %arg1: i32, %arg2: memref<2x8xf32, #tpu.memory_space<vmem>>, %arg3: memref<1x18x18x8xf32, #tpu.memory_space<vmem>>, %arg4: memref<9x8x4xbf16, #tpu.memory_space<vmem>>, %arg5: memref<1x16x16x4xf32, #tpu.memory_space<vmem>>, %arg6: memref<1x2x4xf32, #tpu.memory_space<vmem>>) attributes {dimension_semantics = [#tpu.dimension_semantics<parallel>, #tpu.dimension_semantics<parallel>], iteration_bounds = array<i64: 2, 1>, scalar_prefetch = 0 : i64, scratch_operands = 0 : i64, tpu.core_type = #tpu.core_type<tc>, window_params = [{pipeline_mode = #tpu.pipeline_mode<synchronous>, transform_indices = @transform_0, window_bounds = array<i64: 2, 8>}, {transform_indices = @transform_1, window_bounds = array<i64: 1, 18, 18, 8>}, {pipeline_mode = #tpu.pipeline_mode<synchronous>, transform_indices = @transform_2, window_bounds = array<i64: 9, 8, 4>}, {transform_indices = @transform_3, window_bounds = array<i64: 1, 16, 16, 4>}, {transform_indices = @transform_4, window_bounds = array<i64: 1, 2, 4>}]} {
    %c0 = arith.constant 0 : index
    %c0_0 = arith.constant 0 : index
    %0 = vector.load %arg2[%c0, %c0_0] : memref<2x8xf32, #tpu.memory_space<vmem>>, vector<1x8xf32>
    %c1 = arith.constant 1 : index
    %c0_1 = arith.constant 0 : index
    %1 = vector.load %arg2[%c1, %c0_1] : memref<2x8xf32, #tpu.memory_space<vmem>>, vector<1x8xf32>
    %c0_2 = arith.constant 0 : index
    %c0_3 = arith.constant 0 : index
    %c0_4 = arith.constant 0 : index
    %c0_5 = arith.constant 0 : index
    %2 = vector.load %arg3[%c0_2, %c0_3, %c0_4, %c0_5] : memref<1x18x18x8xf32, #tpu.memory_space<vmem>>, vector<1x18x18x8xf32>
    %3 = vector.shape_cast %2 : vector<1x18x18x8xf32> to vector<18x18x8xf32>
    %4 = vector.shape_cast %0 : vector<1x8xf32> to vector<1x1x8xf32>
    %5 = vector.broadcast %4 : vector<1x1x8xf32> to vector<18x18x8xf32>
    %6 = arith.mulf %3, %5 : vector<18x18x8xf32>
    %7 = vector.shape_cast %1 : vector<1x8xf32> to vector<1x1x8xf32>
    %8 = vector.broadcast %7 : vector<1x1x8xf32> to vector<18x18x8xf32>
    %9 = arith.addf %6, %8 : vector<18x18x8xf32>
    %cst = arith.constant 0.000000e+00 : f32
    %10 = vector.broadcast %cst : f32 to vector<18x18x8xf32>
    %11 = arith.maximumf %9, %10 : vector<18x18x8xf32>
    %12 = tpu.iota {dimensions = array<i32: 1>} : vector<1x18x1xi32>
    %13 = tpu.iota {dimensions = array<i32: 0>} : vector<18x1x1xi32>
    %c16_i32 = arith.constant 16 : i32
    %14 = arith.muli %arg1, %c16_i32 : i32
    %15 = vector.broadcast %14 : i32 to vector<18x1x1xi32>
    %16 = arith.addi %13, %15 : vector<18x1x1xi32>
    %c1_i32 = arith.constant 1 : i32
    %17 = vector.broadcast %c1_i32 : i32 to vector<1x18x1xi32>
    %18 = arith.cmpi sge, %12, %17 : vector<1x18x1xi32>
    %c17_i32 = arith.constant 17 : i32
    %19 = vector.broadcast %c17_i32 : i32 to vector<1x18x1xi32>
    %20 = arith.cmpi slt, %12, %19 : vector<1x18x1xi32>
    %21 = arith.andi %18, %20 : vector<1x18x1xi1>
    %c1_i32_6 = arith.constant 1 : i32
    %22 = vector.broadcast %c1_i32_6 : i32 to vector<18x1x1xi32>
    %23 = arith.cmpi sge, %16, %22 : vector<18x1x1xi32>
    %24 = vector.broadcast %21 : vector<1x18x1xi1> to vector<18x18x1xi1>
    %25 = vector.broadcast %23 : vector<18x1x1xi1> to vector<18x18x1xi1>
    %26 = arith.andi %24, %25 : vector<18x18x1xi1>
    %c17_i32_7 = arith.constant 17 : i32
    %27 = vector.broadcast %c17_i32_7 : i32 to vector<18x1x1xi32>
    %28 = arith.cmpi slt, %16, %27 : vector<18x1x1xi32>
    %29 = vector.broadcast %28 : vector<18x1x1xi1> to vector<18x18x1xi1>
    %30 = arith.andi %26, %29 : vector<18x18x1xi1>
    %cst_8 = arith.constant 0.000000e+00 : f32
    %31 = vector.shape_cast %30 : vector<18x18x1xi1> to vector<18x18x1xi1>
    %32 = vector.broadcast %31 : vector<18x18x1xi1> to vector<18x18x8xi1>
    %33 = vector.broadcast %cst_8 : f32 to vector<18x18x8xf32>
    %34 = arith.select %32, %11, %33 : vector<18x18x8xi1>, vector<18x18x8xf32>
    %cst_9 = arith.constant 0.000000e+00 : f32
    %35 = vector.broadcast %cst_9 : f32 to vector<256x4xf32>
    %36 = vector.extract_strided_slice %34 {offsets = [0, 0, 0], sizes = [16, 18, 8], strides = [1, 1, 1]} : vector<18x18x8xf32> to vector<16x18x8xf32>
    %37 = vector.extract_strided_slice %36 {offsets = [0, 0, 0], sizes = [16, 16, 8], strides = [1, 1, 1]} : vector<16x18x8xf32> to vector<16x16x8xf32>
    %38 = vector.shape_cast %37 : vector<16x16x8xf32> to vector<256x8xf32>
    %39 = arith.truncf %38 : vector<256x8xf32> to vector<256x8xbf16>
    %c0_10 = arith.constant 0 : index
    %c0_11 = arith.constant 0 : index
    %c0_12 = arith.constant 0 : index
    %40 = vector.load %arg4[%c0_10, %c0_11, %c0_12] : memref<9x8x4xbf16, #tpu.memory_space<vmem>>, vector<1x8x4xbf16>
    %41 = vector.shape_cast %40 : vector<1x8x4xbf16> to vector<8x4xbf16>
    %cst_13 = arith.constant dense<0.000000e+00> : vector<256x4xf32>
    %42 = tpu.matmul %39, %41, %cst_13 {dimension_numbers = #tpu.dot_dimension_numbers<[1], [0], [0], [1], [0, 0, 1, 1], [], []>} : vector<256x8xbf16>, vector<8x4xbf16>, vector<256x4xf32> -> vector<256x4xf32>
    %43 = arith.addf %35, %42 : vector<256x4xf32>
    %44 = vector.extract_strided_slice %36 {offsets = [0, 1, 0], sizes = [16, 16, 8], strides = [1, 1, 1]} : vector<16x18x8xf32> to vector<16x16x8xf32>
    %45 = vector.shape_cast %44 : vector<16x16x8xf32> to vector<256x8xf32>
    %46 = arith.truncf %45 : vector<256x8xf32> to vector<256x8xbf16>
    %c1_14 = arith.constant 1 : index
    %c0_15 = arith.constant 0 : index
    %c0_16 = arith.constant 0 : index
    %47 = vector.load %arg4[%c1_14, %c0_15, %c0_16] : memref<9x8x4xbf16, #tpu.memory_space<vmem>>, vector<1x8x4xbf16>
    %48 = vector.shape_cast %47 : vector<1x8x4xbf16> to vector<8x4xbf16>
    %cst_17 = arith.constant dense<0.000000e+00> : vector<256x4xf32>
    %49 = tpu.matmul %46, %48, %cst_17 {dimension_numbers = #tpu.dot_dimension_numbers<[1], [0], [0], [1], [0, 0, 1, 1], [], []>} : vector<256x8xbf16>, vector<8x4xbf16>, vector<256x4xf32> -> vector<256x4xf32>
    %50 = arith.addf %43, %49 : vector<256x4xf32>
    %51 = vector.extract_strided_slice %36 {offsets = [0, 2, 0], sizes = [16, 16, 8], strides = [1, 1, 1]} : vector<16x18x8xf32> to vector<16x16x8xf32>
    %52 = vector.shape_cast %51 : vector<16x16x8xf32> to vector<256x8xf32>
    %53 = arith.truncf %52 : vector<256x8xf32> to vector<256x8xbf16>
    %c2 = arith.constant 2 : index
    %c0_18 = arith.constant 0 : index
    %c0_19 = arith.constant 0 : index
    %54 = vector.load %arg4[%c2, %c0_18, %c0_19] : memref<9x8x4xbf16, #tpu.memory_space<vmem>>, vector<1x8x4xbf16>
    %55 = vector.shape_cast %54 : vector<1x8x4xbf16> to vector<8x4xbf16>
    %cst_20 = arith.constant dense<0.000000e+00> : vector<256x4xf32>
    %56 = tpu.matmul %53, %55, %cst_20 {dimension_numbers = #tpu.dot_dimension_numbers<[1], [0], [0], [1], [0, 0, 1, 1], [], []>} : vector<256x8xbf16>, vector<8x4xbf16>, vector<256x4xf32> -> vector<256x4xf32>
    %57 = arith.addf %50, %56 : vector<256x4xf32>
    %58 = vector.extract_strided_slice %34 {offsets = [1, 0, 0], sizes = [16, 18, 8], strides = [1, 1, 1]} : vector<18x18x8xf32> to vector<16x18x8xf32>
    %59 = vector.extract_strided_slice %58 {offsets = [0, 0, 0], sizes = [16, 16, 8], strides = [1, 1, 1]} : vector<16x18x8xf32> to vector<16x16x8xf32>
    %60 = vector.shape_cast %59 : vector<16x16x8xf32> to vector<256x8xf32>
    %61 = arith.truncf %60 : vector<256x8xf32> to vector<256x8xbf16>
    %c3 = arith.constant 3 : index
    %c0_21 = arith.constant 0 : index
    %c0_22 = arith.constant 0 : index
    %62 = vector.load %arg4[%c3, %c0_21, %c0_22] : memref<9x8x4xbf16, #tpu.memory_space<vmem>>, vector<1x8x4xbf16>
    %63 = vector.shape_cast %62 : vector<1x8x4xbf16> to vector<8x4xbf16>
    %cst_23 = arith.constant dense<0.000000e+00> : vector<256x4xf32>
    %64 = tpu.matmul %61, %63, %cst_23 {dimension_numbers = #tpu.dot_dimension_numbers<[1], [0], [0], [1], [0, 0, 1, 1], [], []>} : vector<256x8xbf16>, vector<8x4xbf16>, vector<256x4xf32> -> vector<256x4xf32>
    %65 = arith.addf %57, %64 : vector<256x4xf32>
    %66 = vector.extract_strided_slice %58 {offsets = [0, 1, 0], sizes = [16, 16, 8], strides = [1, 1, 1]} : vector<16x18x8xf32> to vector<16x16x8xf32>
    %67 = vector.shape_cast %66 : vector<16x16x8xf32> to vector<256x8xf32>
    %68 = arith.truncf %67 : vector<256x8xf32> to vector<256x8xbf16>
    %c4 = arith.constant 4 : index
    %c0_24 = arith.constant 0 : index
    %c0_25 = arith.constant 0 : index
    %69 = vector.load %arg4[%c4, %c0_24, %c0_25] : memref<9x8x4xbf16, #tpu.memory_space<vmem>>, vector<1x8x4xbf16>
    %70 = vector.shape_cast %69 : vector<1x8x4xbf16> to vector<8x4xbf16>
    %cst_26 = arith.constant dense<0.000000e+00> : vector<256x4xf32>
    %71 = tpu.matmul %68, %70, %cst_26 {dimension_numbers = #tpu.dot_dimension_numbers<[1], [0], [0], [1], [0, 0, 1, 1], [], []>} : vector<256x8xbf16>, vector<8x4xbf16>, vector<256x4xf32> -> vector<256x4xf32>
    %72 = arith.addf %65, %71 : vector<256x4xf32>
    %73 = vector.extract_strided_slice %58 {offsets = [0, 2, 0], sizes = [16, 16, 8], strides = [1, 1, 1]} : vector<16x18x8xf32> to vector<16x16x8xf32>
    %74 = vector.shape_cast %73 : vector<16x16x8xf32> to vector<256x8xf32>
    %75 = arith.truncf %74 : vector<256x8xf32> to vector<256x8xbf16>
    %c5 = arith.constant 5 : index
    %c0_27 = arith.constant 0 : index
    %c0_28 = arith.constant 0 : index
    %76 = vector.load %arg4[%c5, %c0_27, %c0_28] : memref<9x8x4xbf16, #tpu.memory_space<vmem>>, vector<1x8x4xbf16>
    %77 = vector.shape_cast %76 : vector<1x8x4xbf16> to vector<8x4xbf16>
    %cst_29 = arith.constant dense<0.000000e+00> : vector<256x4xf32>
    %78 = tpu.matmul %75, %77, %cst_29 {dimension_numbers = #tpu.dot_dimension_numbers<[1], [0], [0], [1], [0, 0, 1, 1], [], []>} : vector<256x8xbf16>, vector<8x4xbf16>, vector<256x4xf32> -> vector<256x4xf32>
    %79 = arith.addf %72, %78 : vector<256x4xf32>
    %80 = vector.extract_strided_slice %34 {offsets = [2, 0, 0], sizes = [16, 18, 8], strides = [1, 1, 1]} : vector<18x18x8xf32> to vector<16x18x8xf32>
    %81 = vector.extract_strided_slice %80 {offsets = [0, 0, 0], sizes = [16, 16, 8], strides = [1, 1, 1]} : vector<16x18x8xf32> to vector<16x16x8xf32>
    %82 = vector.shape_cast %81 : vector<16x16x8xf32> to vector<256x8xf32>
    %83 = arith.truncf %82 : vector<256x8xf32> to vector<256x8xbf16>
    %c6 = arith.constant 6 : index
    %c0_30 = arith.constant 0 : index
    %c0_31 = arith.constant 0 : index
    %84 = vector.load %arg4[%c6, %c0_30, %c0_31] : memref<9x8x4xbf16, #tpu.memory_space<vmem>>, vector<1x8x4xbf16>
    %85 = vector.shape_cast %84 : vector<1x8x4xbf16> to vector<8x4xbf16>
    %cst_32 = arith.constant dense<0.000000e+00> : vector<256x4xf32>
    %86 = tpu.matmul %83, %85, %cst_32 {dimension_numbers = #tpu.dot_dimension_numbers<[1], [0], [0], [1], [0, 0, 1, 1], [], []>} : vector<256x8xbf16>, vector<8x4xbf16>, vector<256x4xf32> -> vector<256x4xf32>
    %87 = arith.addf %79, %86 : vector<256x4xf32>
    %88 = vector.extract_strided_slice %80 {offsets = [0, 1, 0], sizes = [16, 16, 8], strides = [1, 1, 1]} : vector<16x18x8xf32> to vector<16x16x8xf32>
    %89 = vector.shape_cast %88 : vector<16x16x8xf32> to vector<256x8xf32>
    %90 = arith.truncf %89 : vector<256x8xf32> to vector<256x8xbf16>
    %c7 = arith.constant 7 : index
    %c0_33 = arith.constant 0 : index
    %c0_34 = arith.constant 0 : index
    %91 = vector.load %arg4[%c7, %c0_33, %c0_34] : memref<9x8x4xbf16, #tpu.memory_space<vmem>>, vector<1x8x4xbf16>
    %92 = vector.shape_cast %91 : vector<1x8x4xbf16> to vector<8x4xbf16>
    %cst_35 = arith.constant dense<0.000000e+00> : vector<256x4xf32>
    %93 = tpu.matmul %90, %92, %cst_35 {dimension_numbers = #tpu.dot_dimension_numbers<[1], [0], [0], [1], [0, 0, 1, 1], [], []>} : vector<256x8xbf16>, vector<8x4xbf16>, vector<256x4xf32> -> vector<256x4xf32>
    %94 = arith.addf %87, %93 : vector<256x4xf32>
    %95 = vector.extract_strided_slice %80 {offsets = [0, 2, 0], sizes = [16, 16, 8], strides = [1, 1, 1]} : vector<16x18x8xf32> to vector<16x16x8xf32>
    %96 = vector.shape_cast %95 : vector<16x16x8xf32> to vector<256x8xf32>
    %97 = arith.truncf %96 : vector<256x8xf32> to vector<256x8xbf16>
    %c8 = arith.constant 8 : index
    %c0_36 = arith.constant 0 : index
    %c0_37 = arith.constant 0 : index
    %98 = vector.load %arg4[%c8, %c0_36, %c0_37] : memref<9x8x4xbf16, #tpu.memory_space<vmem>>, vector<1x8x4xbf16>
    %99 = vector.shape_cast %98 : vector<1x8x4xbf16> to vector<8x4xbf16>
    %cst_38 = arith.constant dense<0.000000e+00> : vector<256x4xf32>
    %100 = tpu.matmul %97, %99, %cst_38 {dimension_numbers = #tpu.dot_dimension_numbers<[1], [0], [0], [1], [0, 0, 1, 1], [], []>} : vector<256x8xbf16>, vector<8x4xbf16>, vector<256x4xf32> -> vector<256x4xf32>
    %101 = arith.addf %94, %100 : vector<256x4xf32>
    %102 = vector.shape_cast %101 : vector<256x4xf32> to vector<16x16x4xf32>
    %c0_39 = arith.constant 0 : index
    %c0_40 = arith.constant 0 : index
    %c0_41 = arith.constant 0 : index
    %c0_42 = arith.constant 0 : index
    %103 = vector.load %arg5[%c0_39, %c0_40, %c0_41, %c0_42] : memref<1x16x16x4xf32, #tpu.memory_space<vmem>>, vector<1x16x16x4xf32>
    %104 = vector.shape_cast %103 : vector<1x16x16x4xf32> to vector<16x16x4xf32>
    %105 = vector.shape_cast %102 : vector<16x16x4xf32> to vector<1x16x16x4xf32>
    tpu.vector_store %arg5[%c0_39, %c0_40, %c0_41, %c0_42], %105 {strides = array<i32>} : memref<1x16x16x4xf32, #tpu.memory_space<vmem>>, vector<1x16x16x4xf32>,
    %cst_43 = arith.constant dense<0.000000e+00> : vector<4xf32>
    %106 = vector.multi_reduction <add>, %101, %cst_43 [0] : vector<256x4xf32> to vector<4xf32>
    %107 = vector.shape_cast %106 : vector<4xf32> to vector<1x4xf32>
    %108 = arith.mulf %101, %101 : vector<256x4xf32>
    %cst_44 = arith.constant dense<0.000000e+00> : vector<4xf32>
    %109 = vector.multi_reduction <add>, %108, %cst_44 [0] : vector<256x4xf32> to vector<4xf32>
    %110 = vector.shape_cast %109 : vector<4xf32> to vector<1x4xf32>
    %111 = tpu.concatenate %107, %110 in 0 : vector<1x4xf32>, vector<1x4xf32> -> vector<2x4xf32>
    %c0_45 = arith.constant 0 : index
    %c0_46 = arith.constant 0 : index
    %c0_47 = arith.constant 0 : index
    %112 = vector.load %arg6[%c0_45, %c0_46, %c0_47] : memref<1x2x4xf32, #tpu.memory_space<vmem>>, vector<1x2x4xf32>
    %113 = vector.shape_cast %112 : vector<1x2x4xf32> to vector<2x4xf32>
    %114 = vector.shape_cast %111 : vector<2x4xf32> to vector<1x2x4xf32>
    tpu.vector_store %arg6[%c0_45, %c0_46, %c0_47], %114 {strides = array<i32>} : memref<1x2x4xf32, #tpu.memory_space<vmem>>, vector<1x2x4xf32>,
    return
  }
  func.func @transform_0(%arg0: i32, %arg1: i32) -> (i32, i32) {
    %c0_i32 = arith.constant 0 : i32
    %c0_i32_0 = arith.constant 0 : i32
    %c0_i32_1 = arith.constant 0 : i32
    return %c0_i32, %c0_i32_0 : i32, i32
  }
  func.func @transform_1(%arg0: i32, %arg1: i32) -> (i32, i32, i32, i32) {
    %c1_i32 = arith.constant 1 : i32
    %0 = arith.muli %arg0, %c1_i32 : i32
    %1 = arith.addi %0, %arg1 : i32
    %c0_i32 = arith.constant 0 : i32
    %c0_i32_0 = arith.constant 0 : i32
    %c0_i32_1 = arith.constant 0 : i32
    %c0_i32_2 = arith.constant 0 : i32
    return %1, %c0_i32, %c0_i32_0, %c0_i32_1 : i32, i32, i32, i32
  }
  func.func @transform_2(%arg0: i32, %arg1: i32) -> (i32, i32, i32) {
    %c0_i32 = arith.constant 0 : i32
    %c0_i32_0 = arith.constant 0 : i32
    %c0_i32_1 = arith.constant 0 : i32
    %c0_i32_2 = arith.constant 0 : i32
    return %c0_i32, %c0_i32_0, %c0_i32_1 : i32, i32, i32
  }
  func.func @transform_3(%arg0: i32, %arg1: i32) -> (i32, i32, i32, i32) {
    %c0_i32 = arith.constant 0 : i32
    %c0_i32_0 = arith.constant 0 : i32
    %c0_i32_1 = arith.constant 0 : i32
    return %arg0, %arg1, %c0_i32, %c0_i32_0 : i32, i32, i32, i32
  }
  func.func @transform_4(%arg0: i32, %arg1: i32) -> (i32, i32, i32) {
    %c1_i32 = arith.constant 1 : i32
    %0 = arith.muli %arg0, %c1_i32 : i32
    %1 = arith.addi %0, %arg1 : i32
    %c0_i32 = arith.constant 0 : i32
    %c0_i32_0 = arith.constant 0 : i32
    %c0_i32_1 = arith.constant 0 : i32
    return %1, %c0_i32, %c0_i32_0 : i32, i32, i32
  }
}

module attributes {stable_mosaic.version = 11 : i64} {
  func.func @_conv_band_kernel(%arg0: i32, %arg1: i32, %arg2: memref<2x4xf32, #tpu.memory_space<vmem>>, %arg3: memref<1x18x18x4xf32, #tpu.memory_space<vmem>>, %arg4: memref<9x4x4xbf16, #tpu.memory_space<vmem>>, %arg5: memref<1x16x16x4xf32, #tpu.memory_space<vmem>>, %arg6: memref<1x2x4xf32, #tpu.memory_space<vmem>>) attributes {dimension_semantics = [#tpu.dimension_semantics<parallel>, #tpu.dimension_semantics<parallel>], iteration_bounds = array<i64: 2, 1>, scalar_prefetch = 0 : i64, scratch_operands = 0 : i64, tpu.core_type = #tpu.core_type<tc>, window_params = [{pipeline_mode = #tpu.pipeline_mode<synchronous>, transform_indices = @transform_0, window_bounds = array<i64: 2, 4>}, {transform_indices = @transform_1, window_bounds = array<i64: 1, 18, 18, 4>}, {pipeline_mode = #tpu.pipeline_mode<synchronous>, transform_indices = @transform_2, window_bounds = array<i64: 9, 4, 4>}, {transform_indices = @transform_3, window_bounds = array<i64: 1, 16, 16, 4>}, {transform_indices = @transform_4, window_bounds = array<i64: 1, 2, 4>}]} {
    %c0 = arith.constant 0 : index
    %c0_0 = arith.constant 0 : index
    %0 = vector.load %arg2[%c0, %c0_0] : memref<2x4xf32, #tpu.memory_space<vmem>>, vector<1x4xf32>
    %c1 = arith.constant 1 : index
    %c0_1 = arith.constant 0 : index
    %1 = vector.load %arg2[%c1, %c0_1] : memref<2x4xf32, #tpu.memory_space<vmem>>, vector<1x4xf32>
    %c0_2 = arith.constant 0 : index
    %c0_3 = arith.constant 0 : index
    %c0_4 = arith.constant 0 : index
    %c0_5 = arith.constant 0 : index
    %2 = vector.load %arg3[%c0_2, %c0_3, %c0_4, %c0_5] : memref<1x18x18x4xf32, #tpu.memory_space<vmem>>, vector<1x18x18x4xf32>
    %3 = vector.shape_cast %2 : vector<1x18x18x4xf32> to vector<18x18x4xf32>
    %4 = vector.shape_cast %0 : vector<1x4xf32> to vector<1x1x4xf32>
    %5 = vector.broadcast %4 : vector<1x1x4xf32> to vector<18x18x4xf32>
    %6 = arith.mulf %3, %5 : vector<18x18x4xf32>
    %7 = vector.shape_cast %1 : vector<1x4xf32> to vector<1x1x4xf32>
    %8 = vector.broadcast %7 : vector<1x1x4xf32> to vector<18x18x4xf32>
    %9 = arith.addf %6, %8 : vector<18x18x4xf32>
    %cst = arith.constant 0.000000e+00 : f32
    %10 = vector.broadcast %cst : f32 to vector<18x18x4xf32>
    %11 = arith.maximumf %9, %10 : vector<18x18x4xf32>
    %12 = tpu.iota {dimensions = array<i32: 1>} : vector<1x18x1xi32>
    %13 = tpu.iota {dimensions = array<i32: 0>} : vector<18x1x1xi32>
    %c16_i32 = arith.constant 16 : i32
    %14 = arith.muli %arg1, %c16_i32 : i32
    %15 = vector.broadcast %14 : i32 to vector<18x1x1xi32>
    %16 = arith.addi %13, %15 : vector<18x1x1xi32>
    %c1_i32 = arith.constant 1 : i32
    %17 = vector.broadcast %c1_i32 : i32 to vector<1x18x1xi32>
    %18 = arith.cmpi sge, %12, %17 : vector<1x18x1xi32>
    %c17_i32 = arith.constant 17 : i32
    %19 = vector.broadcast %c17_i32 : i32 to vector<1x18x1xi32>
    %20 = arith.cmpi slt, %12, %19 : vector<1x18x1xi32>
    %21 = arith.andi %18, %20 : vector<1x18x1xi1>
    %c1_i32_6 = arith.constant 1 : i32
    %22 = vector.broadcast %c1_i32_6 : i32 to vector<18x1x1xi32>
    %23 = arith.cmpi sge, %16, %22 : vector<18x1x1xi32>
    %24 = vector.broadcast %21 : vector<1x18x1xi1> to vector<18x18x1xi1>
    %25 = vector.broadcast %23 : vector<18x1x1xi1> to vector<18x18x1xi1>
    %26 = arith.andi %24, %25 : vector<18x18x1xi1>
    %c17_i32_7 = arith.constant 17 : i32
    %27 = vector.broadcast %c17_i32_7 : i32 to vector<18x1x1xi32>
    %28 = arith.cmpi slt, %16, %27 : vector<18x1x1xi32>
    %29 = vector.broadcast %28 : vector<18x1x1xi1> to vector<18x18x1xi1>
    %30 = arith.andi %26, %29 : vector<18x18x1xi1>
    %cst_8 = arith.constant 0.000000e+00 : f32
    %31 = vector.shape_cast %30 : vector<18x18x1xi1> to vector<18x18x1xi1>
    %32 = vector.broadcast %31 : vector<18x18x1xi1> to vector<18x18x4xi1>
    %33 = vector.broadcast %cst_8 : f32 to vector<18x18x4xf32>
    %34 = arith.select %32, %11, %33 : vector<18x18x4xi1>, vector<18x18x4xf32>
    %cst_9 = arith.constant 0.000000e+00 : f32
    %35 = vector.broadcast %cst_9 : f32 to vector<256x4xf32>
    %36 = vector.extract_strided_slice %34 {offsets = [0, 0, 0], sizes = [16, 18, 4], strides = [1, 1, 1]} : vector<18x18x4xf32> to vector<16x18x4xf32>
    %37 = vector.extract_strided_slice %36 {offsets = [0, 0, 0], sizes = [16, 16, 4], strides = [1, 1, 1]} : vector<16x18x4xf32> to vector<16x16x4xf32>
    %38 = vector.shape_cast %37 : vector<16x16x4xf32> to vector<256x4xf32>
    %39 = arith.truncf %38 : vector<256x4xf32> to vector<256x4xbf16>
    %c0_10 = arith.constant 0 : index
    %c0_11 = arith.constant 0 : index
    %c0_12 = arith.constant 0 : index
    %40 = vector.load %arg4[%c0_10, %c0_11, %c0_12] : memref<9x4x4xbf16, #tpu.memory_space<vmem>>, vector<1x4x4xbf16>
    %41 = vector.shape_cast %40 : vector<1x4x4xbf16> to vector<4x4xbf16>
    %cst_13 = arith.constant dense<0.000000e+00> : vector<256x4xf32>
    %42 = tpu.matmul %39, %41, %cst_13 {dimension_numbers = #tpu.dot_dimension_numbers<[1], [0], [0], [1], [0, 0, 1, 1], [], []>} : vector<256x4xbf16>, vector<4x4xbf16>, vector<256x4xf32> -> vector<256x4xf32>
    %43 = arith.addf %35, %42 : vector<256x4xf32>
    %44 = vector.extract_strided_slice %36 {offsets = [0, 1, 0], sizes = [16, 16, 4], strides = [1, 1, 1]} : vector<16x18x4xf32> to vector<16x16x4xf32>
    %45 = vector.shape_cast %44 : vector<16x16x4xf32> to vector<256x4xf32>
    %46 = arith.truncf %45 : vector<256x4xf32> to vector<256x4xbf16>
    %c1_14 = arith.constant 1 : index
    %c0_15 = arith.constant 0 : index
    %c0_16 = arith.constant 0 : index
    %47 = vector.load %arg4[%c1_14, %c0_15, %c0_16] : memref<9x4x4xbf16, #tpu.memory_space<vmem>>, vector<1x4x4xbf16>
    %48 = vector.shape_cast %47 : vector<1x4x4xbf16> to vector<4x4xbf16>
    %cst_17 = arith.constant dense<0.000000e+00> : vector<256x4xf32>
    %49 = tpu.matmul %46, %48, %cst_17 {dimension_numbers = #tpu.dot_dimension_numbers<[1], [0], [0], [1], [0, 0, 1, 1], [], []>} : vector<256x4xbf16>, vector<4x4xbf16>, vector<256x4xf32> -> vector<256x4xf32>
    %50 = arith.addf %43, %49 : vector<256x4xf32>
    %51 = vector.extract_strided_slice %36 {offsets = [0, 2, 0], sizes = [16, 16, 4], strides = [1, 1, 1]} : vector<16x18x4xf32> to vector<16x16x4xf32>
    %52 = vector.shape_cast %51 : vector<16x16x4xf32> to vector<256x4xf32>
    %53 = arith.truncf %52 : vector<256x4xf32> to vector<256x4xbf16>
    %c2 = arith.constant 2 : index
    %c0_18 = arith.constant 0 : index
    %c0_19 = arith.constant 0 : index
    %54 = vector.load %arg4[%c2, %c0_18, %c0_19] : memref<9x4x4xbf16, #tpu.memory_space<vmem>>, vector<1x4x4xbf16>
    %55 = vector.shape_cast %54 : vector<1x4x4xbf16> to vector<4x4xbf16>
    %cst_20 = arith.constant dense<0.000000e+00> : vector<256x4xf32>
    %56 = tpu.matmul %53, %55, %cst_20 {dimension_numbers = #tpu.dot_dimension_numbers<[1], [0], [0], [1], [0, 0, 1, 1], [], []>} : vector<256x4xbf16>, vector<4x4xbf16>, vector<256x4xf32> -> vector<256x4xf32>
    %57 = arith.addf %50, %56 : vector<256x4xf32>
    %58 = vector.extract_strided_slice %34 {offsets = [1, 0, 0], sizes = [16, 18, 4], strides = [1, 1, 1]} : vector<18x18x4xf32> to vector<16x18x4xf32>
    %59 = vector.extract_strided_slice %58 {offsets = [0, 0, 0], sizes = [16, 16, 4], strides = [1, 1, 1]} : vector<16x18x4xf32> to vector<16x16x4xf32>
    %60 = vector.shape_cast %59 : vector<16x16x4xf32> to vector<256x4xf32>
    %61 = arith.truncf %60 : vector<256x4xf32> to vector<256x4xbf16>
    %c3 = arith.constant 3 : index
    %c0_21 = arith.constant 0 : index
    %c0_22 = arith.constant 0 : index
    %62 = vector.load %arg4[%c3, %c0_21, %c0_22] : memref<9x4x4xbf16, #tpu.memory_space<vmem>>, vector<1x4x4xbf16>
    %63 = vector.shape_cast %62 : vector<1x4x4xbf16> to vector<4x4xbf16>
    %cst_23 = arith.constant dense<0.000000e+00> : vector<256x4xf32>
    %64 = tpu.matmul %61, %63, %cst_23 {dimension_numbers = #tpu.dot_dimension_numbers<[1], [0], [0], [1], [0, 0, 1, 1], [], []>} : vector<256x4xbf16>, vector<4x4xbf16>, vector<256x4xf32> -> vector<256x4xf32>
    %65 = arith.addf %57, %64 : vector<256x4xf32>
    %66 = vector.extract_strided_slice %58 {offsets = [0, 1, 0], sizes = [16, 16, 4], strides = [1, 1, 1]} : vector<16x18x4xf32> to vector<16x16x4xf32>
    %67 = vector.shape_cast %66 : vector<16x16x4xf32> to vector<256x4xf32>
    %68 = arith.truncf %67 : vector<256x4xf32> to vector<256x4xbf16>
    %c4 = arith.constant 4 : index
    %c0_24 = arith.constant 0 : index
    %c0_25 = arith.constant 0 : index
    %69 = vector.load %arg4[%c4, %c0_24, %c0_25] : memref<9x4x4xbf16, #tpu.memory_space<vmem>>, vector<1x4x4xbf16>
    %70 = vector.shape_cast %69 : vector<1x4x4xbf16> to vector<4x4xbf16>
    %cst_26 = arith.constant dense<0.000000e+00> : vector<256x4xf32>
    %71 = tpu.matmul %68, %70, %cst_26 {dimension_numbers = #tpu.dot_dimension_numbers<[1], [0], [0], [1], [0, 0, 1, 1], [], []>} : vector<256x4xbf16>, vector<4x4xbf16>, vector<256x4xf32> -> vector<256x4xf32>
    %72 = arith.addf %65, %71 : vector<256x4xf32>
    %73 = vector.extract_strided_slice %58 {offsets = [0, 2, 0], sizes = [16, 16, 4], strides = [1, 1, 1]} : vector<16x18x4xf32> to vector<16x16x4xf32>
    %74 = vector.shape_cast %73 : vector<16x16x4xf32> to vector<256x4xf32>
    %75 = arith.truncf %74 : vector<256x4xf32> to vector<256x4xbf16>
    %c5 = arith.constant 5 : index
    %c0_27 = arith.constant 0 : index
    %c0_28 = arith.constant 0 : index
    %76 = vector.load %arg4[%c5, %c0_27, %c0_28] : memref<9x4x4xbf16, #tpu.memory_space<vmem>>, vector<1x4x4xbf16>
    %77 = vector.shape_cast %76 : vector<1x4x4xbf16> to vector<4x4xbf16>
    %cst_29 = arith.constant dense<0.000000e+00> : vector<256x4xf32>
    %78 = tpu.matmul %75, %77, %cst_29 {dimension_numbers = #tpu.dot_dimension_numbers<[1], [0], [0], [1], [0, 0, 1, 1], [], []>} : vector<256x4xbf16>, vector<4x4xbf16>, vector<256x4xf32> -> vector<256x4xf32>
    %79 = arith.addf %72, %78 : vector<256x4xf32>
    %80 = vector.extract_strided_slice %34 {offsets = [2, 0, 0], sizes = [16, 18, 4], strides = [1, 1, 1]} : vector<18x18x4xf32> to vector<16x18x4xf32>
    %81 = vector.extract_strided_slice %80 {offsets = [0, 0, 0], sizes = [16, 16, 4], strides = [1, 1, 1]} : vector<16x18x4xf32> to vector<16x16x4xf32>
    %82 = vector.shape_cast %81 : vector<16x16x4xf32> to vector<256x4xf32>
    %83 = arith.truncf %82 : vector<256x4xf32> to vector<256x4xbf16>
    %c6 = arith.constant 6 : index
    %c0_30 = arith.constant 0 : index
    %c0_31 = arith.constant 0 : index
    %84 = vector.load %arg4[%c6, %c0_30, %c0_31] : memref<9x4x4xbf16, #tpu.memory_space<vmem>>, vector<1x4x4xbf16>
    %85 = vector.shape_cast %84 : vector<1x4x4xbf16> to vector<4x4xbf16>
    %cst_32 = arith.constant dense<0.000000e+00> : vector<256x4xf32>
    %86 = tpu.matmul %83, %85, %cst_32 {dimension_numbers = #tpu.dot_dimension_numbers<[1], [0], [0], [1], [0, 0, 1, 1], [], []>} : vector<256x4xbf16>, vector<4x4xbf16>, vector<256x4xf32> -> vector<256x4xf32>
    %87 = arith.addf %79, %86 : vector<256x4xf32>
    %88 = vector.extract_strided_slice %80 {offsets = [0, 1, 0], sizes = [16, 16, 4], strides = [1, 1, 1]} : vector<16x18x4xf32> to vector<16x16x4xf32>
    %89 = vector.shape_cast %88 : vector<16x16x4xf32> to vector<256x4xf32>
    %90 = arith.truncf %89 : vector<256x4xf32> to vector<256x4xbf16>
    %c7 = arith.constant 7 : index
    %c0_33 = arith.constant 0 : index
    %c0_34 = arith.constant 0 : index
    %91 = vector.load %arg4[%c7, %c0_33, %c0_34] : memref<9x4x4xbf16, #tpu.memory_space<vmem>>, vector<1x4x4xbf16>
    %92 = vector.shape_cast %91 : vector<1x4x4xbf16> to vector<4x4xbf16>
    %cst_35 = arith.constant dense<0.000000e+00> : vector<256x4xf32>
    %93 = tpu.matmul %90, %92, %cst_35 {dimension_numbers = #tpu.dot_dimension_numbers<[1], [0], [0], [1], [0, 0, 1, 1], [], []>} : vector<256x4xbf16>, vector<4x4xbf16>, vector<256x4xf32> -> vector<256x4xf32>
    %94 = arith.addf %87, %93 : vector<256x4xf32>
    %95 = vector.extract_strided_slice %80 {offsets = [0, 2, 0], sizes = [16, 16, 4], strides = [1, 1, 1]} : vector<16x18x4xf32> to vector<16x16x4xf32>
    %96 = vector.shape_cast %95 : vector<16x16x4xf32> to vector<256x4xf32>
    %97 = arith.truncf %96 : vector<256x4xf32> to vector<256x4xbf16>
    %c8 = arith.constant 8 : index
    %c0_36 = arith.constant 0 : index
    %c0_37 = arith.constant 0 : index
    %98 = vector.load %arg4[%c8, %c0_36, %c0_37] : memref<9x4x4xbf16, #tpu.memory_space<vmem>>, vector<1x4x4xbf16>
    %99 = vector.shape_cast %98 : vector<1x4x4xbf16> to vector<4x4xbf16>
    %cst_38 = arith.constant dense<0.000000e+00> : vector<256x4xf32>
    %100 = tpu.matmul %97, %99, %cst_38 {dimension_numbers = #tpu.dot_dimension_numbers<[1], [0], [0], [1], [0, 0, 1, 1], [], []>} : vector<256x4xbf16>, vector<4x4xbf16>, vector<256x4xf32> -> vector<256x4xf32>
    %101 = arith.addf %94, %100 : vector<256x4xf32>
    %102 = vector.shape_cast %101 : vector<256x4xf32> to vector<16x16x4xf32>
    %c0_39 = arith.constant 0 : index
    %c0_40 = arith.constant 0 : index
    %c0_41 = arith.constant 0 : index
    %c0_42 = arith.constant 0 : index
    %103 = vector.load %arg5[%c0_39, %c0_40, %c0_41, %c0_42] : memref<1x16x16x4xf32, #tpu.memory_space<vmem>>, vector<1x16x16x4xf32>
    %104 = vector.shape_cast %103 : vector<1x16x16x4xf32> to vector<16x16x4xf32>
    %105 = vector.shape_cast %102 : vector<16x16x4xf32> to vector<1x16x16x4xf32>
    tpu.vector_store %arg5[%c0_39, %c0_40, %c0_41, %c0_42], %105 {strides = array<i32>} : memref<1x16x16x4xf32, #tpu.memory_space<vmem>>, vector<1x16x16x4xf32>,
    %cst_43 = arith.constant dense<0.000000e+00> : vector<4xf32>
    %106 = vector.multi_reduction <add>, %101, %cst_43 [0] : vector<256x4xf32> to vector<4xf32>
    %107 = vector.shape_cast %106 : vector<4xf32> to vector<1x4xf32>
    %108 = arith.mulf %101, %101 : vector<256x4xf32>
    %cst_44 = arith.constant dense<0.000000e+00> : vector<4xf32>
    %109 = vector.multi_reduction <add>, %108, %cst_44 [0] : vector<256x4xf32> to vector<4xf32>
    %110 = vector.shape_cast %109 : vector<4xf32> to vector<1x4xf32>
    %111 = tpu.concatenate %107, %110 in 0 : vector<1x4xf32>, vector<1x4xf32> -> vector<2x4xf32>
    %c0_45 = arith.constant 0 : index
    %c0_46 = arith.constant 0 : index
    %c0_47 = arith.constant 0 : index
    %112 = vector.load %arg6[%c0_45, %c0_46, %c0_47] : memref<1x2x4xf32, #tpu.memory_space<vmem>>, vector<1x2x4xf32>
    %113 = vector.shape_cast %112 : vector<1x2x4xf32> to vector<2x4xf32>
    %114 = vector.shape_cast %111 : vector<2x4xf32> to vector<1x2x4xf32>
    tpu.vector_store %arg6[%c0_45, %c0_46, %c0_47], %114 {strides = array<i32>} : memref<1x2x4xf32, #tpu.memory_space<vmem>>, vector<1x2x4xf32>,
    return
  }
  func.func @transform_0(%arg0: i32, %arg1: i32) -> (i32, i32) {
    %c0_i32 = arith.constant 0 : i32
    %c0_i32_0 = arith.constant 0 : i32
    %c0_i32_1 = arith.constant 0 : i32
    return %c0_i32, %c0_i32_0 : i32, i32
  }
  func.func @transform_1(%arg0: i32, %arg1: i32) -> (i32, i32, i32, i32) {
    %c1_i32 = arith.constant 1 : i32
    %0 = arith.muli %arg0, %c1_i32 : i32
    %1 = arith.addi %0, %arg1 : i32
    %c0_i32 = arith.constant 0 : i32
    %c0_i32_0 = arith.constant 0 : i32
    %c0_i32_1 = arith.constant 0 : i32
    %c0_i32_2 = arith.constant 0 : i32
    return %1, %c0_i32, %c0_i32_0, %c0_i32_1 : i32, i32, i32, i32
  }
  func.func @transform_2(%arg0: i32, %arg1: i32) -> (i32, i32, i32) {
    %c0_i32 = arith.constant 0 : i32
    %c0_i32_0 = arith.constant 0 : i32
    %c0_i32_1 = arith.constant 0 : i32
    %c0_i32_2 = arith.constant 0 : i32
    return %c0_i32, %c0_i32_0, %c0_i32_1 : i32, i32, i32
  }
  func.func @transform_3(%arg0: i32, %arg1: i32) -> (i32, i32, i32, i32) {
    %c0_i32 = arith.constant 0 : i32
    %c0_i32_0 = arith.constant 0 : i32
    %c0_i32_1 = arith.constant 0 : i32
    return %arg0, %arg1, %c0_i32, %c0_i32_0 : i32, i32, i32, i32
  }
  func.func @transform_4(%arg0: i32, %arg1: i32) -> (i32, i32, i32) {
    %c1_i32 = arith.constant 1 : i32
    %0 = arith.muli %arg0, %c1_i32 : i32
    %1 = arith.addi %0, %arg1 : i32
    %c0_i32 = arith.constant 0 : i32
    %c0_i32_0 = arith.constant 0 : i32
    %c0_i32_1 = arith.constant 0 : i32
    return %1, %c0_i32, %c0_i32_0 : i32, i32, i32
  }
}

module attributes {stable_mosaic.version = 11 : i64} {
  func.func @_conv_band_kernel(%arg0: i32, %arg1: i32, %arg2: memref<2x4xf32, #tpu.memory_space<vmem>>, %arg3: memref<1x16x16x4xf32, #tpu.memory_space<vmem>>, %arg4: memref<1x4x16xbf16, #tpu.memory_space<vmem>>, %arg5: memref<1x16x16x16xf32, #tpu.memory_space<vmem>>, %arg6: memref<1x2x16xf32, #tpu.memory_space<vmem>>) attributes {dimension_semantics = [#tpu.dimension_semantics<parallel>, #tpu.dimension_semantics<parallel>], iteration_bounds = array<i64: 2, 1>, scalar_prefetch = 0 : i64, scratch_operands = 0 : i64, tpu.core_type = #tpu.core_type<tc>, window_params = [{pipeline_mode = #tpu.pipeline_mode<synchronous>, transform_indices = @transform_0, window_bounds = array<i64: 2, 4>}, {transform_indices = @transform_1, window_bounds = array<i64: 1, 16, 16, 4>}, {pipeline_mode = #tpu.pipeline_mode<synchronous>, transform_indices = @transform_2, window_bounds = array<i64: 1, 4, 16>}, {transform_indices = @transform_3, window_bounds = array<i64: 1, 16, 16, 16>}, {transform_indices = @transform_4, window_bounds = array<i64: 1, 2, 16>}]} {
    %c0 = arith.constant 0 : index
    %c0_0 = arith.constant 0 : index
    %0 = vector.load %arg2[%c0, %c0_0] : memref<2x4xf32, #tpu.memory_space<vmem>>, vector<1x4xf32>
    %c1 = arith.constant 1 : index
    %c0_1 = arith.constant 0 : index
    %1 = vector.load %arg2[%c1, %c0_1] : memref<2x4xf32, #tpu.memory_space<vmem>>, vector<1x4xf32>
    %c0_2 = arith.constant 0 : index
    %c0_3 = arith.constant 0 : index
    %c0_4 = arith.constant 0 : index
    %c0_5 = arith.constant 0 : index
    %2 = vector.load %arg3[%c0_2, %c0_3, %c0_4, %c0_5] : memref<1x16x16x4xf32, #tpu.memory_space<vmem>>, vector<1x16x16x4xf32>
    %3 = vector.shape_cast %2 : vector<1x16x16x4xf32> to vector<16x16x4xf32>
    %4 = vector.shape_cast %0 : vector<1x4xf32> to vector<1x1x4xf32>
    %5 = vector.broadcast %4 : vector<1x1x4xf32> to vector<16x16x4xf32>
    %6 = arith.mulf %3, %5 : vector<16x16x4xf32>
    %7 = vector.shape_cast %1 : vector<1x4xf32> to vector<1x1x4xf32>
    %8 = vector.broadcast %7 : vector<1x1x4xf32> to vector<16x16x4xf32>
    %9 = arith.addf %6, %8 : vector<16x16x4xf32>
    %cst = arith.constant 0.000000e+00 : f32
    %10 = vector.broadcast %cst : f32 to vector<16x16x4xf32>
    %11 = arith.maximumf %9, %10 : vector<16x16x4xf32>
    %12 = arith.truncf %11 : vector<16x16x4xf32> to vector<16x16x4xbf16>
    %13 = vector.shape_cast %12 : vector<16x16x4xbf16> to vector<256x4xbf16>
    %c0_6 = arith.constant 0 : index
    %c0_7 = arith.constant 0 : index
    %c0_8 = arith.constant 0 : index
    %14 = vector.load %arg4[%c0_6, %c0_7, %c0_8] : memref<1x4x16xbf16, #tpu.memory_space<vmem>>, vector<1x4x16xbf16>
    %15 = vector.shape_cast %14 : vector<1x4x16xbf16> to vector<4x16xbf16>
    %cst_9 = arith.constant dense<0.000000e+00> : vector<256x16xf32>
    %16 = tpu.matmul %13, %15, %cst_9 {dimension_numbers = #tpu.dot_dimension_numbers<[1], [0], [0], [1], [0, 0, 1, 1], [], []>} : vector<256x4xbf16>, vector<4x16xbf16>, vector<256x16xf32> -> vector<256x16xf32>
    %17 = vector.shape_cast %16 : vector<256x16xf32> to vector<16x16x16xf32>
    %c0_10 = arith.constant 0 : index
    %c0_11 = arith.constant 0 : index
    %c0_12 = arith.constant 0 : index
    %c0_13 = arith.constant 0 : index
    %18 = vector.load %arg5[%c0_10, %c0_11, %c0_12, %c0_13] : memref<1x16x16x16xf32, #tpu.memory_space<vmem>>, vector<1x16x16x16xf32>
    %19 = vector.shape_cast %18 : vector<1x16x16x16xf32> to vector<16x16x16xf32>
    %20 = vector.shape_cast %17 : vector<16x16x16xf32> to vector<1x16x16x16xf32>
    tpu.vector_store %arg5[%c0_10, %c0_11, %c0_12, %c0_13], %20 {strides = array<i32>} : memref<1x16x16x16xf32, #tpu.memory_space<vmem>>, vector<1x16x16x16xf32>,
    %cst_14 = arith.constant dense<0.000000e+00> : vector<16xf32>
    %21 = vector.multi_reduction <add>, %16, %cst_14 [0] : vector<256x16xf32> to vector<16xf32>
    %22 = vector.shape_cast %21 : vector<16xf32> to vector<1x16xf32>
    %23 = arith.mulf %16, %16 : vector<256x16xf32>
    %cst_15 = arith.constant dense<0.000000e+00> : vector<16xf32>
    %24 = vector.multi_reduction <add>, %23, %cst_15 [0] : vector<256x16xf32> to vector<16xf32>
    %25 = vector.shape_cast %24 : vector<16xf32> to vector<1x16xf32>
    %26 = tpu.concatenate %22, %25 in 0 : vector<1x16xf32>, vector<1x16xf32> -> vector<2x16xf32>
    %c0_16 = arith.constant 0 : index
    %c0_17 = arith.constant 0 : index
    %c0_18 = arith.constant 0 : index
    %27 = vector.load %arg6[%c0_16, %c0_17, %c0_18] : memref<1x2x16xf32, #tpu.memory_space<vmem>>, vector<1x2x16xf32>
    %28 = vector.shape_cast %27 : vector<1x2x16xf32> to vector<2x16xf32>
    %29 = vector.shape_cast %26 : vector<2x16xf32> to vector<1x2x16xf32>
    tpu.vector_store %arg6[%c0_16, %c0_17, %c0_18], %29 {strides = array<i32>} : memref<1x2x16xf32, #tpu.memory_space<vmem>>, vector<1x2x16xf32>,
    return
  }
  func.func @transform_0(%arg0: i32, %arg1: i32) -> (i32, i32) {
    %c0_i32 = arith.constant 0 : i32
    %c0_i32_0 = arith.constant 0 : i32
    %c0_i32_1 = arith.constant 0 : i32
    return %c0_i32, %c0_i32_0 : i32, i32
  }
  func.func @transform_1(%arg0: i32, %arg1: i32) -> (i32, i32, i32, i32) {
    %c0_i32 = arith.constant 0 : i32
    %c0_i32_0 = arith.constant 0 : i32
    %c0_i32_1 = arith.constant 0 : i32
    return %arg0, %arg1, %c0_i32, %c0_i32_0 : i32, i32, i32, i32
  }
  func.func @transform_2(%arg0: i32, %arg1: i32) -> (i32, i32, i32) {
    %c0_i32 = arith.constant 0 : i32
    %c0_i32_0 = arith.constant 0 : i32
    %c0_i32_1 = arith.constant 0 : i32
    %c0_i32_2 = arith.constant 0 : i32
    return %c0_i32, %c0_i32_0, %c0_i32_1 : i32, i32, i32
  }
  func.func @transform_3(%arg0: i32, %arg1: i32) -> (i32, i32, i32, i32) {
    %c0_i32 = arith.constant 0 : i32
    %c0_i32_0 = arith.constant 0 : i32
    %c0_i32_1 = arith.constant 0 : i32
    return %arg0, %arg1, %c0_i32, %c0_i32_0 : i32, i32, i32, i32
  }
  func.func @transform_4(%arg0: i32, %arg1: i32) -> (i32, i32, i32) {
    %c1_i32 = arith.constant 1 : i32
    %0 = arith.muli %arg0, %c1_i32 : i32
    %1 = arith.addi %0, %arg1 : i32
    %c0_i32 = arith.constant 0 : i32
    %c0_i32_0 = arith.constant 0 : i32
    %c0_i32_1 = arith.constant 0 : i32
    return %1, %c0_i32, %c0_i32_0 : i32, i32, i32
  }
}

module attributes {stable_mosaic.version = 11 : i64} {
  func.func @_finalize_band_kernel(%arg0: i32, %arg1: i32, %arg2: memref<2x16xf32, #tpu.memory_space<vmem>>, %arg3: memref<1x16x16x16xf32, #tpu.memory_space<vmem>>, %arg4: memref<1x16x16x8xf32, #tpu.memory_space<vmem>>, %arg5: memref<8x16xbf16, #tpu.memory_space<vmem>>, %arg6: memref<1x16xf32, #tpu.memory_space<vmem>>, %arg7: memref<1x16x16x16xf32, #tpu.memory_space<vmem>>) attributes {dimension_semantics = [#tpu.dimension_semantics<parallel>, #tpu.dimension_semantics<parallel>], iteration_bounds = array<i64: 2, 1>, scalar_prefetch = 0 : i64, scratch_operands = 0 : i64, tpu.core_type = #tpu.core_type<tc>, window_params = [{pipeline_mode = #tpu.pipeline_mode<synchronous>, transform_indices = @transform_0, window_bounds = array<i64: 2, 16>}, {transform_indices = @transform_1, window_bounds = array<i64: 1, 16, 16, 16>}, {transform_indices = @transform_2, window_bounds = array<i64: 1, 16, 16, 8>}, {pipeline_mode = #tpu.pipeline_mode<synchronous>, transform_indices = @transform_3, window_bounds = array<i64: 8, 16>}, {pipeline_mode = #tpu.pipeline_mode<synchronous>, transform_indices = @transform_4, window_bounds = array<i64: 1, 16>}, {transform_indices = @transform_5, window_bounds = array<i64: 1, 16, 16, 16>}]} {
    %c0 = arith.constant 0 : index
    %c0_0 = arith.constant 0 : index
    %c0_1 = arith.constant 0 : index
    %c0_2 = arith.constant 0 : index
    %0 = vector.load %arg3[%c0, %c0_0, %c0_1, %c0_2] : memref<1x16x16x16xf32, #tpu.memory_space<vmem>>, vector<1x16x16x16xf32>
    %1 = vector.shape_cast %0 : vector<1x16x16x16xf32> to vector<16x16x16xf32>
    %c0_3 = arith.constant 0 : index
    %c0_4 = arith.constant 0 : index
    %2 = vector.load %arg2[%c0_3, %c0_4] : memref<2x16xf32, #tpu.memory_space<vmem>>, vector<1x16xf32>
    %3 = vector.shape_cast %2 : vector<1x16xf32> to vector<1x1x16xf32>
    %4 = vector.broadcast %3 : vector<1x1x16xf32> to vector<16x16x16xf32>
    %5 = arith.mulf %1, %4 : vector<16x16x16xf32>
    %c1 = arith.constant 1 : index
    %c0_5 = arith.constant 0 : index
    %6 = vector.load %arg2[%c1, %c0_5] : memref<2x16xf32, #tpu.memory_space<vmem>>, vector<1x16xf32>
    %7 = vector.shape_cast %6 : vector<1x16xf32> to vector<1x1x16xf32>
    %8 = vector.broadcast %7 : vector<1x1x16xf32> to vector<16x16x16xf32>
    %9 = arith.addf %5, %8 : vector<16x16x16xf32>
    %c0_6 = arith.constant 0 : index
    %c0_7 = arith.constant 0 : index
    %c0_8 = arith.constant 0 : index
    %c0_9 = arith.constant 0 : index
    %10 = vector.load %arg4[%c0_6, %c0_7, %c0_8, %c0_9] : memref<1x16x16x8xf32, #tpu.memory_space<vmem>>, vector<1x16x16x8xf32>
    %11 = vector.shape_cast %10 : vector<1x16x16x8xf32> to vector<16x16x8xf32>
    %12 = vector.shape_cast %11 : vector<16x16x8xf32> to vector<256x8xf32>
    %13 = arith.truncf %12 : vector<256x8xf32> to vector<256x8xbf16>
    %c0_10 = arith.constant 0 : index
    %c0_11 = arith.constant 0 : index
    %14 = vector.load %arg5[%c0_10, %c0_11] : memref<8x16xbf16, #tpu.memory_space<vmem>>, vector<8x16xbf16>
    %cst = arith.constant dense<0.000000e+00> : vector<256x16xf32>
    %15 = tpu.matmul %13, %14, %cst {dimension_numbers = #tpu.dot_dimension_numbers<[1], [0], [0], [1], [0, 0, 1, 1], [], []>} : vector<256x8xbf16>, vector<8x16xbf16>, vector<256x16xf32> -> vector<256x16xf32>
    %c0_12 = arith.constant 0 : index
    %c0_13 = arith.constant 0 : index
    %16 = vector.load %arg6[%c0_12, %c0_13] : memref<1x16xf32, #tpu.memory_space<vmem>>, vector<1x16xf32>
    %17 = vector.broadcast %16 : vector<1x16xf32> to vector<256x16xf32>
    %18 = arith.addf %15, %17 : vector<256x16xf32>
    %19 = vector.shape_cast %18 : vector<256x16xf32> to vector<16x16x16xf32>
    %20 = arith.addf %9, %19 : vector<16x16x16xf32>
    %c0_14 = arith.constant 0 : index
    %c0_15 = arith.constant 0 : index
    %c0_16 = arith.constant 0 : index
    %c0_17 = arith.constant 0 : index
    %21 = vector.load %arg7[%c0_14, %c0_15, %c0_16, %c0_17] : memref<1x16x16x16xf32, #tpu.memory_space<vmem>>, vector<1x16x16x16xf32>
    %22 = vector.shape_cast %21 : vector<1x16x16x16xf32> to vector<16x16x16xf32>
    %23 = vector.shape_cast %20 : vector<16x16x16xf32> to vector<1x16x16x16xf32>
    tpu.vector_store %arg7[%c0_14, %c0_15, %c0_16, %c0_17], %23 {strides = array<i32>} : memref<1x16x16x16xf32, #tpu.memory_space<vmem>>, vector<1x16x16x16xf32>,
    return
  }
  func.func @transform_0(%arg0: i32, %arg1: i32) -> (i32, i32) {
    %c0_i32 = arith.constant 0 : i32
    %c0_i32_0 = arith.constant 0 : i32
    %c0_i32_1 = arith.constant 0 : i32
    return %c0_i32, %c0_i32_0 : i32, i32
  }
  func.func @transform_1(%arg0: i32, %arg1: i32) -> (i32, i32, i32, i32) {
    %c0_i32 = arith.constant 0 : i32
    %c0_i32_0 = arith.constant 0 : i32
    %c0_i32_1 = arith.constant 0 : i32
    return %arg0, %arg1, %c0_i32, %c0_i32_0 : i32, i32, i32, i32
  }
  func.func @transform_2(%arg0: i32, %arg1: i32) -> (i32, i32, i32, i32) {
    %c0_i32 = arith.constant 0 : i32
    %c0_i32_0 = arith.constant 0 : i32
    %c0_i32_1 = arith.constant 0 : i32
    return %arg0, %arg1, %c0_i32, %c0_i32_0 : i32, i32, i32, i32
  }
  func.func @transform_3(%arg0: i32, %arg1: i32) -> (i32, i32) {
    %c0_i32 = arith.constant 0 : i32
    %c0_i32_0 = arith.constant 0 : i32
    %c0_i32_1 = arith.constant 0 : i32
    return %c0_i32, %c0_i32_0 : i32, i32
  }
  func.func @transform_4(%arg0: i32, %arg1: i32) -> (i32, i32) {
    %c0_i32 = arith.constant 0 : i32
    %c0_i32_0 = arith.constant 0 : i32
    %c0_i32_1 = arith.constant 0 : i32
    return %c0_i32, %c0_i32_0 : i32, i32
  }
  func.func @transform_5(%arg0: i32, %arg1: i32) -> (i32, i32, i32, i32) {
    %c0_i32 = arith.constant 0 : i32
    %c0_i32_0 = arith.constant 0 : i32
    %c0_i32_1 = arith.constant 0 : i32
    return %arg0, %arg1, %c0_i32, %c0_i32_0 : i32, i32, i32, i32
  }
}

</mosaic_0001>

<llo_original>
// kernel: _lambda_.8
$region0: #{_lambda_.8}
  #allocation0 [shape = 'u32[]', space=smem, size = 0x4, offset = 0x4, fixed_abs, tag = 'smem constant byte address 0x4 - core index']
  #allocation1 [shape = 'u32[144,128]{1,0:T(1,128)}', space=vmem, size = 0x12000, scoped, tag = 'internal scratch']
  %s0 = inlined_call_operand.vmem [shape: f32[2,4], index: 0, kind: input, shape index: {}]
  %s1 = inlined_call_operand.vmem [shape: f32[2,16,16,4], index: 1, kind: input, shape index: {}]
  %s2 = inlined_call_operand.vmem [shape: bf16[1,4,16], index: 2, kind: input, shape index: {}]
  %s3 = inlined_call_operand.vmem [shape: f32[2,16,16,16], index: 3, kind: output, shape index: {0}]
  %s4 = inlined_call_operand.vmem [shape: f32[2,2,16], index: 4, kind: output, shape index: {1}]
  %5 = xla_tuple %s3, %s4
  %s6 = sld [smem:[#allocation0]]
  $region53: #{_lambda_.8} parent=0
    _
  %s8 = ssub.s32 1, %s6
  %s9 = scalar_select 0, %s8, %s6
  loop: start=0, step=1, limit=4
  $region2: #{_lambda_.8} parent=0 // loop_pre_header
    _
  $region3: #{_lambda_.8} parent=0 // loop_header
    %s11 = sphi 0, %s15
    %p12 = scmp.ge.s32.totalorder %s11, 4
    %s18 = sphi 0, %s30
    %s19 = sphi 0, %s26
    %s20 = sphi 0, %s18
    %s21 = sphi 0, %s19
    %s22 = sphi 0, %s20
    %s23 = sphi 0, %s21
    %s31 = sphi 0, %s31
    %s33 = sphi 0, %s31
    %s34 = sphi 0, %s33
    %s48 = sphi 0, %s34
    %s56 = sphi 0, %s58
    %s59 = sphi 0, %s56
    %s60 = sphi 0, %s59
    %s76 = sphi 0, %s60
    %s80 = sphi 0, %s80
    %s82 = sphi 0, %s80
    %s83 = sphi 0, %s82
    %s97 = sphi 0, %s83
    %s105 = sphi 0, %s107
    %s108 = sphi 0, %s105
    %s109 = sphi 0, %s108
    %s125 = sphi 0, %s109
    %s133 = sphi 0, %s135
    %s136 = sphi 0, %s133
    %s137 = sphi 0, %s136
    %s153 = sphi 0, %s137
  $region4: #{_lambda_.8} parent=0 // loop_header_branch
    %14 = sbr.rel (%p12) target = $region8
  $region5: #{_lambda_.8} parent=0 // loop_body
    %s16 = ssub.s32 %s11, 1
    %s17 = ssub.s32 %s11, 2
    %s24 = sadd.s32 1, %s19
    %p25 = scmp.ge.s32.totalorder %s24, 1
    %s26 = scalar_select %p25, 0, %s24
    %s27 = sadd.s32 1, %s18
    %s28 = scalar_select %p25, %s27, %s18
    %p29 = scmp.ge.s32.totalorder %s28, 2
    %s30 = scalar_select %p29, 0, %s28
    %s32 = sadd.s32 %s31, 1
    %p35 = scmp.eq.s32.totalorder %s11, 1
    %p36 = scmp.ne.s32.totalorder %s31, %s33
    %p37 = scmp.eq.s32.totalorder %s11, 0
    %p38 = por %p36, %p37
    %p39 = scmp.ne.s32.totalorder %s31, %s33
    %p40 = scmp.eq.s32.totalorder %s16, 1
    %p41 = por %p39, %p40
    %p42 = scmp.ne.s32.totalorder %s33, %s34
    %p43 = scmp.eq.s32.totalorder %s16, 0
    %p44 = por %p42, %p43
    %p45 = scmp.ne.s32.totalorder %s33, %s34
    %p46 = scmp.eq.s32.totalorder %s17, 1
    %p47 = por %p45, %p46
    %p49 = scmp.ne.s32.totalorder %s34, %s48
    %p50 = scmp.eq.s32.totalorder %s17, 0
    %p51 = por %p49, %p50
    %s52 = ssub.s32 %s18, %s30
    %s53 = ssub.s32 %s19, %s26
    %s54 = sor.u32 %s52, %s53
    %p55 = scmp.eq.s32.totalorder %s54, 0
    %s57 = sadd.s32 %s56, 1
    %s58 = scalar_select %p55, %s56, %s57
    %p61 = pneg %p55
    %p62 = scmp.eq.s32.totalorder %s11, 1
    %p63 = por %p61, %p62
    %p64 = scmp.ne.s32.totalorder %s56, %s59
    %p65 = scmp.eq.s32.totalorder %s11, 0
    %p66 = por %p64, %p65
    %p67 = scmp.ne.s32.totalorder %s56, %s59
    %p68 = scmp.eq.s32.totalorder %s16, 1
    %p69 = por %p67, %p68
    %p70 = scmp.ne.s32.totalorder %s59, %s60
    %p71 = scmp.eq.s32.totalorder %s16, 0
    %p72 = por %p70, %p71
    %p73 = scmp.ne.s32.totalorder %s59, %s60
    %p74 = scmp.eq.s32.totalorder %s17, 1
    %p75 = por %p73, %p74
    %p77 = scmp.ne.s32.totalorder %s60, %s76
    %p78 = scmp.eq.s32.totalorder %s17, 0
    %p79 = por %p77, %p78
    %s81 = sadd.s32 %s80, 1
    %p84 = scmp.eq.s32.totalorder %s11, 1
    %p85 = scmp.ne.s32.totalorder %s80, %s82
    %p86 = scmp.eq.s32.totalorder %s11, 0
    %p87 = por %p85, %p86
    %p88 = scmp.ne.s32.totalorder %s80, %s82
    %p89 = scmp.eq.s32.totalorder %s16, 1
    %p90 = por %p88, %p89
    %p91 = scmp.ne.s32.totalorder %s82, %s83
    %p92 = scmp.eq.s32.totalorder %s16, 0
    %p93 = por %p91, %p92
    %p94 = scmp.ne.s32.totalorder %s82, %s83
    %p95 = scmp.eq.s32.totalorder %s17, 1
    %p96 = por %p94, %p95
    %p98 = scmp.ne.s32.totalorder %s83, %s97
    %p99 = scmp.eq.s32.totalorder %s17, 0
    %p100 = por %p98, %p99
    %s101 = ssub.s32 %s18, %s30
    %s102 = ssub.s32 %s19, %s26
    %s103 = sor.u32 %s101, %s102
    %p104 = scmp.eq.s32.totalorder %s103, 0
    %s106 = sadd.s32 %s105, 1
    %s107 = scalar_select %p104, %s105, %s106
    %p110 = pneg %p104
    %p111 = scmp.eq.s32.totalorder %s11, 1
    %p112 = por %p110, %p111
    %p113 = scmp.ne.s32.totalorder %s105, %s108
    %p114 = scmp.eq.s32.totalorder %s11, 0
    %p115 = por %p113, %p114
    %p116 = scmp.ne.s32.totalorder %s105, %s108
    %p117 = scmp.eq.s32.totalorder %s16, 1
    %p118 = por %p116, %p117
    %p119 = scmp.ne.s32.totalorder %s108, %s109
    %p120 = scmp.eq.s32.totalorder %s16, 0
    %p121 = por %p119, %p120
    %p122 = scmp.ne.s32.totalorder %s108, %s109
    %p123 = scmp.eq.s32.totalorder %s17, 1
    %p124 = por %p122, %p123
    %p126 = scmp.ne.s32.totalorder %s109, %s125
    %p127 = scmp.eq.s32.totalorder %s17, 0
    %p128 = por %p126, %p127
    %s129 = sadd.s32 %s18, %s19
    %s130 = sadd.s32 %s30, %s26
    %s131 = ssub.s32 %s129, %s130
    %p132 = scmp.eq.s32.totalorder %s131, 0
    %s134 = sadd.s32 %s133, 1
    %s135 = scalar_select %p132, %s133, %s134
    %p138 = pneg %p132
    %p139 = scmp.eq.s32.totalorder %s11, 1
    %p140 = por %p138, %p139
    %p141 = scmp.ne.s32.totalorder %s133, %s136
    %p142 = scmp.eq.s32.totalorder %s11, 0
    %p143 = por %p141, %p142
    %p144 = scmp.ne.s32.totalorder %s133, %s136
    %p145 = scmp.eq.s32.totalorder %s16, 1
    %p146 = por %p144, %p145
    %p147 = scmp.ne.s32.totalorder %s136, %s137
    %p148 = scmp.eq.s32.totalorder %s16, 0
    %p149 = por %p147, %p148
    %p150 = scmp.ne.s32.totalorder %s136, %s137
    %p151 = scmp.eq.s32.totalorder %s17, 1
    %p152 = por %p150, %p151
    %p154 = scmp.ne.s32.totalorder %s137, %s153
    %p155 = scmp.eq.s32.totalorder %s17, 0
    %p156 = por %p154, %p155
    %p157 = scmp.le.s32.totalorder 1, %s11
    %p158 = scmp.lt.s32.totalorder %s11, 3
    %p159 = pnand %p157, %p158
    %p160 = pneg %p159
    // Predicated region
    $region9: #{_lambda_.8} parent=5 // pred_check
      _
    $region10: #{_lambda_.8} parent=5 // pred_check_branch
      %162 = sbr.rel (%p159) target = $region12
    $region11: #{_lambda_.8} parent=5 // pred_region
      %s163 = ssub.s32 %s11, 1
      // Predicated region
      $region13: #{_lambda_.8} parent=11 // pred_check
        %p164 = pneg %p44
      $region14: #{_lambda_.8} parent=11 // pred_check_branch
        %166 = sbr.rel (%p164) target = $region16
      $region15: #{_lambda_.8} parent=11 // pred_region
        _
      $region16: #{_lambda_.8} parent=11 // pred_fallthru
        _
      // Predicated region
      $region17: #{_lambda_.8} parent=11 // pred_check
        %p167 = pneg %p93
      $region18: #{_lambda_.8} parent=11 // pred_check_branch
        %169 = sbr.rel (%p167) target = $region20
      $region19: #{_lambda_.8} parent=11 // pred_region
        _
      $region20: #{_lambda_.8} parent=11 // pred_fallthru
        _
    $region12: #{_lambda_.8} parent=5 // pred_fallthru
      _
    %p170 = scmp.lt.s32.totalorder %s11, 2
    // Predicated region
    $region21: #{_lambda_.8} parent=5 // pred_check
      %p171 = pneg %p170
    $region22: #{_lambda_.8} parent=5 // pred_check_branch
      %173 = sbr.rel (%p171) target = $region24
    $region23: #{_lambda_.8} parent=5 // pred_region
      // Predicated region
      $region25: #{_lambda_.8} parent=23 // pred_check
        %p174 = pneg %p66
      $region26: #{_lambda_.8} parent=23 // pred_check_branch
        %176 = sbr.rel (%p174) target = $region28
      $region27: #{_lambda_.8} parent=23 // pred_region
        %s177 = smul.u32 16, %s19
        %p178 = scmp.lt.s32.totalorder %s18, 1
        %s179 = scalar_select %p178, %s18, 1
        %p180 = scmp.lt.s32.totalorder %s177, 15
        %s181 = scalar_select %p180, %s177, 15
        %s182 = smul.addr %s181, 2
        %s183 = smul.addr %s179, 32
        %s184 = sadd.s32 %s182, %s183
        %s185 = smul.addr %s184, 8
        %s186 = scalar_lea.vmem %s1, %s185
        %s187 = smul.u32 16, %s19
      $region28: #{_lambda_.8} parent=23 // pred_fallthru
        _
    $region24: #{_lambda_.8} parent=5 // pred_fallthru
      _
    %p188 = scmp.le.s32.totalorder 1, %s11
    %p189 = scmp.lt.s32.totalorder %s11, 3
    %p190 = pnand %p188, %p189
    %p191 = pneg %p190
    // Predicated region
    $region29: #{_lambda_.8} parent=5 // pred_check
      _
    $region30: #{_lambda_.8} parent=5 // pred_check_branch
      %193 = sbr.rel (%p190) target = $region32
    $region31: #{_lambda_.8} parent=5 // pred_region
      %s194 = ssub.s32 %s11, 1
      %p195 = pneg %p44
      %p196 = pneg %p41
      %s197 = smul.u32 16, %s21
      %p198 = scmp.lt.s32.totalorder %s20, 1
      %s199 = scalar_select %p198, %s20, 1
      %p200 = scmp.lt.s32.totalorder %s197, 15
      %s201 = scalar_select %p200, %s197, 15
      %s202 = smul.addr %s201, 2
      %s203 = smul.addr %s199, 32
      %s204 = sadd.s32 %s202, %s203
      %s205 = smul.addr %s204, 8
      %s206 = scalar_lea.vmem %s1, %s205
      %p207 = pneg %p72
      %p208 = pneg %p69
      %p209 = pneg %p93
      %p210 = pneg %p90
      %p211 = pneg %p121
      %p212 = pneg %p118
      %s213 = smul.u32 16, %s21
      %p214 = scmp.lt.s32.totalorder %s20, 1
      %s215 = scalar_select %p214, %s20, 1
      %p216 = scmp.lt.s32.totalorder %s213, 15
      %s217 = scalar_select %p216, %s213, 15
      %s218 = smul.addr %s217, 2
      %s219 = smul.addr %s215, 32
      %s220 = sadd.s32 %s218, %s219
      %s221 = smul.addr %s220, 8
      %s222 = scalar_lea.vmem %s3, %s221
      %p223 = pneg %p149
      %p224 = pneg %p146
      %s225 = sadd.s32 %s20, %s21
      %p226 = scmp.lt.s32.totalorder %s225, 1
      %s227 = scalar_select %p226, %s225, 1
      %s228 = smul.addr %s227, 2
      %s229 = scalar_lea.vmem %s4, %s228
      %s230 = smul.u32 16, %s21
      %p231 = scmp.lt.s32.totalorder %s20, 1
      %s232 = scalar_select %p231, %s20, 1
      %p233 = scmp.lt.s32.totalorder %s230, 15
      %s234 = scalar_select %p233, %s230, 15
      %s235 = smul.addr %s234, 2
      %s236 = smul.addr %s232, 32
      %s237 = sadd.s32 %s235, %s236
      %s238 = smul.addr %s237, 8
      %s239 = scalar_lea.vmem %s1, %s238
      %s240 = smul.u32 16, %s21
      %s241 = smul.u32 16, %s21
      %p242 = scmp.lt.s32.totalorder %s20, 1
      %s243 = scalar_select %p242, %s20, 1
      %p244 = scmp.lt.s32.totalorder %s241, 15
      %s245 = scalar_select %p244, %s241, 15
      %s246 = smul.addr %s245, 2
      %s247 = smul.addr %s243, 32
      %s248 = sadd.s32 %s246, %s247
      %s249 = smul.addr %s248, 8
      %s250 = scalar_lea.vmem %s3, %s249
      %s251 = smul.u32 16, %s21
      %s252 = sadd.s32 %s20, %s21
      %p253 = scmp.lt.s32.totalorder %s252, 1
      %s254 = scalar_select %p253, %s252, 1
      %s255 = smul.addr %s254, 2
      %s256 = scalar_lea.vmem %s4, %s255
      %s257 = sadd.s32 %s20, %s21
      %v259 = vld [vmem:[%s0] sm:$0x1]
      %v260 = vld [vmem:[%s0 + $0x1] sm:$0x1]
      %v261 = vld [vmem:[%s239] sm:$0xff]
      %v262 = vld [vmem:[%s239 + $0x8] sm:$0xff]
      %v263 = vld [vmem:[%s239 + $0x10] sm:$0xff]
      %v264 = vld [vmem:[%s239 + $0x18] sm:$0xff]
      %v265 = vld [vmem:[%s239 + $0x20] sm:$0xff]
      %v266 = vld [vmem:[%s239 + $0x28] sm:$0xff]
      %v267 = vld [vmem:[%s239 + $0x30] sm:$0xff]
      %v268 = vld [vmem:[%s239 + $0x38] sm:$0xff]
      %v269 = vld [vmem:[%s239 + $0x40] sm:$0xff]
      %v270 = vld [vmem:[%s239 + $0x48] sm:$0xff]
      %v271 = vld [vmem:[%s239 + $0x50] sm:$0xff]
      %v272 = vld [vmem:[%s239 + $0x58] sm:$0xff]
      %v273 = vld [vmem:[%s239 + $0x60] sm:$0xff]
      %v274 = vld [vmem:[%s239 + $0x68] sm:$0xff]
      %v275 = vld [vmem:[%s239 + $0x70] sm:$0xff]
      %v276 = vld [vmem:[%s239 + $0x78] sm:$0xff]
      %v277 = vld [vmem:[%s239 + $0x80] sm:$0xff]
      %v278 = vld [vmem:[%s239 + $0x88] sm:$0xff]
      %v279 = vld [vmem:[%s239 + $0x90] sm:$0xff]
      %v280 = vld [vmem:[%s239 + $0x98] sm:$0xff]
      %v281 = vld [vmem:[%s239 + $0xa0] sm:$0xff]
      %v282 = vld [vmem:[%s239 + $0xa8] sm:$0xff]
      %v283 = vld [vmem:[%s239 + $0xb0] sm:$0xff]
      %v284 = vld [vmem:[%s239 + $0xb8] sm:$0xff]
      %v285 = vld [vmem:[%s239 + $0xc0] sm:$0xff]
      %v286 = vld [vmem:[%s239 + $0xc8] sm:$0xff]
      %v287 = vld [vmem:[%s239 + $0xd0] sm:$0xff]
      %v288 = vld [vmem:[%s239 + $0xd8] sm:$0xff]
      %v289 = vld [vmem:[%s239 + $0xe0] sm:$0xff]
      %v290 = vld [vmem:[%s239 + $0xe8] sm:$0xff]
      %v291 = vld [vmem:[%s239 + $0xf0] sm:$0xff]
      %v292 = vld [vmem:[%s239 + $0xf8] sm:$0xff]
      %v293 = vlaneseq
      %v294 = vshrl.u32 %v293, 7
      %v295 = vsub.s32 0, %v294
      %v296 = vrot.slane %v259, %v295
      %v297 = vmul.f32 %v261, %v296
      %v298 = vmul.f32 %v262, %v296
      %v299 = vmul.f32 %v263, %v296
      %v300 = vmul.f32 %v264, %v296
      %v301 = vmul.f32 %v265, %v296
      %v302 = vmul.f32 %v266, %v296
      %v303 = vmul.f32 %v267, %v296
      %v304 = vmul.f32 %v268, %v296
      %v305 = vmul.f32 %v269, %v296
      %v306 = vmul.f32 %v270, %v296
      %v307 = vmul.f32 %v271, %v296
      %v308 = vmul.f32 %v272, %v296
      %v309 = vmul.f32 %v273, %v296
      %v310 = vmul.f32 %v274, %v296
      %v311 = vmul.f32 %v275, %v296
      %v312 = vmul.f32 %v276, %v296
      %v313 = vmul.f32 %v277, %v296
      %v314 = vmul.f32 %v278, %v296
      %v315 = vmul.f32 %v279, %v296
      %v316 = vmul.f32 %v280, %v296
      %v317 = vmul.f32 %v281, %v296
      %v318 = vmul.f32 %v282, %v296
      %v319 = vmul.f32 %v283, %v296
      %v320 = vmul.f32 %v284, %v296
      %v321 = vmul.f32 %v285, %v296
      %v322 = vmul.f32 %v286, %v296
      %v323 = vmul.f32 %v287, %v296
      %v324 = vmul.f32 %v288, %v296
      %v325 = vmul.f32 %v289, %v296
      %v326 = vmul.f32 %v290, %v296
      %v327 = vmul.f32 %v291, %v296
      %v328 = vmul.f32 %v292, %v296
      %v329 = vlaneseq
      %v330 = vshrl.u32 %v329, 7
      %v331 = vsub.s32 0, %v330
      %v332 = vrot.slane %v260, %v331
      %v333 = vadd.f32 %v297, %v332
      %v334 = vadd.f32 %v298, %v332
      %v335 = vadd.f32 %v299, %v332
      %v336 = vadd.f32 %v300, %v332
      %v337 = vadd.f32 %v301, %v332
      %v338 = vadd.f32 %v302, %v332
      %v339 = vadd.f32 %v303, %v332
      %v340 = vadd.f32 %v304, %v332
      %v341 = vadd.f32 %v305, %v332
      %v342 = vadd.f32 %v306, %v332
      %v343 = vadd.f32 %v307, %v332
      %v344 = vadd.f32 %v308, %v332
      %v345 = vadd.f32 %v309, %v332
      %v346 = vadd.f32 %v310, %v332
      %v347 = vadd.f32 %v311, %v332
      %v348 = vadd.f32 %v312, %v332
      %v349 = vadd.f32 %v313, %v332
      %v350 = vadd.f32 %v314, %v332
      %v351 = vadd.f32 %v315, %v332
      %v352 = vadd.f32 %v316, %v332
      %v353 = vadd.f32 %v317, %v332
      %v354 = vadd.f32 %v318, %v332
      %v355 = vadd.f32 %v319, %v332
      %v356 = vadd.f32 %v320, %v332
      %v357 = vadd.f32 %v321, %v332
      %v358 = vadd.f32 %v322, %v332
      %v359 = vadd.f32 %v323, %v332
      %v360 = vadd.f32 %v324, %v332
      %v361 = vadd.f32 %v325, %v332
      %v362 = vadd.f32 %v326, %v332
      %v363 = vadd.f32 %v327, %v332
      %v364 = vadd.f32 %v328, %v332
      %v365 = vmax.f32 %v333, 0.0
      %v366 = vmax.f32 %v334, 0.0
      %v367 = vmax.f32 %v335, 0.0
      %v368 = vmax.f32 %v336, 0.0
      %v369 = vmax.f32 %v337, 0.0
      %v370 = vmax.f32 %v338, 0.0
      %v371 = vmax.f32 %v339, 0.0
      %v372 = vmax.f32 %v340, 0.0
      %v373 = vmax.f32 %v341, 0.0
      %v374 = vmax.f32 %v342, 0.0
      %v375 = vmax.f32 %v343, 0.0
      %v376 = vmax.f32 %v344, 0.0
      %v377 = vmax.f32 %v345, 0.0
      %v378 = vmax.f32 %v346, 0.0
      %v379 = vmax.f32 %v347, 0.0
      %v380 = vmax.f32 %v348, 0.0
      %v381 = vmax.f32 %v349, 0.0
      %v382 = vmax.f32 %v350, 0.0
      %v383 = vmax.f32 %v351, 0.0
      %v384 = vmax.f32 %v352, 0.0
      %v385 = vmax.f32 %v353, 0.0
      %v386 = vmax.f32 %v354, 0.0
      %v387 = vmax.f32 %v355, 0.0
      %v388 = vmax.f32 %v356, 0.0
      %v389 = vmax.f32 %v357, 0.0
      %v390 = vmax.f32 %v358, 0.0
      %v391 = vmax.f32 %v359, 0.0
      %v392 = vmax.f32 %v360, 0.0
      %v393 = vmax.f32 %v361, 0.0
      %v394 = vmax.f32 %v362, 0.0
      %v395 = vmax.f32 %v363, 0.0
      %v396 = vmax.f32 %v364, 0.0
      %v397 = vpack.c.bf16 %v366, %v365
      %v398 = vpack.c.bf16 %v368, %v367
      %v399 = vpack.c.bf16 %v370, %v369
      %v400 = vpack.c.bf16 %v372, %v371
      %v401 = vpack.c.bf16 %v374, %v373
      %v402 = vpack.c.bf16 %v376, %v375
      %v403 = vpack.c.bf16 %v378, %v377
      %v404 = vpack.c.bf16 %v380, %v379
      %v405 = vpack.c.bf16 %v382, %v381
      %v406 = vpack.c.bf16 %v384, %v383
      %v407 = vpack.c.bf16 %v386, %v385
      %v408 = vpack.c.bf16 %v388, %v387
      %v409 = vpack.c.bf16 %v390, %v389
      %v410 = vpack.c.bf16 %v392, %v391
      %v411 = vpack.c.bf16 %v394, %v393
      %v412 = vpack.c.bf16 %v396, %v395
      %v413 = vld [vmem:[%s2] sm:$0x3]
      %vm414 = vcmask 31744
      %v416 = vsel %vm414, %v397, 0
      %v419 = vsel %vm414, %v398, 0
      %v422 = vsel %vm414, %v399, 0
      %v425 = vsel %vm414, %v400, 0
      %v428 = vsel %vm414, %v401, 0
      %v431 = vsel %vm414, %v402, 0
      %v434 = vsel %vm414, %v403, 0
      %v437 = vsel %vm414, %v404, 0
      %v440 = vsel %vm414, %v405, 0
      %v443 = vsel %vm414, %v406, 0
      %v446 = vsel %vm414, %v407, 0
      %v449 = vsel %vm414, %v408, 0
      %v452 = vsel %vm414, %v409, 0
      %v455 = vsel %vm414, %v410, 0
      %v458 = vsel %vm414, %v411, 0
      %v461 = vsel %vm414, %v412, 0
      %vm463 = vcmask 1041408
      %v465 = vsel %vm463, %v413, 0
      %467 = vmatprep.subr.bf16.mxu0 0
      %468 = vmatpush1.bf16.msra.mxu0 0
      %469 = vmatprep.subr.bf16.mxu0 0
      %470 = vmatpush1.bf16.msra.mxu0 0
      %471 = vmatprep.subr.bf16.mxu0 0
      %472 = vmatpush1.bf16.msra.mxu0 0
      %473 = vmatprep.subr.bf16.mxu0 0
      %474 = vmatpush1.bf16.msra.mxu0 0
      %475 = vmatprep.subr.bf16.mxu0 0
      %476 = vmatpush1.bf16.msra.mxu0 0
      %477 = vmatprep.subr.bf16.mxu0 0
      %478 = vmatpush1.bf16.msra.mxu0 0
      %479 = vmatprep.subr.bf16.mxu0 0
      %480 = vmatpush1.bf16.msra.mxu0 0
      %481 = vmatprep.subr.bf16.mxu0 0
      %482 = vmatpush1.bf16.msra.mxu0 %v465
      %483 = vmatprep.subr.bf16.mxu0 0
      %484 = vmatpush2.bf16.msra.mxu0 0
      %485 = vmatprep.subr.bf16.mxu0 0
      %486 = vmatpush2.bf16.msra.mxu0 0
      %487 = vmatprep.subr.bf16.mxu0 0
      %488 = vmatpush2.bf16.msra.mxu0 0
      %489 = vmatprep.subr.bf16.mxu0 0
      %490 = vmatpush2.bf16.msra.mxu0 0
      %491 = vmatprep.subr.bf16.mxu0 0
      %492 = vmatpush2.bf16.msra.mxu0 0
      %493 = vmatprep.subr.bf16.mxu0 0
      %494 = vmatpush2.bf16.msra.mxu0 0
      %495 = vmatprep.subr.bf16.mxu0 0
      %496 = vmatpush2.bf16.msra.mxu0 0
      %497 = vmatprep.subr.bf16.mxu0 0
      %498 = vmatpush2.bf16.msra.mxu0 0
      %499 = vmatprep.mubr.bf16.mxu0 0
      %500 = vmatmul.mubr.bf16.gmra.mxu0 %v416
      %v501 = vpop.f32.mrf.mxu0
      %v502 = vadd.f32 0.0, %v501
      %v503 = vpop.f32.mrf.mxu0
      %v504 = vpop.f32.mrf.mxu0
      %v505 = vadd.f32 0.0, %v504
      %v506 = vpop.f32.mrf.mxu0
      %507 = vmatprep.mubr.bf16.mxu0 0
      %508 = vmatmul.mubr.bf16.gmra.mxu0 %v419
      %v509 = vpop.f32.mrf.mxu0
      %v510 = vadd.f32 0.0, %v509
      %v511 = vpop.f32.mrf.mxu0
      %v512 = vpop.f32.mrf.mxu0
      %v513 = vadd.f32 0.0, %v512
      %v514 = vpop.f32.mrf.mxu0
      %515 = vmatprep.mubr.bf16.mxu0 0
      %516 = vmatmul.mubr.bf16.gmra.mxu0 %v422
      %v517 = vpop.f32.mrf.mxu0
      %v518 = vadd.f32 0.0, %v517
      %v519 = vpop.f32.mrf.mxu0
      %v520 = vpop.f32.mrf.mxu0
      %v521 = vadd.f32 0.0, %v520
      %v522 = vpop.f32.mrf.mxu0
      %523 = vmatprep.mubr.bf16.mxu0 0
      %524 = vmatmul.mubr.bf16.gmra.mxu0 %v425
      %v525 = vpop.f32.mrf.mxu0
      %v526 = vadd.f32 0.0, %v525
      %v527 = vpop.f32.mrf.mxu0
      %v528 = vpop.f32.mrf.mxu0
      %v529 = vadd.f32 0.0, %v528
      %v530 = vpop.f32.mrf.mxu0
      %531 = vmatprep.mubr.bf16.mxu0 0
      %532 = vmatmul.mubr.bf16.gmra.mxu0 %v428
      %v533 = vpop.f32.mrf.mxu0
      %v534 = vadd.f32 0.0, %v533
      %v535 = vpop.f32.mrf.mxu0
      %v536 = vpop.f32.mrf.mxu0
      %v537 = vadd.f32 0.0, %v536
      %v538 = vpop.f32.mrf.mxu0
      %539 = vmatprep.mubr.bf16.mxu0 0
      %540 = vmatmul.mubr.bf16.gmra.mxu0 %v431
      %v541 = vpop.f32.mrf.mxu0
      %v542 = vadd.f32 0.0, %v541
      %v543 = vpop.f32.mrf.mxu0
      %v544 = vpop.f32.mrf.mxu0
      %v545 = vadd.f32 0.0, %v544
      %v546 = vpop.f32.mrf.mxu0
      %547 = vmatprep.mubr.bf16.mxu0 0
      %548 = vmatmul.mubr.bf16.gmra.mxu0 %v434
      %v549 = vpop.f32.mrf.mxu0
      %v550 = vadd.f32 0.0, %v549
      %v551 = vpop.f32.mrf.mxu0
      %v552 = vpop.f32.mrf.mxu0
      %v553 = vadd.f32 0.0, %v552
      %v554 = vpop.f32.mrf.mxu0
      %555 = vmatprep.mubr.bf16.mxu0 0
      %556 = vmatmul.mubr.bf16.gmra.mxu0 %v437
      %v557 = vpop.f32.mrf.mxu0
      %v558 = vadd.f32 0.0, %v557
      %v559 = vpop.f32.mrf.mxu0
      %v560 = vpop.f32.mrf.mxu0
      %v561 = vadd.f32 0.0, %v560
      %v562 = vpop.f32.mrf.mxu0
      %563 = vmatprep.mubr.bf16.mxu0 0
      %564 = vmatmul.mubr.bf16.gmra.mxu0 %v440
      %v565 = vpop.f32.mrf.mxu0
      %v566 = vadd.f32 0.0, %v565
      %v567 = vpop.f32.mrf.mxu0
      %v568 = vpop.f32.mrf.mxu0
      %v569 = vadd.f32 0.0, %v568
      %v570 = vpop.f32.mrf.mxu0
      %571 = vmatprep.mubr.bf16.mxu0 0
      %572 = vmatmul.mubr.bf16.gmra.mxu0 %v443
      %v573 = vpop.f32.mrf.mxu0
      %v574 = vadd.f32 0.0, %v573
      %v575 = vpop.f32.mrf.mxu0
      %v576 = vpop.f32.mrf.mxu0
      %v577 = vadd.f32 0.0, %v576
      %v578 = vpop.f32.mrf.mxu0
      %579 = vmatprep.mubr.bf16.mxu0 0
      %580 = vmatmul.mubr.bf16.gmra.mxu0 %v446
      %v581 = vpop.f32.mrf.mxu0
      %v582 = vadd.f32 0.0, %v581
      %v583 = vpop.f32.mrf.mxu0
      %v584 = vpop.f32.mrf.mxu0
      %v585 = vadd.f32 0.0, %v584
      %v586 = vpop.f32.mrf.mxu0
      %587 = vmatprep.mubr.bf16.mxu0 0
      %588 = vmatmul.mubr.bf16.gmra.mxu0 %v449
      %v589 = vpop.f32.mrf.mxu0
      %v590 = vadd.f32 0.0, %v589
      %v591 = vpop.f32.mrf.mxu0
      %v592 = vpop.f32.mrf.mxu0
      %v593 = vadd.f32 0.0, %v592
      %v594 = vpop.f32.mrf.mxu0
      %595 = vmatprep.mubr.bf16.mxu0 0
      %596 = vmatmul.mubr.bf16.gmra.mxu0 %v452
      %v597 = vpop.f32.mrf.mxu0
      %v598 = vadd.f32 0.0, %v597
      %v599 = vpop.f32.mrf.mxu0
      %v600 = vpop.f32.mrf.mxu0
      %v601 = vadd.f32 0.0, %v600
      %v602 = vpop.f32.mrf.mxu0
      %603 = vmatprep.mubr.bf16.mxu0 0
      %604 = vmatmul.mubr.bf16.gmra.mxu0 %v455
      %v605 = vpop.f32.mrf.mxu0
      %v606 = vadd.f32 0.0, %v605
      %v607 = vpop.f32.mrf.mxu0
      %v608 = vpop.f32.mrf.mxu0
      %v609 = vadd.f32 0.0, %v608
      %v610 = vpop.f32.mrf.mxu0
      %611 = vmatprep.mubr.bf16.mxu0 0
      %612 = vmatmul.mubr.bf16.gmra.mxu0 %v458
      %v613 = vpop.f32.mrf.mxu0
      %v614 = vadd.f32 0.0, %v613
      %v615 = vpop.f32.mrf.mxu0
      %v616 = vpop.f32.mrf.mxu0
      %v617 = vadd.f32 0.0, %v616
      %v618 = vpop.f32.mrf.mxu0
      %619 = vmatprep.mubr.bf16.mxu0 0
      %620 = vmatmul.mubr.bf16.gmra.mxu0 %v461
      %v621 = vpop.f32.mrf.mxu0
      %v622 = vadd.f32 0.0, %v621
      %v623 = vpop.f32.mrf.mxu0
      %v624 = vpop.f32.mrf.mxu0
      %v625 = vadd.f32 0.0, %v624
      %v626 = vpop.f32.mrf.mxu0
      %627 = vdwg.mxu0
      %vm628 = vcmask 130048
      %629 = vst.msk [vmem:[%s250] sm:$0xff] %vm628, %v502
      %630 = vst.msk [vmem:[%s250 + $0x8] sm:$0xff] %vm628, %v505
      %631 = vst.msk [vmem:[%s250 + $0x10] sm:$0xff] %vm628, %v510
      %632 = vst.msk [vmem:[%s250 + $0x18] sm:$0xff] %vm628, %v513
      %633 = vst.msk [vmem:[%s250 + $0x20] sm:$0xff] %vm628, %v518
      %634 = vst.msk [vmem:[%s250 + $0x28] sm:$0xff] %vm628, %v521
      %635 = vst.msk [vmem:[%s250 + $0x30] sm:$0xff] %vm628, %v526
      %636 = vst.msk [vmem:[%s250 + $0x38] sm:$0xff] %vm628, %v529
      %637 = vst.msk [vmem:[%s250 + $0x40] sm:$0xff] %vm628, %v534
      %638 = vst.msk [vmem:[%s250 + $0x48] sm:$0xff] %vm628, %v537
      %639 = vst.msk [vmem:[%s250 + $0x50] sm:$0xff] %vm628, %v542
      %640 = vst.msk [vmem:[%s250 + $0x58] sm:$0xff] %vm628, %v545
      %641 = vst.msk [vmem:[%s250 + $0x60] sm:$0xff] %vm628, %v550
      %642 = vst.msk [vmem:[%s250 + $0x68] sm:$0xff] %vm628, %v553
      %643 = vst.msk [vmem:[%s250 + $0x70] sm:$0xff] %vm628, %v558
      %644 = vst.msk [vmem:[%s250 + $0x78] sm:$0xff] %vm628, %v561
      %645 = vst.msk [vmem:[%s250 + $0x80] sm:$0xff] %vm628, %v566
      %646 = vst.msk [vmem:[%s250 + $0x88] sm:$0xff] %vm628, %v569
      %647 = vst.msk [vmem:[%s250 + $0x90] sm:$0xff] %vm628, %v574
      %648 = vst.msk [vmem:[%s250 + $0x98] sm:$0xff] %vm628, %v577
      %649 = vst.msk [vmem:[%s250 + $0xa0] sm:$0xff] %vm628, %v582
      %650 = vst.msk [vmem:[%s250 + $0xa8] sm:$0xff] %vm628, %v585
      %651 = vst.msk [vmem:[%s250 + $0xb0] sm:$0xff] %vm628, %v590
      %652 = vst.msk [vmem:[%s250 + $0xb8] sm:$0xff] %vm628, %v593
      %653 = vst.msk [vmem:[%s250 + $0xc0] sm:$0xff] %vm628, %v598
      %654 = vst.msk [vmem:[%s250 + $0xc8] sm:$0xff] %vm628, %v601
      %655 = vst.msk [vmem:[%s250 + $0xd0] sm:$0xff] %vm628, %v606
      %656 = vst.msk [vmem:[%s250 + $0xd8] sm:$0xff] %vm628, %v609
      %657 = vst.msk [vmem:[%s250 + $0xe0] sm:$0xff] %vm628, %v614
      %658 = vst.msk [vmem:[%s250 + $0xe8] sm:$0xff] %vm628, %v617
      %659 = vst.msk [vmem:[%s250 + $0xf0] sm:$0xff] %vm628, %v622
      %660 = vst.msk [vmem:[%s250 + $0xf8] sm:$0xff] %vm628, %v625
      %v661 = vsel %vm628, %v502, 0.0
      %v662 = vsel %vm628, %v505, 0.0
      %v663 = vadd.f32 %v661, %v662
      %v664 = vsel %vm628, %v510, 0.0
      %v665 = vadd.f32 %v663, %v664
      %v666 = vsel %vm628, %v513, 0.0
      %v667 = vadd.f32 %v665, %v666
      %v668 = vsel %vm628, %v518, 0.0
      %v669 = vadd.f32 %v667, %v668
      %v670 = vsel %vm628, %v521, 0.0
      %v671 = vadd.f32 %v669, %v670
      %v672 = vsel %vm628, %v526, 0.0
      %v673 = vadd.f32 %v671, %v672
      %v674 = vsel %vm628, %v529, 0.0
      %v675 = vadd.f32 %v673, %v674
      %v676 = vsel %vm628, %v534, 0.0
      %v677 = vadd.f32 %v675, %v676
      %v678 = vsel %vm628, %v537, 0.0
      %v679 = vadd.f32 %v677, %v678
      %v680 = vsel %vm628, %v542, 0.0
      %v681 = vadd.f32 %v679, %v680
      %v682 = vsel %vm628, %v545, 0.0
      %v683 = vadd.f32 %v681, %v682
      %v684 = vsel %vm628, %v550, 0.0
      %v685 = vadd.f32 %v683, %v684
      %v686 = vsel %vm628, %v553, 0.0
      %v687 = vadd.f32 %v685, %v686
      %v688 = vsel %vm628, %v558, 0.0
      %v689 = vadd.f32 %v687, %v688
      %v690 = vsel %vm628, %v561, 0.0
      %v691 = vadd.f32 %v689, %v690
      %v692 = vsel %vm628, %v566, 0.0
      %v693 = vadd.f32 %v691, %v692
      %v694 = vsel %vm628, %v569, 0.0
      %v695 = vadd.f32 %v693, %v694
      %v696 = vsel %vm628, %v574, 0.0
      %v697 = vadd.f32 %v695, %v696
      %v698 = vsel %vm628, %v577, 0.0
      %v699 = vadd.f32 %v697, %v698
      %v700 = vsel %vm628, %v582, 0.0
      %v701 = vadd.f32 %v699, %v700
      %v702 = vsel %vm628, %v585, 0.0
      %v703 = vadd.f32 %v701, %v702
      %v704 = vsel %vm628, %v590, 0.0
      %v705 = vadd.f32 %v703, %v704
      %v706 = vsel %vm628, %v593, 0.0
      %v707 = vadd.f32 %v705, %v706
      %v708 = vsel %vm628, %v598, 0.0
      %v709 = vadd.f32 %v707, %v708
      %v710 = vsel %vm628, %v601, 0.0
      %v711 = vadd.f32 %v709, %v710
      %v712 = vsel %vm628, %v606, 0.0
      %v713 = vadd.f32 %v711, %v712
      %v714 = vsel %vm628, %v609, 0.0
      %v715 = vadd.f32 %v713, %v714
      %v716 = vsel %vm628, %v614, 0.0
      %v717 = vadd.f32 %v715, %v716
      %v718 = vsel %vm628, %v617, 0.0
      %v719 = vadd.f32 %v717, %v718
      %v720 = vsel %vm628, %v622, 0.0
      %v721 = vadd.f32 %v719, %v720
      %v722 = vsel %vm628, %v625, 0.0
      %v723 = vadd.f32 %v721, %v722
      %v724 = vrot.slane %v723, 4
      %v725 = vadd.f32 %v723, %v724
      %v726 = vrot.slane %v725, 2
      %v727 = vadd.f32 %v725, %v726
      %v728 = vrot.slane %v727, 1
      %v729 = vadd.f32 %v727, %v728
      %v730 = vmul.f32 %v502, %v502
      %v731 = vmul.f32 %v505, %v505
      %v732 = vmul.f32 %v510, %v510
      %v733 = vmul.f32 %v513, %v513
      %v734 = vmul.f32 %v518, %v518
      %v735 = vmul.f32 %v521, %v521
      %v736 = vmul.f32 %v526, %v526
      %v737 = vmul.f32 %v529, %v529
      %v738 = vmul.f32 %v534, %v534
      %v739 = vmul.f32 %v537, %v537
      %v740 = vmul.f32 %v542, %v542
      %v741 = vmul.f32 %v545, %v545
      %v742 = vmul.f32 %v550, %v550
      %v743 = vmul.f32 %v553, %v553
      %v744 = vmul.f32 %v558, %v558
      %v745 = vmul.f32 %v561, %v561
      %v746 = vmul.f32 %v566, %v566
      %v747 = vmul.f32 %v569, %v569
      %v748 = vmul.f32 %v574, %v574
      %v749 = vmul.f32 %v577, %v577
      %v750 = vmul.f32 %v582, %v582
      %v751 = vmul.f32 %v585, %v585
      %v752 = vmul.f32 %v590, %v590
      %v753 = vmul.f32 %v593, %v593
      %v754 = vmul.f32 %v598, %v598
      %v755 = vmul.f32 %v601, %v601
      %v756 = vmul.f32 %v606, %v606
      %v757 = vmul.f32 %v609, %v609
      %v758 = vmul.f32 %v614, %v614
      %v759 = vmul.f32 %v617, %v617
      %v760 = vmul.f32 %v622, %v622
      %v761 = vmul.f32 %v625, %v625
      %v762 = vsel %vm628, %v730, 0.0
      %v763 = vsel %vm628, %v731, 0.0
      %v764 = vadd.f32 %v762, %v763
      %v765 = vsel %vm628, %v732, 0.0
      %v766 = vadd.f32 %v764, %v765
      %v767 = vsel %vm628, %v733, 0.0
      %v768 = vadd.f32 %v766, %v767
      %v769 = vsel %vm628, %v734, 0.0
      %v770 = vadd.f32 %v768, %v769
      %v771 = vsel %vm628, %v735, 0.0
      %v772 = vadd.f32 %v770, %v771
      %v773 = vsel %vm628, %v736, 0.0
      %v774 = vadd.f32 %v772, %v773
      %v775 = vsel %vm628, %v737, 0.0
      %v776 = vadd.f32 %v774, %v775
      %v777 = vsel %vm628, %v738, 0.0
      %v778 = vadd.f32 %v776, %v777
      %v779 = vsel %vm628, %v739, 0.0
      %v780 = vadd.f32 %v778, %v779
      %v781 = vsel %vm628, %v740, 0.0
      %v782 = vadd.f32 %v780, %v781
      %v783 = vsel %vm628, %v741, 0.0
      %v784 = vadd.f32 %v782, %v783
      %v785 = vsel %vm628, %v742, 0.0
      %v786 = vadd.f32 %v784, %v785
      %v787 = vsel %vm628, %v743, 0.0
      %v788 = vadd.f32 %v786, %v787
      %v789 = vsel %vm628, %v744, 0.0
      %v790 = vadd.f32 %v788, %v789
      %v791 = vsel %vm628, %v745, 0.0
      %v792 = vadd.f32 %v790, %v791
      %v793 = vsel %vm628, %v746, 0.0
      %v794 = vadd.f32 %v792, %v793
      %v795 = vsel %vm628, %v747, 0.0
      %v796 = vadd.f32 %v794, %v795
      %v797 = vsel %vm628, %v748, 0.0
      %v798 = vadd.f32 %v796, %v797
      %v799 = vsel %vm628, %v749, 0.0
      %v800 = vadd.f32 %v798, %v799
      %v801 = vsel %vm628, %v750, 0.0
      %v802 = vadd.f32 %v800, %v801
      %v803 = vsel %vm628, %v751, 0.0
      %v804 = vadd.f32 %v802, %v803
      %v805 = vsel %vm628, %v752, 0.0
      %v806 = vadd.f32 %v804, %v805
      %v807 = vsel %vm628, %v753, 0.0
      %v808 = vadd.f32 %v806, %v807
      %v809 = vsel %vm628, %v754, 0.0
      %v810 = vadd.f32 %v808, %v809
      %v811 = vsel %vm628, %v755, 0.0
      %v812 = vadd.f32 %v810, %v811
      %v813 = vsel %vm628, %v756, 0.0
      %v814 = vadd.f32 %v812, %v813
      %v815 = vsel %vm628, %v757, 0.0
      %v816 = vadd.f32 %v814, %v815
      %v817 = vsel %vm628, %v758, 0.0
      %v818 = vadd.f32 %v816, %v817
      %v819 = vsel %vm628, %v759, 0.0
      %v820 = vadd.f32 %v818, %v819
      %v821 = vsel %vm628, %v760, 0.0
      %v822 = vadd.f32 %v820, %v821
      %v823 = vsel %vm628, %v761, 0.0
      %v824 = vadd.f32 %v822, %v823
      %v825 = vrot.slane %v824, 4
      %v826 = vadd.f32 %v824, %v825
      %v827 = vrot.slane %v826, 2
      %v828 = vadd.f32 %v826, %v827
      %v829 = vrot.slane %v828, 1
      %v830 = vadd.f32 %v828, %v829
      %vm831 = vcmask 1040384
      %v832 = vsel %vm831, %v729, %v830
      %vm833 = vcmask 123904
      %834 = vst.msk [vmem:[%s256] sm:$0x3] %vm833, %v832
      %s835 = smul.u32 16, %s21
      %p836 = scmp.lt.s32.totalorder %s20, 1
      %s837 = scalar_select %p836, %s20, 1
      %p838 = scmp.lt.s32.totalorder %s835, 15
      %s839 = scalar_select %p838, %s835, 15
      %s840 = smul.addr %s839, 2
      %s841 = smul.addr %s837, 32
      %s842 = sadd.s32 %s840, %s841
      %s843 = smul.addr %s842, 8
      %s844 = scalar_lea.vmem %s3, %s843
      %s845 = sadd.s32 %s20, %s21
      %p846 = scmp.lt.s32.totalorder %s845, 1
      %s847 = scalar_select %p846, %s845, 1
      %s848 = smul.addr %s847, 2
      %s849 = scalar_lea.vmem %s4, %s848
      // Predicated region
      $region33: #{_lambda_.8} parent=31 // pred_check
        %p850 = pneg %p118
      $region34: #{_lambda_.8} parent=31 // pred_check_branch
        %852 = sbr.rel (%p850) target = $region36
      $region35: #{_lambda_.8} parent=31 // pred_region
        %s853 = smul.u32 16, %s21
      $region36: #{_lambda_.8} parent=31 // pred_fallthru
        _
      // Predicated region
      $region37: #{_lambda_.8} parent=31 // pred_check
        %p854 = pneg %p146
      $region38: #{_lambda_.8} parent=31 // pred_check_branch
        %856 = sbr.rel (%p854) target = $region40
      $region39: #{_lambda_.8} parent=31 // pred_region
        %s857 = sadd.s32 %s20, %s21
      $region40: #{_lambda_.8} parent=31 // pred_fallthru
        _
    $region32: #{_lambda_.8} parent=5 // pred_fallthru
      _
    %p858 = scmp.le.s32.totalorder 2, %s11
    // Predicated region
    $region41: #{_lambda_.8} parent=5 // pred_check
      %p859 = pneg %p858
    $region42: #{_lambda_.8} parent=5 // pred_check_branch
      %861 = sbr.rel (%p859) target = $region44
    $region43: #{_lambda_.8} parent=5 // pred_region
      %s862 = ssub.s32 %s11, 2
      // Predicated region
      $region45: #{_lambda_.8} parent=43 // pred_check
        %p863 = pneg %p124
      $region46: #{_lambda_.8} parent=43 // pred_check_branch
        %865 = sbr.rel (%p863) target = $region48
      $region47: #{_lambda_.8} parent=43 // pred_region
        %s866 = smul.u32 16, %s23
        %p867 = scmp.lt.s32.totalorder %s22, 1
        %s868 = scalar_select %p867, %s22, 1
        %p869 = scmp.lt.s32.totalorder %s866, 15
        %s870 = scalar_select %p869, %s866, 15
        %s871 = smul.addr %s870, 2
        %s872 = smul.addr %s868, 32
        %s873 = sadd.s32 %s871, %s872
        %s874 = smul.addr %s873, 8
        %s875 = scalar_lea.vmem %s3, %s874
      $region48: #{_lambda_.8} parent=43 // pred_fallthru
        _
      // Predicated region
      $region49: #{_lambda_.8} parent=43 // pred_check
        %p876 = pneg %p152
      $region50: #{_lambda_.8} parent=43 // pred_check_branch
        %878 = sbr.rel (%p876) target = $region52
      $region51: #{_lambda_.8} parent=43 // pred_region
        %s879 = sadd.s32 %s22, %s23
        %p880 = scmp.lt.s32.totalorder %s879, 1
        %s881 = scalar_select %p880, %s879, 1
        %s882 = smul.addr %s881, 2
        %s883 = scalar_lea.vmem %s4, %s882
      $region52: #{_lambda_.8} parent=43 // pred_fallthru
        _
    $region44: #{_lambda_.8} parent=5 // pred_fallthru
      _
  $region6: #{_lambda_.8} parent=0 // loop_footer
    %s15 = sadd.s32 1, %s11
  $region7: #{_lambda_.8} parent=0 // loop_footer_branch
    %10 = sbr.rel target = $region3
  $region8: #{_lambda_.8} parent=0 // loop_exit
    _

// kernel: _lambda_.5
$region0: #{_lambda_.5}
  #allocation0 [shape = 'u32[]', space=smem, size = 0x4, offset = 0x4, fixed_abs, tag = 'smem constant byte address 0x4 - core index']
  #allocation1 [shape = 'u32[144,128]{1,0:T(1,128)}', space=vmem, size = 0x12000, scoped, tag = 'internal scratch']
  %s0 = inlined_call_operand.vmem [shape: f32[2,8], index: 0, kind: input, shape index: {}]
  %s1 = inlined_call_operand.vmem [shape: f32[2,18,18,8], index: 1, kind: input, shape index: {}]
  %s2 = inlined_call_operand.vmem [shape: bf16[9,8,4], index: 2, kind: input, shape index: {}]
  %s3 = inlined_call_operand.vmem [shape: f32[2,16,16,4], index: 3, kind: output, shape index: {0}]
  %s4 = inlined_call_operand.vmem [shape: f32[2,2,4], index: 4, kind: output, shape index: {1}]
  %5 = xla_tuple %s3, %s4
  %s6 = sld [smem:[#allocation0]]
  $region53: #{_lambda_.5} parent=0
    _
  %s8 = ssub.s32 1, %s6
  %s9 = scalar_select 0, %s8, %s6
  loop: start=0, step=1, limit=4
  $region2: #{_lambda_.5} parent=0 // loop_pre_header
    _
  $region3: #{_lambda_.5} parent=0 // loop_header
    %s11 = sphi 0, %s15
    %p12 = scmp.ge.s32.totalorder %s11, 4
    %s18 = sphi 0, %s30
    %s19 = sphi 0, %s26
    %s20 = sphi 0, %s18
    %s21 = sphi 0, %s19
    %s22 = sphi 0, %s20
    %s23 = sphi 0, %s21
    %s31 = sphi 0, %s31
    %s33 = sphi 0, %s31
    %s34 = sphi 0, %s33
    %s48 = sphi 0, %s34
    %s56 = sphi 0, %s58
    %s59 = sphi 0, %s56
    %s60 = sphi 0, %s59
    %s76 = sphi 0, %s60
    %s80 = sphi 0, %s80
    %s82 = sphi 0, %s80
    %s83 = sphi 0, %s82
    %s97 = sphi 0, %s83
    %s105 = sphi 0, %s107
    %s108 = sphi 0, %s105
    %s109 = sphi 0, %s108
    %s125 = sphi 0, %s109
    %s133 = sphi 0, %s135
    %s136 = sphi 0, %s133
    %s137 = sphi 0, %s136
    %s153 = sphi 0, %s137
  $region4: #{_lambda_.5} parent=0 // loop_header_branch
    %14 = sbr.rel (%p12) target = $region8
  $region5: #{_lambda_.5} parent=0 // loop_body
    %s16 = ssub.s32 %s11, 1
    %s17 = ssub.s32 %s11, 2
    %s24 = sadd.s32 1, %s19
    %p25 = scmp.ge.s32.totalorder %s24, 1
    %s26 = scalar_select %p25, 0, %s24
    %s27 = sadd.s32 1, %s18
    %s28 = scalar_select %p25, %s27, %s18
    %p29 = scmp.ge.s32.totalorder %s28, 2
    %s30 = scalar_select %p29, 0, %s28
    %s32 = sadd.s32 %s31, 1
    %p35 = scmp.eq.s32.totalorder %s11, 1
    %p36 = scmp.ne.s32.totalorder %s31, %s33
    %p37 = scmp.eq.s32.totalorder %s11, 0
    %p38 = por %p36, %p37
    %p39 = scmp.ne.s32.totalorder %s31, %s33
    %p40 = scmp.eq.s32.totalorder %s16, 1
    %p41 = por %p39, %p40
    %p42 = scmp.ne.s32.totalorder %s33, %s34
    %p43 = scmp.eq.s32.totalorder %s16, 0
    %p44 = por %p42, %p43
    %p45 = scmp.ne.s32.totalorder %s33, %s34
    %p46 = scmp.eq.s32.totalorder %s17, 1
    %p47 = por %p45, %p46
    %p49 = scmp.ne.s32.totalorder %s34, %s48
    %p50 = scmp.eq.s32.totalorder %s17, 0
    %p51 = por %p49, %p50
    %s52 = sadd.s32 %s18, %s19
    %s53 = sadd.s32 %s30, %s26
    %s54 = ssub.s32 %s52, %s53
    %p55 = scmp.eq.s32.totalorder %s54, 0
    %s57 = sadd.s32 %s56, 1
    %s58 = scalar_select %p55, %s56, %s57
    %p61 = pneg %p55
    %p62 = scmp.eq.s32.totalorder %s11, 1
    %p63 = por %p61, %p62
    %p64 = scmp.ne.s32.totalorder %s56, %s59
    %p65 = scmp.eq.s32.totalorder %s11, 0
    %p66 = por %p64, %p65
    %p67 = scmp.ne.s32.totalorder %s56, %s59
    %p68 = scmp.eq.s32.totalorder %s16, 1
    %p69 = por %p67, %p68
    %p70 = scmp.ne.s32.totalorder %s59, %s60
    %p71 = scmp.eq.s32.totalorder %s16, 0
    %p72 = por %p70, %p71
    %p73 = scmp.ne.s32.totalorder %s59, %s60
    %p74 = scmp.eq.s32.totalorder %s17, 1
    %p75 = por %p73, %p74
    %p77 = scmp.ne.s32.totalorder %s60, %s76
    %p78 = scmp.eq.s32.totalorder %s17, 0
    %p79 = por %p77, %p78
    %s81 = sadd.s32 %s80, 1
    %p84 = scmp.eq.s32.totalorder %s11, 1
    %p85 = scmp.ne.s32.totalorder %s80, %s82
    %p86 = scmp.eq.s32.totalorder %s11, 0
    %p87 = por %p85, %p86
    %p88 = scmp.ne.s32.totalorder %s80, %s82
    %p89 = scmp.eq.s32.totalorder %s16, 1
    %p90 = por %p88, %p89
    %p91 = scmp.ne.s32.totalorder %s82, %s83
    %p92 = scmp.eq.s32.totalorder %s16, 0
    %p93 = por %p91, %p92
    %p94 = scmp.ne.s32.totalorder %s82, %s83
    %p95 = scmp.eq.s32.totalorder %s17, 1
    %p96 = por %p94, %p95
    %p98 = scmp.ne.s32.totalorder %s83, %s97
    %p99 = scmp.eq.s32.totalorder %s17, 0
    %p100 = por %p98, %p99
    %s101 = ssub.s32 %s18, %s30
    %s102 = ssub.s32 %s19, %s26
    %s103 = sor.u32 %s101, %s102
    %p104 = scmp.eq.s32.totalorder %s103, 0
    %s106 = sadd.s32 %s105, 1
    %s107 = scalar_select %p104, %s105, %s106
    %p110 = pneg %p104
    %p111 = scmp.eq.s32.totalorder %s11, 1
    %p112 = por %p110, %p111
    %p113 = scmp.ne.s32.totalorder %s105, %s108
    %p114 = scmp.eq.s32.totalorder %s11, 0
    %p115 = por %p113, %p114
    %p116 = scmp.ne.s32.totalorder %s105, %s108
    %p117 = scmp.eq.s32.totalorder %s16, 1
    %p118 = por %p116, %p117
    %p119 = scmp.ne.s32.totalorder %s108, %s109
    %p120 = scmp.eq.s32.totalorder %s16, 0
    %p121 = por %p119, %p120
    %p122 = scmp.ne.s32.totalorder %s108, %s109
    %p123 = scmp.eq.s32.totalorder %s17, 1
    %p124 = por %p122, %p123
    %p126 = scmp.ne.s32.totalorder %s109, %s125
    %p127 = scmp.eq.s32.totalorder %s17, 0
    %p128 = por %p126, %p127
    %s129 = sadd.s32 %s18, %s19
    %s130 = sadd.s32 %s30, %s26
    %s131 = ssub.s32 %s129, %s130
    %p132 = scmp.eq.s32.totalorder %s131, 0
    %s134 = sadd.s32 %s133, 1
    %s135 = scalar_select %p132, %s133, %s134
    %p138 = pneg %p132
    %p139 = scmp.eq.s32.totalorder %s11, 1
    %p140 = por %p138, %p139
    %p141 = scmp.ne.s32.totalorder %s133, %s136
    %p142 = scmp.eq.s32.totalorder %s11, 0
    %p143 = por %p141, %p142
    %p144 = scmp.ne.s32.totalorder %s133, %s136
    %p145 = scmp.eq.s32.totalorder %s16, 1
    %p146 = por %p144, %p145
    %p147 = scmp.ne.s32.totalorder %s136, %s137
    %p148 = scmp.eq.s32.totalorder %s16, 0
    %p149 = por %p147, %p148
    %p150 = scmp.ne.s32.totalorder %s136, %s137
    %p151 = scmp.eq.s32.totalorder %s17, 1
    %p152 = por %p150, %p151
    %p154 = scmp.ne.s32.totalorder %s137, %s153
    %p155 = scmp.eq.s32.totalorder %s17, 0
    %p156 = por %p154, %p155
    %p157 = scmp.le.s32.totalorder 1, %s11
    %p158 = scmp.lt.s32.totalorder %s11, 3
    %p159 = pnand %p157, %p158
    %p160 = pneg %p159
    // Predicated region
    $region9: #{_lambda_.5} parent=5 // pred_check
      _
    $region10: #{_lambda_.5} parent=5 // pred_check_branch
      %162 = sbr.rel (%p159) target = $region12
    $region11: #{_lambda_.5} parent=5 // pred_region
      %s163 = ssub.s32 %s11, 1
      // Predicated region
      $region13: #{_lambda_.5} parent=11 // pred_check
        %p164 = pneg %p44
      $region14: #{_lambda_.5} parent=11 // pred_check_branch
        %166 = sbr.rel (%p164) target = $region16
      $region15: #{_lambda_.5} parent=11 // pred_region
        _
      $region16: #{_lambda_.5} parent=11 // pred_fallthru
        _
      // Predicated region
      $region17: #{_lambda_.5} parent=11 // pred_check
        %p167 = pneg %p93
      $region18: #{_lambda_.5} parent=11 // pred_check_branch
        %169 = sbr.rel (%p167) target = $region20
      $region19: #{_lambda_.5} parent=11 // pred_region
        _
      $region20: #{_lambda_.5} parent=11 // pred_fallthru
        _
    $region12: #{_lambda_.5} parent=5 // pred_fallthru
      _
    %p170 = scmp.lt.s32.totalorder %s11, 2
    // Predicated region
    $region21: #{_lambda_.5} parent=5 // pred_check
      %p171 = pneg %p170
    $region22: #{_lambda_.5} parent=5 // pred_check_branch
      %173 = sbr.rel (%p171) target = $region24
    $region23: #{_lambda_.5} parent=5 // pred_region
      // Predicated region
      $region25: #{_lambda_.5} parent=23 // pred_check
        %p174 = pneg %p66
      $region26: #{_lambda_.5} parent=23 // pred_check_branch
        %176 = sbr.rel (%p174) target = $region28
      $region27: #{_lambda_.5} parent=23 // pred_region
        %s177 = sadd.s32 %s18, %s19
        %p178 = scmp.lt.s32.totalorder %s177, 1
        %s179 = scalar_select %p178, %s177, 1
        %s180 = smul.addr %s179, 54
        %s181 = smul.addr %s180, 8
        %s182 = scalar_lea.vmem %s1, %s181
        %s183 = sadd.s32 %s18, %s19
      $region28: #{_lambda_.5} parent=23 // pred_fallthru
        _
    $region24: #{_lambda_.5} parent=5 // pred_fallthru
      _
    %p184 = scmp.le.s32.totalorder 1, %s11
    %p185 = scmp.lt.s32.totalorder %s11, 3
    %p186 = pnand %p184, %p185
    %p187 = pneg %p186
    // Predicated region
    $region29: #{_lambda_.5} parent=5 // pred_check
      _
    $region30: #{_lambda_.5} parent=5 // pred_check_branch
      %189 = sbr.rel (%p186) target = $region32
    $region31: #{_lambda_.5} parent=5 // pred_region
      %s190 = ssub.s32 %s11, 1
      %p191 = pneg %p44
      %p192 = pneg %p41
      %s193 = sadd.s32 %s20, %s21
      %p194 = scmp.lt.s32.totalorder %s193, 1
      %s195 = scalar_select %p194, %s193, 1
      %s196 = smul.addr %s195, 54
      %s197 = smul.addr %s196, 8
      %s198 = scalar_lea.vmem %s1, %s197
      %p199 = pneg %p72
      %p200 = pneg %p69
      %p201 = pneg %p93
      %p202 = pneg %p90
      %p203 = pneg %p121
      %p204 = pneg %p118
      %s205 = smul.u32 16, %s21
      %p206 = scmp.lt.s32.totalorder %s20, 1
      %s207 = scalar_select %p206, %s20, 1
      %p208 = scmp.lt.s32.totalorder %s205, 15
      %s209 = scalar_select %p208, %s205, 15
      %s210 = smul.addr %s209, 2
      %s211 = smul.addr %s207, 32
      %s212 = sadd.s32 %s210, %s211
      %s213 = smul.addr %s212, 8
      %s214 = scalar_lea.vmem %s3, %s213
      %p215 = pneg %p149
      %p216 = pneg %p146
      %s217 = sadd.s32 %s20, %s21
      %p218 = scmp.lt.s32.totalorder %s217, 1
      %s219 = scalar_select %p218, %s217, 1
      %s220 = smul.addr %s219, 2
      %s221 = scalar_lea.vmem %s4, %s220
      %s222 = sadd.s32 %s20, %s21
      %p223 = scmp.lt.s32.totalorder %s222, 1
      %s224 = scalar_select %p223, %s222, 1
      %s225 = smul.addr %s224, 54
      %s226 = smul.addr %s225, 8
      %s227 = scalar_lea.vmem %s1, %s226
      %s228 = sadd.s32 %s20, %s21
      %s229 = smul.u32 16, %s21
      %p230 = scmp.lt.s32.totalorder %s20, 1
      %s231 = scalar_select %p230, %s20, 1
      %p232 = scmp.lt.s32.totalorder %s229, 15
      %s233 = scalar_select %p232, %s229, 15
      %s234 = smul.addr %s233, 2
      %s235 = smul.addr %s231, 32
      %s236 = sadd.s32 %s234, %s235
      %s237 = smul.addr %s236, 8
      %s238 = scalar_lea.vmem %s3, %s237
      %s239 = smul.u32 16, %s21
      %s240 = sadd.s32 %s20, %s21
      %p241 = scmp.lt.s32.totalorder %s240, 1
      %s242 = scalar_select %p241, %s240, 1
      %s243 = smul.addr %s242, 2
      %s244 = scalar_lea.vmem %s4, %s243
      %s245 = sadd.s32 %s20, %s21
      %v247 = vld [vmem:[%s0] sm:$0x1]
      %v248 = vld [vmem:[%s0 + $0x1] sm:$0x1]
      %v249 = vld [vmem:[%s227] sm:$0xff]
      %v250 = vld [vmem:[%s227 + $0x8] sm:$0xff]
      %v251 = vld [vmem:[%s227 + $0x10] sm:$0x3]
      %v252 = vld [vmem:[%s227 + $0x18] sm:$0xff]
      %v253 = vld [vmem:[%s227 + $0x20] sm:$0xff]
      %v254 = vld [vmem:[%s227 + $0x28] sm:$0x3]
      %v255 = vld [vmem:[%s227 + $0x30] sm:$0xff]
      %v256 = vld [vmem:[%s227 + $0x38] sm:$0xff]
      %v257 = vld [vmem:[%s227 + $0x40] sm:$0x3]
      %v258 = vld [vmem:[%s227 + $0x48] sm:$0xff]
      %v259 = vld [vmem:[%s227 + $0x50] sm:$0xff]
      %v260 = vld [vmem:[%s227 + $0x58] sm:$0x3]
      %v261 = vld [vmem:[%s227 + $0x60] sm:$0xff]
      %v262 = vld [vmem:[%s227 + $0x68] sm:$0xff]
      %v263 = vld [vmem:[%s227 + $0x70] sm:$0x3]
      %v264 = vld [vmem:[%s227 + $0x78] sm:$0xff]
      %v265 = vld [vmem:[%s227 + $0x80] sm:$0xff]
      %v266 = vld [vmem:[%s227 + $0x88] sm:$0x3]
      %v267 = vld [vmem:[%s227 + $0x90] sm:$0xff]
      %v268 = vld [vmem:[%s227 + $0x98] sm:$0xff]
      %v269 = vld [vmem:[%s227 + $0xa0] sm:$0x3]
      %v270 = vld [vmem:[%s227 + $0xa8] sm:$0xff]
      %v271 = vld [vmem:[%s227 + $0xb0] sm:$0xff]
      %v272 = vld [vmem:[%s227 + $0xb8] sm:$0x3]
      %v273 = vld [vmem:[%s227 + $0xc0] sm:$0xff]
      %v274 = vld [vmem:[%s227 + $0xc8] sm:$0xff]
      %v275 = vld [vmem:[%s227 + $0xd0] sm:$0x3]
      %v276 = vld [vmem:[%s227 + $0xd8] sm:$0xff]
      %v277 = vld [vmem:[%s227 + $0xe0] sm:$0xff]
      %v278 = vld [vmem:[%s227 + $0xe8] sm:$0x3]
      %v279 = vld [vmem:[%s227 + $0xf0] sm:$0xff]
      %v280 = vld [vmem:[%s227 + $0xf8] sm:$0xff]
      %v281 = vld [vmem:[%s227 + $0x100] sm:$0x3]
      %v282 = vld [vmem:[%s227 + $0x108] sm:$0xff]
      %v283 = vld [vmem:[%s227 + $0x110] sm:$0xff]
      %v284 = vld [vmem:[%s227 + $0x118] sm:$0x3]
      %v285 = vld [vmem:[%s227 + $0x120] sm:$0xff]
      %v286 = vld [vmem:[%s227 + $0x128] sm:$0xff]
      %v287 = vld [vmem:[%s227 + $0x130] sm:$0x3]
      %v288 = vld [vmem:[%s227 + $0x138] sm:$0xff]
      %v289 = vld [vmem:[%s227 + $0x140] sm:$0xff]
      %v290 = vld [vmem:[%s227 + $0x148] sm:$0x3]
      %v291 = vld [vmem:[%s227 + $0x150] sm:$0xff]
      %v292 = vld [vmem:[%s227 + $0x158] sm:$0xff]
      %v293 = vld [vmem:[%s227 + $0x160] sm:$0x3]
      %v294 = vld [vmem:[%s227 + $0x168] sm:$0xff]
      %v295 = vld [vmem:[%s227 + $0x170] sm:$0xff]
      %v296 = vld [vmem:[%s227 + $0x178] sm:$0x3]
      %v297 = vld [vmem:[%s227 + $0x180] sm:$0xff]
      %v298 = vld [vmem:[%s227 + $0x188] sm:$0xff]
      %v299 = vld [vmem:[%s227 + $0x190] sm:$0x3]
      %v300 = vld [vmem:[%s227 + $0x198] sm:$0xff]
      %v301 = vld [vmem:[%s227 + $0x1a0] sm:$0xff]
      %v302 = vld [vmem:[%s227 + $0x1a8] sm:$0x3]
      %v303 = vlaneseq
      %v304 = vshrl.u32 %v303, 7
      %v305 = vsub.s32 0, %v304
      %v306 = vrot.slane %v247, %v305
      %v307 = vmul.f32 %v249, %v306
      %v308 = vmul.f32 %v250, %v306
      %v309 = vmul.f32 %v251, %v306
      %v310 = vmul.f32 %v252, %v306
      %v311 = vmul.f32 %v253, %v306
      %v312 = vmul.f32 %v254, %v306
      %v313 = vmul.f32 %v255, %v306
      %v314 = vmul.f32 %v256, %v306
      %v315 = vmul.f32 %v257, %v306
      %v316 = vmul.f32 %v258, %v306
      %v317 = vmul.f32 %v259, %v306
      %v318 = vmul.f32 %v260, %v306
      %v319 = vmul.f32 %v261, %v306
      %v320 = vmul.f32 %v262, %v306
      %v321 = vmul.f32 %v263, %v306
      %v322 = vmul.f32 %v264, %v306
      %v323 = vmul.f32 %v265, %v306
      %v324 = vmul.f32 %v266, %v306
      %v325 = vmul.f32 %v267, %v306
      %v326 = vmul.f32 %v268, %v306
      %v327 = vmul.f32 %v269, %v306
      %v328 = vmul.f32 %v270, %v306
      %v329 = vmul.f32 %v271, %v306
      %v330 = vmul.f32 %v272, %v306
      %v331 = vmul.f32 %v273, %v306
      %v332 = vmul.f32 %v274, %v306
      %v333 = vmul.f32 %v275, %v306
      %v334 = vmul.f32 %v276, %v306
      %v335 = vmul.f32 %v277, %v306
      %v336 = vmul.f32 %v278, %v306
      %v337 = vmul.f32 %v279, %v306
      %v338 = vmul.f32 %v280, %v306
      %v339 = vmul.f32 %v281, %v306
      %v340 = vmul.f32 %v282, %v306
      %v341 = vmul.f32 %v283, %v306
      %v342 = vmul.f32 %v284, %v306
      %v343 = vmul.f32 %v285, %v306
      %v344 = vmul.f32 %v286, %v306
      %v345 = vmul.f32 %v287, %v306
      %v346 = vmul.f32 %v288, %v306
      %v347 = vmul.f32 %v289, %v306
      %v348 = vmul.f32 %v290, %v306
      %v349 = vmul.f32 %v291, %v306
      %v350 = vmul.f32 %v292, %v306
      %v351 = vmul.f32 %v293, %v306
      %v352 = vmul.f32 %v294, %v306
      %v353 = vmul.f32 %v295, %v306
      %v354 = vmul.f32 %v296, %v306
      %v355 = vmul.f32 %v297, %v306
      %v356 = vmul.f32 %v298, %v306
      %v357 = vmul.f32 %v299, %v306
      %v358 = vmul.f32 %v300, %v306
      %v359 = vmul.f32 %v301, %v306
      %v360 = vmul.f32 %v302, %v306
      %v361 = vlaneseq
      %v362 = vshrl.u32 %v361, 7
      %v363 = vsub.s32 0, %v362
      %v364 = vrot.slane %v248, %v363
      %v365 = vadd.f32 %v307, %v364
      %v366 = vadd.f32 %v308, %v364
      %v367 = vadd.f32 %v309, %v364
      %v368 = vadd.f32 %v310, %v364
      %v369 = vadd.f32 %v311, %v364
      %v370 = vadd.f32 %v312, %v364
      %v371 = vadd.f32 %v313, %v364
      %v372 = vadd.f32 %v314, %v364
      %v373 = vadd.f32 %v315, %v364
      %v374 = vadd.f32 %v316, %v364
      %v375 = vadd.f32 %v317, %v364
      %v376 = vadd.f32 %v318, %v364
      %v377 = vadd.f32 %v319, %v364
      %v378 = vadd.f32 %v320, %v364
      %v379 = vadd.f32 %v321, %v364
      %v380 = vadd.f32 %v322, %v364
      %v381 = vadd.f32 %v323, %v364
      %v382 = vadd.f32 %v324, %v364
      %v383 = vadd.f32 %v325, %v364
      %v384 = vadd.f32 %v326, %v364
      %v385 = vadd.f32 %v327, %v364
      %v386 = vadd.f32 %v328, %v364
      %v387 = vadd.f32 %v329, %v364
      %v388 = vadd.f32 %v330, %v364
      %v389 = vadd.f32 %v331, %v364
      %v390 = vadd.f32 %v332, %v364
      %v391 = vadd.f32 %v333, %v364
      %v392 = vadd.f32 %v334, %v364
      %v393 = vadd.f32 %v335, %v364
      %v394 = vadd.f32 %v336, %v364
      %v395 = vadd.f32 %v337, %v364
      %v396 = vadd.f32 %v338, %v364
      %v397 = vadd.f32 %v339, %v364
      %v398 = vadd.f32 %v340, %v364
      %v399 = vadd.f32 %v341, %v364
      %v400 = vadd.f32 %v342, %v364
      %v401 = vadd.f32 %v343, %v364
      %v402 = vadd.f32 %v344, %v364
      %v403 = vadd.f32 %v345, %v364
      %v404 = vadd.f32 %v346, %v364
      %v405 = vadd.f32 %v347, %v364
      %v406 = vadd.f32 %v348, %v364
      %v407 = vadd.f32 %v349, %v364
      %v408 = vadd.f32 %v350, %v364
      %v409 = vadd.f32 %v351, %v364
      %v410 = vadd.f32 %v352, %v364
      %v411 = vadd.f32 %v353, %v364
      %v412 = vadd.f32 %v354, %v364
      %v413 = vadd.f32 %v355, %v364
      %v414 = vadd.f32 %v356, %v364
      %v415 = vadd.f32 %v357, %v364
      %v416 = vadd.f32 %v358, %v364
      %v417 = vadd.f32 %v359, %v364
      %v418 = vadd.f32 %v360, %v364
      %v419 = vmax.f32 %v365, 0.0
      %v420 = vmax.f32 %v366, 0.0
      %v421 = vmax.f32 %v367, 0.0
      %v422 = vmax.f32 %v368, 0.0
      %v423 = vmax.f32 %v369, 0.0
      %v424 = vmax.f32 %v370, 0.0
      %v425 = vmax.f32 %v371, 0.0
      %v426 = vmax.f32 %v372, 0.0
      %v427 = vmax.f32 %v373, 0.0
      %v428 = vmax.f32 %v374, 0.0
      %v429 = vmax.f32 %v375, 0.0
      %v430 = vmax.f32 %v376, 0.0
      %v431 = vmax.f32 %v377, 0.0
      %v432 = vmax.f32 %v378, 0.0
      %v433 = vmax.f32 %v379, 0.0
      %v434 = vmax.f32 %v380, 0.0
      %v435 = vmax.f32 %v381, 0.0
      %v436 = vmax.f32 %v382, 0.0
      %v437 = vmax.f32 %v383, 0.0
      %v438 = vmax.f32 %v384, 0.0
      %v439 = vmax.f32 %v385, 0.0
      %v440 = vmax.f32 %v386, 0.0
      %v441 = vmax.f32 %v387, 0.0
      %v442 = vmax.f32 %v388, 0.0
      %v443 = vmax.f32 %v389, 0.0
      %v444 = vmax.f32 %v390, 0.0
      %v445 = vmax.f32 %v391, 0.0
      %v446 = vmax.f32 %v392, 0.0
      %v447 = vmax.f32 %v393, 0.0
      %v448 = vmax.f32 %v394, 0.0
      %v449 = vmax.f32 %v395, 0.0
      %v450 = vmax.f32 %v396, 0.0
      %v451 = vmax.f32 %v397, 0.0
      %v452 = vmax.f32 %v398, 0.0
      %v453 = vmax.f32 %v399, 0.0
      %v454 = vmax.f32 %v400, 0.0
      %v455 = vmax.f32 %v401, 0.0
      %v456 = vmax.f32 %v402, 0.0
      %v457 = vmax.f32 %v403, 0.0
      %v458 = vmax.f32 %v404, 0.0
      %v459 = vmax.f32 %v405, 0.0
      %v460 = vmax.f32 %v406, 0.0
      %v461 = vmax.f32 %v407, 0.0
      %v462 = vmax.f32 %v408, 0.0
      %v463 = vmax.f32 %v409, 0.0
      %v464 = vmax.f32 %v410, 0.0
      %v465 = vmax.f32 %v411, 0.0
      %v466 = vmax.f32 %v412, 0.0
      %v467 = vmax.f32 %v413, 0.0
      %v468 = vmax.f32 %v414, 0.0
      %v469 = vmax.f32 %v415, 0.0
      %v470 = vmax.f32 %v416, 0.0
      %v471 = vmax.f32 %v417, 0.0
      %v472 = vmax.f32 %v418, 0.0
      %v473 = vlaneseq
      %v474 = vshrl.u32 %v473, 7
      %v475 = vadd.s32 %v474, 8
      %v476 = vadd.s32 %v474, 16
      %s477 = smul.u32 %s21, 16
      %v478 = vstv %s477
      %v479 = vadd.s32 %v478, 1
      %v480 = vadd.s32 %v478, 2
      %v481 = vadd.s32 %v478, 3
      %v482 = vadd.s32 %v478, 4
      %v483 = vadd.s32 %v478, 5
      %v484 = vadd.s32 %v478, 6
      %v485 = vadd.s32 %v478, 7
      %v486 = vadd.s32 %v478, 8
      %v487 = vadd.s32 %v478, 9
      %v488 = vadd.s32 %v478, 10
      %v489 = vadd.s32 %v478, 11
      %v490 = vadd.s32 %v478, 12
      %v491 = vadd.s32 %v478, 13
      %v492 = vadd.s32 %v478, 14
      %v493 = vadd.s32 %v478, 15
      %v494 = vadd.s32 %v478, 16
      %v495 = vadd.s32 %v478, 17
      %vm496 = vcmp.ge.s32.totalorder %v474, 1
      %vm497 = vcmp.ge.s32.totalorder %v475, 1
      %vm498 = vcmp.ge.s32.totalorder %v476, 1
      %vm499 = vcmp.lt.s32.totalorder %v474, 17
      %vm500 = vcmp.lt.s32.totalorder %v475, 17
      %vm501 = vcmp.lt.s32.totalorder %v476, 17
      %vm502 = vmand %vm496, %vm499
      %vm503 = vmand %vm497, %vm500
      %vm504 = vmand %vm498, %vm501
      %vm505 = vcmp.ge.s32.totalorder %v478, 1
      %vm506 = vcmp.ge.s32.totalorder %v479, 1
      %vm507 = vcmp.ge.s32.totalorder %v480, 1
      %vm508 = vcmp.ge.s32.totalorder %v481, 1
      %vm509 = vcmp.ge.s32.totalorder %v482, 1
      %vm510 = vcmp.ge.s32.totalorder %v483, 1
      %vm511 = vcmp.ge.s32.totalorder %v484, 1
      %vm512 = vcmp.ge.s32.totalorder %v485, 1
      %vm513 = vcmp.ge.s32.totalorder %v486, 1
      %vm514 = vcmp.ge.s32.totalorder %v487, 1
      %vm515 = vcmp.ge.s32.totalorder %v488, 1
      %vm516 = vcmp.ge.s32.totalorder %v489, 1
      %vm517 = vcmp.ge.s32.totalorder %v490, 1
      %vm518 = vcmp.ge.s32.totalorder %v491, 1
      %vm519 = vcmp.ge.s32.totalorder %v492, 1
      %vm520 = vcmp.ge.s32.totalorder %v493, 1
      %vm521 = vcmp.ge.s32.totalorder %v494, 1
      %vm522 = vcmp.ge.s32.totalorder %v495, 1
      %v523 = vsel %vm502, 1, 0
      %v524 = vsel %vm503, 1, 0
      %v525 = vsel %vm504, 1, 0
      %vm526 = vcmp.eq.s32.totalorder %v523, 1
      %vm527 = vcmp.eq.s32.totalorder %v524, 1
      %vm528 = vcmp.eq.s32.totalorder %v525, 1
      %v529 = vsel %vm505, 1, 0
      %v530 = vsel %vm506, 1, 0
      %v531 = vsel %vm507, 1, 0
      %v532 = vsel %vm508, 1, 0
      %v533 = vsel %vm509, 1, 0
      %v534 = vsel %vm510, 1, 0
      %v535 = vsel %vm511, 1, 0
      %v536 = vsel %vm512, 1, 0
      %v537 = vsel %vm513, 1, 0
      %v538 = vsel %vm514, 1, 0
      %v539 = vsel %vm515, 1, 0
      %v540 = vsel %vm516, 1, 0
      %v541 = vsel %vm517, 1, 0
      %v542 = vsel %vm518, 1, 0
      %v543 = vsel %vm519, 1, 0
      %v544 = vsel %vm520, 1, 0
      %v545 = vsel %vm521, 1, 0
      %v546 = vsel %vm522, 1, 0
      %vm547 = vcmp.eq.s32.totalorder %v529, 1
      %vm548 = vcmp.eq.s32.totalorder %v530, 1
      %vm549 = vcmp.eq.s32.totalorder %v531, 1
      %vm550 = vcmp.eq.s32.totalorder %v532, 1
      %vm551 = vcmp.eq.s32.totalorder %v533, 1
      %vm552 = vcmp.eq.s32.totalorder %v534, 1
      %vm553 = vcmp.eq.s32.totalorder %v535, 1
      %vm554 = vcmp.eq.s32.totalorder %v536, 1
      %vm555 = vcmp.eq.s32.totalorder %v537, 1
      %vm556 = vcmp.eq.s32.totalorder %v538, 1
      %vm557 = vcmp.eq.s32.totalorder %v539, 1
      %vm558 = vcmp.eq.s32.totalorder %v540, 1
      %vm559 = vcmp.eq.s32.totalorder %v541, 1
      %vm560 = vcmp.eq.s32.totalorder %v542, 1
      %vm561 = vcmp.eq.s32.totalorder %v543, 1
      %vm562 = vcmp.eq.s32.totalorder %v544, 1
      %vm563 = vcmp.eq.s32.totalorder %v545, 1
      %vm564 = vcmp.eq.s32.totalorder %v546, 1
      %vm565 = vmand %vm526, %vm547
      %vm566 = vmand %vm527, %vm547
      %vm567 = vmand %vm528, %vm547
      %vm568 = vmand %vm526, %vm548
      %vm569 = vmand %vm527, %vm548
      %vm570 = vmand %vm528, %vm548
      %vm571 = vmand %vm526, %vm549
      %vm572 = vmand %vm527, %vm549
      %vm573 = vmand %vm528, %vm549
      %vm574 = vmand %vm526, %vm550
      %vm575 = vmand %vm527, %vm550
      %vm576 = vmand %vm528, %vm550
      %vm577 = vmand %vm526, %vm551
      %vm578 = vmand %vm527, %vm551
      %vm579 = vmand %vm528, %vm551
      %vm580 = vmand %vm526, %vm552
      %vm581 = vmand %vm527, %vm552
      %vm582 = vmand %vm528, %vm552
      %vm583 = vmand %vm526, %vm553
      %vm584 = vmand %vm527, %vm553
      %vm585 = vmand %vm528, %vm553
      %vm586 = vmand %vm526, %vm554
      %vm587 = vmand %vm527, %vm554
      %vm588 = vmand %vm528, %vm554
      %vm589 = vmand %vm526, %vm555
      %vm590 = vmand %vm527, %vm555
      %vm591 = vmand %vm528, %vm555
      %vm592 = vmand %vm526, %vm556
      %vm593 = vmand %vm527, %vm556
      %vm594 = vmand %vm528, %vm556
      %vm595 = vmand %vm526, %vm557
      %vm596 = vmand %vm527, %vm557
      %vm597 = vmand %vm528, %vm557
      %vm598 = vmand %vm526, %vm558
      %vm599 = vmand %vm527, %vm558
      %vm600 = vmand %vm528, %vm558
      %vm601 = vmand %vm526, %vm559
      %vm602 = vmand %vm527, %vm559
      %vm603 = vmand %vm528, %vm559
      %vm604 = vmand %vm526, %vm560
      %vm605 = vmand %vm527, %vm560
      %vm606 = vmand %vm528, %vm560
      %vm607 = vmand %vm526, %vm561
      %vm608 = vmand %vm527, %vm561
      %vm609 = vmand %vm528, %vm561
      %vm610 = vmand %vm526, %vm562
      %vm611 = vmand %vm527, %vm562
      %vm612 = vmand %vm528, %vm562
      %vm613 = vmand %vm526, %vm563
      %vm614 = vmand %vm527, %vm563
      %vm615 = vmand %vm528, %vm563
      %vm616 = vmand %vm526, %vm564
      %vm617 = vmand %vm527, %vm564
      %vm618 = vmand %vm528, %vm564
      %vm619 = vcmp.lt.s32.totalorder %v478, 17
      %vm620 = vcmp.lt.s32.totalorder %v479, 17
      %vm621 = vcmp.lt.s32.totalorder %v480, 17
      %vm622 = vcmp.lt.s32.totalorder %v481, 17
      %vm623 = vcmp.lt.s32.totalorder %v482, 17
      %vm624 = vcmp.lt.s32.totalorder %v483, 17
      %vm625 = vcmp.lt.s32.totalorder %v484, 17
      %vm626 = vcmp.lt.s32.totalorder %v485, 17
      %vm627 = vcmp.lt.s32.totalorder %v486, 17
      %vm628 = vcmp.lt.s32.totalorder %v487, 17
      %vm629 = vcmp.lt.s32.totalorder %v488, 17
      %vm630 = vcmp.lt.s32.totalorder %v489, 17
      %vm631 = vcmp.lt.s32.totalorder %v490, 17
      %vm632 = vcmp.lt.s32.totalorder %v491, 17
      %vm633 = vcmp.lt.s32.totalorder %v492, 17
      %vm634 = vcmp.lt.s32.totalorder %v493, 17
      %vm635 = vcmp.lt.s32.totalorder %v494, 17
      %vm636 = vcmp.lt.s32.totalorder %v495, 17
      %v637 = vsel %vm619, 1, 0
      %v638 = vsel %vm620, 1, 0
      %v639 = vsel %vm621, 1, 0
      %v640 = vsel %vm622, 1, 0
      %v641 = vsel %vm623, 1, 0
      %v642 = vsel %vm624, 1, 0
      %v643 = vsel %vm625, 1, 0
      %v644 = vsel %vm626, 1, 0
      %v645 = vsel %vm627, 1, 0
      %v646 = vsel %vm628, 1, 0
      %v647 = vsel %vm629, 1, 0
      %v648 = vsel %vm630, 1, 0
      %v649 = vsel %vm631, 1, 0
      %v650 = vsel %vm632, 1, 0
      %v651 = vsel %vm633, 1, 0
      %v652 = vsel %vm634, 1, 0
      %v653 = vsel %vm635, 1, 0
      %v654 = vsel %vm636, 1, 0
      %vm655 = vcmp.eq.s32.totalorder %v637, 1
      %vm656 = vcmp.eq.s32.totalorder %v638, 1
      %vm657 = vcmp.eq.s32.totalorder %v639, 1
      %vm658 = vcmp.eq.s32.totalorder %v640, 1
      %vm659 = vcmp.eq.s32.totalorder %v641, 1
      %vm660 = vcmp.eq.s32.totalorder %v642, 1
      %vm661 = vcmp.eq.s32.totalorder %v643, 1
      %vm662 = vcmp.eq.s32.totalorder %v644, 1
      %vm663 = vcmp.eq.s32.totalorder %v645, 1
      %vm664 = vcmp.eq.s32.totalorder %v646, 1
      %vm665 = vcmp.eq.s32.totalorder %v647, 1
      %vm666 = vcmp.eq.s32.totalorder %v648, 1
      %vm667 = vcmp.eq.s32.totalorder %v649, 1
      %vm668 = vcmp.eq.s32.totalorder %v650, 1
      %vm669 = vcmp.eq.s32.totalorder %v651, 1
      %vm670 = vcmp.eq.s32.totalorder %v652, 1
      %vm671 = vcmp.eq.s32.totalorder %v653, 1
      %vm672 = vcmp.eq.s32.totalorder %v654, 1
      %vm673 = vmand %vm565, %vm655
      %vm674 = vmand %vm566, %vm655
      %vm675 = vmand %vm567, %vm655
      %vm676 = vmand %vm568, %vm656
      %vm677 = vmand %vm569, %vm656
      %vm678 = vmand %vm570, %vm656
      %vm679 = vmand %vm571, %vm657
      %vm680 = vmand %vm572, %vm657
      %vm681 = vmand %vm573, %vm657
      %vm682 = vmand %vm574, %vm658
      %vm683 = vmand %vm575, %vm658
      %vm684 = vmand %vm576, %vm658
      %vm685 = vmand %vm577, %vm659
      %vm686 = vmand %vm578, %vm659
      %vm687 = vmand %vm579, %vm659
      %vm688 = vmand %vm580, %vm660
      %vm689 = vmand %vm581, %vm660
      %vm690 = vmand %vm582, %vm660
      %vm691 = vmand %vm583, %vm661
      %vm692 = vmand %vm584, %vm661
      %vm693 = vmand %vm585, %vm661
      %vm694 = vmand %vm586, %vm662
      %vm695 = vmand %vm587, %vm662
      %vm696 = vmand %vm588, %vm662
      %vm697 = vmand %vm589, %vm663
      %vm698 = vmand %vm590, %vm663
      %vm699 = vmand %vm591, %vm663
      %vm700 = vmand %vm592, %vm664
      %vm701 = vmand %vm593, %vm664
      %vm702 = vmand %vm594, %vm664
      %vm703 = vmand %vm595, %vm665
      %vm704 = vmand %vm596, %vm665
      %vm705 = vmand %vm597, %vm665
      %vm706 = vmand %vm598, %vm666
      %vm707 = vmand %vm599, %vm666
      %vm708 = vmand %vm600, %vm666
      %vm709 = vmand %vm601, %vm667
      %vm710 = vmand %vm602, %vm667
      %vm711 = vmand %vm603, %vm667
      %vm712 = vmand %vm604, %vm668
      %vm713 = vmand %vm605, %vm668
      %vm714 = vmand %vm606, %vm668
      %vm715 = vmand %vm607, %vm669
      %vm716 = vmand %vm608, %vm669
      %vm717 = vmand %vm609, %vm669
      %vm718 = vmand %vm610, %vm670
      %vm719 = vmand %vm611, %vm670
      %vm720 = vmand %vm612, %vm670
      %vm721 = vmand %vm613, %vm671
      %vm722 = vmand %vm614, %vm671
      %vm723 = vmand %vm615, %vm671
      %vm724 = vmand %vm616, %vm672
      %vm725 = vmand %vm617, %vm672
      %vm726 = vmand %vm618, %vm672
      %v727 = vsel %vm673, 1, 0
      %v728 = vsel %vm674, 1, 0
      %v729 = vsel %vm675, 1, 0
      %v730 = vsel %vm676, 1, 0
      %v731 = vsel %vm677, 1, 0
      %v732 = vsel %vm678, 1, 0
      %v733 = vsel %vm679, 1, 0
      %v734 = vsel %vm680, 1, 0
      %v735 = vsel %vm681, 1, 0
      %v736 = vsel %vm682, 1, 0
      %v737 = vsel %vm683, 1, 0
      %v738 = vsel %vm684, 1, 0
      %v739 = vsel %vm685, 1, 0
      %v740 = vsel %vm686, 1, 0
      %v741 = vsel %vm687, 1, 0
      %v742 = vsel %vm688, 1, 0
      %v743 = vsel %vm689, 1, 0
      %v744 = vsel %vm690, 1, 0
      %v745 = vsel %vm691, 1, 0
      %v746 = vsel %vm692, 1, 0
      %v747 = vsel %vm693, 1, 0
      %v748 = vsel %vm694, 1, 0
      %v749 = vsel %vm695, 1, 0
      %v750 = vsel %vm696, 1, 0
      %v751 = vsel %vm697, 1, 0
      %v752 = vsel %vm698, 1, 0
      %v753 = vsel %vm699, 1, 0
      %v754 = vsel %vm700, 1, 0
      %v755 = vsel %vm701, 1, 0
      %v756 = vsel %vm702, 1, 0
      %v757 = vsel %vm703, 1, 0
      %v758 = vsel %vm704, 1, 0
      %v759 = vsel %vm705, 1, 0
      %v760 = vsel %vm706, 1, 0
      %v761 = vsel %vm707, 1, 0
      %v762 = vsel %vm708, 1, 0
      %v763 = vsel %vm709, 1, 0
      %v764 = vsel %vm710, 1, 0
      %v765 = vsel %vm711, 1, 0
      %v766 = vsel %vm712, 1, 0
      %v767 = vsel %vm713, 1, 0
      %v768 = vsel %vm714, 1, 0
      %v769 = vsel %vm715, 1, 0
      %v770 = vsel %vm716, 1, 0
      %v771 = vsel %vm717, 1, 0
      %v772 = vsel %vm718, 1, 0
      %v773 = vsel %vm719, 1, 0
      %v774 = vsel %vm720, 1, 0
      %v775 = vsel %vm721, 1, 0
      %v776 = vsel %vm722, 1, 0
      %v777 = vsel %vm723, 1, 0
      %v778 = vsel %vm724, 1, 0
      %v779 = vsel %vm725, 1, 0
      %v780 = vsel %vm726, 1, 0
      %vm781 = vcmp.eq.s32.totalorder %v727, 1
      %vm782 = vcmp.eq.s32.totalorder %v728, 1
      %vm783 = vcmp.eq.s32.totalorder %v729, 1
      %vm784 = vcmp.eq.s32.totalorder %v730, 1
      %vm785 = vcmp.eq.s32.totalorder %v731, 1
      %vm786 = vcmp.eq.s32.totalorder %v732, 1
      %vm787 = vcmp.eq.s32.totalorder %v733, 1
      %vm788 = vcmp.eq.s32.totalorder %v734, 1
      %vm789 = vcmp.eq.s32.totalorder %v735, 1
      %vm790 = vcmp.eq.s32.totalorder %v736, 1
      %vm791 = vcmp.eq.s32.totalorder %v737, 1
      %vm792 = vcmp.eq.s32.totalorder %v738, 1
      %vm793 = vcmp.eq.s32.totalorder %v739, 1
      %vm794 = vcmp.eq.s32.totalorder %v740, 1
      %vm795 = vcmp.eq.s32.totalorder %v741, 1
      %vm796 = vcmp.eq.s32.totalorder %v742, 1
      %vm797 = vcmp.eq.s32.totalorder %v743, 1
      %vm798 = vcmp.eq.s32.totalorder %v744, 1
      %vm799 = vcmp.eq.s32.totalorder %v745, 1
      %vm800 = vcmp.eq.s32.totalorder %v746, 1
      %vm801 = vcmp.eq.s32.totalorder %v747, 1
      %vm802 = vcmp.eq.s32.totalorder %v748, 1
      %vm803 = vcmp.eq.s32.totalorder %v749, 1
      %vm804 = vcmp.eq.s32.totalorder %v750, 1
      %vm805 = vcmp.eq.s32.totalorder %v751, 1
      %vm806 = vcmp.eq.s32.totalorder %v752, 1
      %vm807 = vcmp.eq.s32.totalorder %v753, 1
      %vm808 = vcmp.eq.s32.totalorder %v754, 1
      %vm809 = vcmp.eq.s32.totalorder %v755, 1
      %vm810 = vcmp.eq.s32.totalorder %v756, 1
      %vm811 = vcmp.eq.s32.totalorder %v757, 1
      %vm812 = vcmp.eq.s32.totalorder %v758, 1
      %vm813 = vcmp.eq.s32.totalorder %v759, 1
      %vm814 = vcmp.eq.s32.totalorder %v760, 1
      %vm815 = vcmp.eq.s32.totalorder %v761, 1
      %vm816 = vcmp.eq.s32.totalorder %v762, 1
      %vm817 = vcmp.eq.s32.totalorder %v763, 1
      %vm818 = vcmp.eq.s32.totalorder %v764, 1
      %vm819 = vcmp.eq.s32.totalorder %v765, 1
      %vm820 = vcmp.eq.s32.totalorder %v766, 1
      %vm821 = vcmp.eq.s32.totalorder %v767, 1
      %vm822 = vcmp.eq.s32.totalorder %v768, 1
      %vm823 = vcmp.eq.s32.totalorder %v769, 1
      %vm824 = vcmp.eq.s32.totalorder %v770, 1
      %vm825 = vcmp.eq.s32.totalorder %v771, 1
      %vm826 = vcmp.eq.s32.totalorder %v772, 1
      %vm827 = vcmp.eq.s32.totalorder %v773, 1
      %vm828 = vcmp.eq.s32.totalorder %v774, 1
      %vm829 = vcmp.eq.s32.totalorder %v775, 1
      %vm830 = vcmp.eq.s32.totalorder %v776, 1
      %vm831 = vcmp.eq.s32.totalorder %v777, 1
      %vm832 = vcmp.eq.s32.totalorder %v778, 1
      %vm833 = vcmp.eq.s32.totalorder %v779, 1
      %vm834 = vcmp.eq.s32.totalorder %v780, 1
      %v835 = vsel %vm781, %v419, 0.0
      %v836 = vsel %vm782, %v420, 0.0
      %v837 = vsel %vm783, %v421, 0.0
      %v838 = vsel %vm784, %v422, 0.0
      %v839 = vsel %vm785, %v423, 0.0
      %v840 = vsel %vm786, %v424, 0.0
      %v841 = vsel %vm787, %v425, 0.0
      %v842 = vsel %vm788, %v426, 0.0
      %v843 = vsel %vm789, %v427, 0.0
      %v844 = vsel %vm790, %v428, 0.0
      %v845 = vsel %vm791, %v429, 0.0
      %v846 = vsel %vm792, %v430, 0.0
      %v847 = vsel %vm793, %v431, 0.0
      %v848 = vsel %vm794, %v432, 0.0
      %v849 = vsel %vm795, %v433, 0.0
      %v850 = vsel %vm796, %v434, 0.0
      %v851 = vsel %vm797, %v435, 0.0
      %v852 = vsel %vm798, %v436, 0.0
      %v853 = vsel %vm799, %v437, 0.0
      %v854 = vsel %vm800, %v438, 0.0
      %v855 = vsel %vm801, %v439, 0.0
      %v856 = vsel %vm802, %v440, 0.0
      %v857 = vsel %vm803, %v441, 0.0
      %v858 = vsel %vm804, %v442, 0.0
      %v859 = vsel %vm805, %v443, 0.0
      %v860 = vsel %vm806, %v444, 0.0
      %v861 = vsel %vm807, %v445, 0.0
      %v862 = vsel %vm808, %v446, 0.0
      %v863 = vsel %vm809, %v447, 0.0
      %v864 = vsel %vm810, %v448, 0.0
      %v865 = vsel %vm811, %v449, 0.0
      %v866 = vsel %vm812, %v450, 0.0
      %v867 = vsel %vm813, %v451, 0.0
      %v868 = vsel %vm814, %v452, 0.0
      %v869 = vsel %vm815, %v453, 0.0
      %v870 = vsel %vm816, %v454, 0.0
      %v871 = vsel %vm817, %v455, 0.0
      %v872 = vsel %vm818, %v456, 0.0
      %v873 = vsel %vm819, %v457, 0.0
      %v874 = vsel %vm820, %v458, 0.0
      %v875 = vsel %vm821, %v459, 0.0
      %v876 = vsel %vm822, %v460, 0.0
      %v877 = vsel %vm823, %v461, 0.0
      %v878 = vsel %vm824, %v462, 0.0
      %v879 = vsel %vm825, %v463, 0.0
      %v880 = vsel %vm826, %v464, 0.0
      %v881 = vsel %vm827, %v465, 0.0
      %v882 = vsel %vm828, %v466, 0.0
      %v883 = vsel %vm829, %v467, 0.0
      %v884 = vsel %vm830, %v468, 0.0
      %v885 = vsel %vm831, %v469, 0.0
      %v886 = vsel %vm832, %v470, 0.0
      %v887 = vsel %vm833, %v471, 0.0
      %v888 = vsel %vm834, %v472, 0.0
      %v889 = vpack.c.bf16 %v836, %v835
      %v890 = vpack.c.bf16 %v839, %v838
      %v891 = vpack.c.bf16 %v842, %v841
      %v892 = vpack.c.bf16 %v845, %v844
      %v893 = vpack.c.bf16 %v848, %v847
      %v894 = vpack.c.bf16 %v851, %v850
      %v895 = vpack.c.bf16 %v854, %v853
      %v896 = vpack.c.bf16 %v857, %v856
      %v897 = vpack.c.bf16 %v860, %v859
      %v898 = vpack.c.bf16 %v863, %v862
      %v899 = vpack.c.bf16 %v866, %v865
      %v900 = vpack.c.bf16 %v869, %v868
      %v901 = vpack.c.bf16 %v872, %v871
      %v902 = vpack.c.bf16 %v875, %v874
      %v903 = vpack.c.bf16 %v878, %v877
      %v904 = vpack.c.bf16 %v881, %v880
      %v905 = vld [vmem:[%s2] sm:$0xf]
      %vm954 = vcmask 1046528
      %v955 = vrot.slane %v835, 1
      %v956 = vrot.slane %v836, 1
      %v957 = vsel %vm954, %v955, %v956
      %v958 = vrot.slane %v837, 1
      %v959 = vsel %vm954, %v956, %v958
      %v960 = vrot.slane %v838, 1
      %v961 = vrot.slane %v839, 1
      %v962 = vsel %vm954, %v960, %v961
      %v963 = vrot.slane %v840, 1
      %v964 = vsel %vm954, %v961, %v963
      %v965 = vrot.slane %v841, 1
      %v966 = vrot.slane %v842, 1
      %v967 = vsel %vm954, %v965, %v966
      %v968 = vrot.slane %v843, 1
      %v969 = vsel %vm954, %v966, %v968
      %v970 = vrot.slane %v844, 1
      %v971 = vrot.slane %v845, 1
      %v972 = vsel %vm954, %v970, %v971
      %v973 = vrot.slane %v846, 1
      %v974 = vsel %vm954, %v971, %v973
      %v975 = vrot.slane %v847, 1
      %v976 = vrot.slane %v848, 1
      %v977 = vsel %vm954, %v975, %v976
      %v978 = vrot.slane %v849, 1
      %v979 = vsel %vm954, %v976, %v978
      %v980 = vrot.slane %v850, 1
      %v981 = vrot.slane %v851, 1
      %v982 = vsel %vm954, %v980, %v981
      %v983 = vrot.slane %v852, 1
      %v984 = vsel %vm954, %v981, %v983
      %v985 = vrot.slane %v853, 1
      %v986 = vrot.slane %v854, 1
      %v987 = vsel %vm954, %v985, %v986
      %v988 = vrot.slane %v855, 1
      %v989 = vsel %vm954, %v986, %v988
      %v990 = vrot.slane %v856, 1
      %v991 = vrot.slane %v857, 1
      %v992 = vsel %vm954, %v990, %v991
      %v993 = vrot.slane %v858, 1
      %v994 = vsel %vm954, %v991, %v993
      %v995 = vrot.slane %v859, 1
      %v996 = vrot.slane %v860, 1
      %v997 = vsel %vm954, %v995, %v996
      %v998 = vrot.slane %v861, 1
      %v999 = vsel %vm954, %v996, %v998
      %v1000 = vrot.slane %v862, 1
      %v1001 = vrot.slane %v863, 1
      %v1002 = vsel %vm954, %v1000, %v1001
      %v1003 = vrot.slane %v864, 1
      %v1004 = vsel %vm954, %v1001, %v1003
      %v1005 = vrot.slane %v865, 1
      %v1006 = vrot.slane %v866, 1
      %v1007 = vsel %vm954, %v1005, %v1006
      %v1008 = vrot.slane %v867, 1
      %v1009 = vsel %vm954, %v1006, %v1008
      %v1010 = vrot.slane %v868, 1
      %v1011 = vrot.slane %v869, 1
      %v1012 = vsel %vm954, %v1010, %v1011
      %v1013 = vrot.slane %v870, 1
      %v1014 = vsel %vm954, %v1011, %v1013
      %v1015 = vrot.slane %v871, 1
      %v1016 = vrot.slane %v872, 1
      %v1017 = vsel %vm954, %v1015, %v1016
      %v1018 = vrot.slane %v873, 1
      %v1019 = vsel %vm954, %v1016, %v1018
      %v1020 = vrot.slane %v874, 1
      %v1021 = vrot.slane %v875, 1
      %v1022 = vsel %vm954, %v1020, %v1021
      %v1023 = vrot.slane %v876, 1
      %v1024 = vsel %vm954, %v1021, %v1023
      %v1025 = vrot.slane %v877, 1
      %v1026 = vrot.slane %v878, 1
      %v1027 = vsel %vm954, %v1025, %v1026
      %v1028 = vrot.slane %v879, 1
      %v1029 = vsel %vm954, %v1026, %v1028
      %v1030 = vrot.slane %v880, 1
      %v1031 = vrot.slane %v881, 1
      %v1032 = vsel %vm954, %v1030, %v1031
      %v1033 = vrot.slane %v882, 1
      %v1034 = vsel %vm954, %v1031, %v1033
      %v1067 = vpack.c.bf16 %v959, %v957
      %v1068 = vpack.c.bf16 %v964, %v962
      %v1069 = vpack.c.bf16 %v969, %v967
      %v1070 = vpack.c.bf16 %v974, %v972
      %v1071 = vpack.c.bf16 %v979, %v977
      %v1072 = vpack.c.bf16 %v984, %v982
      %v1073 = vpack.c.bf16 %v989, %v987
      %v1074 = vpack.c.bf16 %v994, %v992
      %v1075 = vpack.c.bf16 %v999, %v997
      %v1076 = vpack.c.bf16 %v1004, %v1002
      %v1077 = vpack.c.bf16 %v1009, %v1007
      %v1078 = vpack.c.bf16 %v1014, %v1012
      %v1079 = vpack.c.bf16 %v1019, %v1017
      %v1080 = vpack.c.bf16 %v1024, %v1022
      %v1081 = vpack.c.bf16 %v1029, %v1027
      %v1082 = vpack.c.bf16 %v1034, %v1032
      %s1083 = scalar_lea.vmem %s2, 4
      %v1084 = vld [vmem:[%s1083] sm:$0xf]
      %vm1085 = vcmask 64512
      %v1087 = vsel %vm1085, %v1067, 0
      %v1090 = vsel %vm1085, %v1068, 0
      %v1093 = vsel %vm1085, %v1069, 0
      %v1096 = vsel %vm1085, %v1070, 0
      %v1099 = vsel %vm1085, %v1071, 0
      %v1102 = vsel %vm1085, %v1072, 0
      %v1105 = vsel %vm1085, %v1073, 0
      %v1108 = vsel %vm1085, %v1074, 0
      %v1111 = vsel %vm1085, %v1075, 0
      %v1114 = vsel %vm1085, %v1076, 0
      %v1117 = vsel %vm1085, %v1077, 0
      %v1120 = vsel %vm1085, %v1078, 0
      %v1123 = vsel %vm1085, %v1079, 0
      %v1126 = vsel %vm1085, %v1080, 0
      %v1129 = vsel %vm1085, %v1081, 0
      %v1132 = vsel %vm1085, %v1082, 0
      %vm1134 = vcmask 1043456
      %v1136 = vsel %vm1134, %v1084, 0
      %1138 = vmatprep.subr.bf16.mxu0 0
      %1139 = vmatpush1.bf16.msra.mxu0 0
      %1140 = vmatprep.subr.bf16.mxu0 0
      %1141 = vmatpush1.bf16.msra.mxu0 0
      %1142 = vmatprep.subr.bf16.mxu0 0
      %1143 = vmatpush1.bf16.msra.mxu0 0
      %1144 = vmatprep.subr.bf16.mxu0 0
      %1145 = vmatpush1.bf16.msra.mxu0 0
      %1146 = vmatprep.subr.bf16.mxu0 0
      %1147 = vmatpush1.bf16.msra.mxu0 0
      %1148 = vmatprep.subr.bf16.mxu0 0
      %1149 = vmatpush1.bf16.msra.mxu0 0
      %1150 = vmatprep.subr.bf16.mxu0 0
      %1151 = vmatpush1.bf16.msra.mxu0 0
      %1152 = vmatprep.subr.bf16.mxu0 0
      %1153 = vmatpush1.bf16.msra.mxu0 %v1136
      %1154 = vmatprep.subr.bf16.mxu0 0
      %1155 = vmatpush2.bf16.msra.mxu0 0
      %1156 = vmatprep.subr.bf16.mxu0 0
      %1157 = vmatpush2.bf16.msra.mxu0 0
      %1158 = vmatprep.subr.bf16.mxu0 0
      %1159 = vmatpush2.bf16.msra.mxu0 0
      %1160 = vmatprep.subr.bf16.mxu0 0
      %1161 = vmatpush2.bf16.msra.mxu0 0
      %1162 = vmatprep.subr.bf16.mxu0 0
      %1163 = vmatpush2.bf16.msra.mxu0 0
      %1164 = vmatprep.subr.bf16.mxu0 0
      %1165 = vmatpush2.bf16.msra.mxu0 0
      %1166 = vmatprep.subr.bf16.mxu0 0
      %1167 = vmatpush2.bf16.msra.mxu0 0
      %1168 = vmatprep.subr.bf16.mxu0 0
      %1169 = vmatpush2.bf16.msra.mxu0 0
      %1170 = vmatprep.mubr.bf16.mxu0 0
      %1171 = vmatmul.mubr.bf16.gmra.mxu0 %v1087
      %v1172 = vpop.f32.mrf.mxu0
      %v1173 = vadd.f32 0.0, %v1172
      %v1174 = vpop.f32.mrf.mxu0
      %v1175 = vpop.f32.mrf.mxu0
      %v1176 = vadd.f32 0.0, %v1175
      %v1177 = vpop.f32.mrf.mxu0
      %1178 = vmatprep.mubr.bf16.mxu0 0
      %1179 = vmatmul.mubr.bf16.gmra.mxu0 %v1090
      %v1180 = vpop.f32.mrf.mxu0
      %v1181 = vadd.f32 0.0, %v1180
      %v1182 = vpop.f32.mrf.mxu0
      %v1183 = vpop.f32.mrf.mxu0
      %v1184 = vadd.f32 0.0, %v1183
      %v1185 = vpop.f32.mrf.mxu0
      %1186 = vmatprep.mubr.bf16.mxu0 0
      %1187 = vmatmul.mubr.bf16.gmra.mxu0 %v1093
      %v1188 = vpop.f32.mrf.mxu0
      %v1189 = vadd.f32 0.0, %v1188
      %v1190 = vpop.f32.mrf.mxu0
      %v1191 = vpop.f32.mrf.mxu0
      %v1192 = vadd.f32 0.0, %v1191
      %v1193 = vpop.f32.mrf.mxu0
      %1194 = vmatprep.mubr.bf16.mxu0 0
      %1195 = vmatmul.mubr.bf16.gmra.mxu0 %v1096
      %v1196 = vpop.f32.mrf.mxu0
      %v1197 = vadd.f32 0.0, %v1196
      %v1198 = vpop.f32.mrf.mxu0
      %v1199 = vpop.f32.mrf.mxu0
      %v1200 = vadd.f32 0.0, %v1199
      %v1201 = vpop.f32.mrf.mxu0
      %1202 = vmatprep.mubr.bf16.mxu0 0
      %1203 = vmatmul.mubr.bf16.gmra.mxu0 %v1099
      %v1204 = vpop.f32.mrf.mxu0
      %v1205 = vadd.f32 0.0, %v1204
      %v1206 = vpop.f32.mrf.mxu0
      %v1207 = vpop.f32.mrf.mxu0
      %v1208 = vadd.f32 0.0, %v1207
      %v1209 = vpop.f32.mrf.mxu0
      %1210 = vmatprep.mubr.bf16.mxu0 0
      %1211 = vmatmul.mubr.bf16.gmra.mxu0 %v1102
      %v1212 = vpop.f32.mrf.mxu0
      %v1213 = vadd.f32 0.0, %v1212
      %v1214 = vpop.f32.mrf.mxu0
      %v1215 = vpop.f32.mrf.mxu0
      %v1216 = vadd.f32 0.0, %v1215
      %v1217 = vpop.f32.mrf.mxu0
      %1218 = vmatprep.mubr.bf16.mxu0 0
      %1219 = vmatmul.mubr.bf16.gmra.mxu0 %v1105
      %v1220 = vpop.f32.mrf.mxu0
      %v1221 = vadd.f32 0.0, %v1220
      %v1222 = vpop.f32.mrf.mxu0
      %v1223 = vpop.f32.mrf.mxu0
      %v1224 = vadd.f32 0.0, %v1223
      %v1225 = vpop.f32.mrf.mxu0
      %1226 = vmatprep.mubr.bf16.mxu0 0
      %1227 = vmatmul.mubr.bf16.gmra.mxu0 %v1108
      %v1228 = vpop.f32.mrf.mxu0
      %v1229 = vadd.f32 0.0, %v1228
      %v1230 = vpop.f32.mrf.mxu0
      %v1231 = vpop.f32.mrf.mxu0
      %v1232 = vadd.f32 0.0, %v1231
      %v1233 = vpop.f32.mrf.mxu0
      %1234 = vmatprep.mubr.bf16.mxu0 0
      %1235 = vmatmul.mubr.bf16.gmra.mxu0 %v1111
      %v1236 = vpop.f32.mrf.mxu0
      %v1237 = vadd.f32 0.0, %v1236
      %v1238 = vpop.f32.mrf.mxu0
      %v1239 = vpop.f32.mrf.mxu0
      %v1240 = vadd.f32 0.0, %v1239
      %v1241 = vpop.f32.mrf.mxu0
      %1242 = vmatprep.mubr.bf16.mxu0 0
      %1243 = vmatmul.mubr.bf16.gmra.mxu0 %v1114
      %v1244 = vpop.f32.mrf.mxu0
      %v1245 = vadd.f32 0.0, %v1244
      %v1246 = vpop.f32.mrf.mxu0
      %v1247 = vpop.f32.mrf.mxu0
      %v1248 = vadd.f32 0.0, %v1247
      %v1249 = vpop.f32.mrf.mxu0
      %1250 = vmatprep.mubr.bf16.mxu0 0
      %1251 = vmatmul.mubr.bf16.gmra.mxu0 %v1117
      %v1252 = vpop.f32.mrf.mxu0
      %v1253 = vadd.f32 0.0, %v1252
      %v1254 = vpop.f32.mrf.mxu0
      %v1255 = vpop.f32.mrf.mxu0
      %v1256 = vadd.f32 0.0, %v1255
      %v1257 = vpop.f32.mrf.mxu0
      %1258 = vmatprep.mubr.bf16.mxu0 0
      %1259 = vmatmul.mubr.bf16.gmra.mxu0 %v1120
      %v1260 = vpop.f32.mrf.mxu0
      %v1261 = vadd.f32 0.0, %v1260
      %v1262 = vpop.f32.mrf.mxu0
      %v1263 = vpop.f32.mrf.mxu0
      %v1264 = vadd.f32 0.0, %v1263
      %v1265 = vpop.f32.mrf.mxu0
      %1266 = vmatprep.mubr.bf16.mxu0 0
      %1267 = vmatmul.mubr.bf16.gmra.mxu0 %v1123
      %v1268 = vpop.f32.mrf.mxu0
      %v1269 = vadd.f32 0.0, %v1268
      %v1270 = vpop.f32.mrf.mxu0
      %v1271 = vpop.f32.mrf.mxu0
      %v1272 = vadd.f32 0.0, %v1271
      %v1273 = vpop.f32.mrf.mxu0
      %1274 = vmatprep.mubr.bf16.mxu0 0
      %1275 = vmatmul.mubr.bf16.gmra.mxu0 %v1126
      %v1276 = vpop.f32.mrf.mxu0
      %v1277 = vadd.f32 0.0, %v1276
      %v1278 = vpop.f32.mrf.mxu0
      %v1279 = vpop.f32.mrf.mxu0
      %v1280 = vadd.f32 0.0, %v1279
      %v1281 = vpop.f32.mrf.mxu0
      %1282 = vmatprep.mubr.bf16.mxu0 0
      %1283 = vmatmul.mubr.bf16.gmra.mxu0 %v1129
      %v1284 = vpop.f32.mrf.mxu0
      %v1285 = vadd.f32 0.0, %v1284
      %v1286 = vpop.f32.mrf.mxu0
      %v1287 = vpop.f32.mrf.mxu0
      %v1288 = vadd.f32 0.0, %v1287
      %v1289 = vpop.f32.mrf.mxu0
      %1290 = vmatprep.mubr.bf16.mxu0 0
      %1291 = vmatmul.mubr.bf16.gmra.mxu0 %v1132
      %v1292 = vpop.f32.mrf.mxu0
      %v1293 = vadd.f32 0.0, %v1292
      %v1294 = vpop.f32.mrf.mxu0
      %v1295 = vpop.f32.mrf.mxu0
      %v1296 = vadd.f32 0.0, %v1295
      %v1297 = vpop.f32.mrf.mxu0
      %1298 = vdwg.mxu0
      %v1300 = vsel %vm1085, %v889, 0
      %v1303 = vsel %vm1085, %v890, 0
      %v1306 = vsel %vm1085, %v891, 0
      %v1309 = vsel %vm1085, %v892, 0
      %v1312 = vsel %vm1085, %v893, 0
      %v1315 = vsel %vm1085, %v894, 0
      %v1318 = vsel %vm1085, %v895, 0
      %v1321 = vsel %vm1085, %v896, 0
      %v1324 = vsel %vm1085, %v897, 0
      %v1327 = vsel %vm1085, %v898, 0
      %v1330 = vsel %vm1085, %v899, 0
      %v1333 = vsel %vm1085, %v900, 0
      %v1336 = vsel %vm1085, %v901, 0
      %v1339 = vsel %vm1085, %v902, 0
      %v1342 = vsel %vm1085, %v903, 0
      %v1345 = vsel %vm1085, %v904, 0
      %v1348 = vsel %vm1134, %v905, 0
      %1350 = vmatprep.subr.bf16.mxu0 0
      %1351 = vmatpush1.bf16.msra.mxu0 0
      %1352 = vmatprep.subr.bf16.mxu0 0
      %1353 = vmatpush1.bf16.msra.mxu0 0
      %1354 = vmatprep.subr.bf16.mxu0 0
      %1355 = vmatpush1.bf16.msra.mxu0 0
      %1356 = vmatprep.subr.bf16.mxu0 0
      %1357 = vmatpush1.bf16.msra.mxu0 0
      %1358 = vmatprep.subr.bf16.mxu0 0
      %1359 = vmatpush1.bf16.msra.mxu0 0
      %1360 = vmatprep.subr.bf16.mxu0 0
      %1361 = vmatpush1.bf16.msra.mxu0 0
      %1362 = vmatprep.subr.bf16.mxu0 0
      %1363 = vmatpush1.bf16.msra.mxu0 0
      %1364 = vmatprep.subr.bf16.mxu0 0
      %1365 = vmatpush1.bf16.msra.mxu0 %v1348
      %1366 = vmatprep.subr.bf16.mxu0 0
      %1367 = vmatpush2.bf16.msra.mxu0 0
      %1368 = vmatprep.subr.bf16.mxu0 0
      %1369 = vmatpush2.bf16.msra.mxu0 0
      %1370 = vmatprep.subr.bf16.mxu0 0
      %1371 = vmatpush2.bf16.msra.mxu0 0
      %1372 = vmatprep.subr.bf16.mxu0 0
      %1373 = vmatpush2.bf16.msra.mxu0 0
      %1374 = vmatprep.subr.bf16.mxu0 0
      %1375 = vmatpush2.bf16.msra.mxu0 0
      %1376 = vmatprep.subr.bf16.mxu0 0
      %1377 = vmatpush2.bf16.msra.mxu0 0
      %1378 = vmatprep.subr.bf16.mxu0 0
      %1379 = vmatpush2.bf16.msra.mxu0 0
      %1380 = vmatprep.subr.bf16.mxu0 0
      %1381 = vmatpush2.bf16.msra.mxu0 0
      %1382 = vmatprep.mubr.bf16.mxu0 0
      %1383 = vmatmul.mubr.bf16.gmra.mxu0 %v1300
      %v1384 = vpop.f32.mrf.mxu0
      %v1385 = vadd.f32 %v1173, %v1384
      %v1386 = vpop.f32.mrf.mxu0
      %v1387 = vpop.f32.mrf.mxu0
      %v1388 = vadd.f32 %v1176, %v1387
      %v1389 = vpop.f32.mrf.mxu0
      %1390 = vmatprep.mubr.bf16.mxu0 0
      %1391 = vmatmul.mubr.bf16.gmra.mxu0 %v1303
      %v1392 = vpop.f32.mrf.mxu0
      %v1393 = vadd.f32 %v1181, %v1392
      %v1394 = vpop.f32.mrf.mxu0
      %v1395 = vpop.f32.mrf.mxu0
      %v1396 = vadd.f32 %v1184, %v1395
      %v1397 = vpop.f32.mrf.mxu0
      %1398 = vmatprep.mubr.bf16.mxu0 0
      %1399 = vmatmul.mubr.bf16.gmra.mxu0 %v1306
      %v1400 = vpop.f32.mrf.mxu0
      %v1401 = vadd.f32 %v1189, %v1400
      %v1402 = vpop.f32.mrf.mxu0
      %v1403 = vpop.f32.mrf.mxu0
      %v1404 = vadd.f32 %v1192, %v1403
      %v1405 = vpop.f32.mrf.mxu0
      %1406 = vmatprep.mubr.bf16.mxu0 0
      %1407 = vmatmul.mubr.bf16.gmra.mxu0 %v1309
      %v1408 = vpop.f32.mrf.mxu0
      %v1409 = vadd.f32 %v1197, %v1408
      %v1410 = vpop.f32.mrf.mxu0
      %v1411 = vpop.f32.mrf.mxu0
      %v1412 = vadd.f32 %v1200, %v1411
      %v1413 = vpop.f32.mrf.mxu0
      %1414 = vmatprep.mubr.bf16.mxu0 0
      %1415 = vmatmul.mubr.bf16.gmra.mxu0 %v1312
      %v1416 = vpop.f32.mrf.mxu0
      %v1417 = vadd.f32 %v1205, %v1416
      %v1418 = vpop.f32.mrf.mxu0
      %v1419 = vpop.f32.mrf.mxu0
      %v1420 = vadd.f32 %v1208, %v1419
      %v1421 = vpop.f32.mrf.mxu0
      %1422 = vmatprep.mubr.bf16.mxu0 0
      %1423 = vmatmul.mubr.bf16.gmra.mxu0 %v1315
      %v1424 = vpop.f32.mrf.mxu0
      %v1425 = vadd.f32 %v1213, %v1424
      %v1426 = vpop.f32.mrf.mxu0
      %v1427 = vpop.f32.mrf.mxu0
      %v1428 = vadd.f32 %v1216, %v1427
      %v1429 = vpop.f32.mrf.mxu0
      %1430 = vmatprep.mubr.bf16.mxu0 0
      %1431 = vmatmul.mubr.bf16.gmra.mxu0 %v1318
      %v1432 = vpop.f32.mrf.mxu0
      %v1433 = vadd.f32 %v1221, %v1432
      %v1434 = vpop.f32.mrf.mxu0
      %v1435 = vpop.f32.mrf.mxu0
      %v1436 = vadd.f32 %v1224, %v1435
      %v1437 = vpop.f32.mrf.mxu0
      %1438 = vmatprep.mubr.bf16.mxu0 0
      %1439 = vmatmul.mubr.bf16.gmra.mxu0 %v1321
      %v1440 = vpop.f32.mrf.mxu0
      %v1441 = vadd.f32 %v1229, %v1440
      %v1442 = vpop.f32.mrf.mxu0
      %v1443 = vpop.f32.mrf.mxu0
      %v1444 = vadd.f32 %v1232, %v1443
      %v1445 = vpop.f32.mrf.mxu0
      %1446 = vmatprep.mubr.bf16.mxu0 0
      %1447 = vmatmul.mubr.bf16.gmra.mxu0 %v1324
      %v1448 = vpop.f32.mrf.mxu0
      %v1449 = vadd.f32 %v1237, %v1448
      %v1450 = vpop.f32.mrf.mxu0
      %v1451 = vpop.f32.mrf.mxu0
      %v1452 = vadd.f32 %v1240, %v1451
      %v1453 = vpop.f32.mrf.mxu0
      %1454 = vmatprep.mubr.bf16.mxu0 0
      %1455 = vmatmul.mubr.bf16.gmra.mxu0 %v1327
      %v1456 = vpop.f32.mrf.mxu0
      %v1457 = vadd.f32 %v1245, %v1456
      %v1458 = vpop.f32.mrf.mxu0
      %v1459 = vpop.f32.mrf.mxu0
      %v1460 = vadd.f32 %v1248, %v1459
      %v1461 = vpop.f32.mrf.mxu0
      %1462 = vmatprep.mubr.bf16.mxu0 0
      %1463 = vmatmul.mubr.bf16.gmra.mxu0 %v1330
      %v1464 = vpop.f32.mrf.mxu0
      %v1465 = vadd.f32 %v1253, %v1464
      %v1466 = vpop.f32.mrf.mxu0
      %v1467 = vpop.f32.mrf.mxu0
      %v1468 = vadd.f32 %v1256, %v1467
      %v1469 = vpop.f32.mrf.mxu0
      %1470 = vmatprep.mubr.bf16.mxu0 0
      %1471 = vmatmul.mubr.bf16.gmra.mxu0 %v1333
      %v1472 = vpop.f32.mrf.mxu0
      %v1473 = vadd.f32 %v1261, %v1472
      %v1474 = vpop.f32.mrf.mxu0
      %v1475 = vpop.f32.mrf.mxu0
      %v1476 = vadd.f32 %v1264, %v1475
      %v1477 = vpop.f32.mrf.mxu0
      %1478 = vmatprep.mubr.bf16.mxu0 0
      %1479 = vmatmul.mubr.bf16.gmra.mxu0 %v1336
      %v1480 = vpop.f32.mrf.mxu0
      %v1481 = vadd.f32 %v1269, %v1480
      %v1482 = vpop.f32.mrf.mxu0
      %v1483 = vpop.f32.mrf.mxu0
      %v1484 = vadd.f32 %v1272, %v1483
      %v1485 = vpop.f32.mrf.mxu0
      %1486 = vmatprep.mubr.bf16.mxu0 0
      %1487 = vmatmul.mubr.bf16.gmra.mxu0 %v1339
      %v1488 = vpop.f32.mrf.mxu0
      %v1489 = vadd.f32 %v1277, %v1488
      %v1490 = vpop.f32.mrf.mxu0
      %v1491 = vpop.f32.mrf.mxu0
      %v1492 = vadd.f32 %v1280, %v1491
      %v1493 = vpop.f32.mrf.mxu0
      %1494 = vmatprep.mubr.bf16.mxu0 0
      %1495 = vmatmul.mubr.bf16.gmra.mxu0 %v1342
      %v1496 = vpop.f32.mrf.mxu0
      %v1497 = vadd.f32 %v1285, %v1496
      %v1498 = vpop.f32.mrf.mxu0
      %v1499 = vpop.f32.mrf.mxu0
      %v1500 = vadd.f32 %v1288, %v1499
      %v1501 = vpop.f32.mrf.mxu0
      %1502 = vmatprep.mubr.bf16.mxu0 0
      %1503 = vmatmul.mubr.bf16.gmra.mxu0 %v1345
      %v1504 = vpop.f32.mrf.mxu0
      %v1505 = vadd.f32 %v1293, %v1504
      %v1506 = vpop.f32.mrf.mxu0
      %v1507 = vpop.f32.mrf.mxu0
      %v1508 = vadd.f32 %v1296, %v1507
      %v1509 = vpop.f32.mrf.mxu0
      %1510 = vdwg.mxu0
      %vm1511 = vcmask 1045504
      %v1512 = vrot.slane %v835, 2
      %v1513 = vrot.slane %v836, 2
      %v1514 = vsel %vm1511, %v1512, %v1513
      %v1515 = vrot.slane %v837, 2
      %v1516 = vsel %vm1511, %v1513, %v1515
      %v1517 = vrot.slane %v838, 2
      %v1518 = vrot.slane %v839, 2
      %v1519 = vsel %vm1511, %v1517, %v1518
      %v1520 = vrot.slane %v840, 2
      %v1521 = vsel %vm1511, %v1518, %v1520
      %v1522 = vrot.slane %v841, 2
      %v1523 = vrot.slane %v842, 2
      %v1524 = vsel %vm1511, %v1522, %v1523
      %v1525 = vrot.slane %v843, 2
      %v1526 = vsel %vm1511, %v1523, %v1525
      %v1527 = vrot.slane %v844, 2
      %v1528 = vrot.slane %v845, 2
      %v1529 = vsel %vm1511, %v1527, %v1528
      %v1530 = vrot.slane %v846, 2
      %v1531 = vsel %vm1511, %v1528, %v1530
      %v1532 = vrot.slane %v847, 2
      %v1533 = vrot.slane %v848, 2
      %v1534 = vsel %vm1511, %v1532, %v1533
      %v1535 = vrot.slane %v849, 2
      %v1536 = vsel %vm1511, %v1533, %v1535
      %v1537 = vrot.slane %v850, 2
      %v1538 = vrot.slane %v851, 2
      %v1539 = vsel %vm1511, %v1537, %v1538
      %v1540 = vrot.slane %v852, 2
      %v1541 = vsel %vm1511, %v1538, %v1540
      %v1542 = vrot.slane %v853, 2
      %v1543 = vrot.slane %v854, 2
      %v1544 = vsel %vm1511, %v1542, %v1543
      %v1545 = vrot.slane %v855, 2
      %v1546 = vsel %vm1511, %v1543, %v1545
      %v1547 = vrot.slane %v856, 2
      %v1548 = vrot.slane %v857, 2
      %v1549 = vsel %vm1511, %v1547, %v1548
      %v1550 = vrot.slane %v858, 2
      %v1551 = vsel %vm1511, %v1548, %v1550
      %v1552 = vrot.slane %v859, 2
      %v1553 = vrot.slane %v860, 2
      %v1554 = vsel %vm1511, %v1552, %v1553
      %v1555 = vrot.slane %v861, 2
      %v1556 = vsel %vm1511, %v1553, %v1555
      %v1557 = vrot.slane %v862, 2
      %v1558 = vrot.slane %v863, 2
      %v1559 = vsel %vm1511, %v1557, %v1558
      %v1560 = vrot.slane %v864, 2
      %v1561 = vsel %vm1511, %v1558, %v1560
      %v1562 = vrot.slane %v865, 2
      %v1563 = vrot.slane %v866, 2
      %v1564 = vsel %vm1511, %v1562, %v1563
      %v1565 = vrot.slane %v867, 2
      %v1566 = vsel %vm1511, %v1563, %v1565
      %v1567 = vrot.slane %v868, 2
      %v1568 = vrot.slane %v869, 2
      %v1569 = vsel %vm1511, %v1567, %v1568
      %v1570 = vrot.slane %v870, 2
      %v1571 = vsel %vm1511, %v1568, %v1570
      %v1572 = vrot.slane %v871, 2
      %v1573 = vrot.slane %v872, 2
      %v1574 = vsel %vm1511, %v1572, %v1573
      %v1575 = vrot.slane %v873, 2
      %v1576 = vsel %vm1511, %v1573, %v1575
      %v1577 = vrot.slane %v874, 2
      %v1578 = vrot.slane %v875, 2
      %v1579 = vsel %vm1511, %v1577, %v1578
      %v1580 = vrot.slane %v876, 2
      %v1581 = vsel %vm1511, %v1578, %v1580
      %v1582 = vrot.slane %v877, 2
      %v1583 = vrot.slane %v878, 2
      %v1584 = vsel %vm1511, %v1582, %v1583
      %v1585 = vrot.slane %v879, 2
      %v1586 = vsel %vm1511, %v1583, %v1585
      %v1587 = vrot.slane %v880, 2
      %v1588 = vrot.slane %v881, 2
      %v1589 = vsel %vm1511, %v1587, %v1588
      %v1590 = vrot.slane %v882, 2
      %v1591 = vsel %vm1511, %v1588, %v1590
      %v1624 = vpack.c.bf16 %v1516, %v1514
      %v1625 = vpack.c.bf16 %v1521, %v1519
      %v1626 = vpack.c.bf16 %v1526, %v1524
      %v1627 = vpack.c.bf16 %v1531, %v1529
      %v1628 = vpack.c.bf16 %v1536, %v1534
      %v1629 = vpack.c.bf16 %v1541, %v1539
      %v1630 = vpack.c.bf16 %v1546, %v1544
      %v1631 = vpack.c.bf16 %v1551, %v1549
      %v1632 = vpack.c.bf16 %v1556, %v1554
      %v1633 = vpack.c.bf16 %v1561, %v1559
      %v1634 = vpack.c.bf16 %v1566, %v1564
      %v1635 = vpack.c.bf16 %v1571, %v1569
      %v1636 = vpack.c.bf16 %v1576, %v1574
      %v1637 = vpack.c.bf16 %v1581, %v1579
      %v1638 = vpack.c.bf16 %v1586, %v1584
      %v1639 = vpack.c.bf16 %v1591, %v1589
      %s1640 = scalar_lea.vmem %s2, 8
      %v1641 = vld [vmem:[%s1640] sm:$0xf]
      %v1643 = vsel %vm1085, %v1624, 0
      %v1646 = vsel %vm1085, %v1625, 0
      %v1649 = vsel %vm1085, %v1626, 0
      %v1652 = vsel %vm1085, %v1627, 0
      %v1655 = vsel %vm1085, %v1628, 0
      %v1658 = vsel %vm1085, %v1629, 0
      %v1661 = vsel %vm1085, %v1630, 0
      %v1664 = vsel %vm1085, %v1631, 0
      %v1667 = vsel %vm1085, %v1632, 0
      %v1670 = vsel %vm1085, %v1633, 0
      %v1673 = vsel %vm1085, %v1634, 0
      %v1676 = vsel %vm1085, %v1635, 0
      %v1679 = vsel %vm1085, %v1636, 0
      %v1682 = vsel %vm1085, %v1637, 0
      %v1685 = vsel %vm1085, %v1638, 0
      %v1688 = vsel %vm1085, %v1639, 0
      %v1691 = vsel %vm1134, %v1641, 0
      %1693 = vmatprep.subr.bf16.mxu0 0
      %1694 = vmatpush1.bf16.msra.mxu0 0
      %1695 = vmatprep.subr.bf16.mxu0 0
      %1696 = vmatpush1.bf16.msra.mxu0 0
      %1697 = vmatprep.subr.bf16.mxu0 0
      %1698 = vmatpush1.bf16.msra.mxu0 0
      %1699 = vmatprep.subr.bf16.mxu0 0
      %1700 = vmatpush1.bf16.msra.mxu0 0
      %1701 = vmatprep.subr.bf16.mxu0 0
      %1702 = vmatpush1.bf16.msra.mxu0 0
      %1703 = vmatprep.subr.bf16.mxu0 0
      %1704 = vmatpush1.bf16.msra.mxu0 0
      %1705 = vmatprep.subr.bf16.mxu0 0
      %1706 = vmatpush1.bf16.msra.mxu0 0
      %1707 = vmatprep.subr.bf16.mxu0 0
      %1708 = vmatpush1.bf16.msra.mxu0 %v1691
      %1709 = vmatprep.subr.bf16.mxu0 0
      %1710 = vmatpush2.bf16.msra.mxu0 0
      %1711 = vmatprep.subr.bf16.mxu0 0
      %1712 = vmatpush2.bf16.msra.mxu0 0
      %1713 = vmatprep.subr.bf16.mxu0 0
      %1714 = vmatpush2.bf16.msra.mxu0 0
      %1715 = vmatprep.subr.bf16.mxu0 0
      %1716 = vmatpush2.bf16.msra.mxu0 0
      %1717 = vmatprep.subr.bf16.mxu0 0
      %1718 = vmatpush2.bf16.msra.mxu0 0
      %1719 = vmatprep.subr.bf16.mxu0 0
      %1720 = vmatpush2.bf16.msra.mxu0 0
      %1721 = vmatprep.subr.bf16.mxu0 0
      %1722 = vmatpush2.bf16.msra.mxu0 0
      %1723 = vmatprep.subr.bf16.mxu0 0
      %1724 = vmatpush2.bf16.msra.mxu0 0
      %1725 = vmatprep.mubr.bf16.mxu0 0
      %1726 = vmatmul.mubr.bf16.gmra.mxu0 %v1643
      %v1727 = vpop.f32.mrf.mxu0
      %v1728 = vadd.f32 0.0, %v1727
      %v1729 = vpop.f32.mrf.mxu0
      %v1730 = vpop.f32.mrf.mxu0
      %v1731 = vadd.f32 0.0, %v1730
      %v1732 = vpop.f32.mrf.mxu0
      %1733 = vmatprep.mubr.bf16.mxu0 0
      %1734 = vmatmul.mubr.bf16.gmra.mxu0 %v1646
      %v1735 = vpop.f32.mrf.mxu0
      %v1736 = vadd.f32 0.0, %v1735
      %v1737 = vpop.f32.mrf.mxu0
      %v1738 = vpop.f32.mrf.mxu0
      %v1739 = vadd.f32 0.0, %v1738
      %v1740 = vpop.f32.mrf.mxu0
      %1741 = vmatprep.mubr.bf16.mxu0 0
      %1742 = vmatmul.mubr.bf16.gmra.mxu0 %v1649
      %v1743 = vpop.f32.mrf.mxu0
      %v1744 = vadd.f32 0.0, %v1743
      %v1745 = vpop.f32.mrf.mxu0
      %v1746 = vpop.f32.mrf.mxu0
      %v1747 = vadd.f32 0.0, %v1746
      %v1748 = vpop.f32.mrf.mxu0
      %1749 = vmatprep.mubr.bf16.mxu0 0
      %1750 = vmatmul.mubr.bf16.gmra.mxu0 %v1652
      %v1751 = vpop.f32.mrf.mxu0
      %v1752 = vadd.f32 0.0, %v1751
      %v1753 = vpop.f32.mrf.mxu0
      %v1754 = vpop.f32.mrf.mxu0
      %v1755 = vadd.f32 0.0, %v1754
      %v1756 = vpop.f32.mrf.mxu0
      %1757 = vmatprep.mubr.bf16.mxu0 0
      %1758 = vmatmul.mubr.bf16.gmra.mxu0 %v1655
      %v1759 = vpop.f32.mrf.mxu0
      %v1760 = vadd.f32 0.0, %v1759
      %v1761 = vpop.f32.mrf.mxu0
      %v1762 = vpop.f32.mrf.mxu0
      %v1763 = vadd.f32 0.0, %v1762
      %v1764 = vpop.f32.mrf.mxu0
      %1765 = vmatprep.mubr.bf16.mxu0 0
      %1766 = vmatmul.mubr.bf16.gmra.mxu0 %v1658
      %v1767 = vpop.f32.mrf.mxu0
      %v1768 = vadd.f32 0.0, %v1767
      %v1769 = vpop.f32.mrf.mxu0
      %v1770 = vpop.f32.mrf.mxu0
      %v1771 = vadd.f32 0.0, %v1770
      %v1772 = vpop.f32.mrf.mxu0
      %1773 = vmatprep.mubr.bf16.mxu0 0
      %1774 = vmatmul.mubr.bf16.gmra.mxu0 %v1661
      %v1775 = vpop.f32.mrf.mxu0
      %v1776 = vadd.f32 0.0, %v1775
      %v1777 = vpop.f32.mrf.mxu0
      %v1778 = vpop.f32.mrf.mxu0
      %v1779 = vadd.f32 0.0, %v1778
      %v1780 = vpop.f32.mrf.mxu0
      %1781 = vmatprep.mubr.bf16.mxu0 0
      %1782 = vmatmul.mubr.bf16.gmra.mxu0 %v1664
      %v1783 = vpop.f32.mrf.mxu0
      %v1784 = vadd.f32 0.0, %v1783
      %v1785 = vpop.f32.mrf.mxu0
      %v1786 = vpop.f32.mrf.mxu0
      %v1787 = vadd.f32 0.0, %v1786
      %v1788 = vpop.f32.mrf.mxu0
      %1789 = vmatprep.mubr.bf16.mxu0 0
      %1790 = vmatmul.mubr.bf16.gmra.mxu0 %v1667
      %v1791 = vpop.f32.mrf.mxu0
      %v1792 = vadd.f32 0.0, %v1791
      %v1793 = vpop.f32.mrf.mxu0
      %v1794 = vpop.f32.mrf.mxu0
      %v1795 = vadd.f32 0.0, %v1794
      %v1796 = vpop.f32.mrf.mxu0
      %1797 = vmatprep.mubr.bf16.mxu0 0
      %1798 = vmatmul.mubr.bf16.gmra.mxu0 %v1670
      %v1799 = vpop.f32.mrf.mxu0
      %v1800 = vadd.f32 0.0, %v1799
      %v1801 = vpop.f32.mrf.mxu0
      %v1802 = vpop.f32.mrf.mxu0
      %v1803 = vadd.f32 0.0, %v1802
      %v1804 = vpop.f32.mrf.mxu0
      %1805 = vmatprep.mubr.bf16.mxu0 0
      %1806 = vmatmul.mubr.bf16.gmra.mxu0 %v1673
      %v1807 = vpop.f32.mrf.mxu0
      %v1808 = vadd.f32 0.0, %v1807
      %v1809 = vpop.f32.mrf.mxu0
      %v1810 = vpop.f32.mrf.mxu0
      %v1811 = vadd.f32 0.0, %v1810
      %v1812 = vpop.f32.mrf.mxu0
      %1813 = vmatprep.mubr.bf16.mxu0 0
      %1814 = vmatmul.mubr.bf16.gmra.mxu0 %v1676
      %v1815 = vpop.f32.mrf.mxu0
      %v1816 = vadd.f32 0.0, %v1815
      %v1817 = vpop.f32.mrf.mxu0
      %v1818 = vpop.f32.mrf.mxu0
      %v1819 = vadd.f32 0.0, %v1818
      %v1820 = vpop.f32.mrf.mxu0
      %1821 = vmatprep.mubr.bf16.mxu0 0
      %1822 = vmatmul.mubr.bf16.gmra.mxu0 %v1679
      %v1823 = vpop.f32.mrf.mxu0
      %v1824 = vadd.f32 0.0, %v1823
      %v1825 = vpop.f32.mrf.mxu0
      %v1826 = vpop.f32.mrf.mxu0
      %v1827 = vadd.f32 0.0, %v1826
      %v1828 = vpop.f32.mrf.mxu0
      %1829 = vmatprep.mubr.bf16.mxu0 0
      %1830 = vmatmul.mubr.bf16.gmra.mxu0 %v1682
      %v1831 = vpop.f32.mrf.mxu0
      %v1832 = vadd.f32 0.0, %v1831
      %v1833 = vpop.f32.mrf.mxu0
      %v1834 = vpop.f32.mrf.mxu0
      %v1835 = vadd.f32 0.0, %v1834
      %v1836 = vpop.f32.mrf.mxu0
      %1837 = vmatprep.mubr.bf16.mxu0 0
      %1838 = vmatmul.mubr.bf16.gmra.mxu0 %v1685
      %v1839 = vpop.f32.mrf.mxu0
      %v1840 = vadd.f32 0.0, %v1839
      %v1841 = vpop.f32.mrf.mxu0
      %v1842 = vpop.f32.mrf.mxu0
      %v1843 = vadd.f32 0.0, %v1842
      %v1844 = vpop.f32.mrf.mxu0
      %1845 = vmatprep.mubr.bf16.mxu0 0
      %1846 = vmatmul.mubr.bf16.gmra.mxu0 %v1688
      %v1847 = vpop.f32.mrf.mxu0
      %v1848 = vadd.f32 0.0, %v1847
      %v1849 = vpop.f32.mrf.mxu0
      %v1850 = vpop.f32.mrf.mxu0
      %v1851 = vadd.f32 0.0, %v1850
      %v1852 = vpop.f32.mrf.mxu0
      %1853 = vdwg.mxu0
      %v1854 = vadd.f32 %v1385, %v1728
      %v1855 = vadd.f32 %v1388, %v1731
      %v1856 = vadd.f32 %v1393, %v1736
      %v1857 = vadd.f32 %v1396, %v1739
      %v1858 = vadd.f32 %v1401, %v1744
      %v1859 = vadd.f32 %v1404, %v1747
      %v1860 = vadd.f32 %v1409, %v1752
      %v1861 = vadd.f32 %v1412, %v1755
      %v1862 = vadd.f32 %v1417, %v1760
      %v1863 = vadd.f32 %v1420, %v1763
      %v1864 = vadd.f32 %v1425, %v1768
      %v1865 = vadd.f32 %v1428, %v1771
      %v1866 = vadd.f32 %v1433, %v1776
      %v1867 = vadd.f32 %v1436, %v1779
      %v1868 = vadd.f32 %v1441, %v1784
      %v1869 = vadd.f32 %v1444, %v1787
      %v1870 = vadd.f32 %v1449, %v1792
      %v1871 = vadd.f32 %v1452, %v1795
      %v1872 = vadd.f32 %v1457, %v1800
      %v1873 = vadd.f32 %v1460, %v1803
      %v1874 = vadd.f32 %v1465, %v1808
      %v1875 = vadd.f32 %v1468, %v1811
      %v1876 = vadd.f32 %v1473, %v1816
      %v1877 = vadd.f32 %v1476, %v1819
      %v1878 = vadd.f32 %v1481, %v1824
      %v1879 = vadd.f32 %v1484, %v1827
      %v1880 = vadd.f32 %v1489, %v1832
      %v1881 = vadd.f32 %v1492, %v1835
      %v1882 = vadd.f32 %v1497, %v1840
      %v1883 = vadd.f32 %v1500, %v1843
      %v1884 = vadd.f32 %v1505, %v1848
      %v1885 = vadd.f32 %v1508, %v1851
      %v1886 = vpack.c.bf16 %v884, %v883
      %s1887 = scalar_lea.vmem %s2, 12
      %v1888 = vld [vmem:[%s1887] sm:$0xf]
      %v1890 = vsel %vm1085, %v1886, 0
      %v1893 = vsel %vm1134, %v1888, 0
      %1895 = vmatprep.subr.bf16.mxu0 0
      %1896 = vmatpush1.bf16.msra.mxu0 0
      %1897 = vmatprep.subr.bf16.mxu0 0
      %1898 = vmatpush1.bf16.msra.mxu0 0
      %1899 = vmatprep.subr.bf16.mxu0 0
      %1900 = vmatpush1.bf16.msra.mxu0 0
      %1901 = vmatprep.subr.bf16.mxu0 0
      %1902 = vmatpush1.bf16.msra.mxu0 0
      %1903 = vmatprep.subr.bf16.mxu0 0
      %1904 = vmatpush1.bf16.msra.mxu0 0
      %1905 = vmatprep.subr.bf16.mxu0 0
      %1906 = vmatpush1.bf16.msra.mxu0 0
      %1907 = vmatprep.subr.bf16.mxu0 0
      %1908 = vmatpush1.bf16.msra.mxu0 0
      %1909 = vmatprep.subr.bf16.mxu0 0
      %1910 = vmatpush1.bf16.msra.mxu0 %v1893
      %1911 = vmatprep.subr.bf16.mxu0 0
      %1912 = vmatpush2.bf16.msra.mxu0 0
      %1913 = vmatprep.subr.bf16.mxu0 0
      %1914 = vmatpush2.bf16.msra.mxu0 0
      %1915 = vmatprep.subr.bf16.mxu0 0
      %1916 = vmatpush2.bf16.msra.mxu0 0
      %1917 = vmatprep.subr.bf16.mxu0 0
      %1918 = vmatpush2.bf16.msra.mxu0 0
      %1919 = vmatprep.subr.bf16.mxu0 0
      %1920 = vmatpush2.bf16.msra.mxu0 0
      %1921 = vmatprep.subr.bf16.mxu0 0
      %1922 = vmatpush2.bf16.msra.mxu0 0
      %1923 = vmatprep.subr.bf16.mxu0 0
      %1924 = vmatpush2.bf16.msra.mxu0 0
      %1925 = vmatprep.subr.bf16.mxu0 0
      %1926 = vmatpush2.bf16.msra.mxu0 0
      %1927 = vmatprep.mubr.bf16.mxu0 0
      %1928 = vmatmul.mubr.bf16.gmra.mxu0 %v1303
      %v1929 = vpop.f32.mrf.mxu0
      %v1930 = vadd.f32 0.0, %v1929
      %v1931 = vpop.f32.mrf.mxu0
      %v1932 = vpop.f32.mrf.mxu0
      %v1933 = vadd.f32 0.0, %v1932
      %v1934 = vpop.f32.mrf.mxu0
      %1935 = vmatprep.mubr.bf16.mxu0 0
      %1936 = vmatmul.mubr.bf16.gmra.mxu0 %v1306
      %v1937 = vpop.f32.mrf.mxu0
      %v1938 = vadd.f32 0.0, %v1937
      %v1939 = vpop.f32.mrf.mxu0
      %v1940 = vpop.f32.mrf.mxu0
      %v1941 = vadd.f32 0.0, %v1940
      %v1942 = vpop.f32.mrf.mxu0
      %1943 = vmatprep.mubr.bf16.mxu0 0
      %1944 = vmatmul.mubr.bf16.gmra.mxu0 %v1309
      %v1945 = vpop.f32.mrf.mxu0
      %v1946 = vadd.f32 0.0, %v1945
      %v1947 = vpop.f32.mrf.mxu0
      %v1948 = vpop.f32.mrf.mxu0
      %v1949 = vadd.f32 0.0, %v1948
      %v1950 = vpop.f32.mrf.mxu0
      %1951 = vmatprep.mubr.bf16.mxu0 0
      %1952 = vmatmul.mubr.bf16.gmra.mxu0 %v1312
      %v1953 = vpop.f32.mrf.mxu0
      %v1954 = vadd.f32 0.0, %v1953
      %v1955 = vpop.f32.mrf.mxu0
      %v1956 = vpop.f32.mrf.mxu0
      %v1957 = vadd.f32 0.0, %v1956
      %v1958 = vpop.f32.mrf.mxu0
      %1959 = vmatprep.mubr.bf16.mxu0 0
      %1960 = vmatmul.mubr.bf16.gmra.mxu0 %v1315
      %v1961 = vpop.f32.mrf.mxu0
      %v1962 = vadd.f32 0.0, %v1961
      %v1963 = vpop.f32.mrf.mxu0
      %v1964 = vpop.f32.mrf.mxu0
      %v1965 = vadd.f32 0.0, %v1964
      %v1966 = vpop.f32.mrf.mxu0
      %1967 = vmatprep.mubr.bf16.mxu0 0
      %1968 = vmatmul.mubr.bf16.gmra.mxu0 %v1318
      %v1969 = vpop.f32.mrf.mxu0
      %v1970 = vadd.f32 0.0, %v1969
      %v1971 = vpop.f32.mrf.mxu0
      %v1972 = vpop.f32.mrf.mxu0
      %v1973 = vadd.f32 0.0, %v1972
      %v1974 = vpop.f32.mrf.mxu0
      %1975 = vmatprep.mubr.bf16.mxu0 0
      %1976 = vmatmul.mubr.bf16.gmra.mxu0 %v1321
      %v1977 = vpop.f32.mrf.mxu0
      %v1978 = vadd.f32 0.0, %v1977
      %v1979 = vpop.f32.mrf.mxu0
      %v1980 = vpop.f32.mrf.mxu0
      %v1981 = vadd.f32 0.0, %v1980
      %v1982 = vpop.f32.mrf.mxu0
      %1983 = vmatprep.mubr.bf16.mxu0 0
      %1984 = vmatmul.mubr.bf16.gmra.mxu0 %v1324
      %v1985 = vpop.f32.mrf.mxu0
      %v1986 = vadd.f32 0.0, %v1985
      %v1987 = vpop.f32.mrf.mxu0
      %v1988 = vpop.f32.mrf.mxu0
      %v1989 = vadd.f32 0.0, %v1988
      %v1990 = vpop.f32.mrf.mxu0
      %1991 = vmatprep.mubr.bf16.mxu0 0
      %1992 = vmatmul.mubr.bf16.gmra.mxu0 %v1327
      %v1993 = vpop.f32.mrf.mxu0
      %v1994 = vadd.f32 0.0, %v1993
      %v1995 = vpop.f32.mrf.mxu0
      %v1996 = vpop.f32.mrf.mxu0
      %v1997 = vadd.f32 0.0, %v1996
      %v1998 = vpop.f32.mrf.mxu0
      %1999 = vmatprep.mubr.bf16.mxu0 0
      %2000 = vmatmul.mubr.bf16.gmra.mxu0 %v1330
      %v2001 = vpop.f32.mrf.mxu0
      %v2002 = vadd.f32 0.0, %v2001
      %v2003 = vpop.f32.mrf.mxu0
      %v2004 = vpop.f32.mrf.mxu0
      %v2005 = vadd.f32 0.0, %v2004
      %v2006 = vpop.f32.mrf.mxu0
      %2007 = vmatprep.mubr.bf16.mxu0 0
      %2008 = vmatmul.mubr.bf16.gmra.mxu0 %v1333
      %v2009 = vpop.f32.mrf.mxu0
      %v2010 = vadd.f32 0.0, %v2009
      %v2011 = vpop.f32.mrf.mxu0
      %v2012 = vpop.f32.mrf.mxu0
      %v2013 = vadd.f32 0.0, %v2012
      %v2014 = vpop.f32.mrf.mxu0
      %2015 = vmatprep.mubr.bf16.mxu0 0
      %2016 = vmatmul.mubr.bf16.gmra.mxu0 %v1336
      %v2017 = vpop.f32.mrf.mxu0
      %v2018 = vadd.f32 0.0, %v2017
      %v2019 = vpop.f32.mrf.mxu0
      %v2020 = vpop.f32.mrf.mxu0
      %v2021 = vadd.f32 0.0, %v2020
      %v2022 = vpop.f32.mrf.mxu0
      %2023 = vmatprep.mubr.bf16.mxu0 0
      %2024 = vmatmul.mubr.bf16.gmra.mxu0 %v1339
      %v2025 = vpop.f32.mrf.mxu0
      %v2026 = vadd.f32 0.0, %v2025
      %v2027 = vpop.f32.mrf.mxu0
      %v2028 = vpop.f32.mrf.mxu0
      %v2029 = vadd.f32 0.0, %v2028
      %v2030 = vpop.f32.mrf.mxu0
      %2031 = vmatprep.mubr.bf16.mxu0 0
      %2032 = vmatmul.mubr.bf16.gmra.mxu0 %v1342
      %v2033 = vpop.f32.mrf.mxu0
      %v2034 = vadd.f32 0.0, %v2033
      %v2035 = vpop.f32.mrf.mxu0
      %v2036 = vpop.f32.mrf.mxu0
      %v2037 = vadd.f32 0.0, %v2036
      %v2038 = vpop.f32.mrf.mxu0
      %2039 = vmatprep.mubr.bf16.mxu0 0
      %2040 = vmatmul.mubr.bf16.gmra.mxu0 %v1345
      %v2041 = vpop.f32.mrf.mxu0
      %v2042 = vadd.f32 0.0, %v2041
      %v2043 = vpop.f32.mrf.mxu0
      %v2044 = vpop.f32.mrf.mxu0
      %v2045 = vadd.f32 0.0, %v2044
      %v2046 = vpop.f32.mrf.mxu0
      %2047 = vmatprep.mubr.bf16.mxu0 0
      %2048 = vmatmul.mubr.bf16.gmra.mxu0 %v1890
      %v2049 = vpop.f32.mrf.mxu0
      %v2050 = vadd.f32 0.0, %v2049
      %v2051 = vpop.f32.mrf.mxu0
      %v2052 = vpop.f32.mrf.mxu0
      %v2053 = vadd.f32 0.0, %v2052
      %v2054 = vpop.f32.mrf.mxu0
      %2055 = vdwg.mxu0
      %v2056 = vadd.f32 %v1854, %v1930
      %v2057 = vadd.f32 %v1855, %v1933
      %v2058 = vadd.f32 %v1856, %v1938
      %v2059 = vadd.f32 %v1857, %v1941
      %v2060 = vadd.f32 %v1858, %v1946
      %v2061 = vadd.f32 %v1859, %v1949
      %v2062 = vadd.f32 %v1860, %v1954
      %v2063 = vadd.f32 %v1861, %v1957
      %v2064 = vadd.f32 %v1862, %v1962
      %v2065 = vadd.f32 %v1863, %v1965
      %v2066 = vadd.f32 %v1864, %v1970
      %v2067 = vadd.f32 %v1865, %v1973
      %v2068 = vadd.f32 %v1866, %v1978
      %v2069 = vadd.f32 %v1867, %v1981
      %v2070 = vadd.f32 %v1868, %v1986
      %v2071 = vadd.f32 %v1869, %v1989
      %v2072 = vadd.f32 %v1870, %v1994
      %v2073 = vadd.f32 %v1871, %v1997
      %v2074 = vadd.f32 %v1872, %v2002
      %v2075 = vadd.f32 %v1873, %v2005
      %v2076 = vadd.f32 %v1874, %v2010
      %v2077 = vadd.f32 %v1875, %v2013
      %v2078 = vadd.f32 %v1876, %v2018
      %v2079 = vadd.f32 %v1877, %v2021
      %v2080 = vadd.f32 %v1878, %v2026
      %v2081 = vadd.f32 %v1879, %v2029
      %v2082 = vadd.f32 %v1880, %v2034
      %v2083 = vadd.f32 %v1881, %v2037
      %v2084 = vadd.f32 %v1882, %v2042
      %v2085 = vadd.f32 %v1883, %v2045
      %v2086 = vadd.f32 %v1884, %v2050
      %v2087 = vadd.f32 %v1885, %v2053
      %v2091 = vrot.slane %v883, 1
      %v2092 = vrot.slane %v884, 1
      %v2093 = vsel %vm954, %v2091, %v2092
      %v2094 = vrot.slane %v885, 1
      %v2095 = vsel %vm954, %v2092, %v2094
      %v2098 = vpack.c.bf16 %v2095, %v2093
      %s2099 = scalar_lea.vmem %s2, 16
      %v2100 = vld [vmem:[%s2099] sm:$0xf]
      %v2102 = vsel %vm1085, %v2098, 0
      %v2105 = vsel %vm1134, %v2100, 0
      %2107 = vmatprep.subr.bf16.mxu0 0
      %2108 = vmatpush1.bf16.msra.mxu0 0
      %2109 = vmatprep.subr.bf16.mxu0 0
      %2110 = vmatpush1.bf16.msra.mxu0 0
      %2111 = vmatprep.subr.bf16.mxu0 0
      %2112 = vmatpush1.bf16.msra.mxu0 0
      %2113 = vmatprep.subr.bf16.mxu0 0
      %2114 = vmatpush1.bf16.msra.mxu0 0
      %2115 = vmatprep.subr.bf16.mxu0 0
      %2116 = vmatpush1.bf16.msra.mxu0 0
      %2117 = vmatprep.subr.bf16.mxu0 0
      %2118 = vmatpush1.bf16.msra.mxu0 0
      %2119 = vmatprep.subr.bf16.mxu0 0
      %2120 = vmatpush1.bf16.msra.mxu0 0
      %2121 = vmatprep.subr.bf16.mxu0 0
      %2122 = vmatpush1.bf16.msra.mxu0 %v2105
      %2123 = vmatprep.subr.bf16.mxu0 0
      %2124 = vmatpush2.bf16.msra.mxu0 0
      %2125 = vmatprep.subr.bf16.mxu0 0
      %2126 = vmatpush2.bf16.msra.mxu0 0
      %2127 = vmatprep.subr.bf16.mxu0 0
      %2128 = vmatpush2.bf16.msra.mxu0 0
      %2129 = vmatprep.subr.bf16.mxu0 0
      %2130 = vmatpush2.bf16.msra.mxu0 0
      %2131 = vmatprep.subr.bf16.mxu0 0
      %2132 = vmatpush2.bf16.msra.mxu0 0
      %2133 = vmatprep.subr.bf16.mxu0 0
      %2134 = vmatpush2.bf16.msra.mxu0 0
      %2135 = vmatprep.subr.bf16.mxu0 0
      %2136 = vmatpush2.bf16.msra.mxu0 0
      %2137 = vmatprep.subr.bf16.mxu0 0
      %2138 = vmatpush2.bf16.msra.mxu0 0
      %2139 = vmatprep.mubr.bf16.mxu0 0
      %2140 = vmatmul.mubr.bf16.gmra.mxu0 %v1090
      %v2141 = vpop.f32.mrf.mxu0
      %v2142 = vadd.f32 0.0, %v2141
      %v2143 = vpop.f32.mrf.mxu0
      %v2144 = vpop.f32.mrf.mxu0
      %v2145 = vadd.f32 0.0, %v2144
      %v2146 = vpop.f32.mrf.mxu0
      %2147 = vmatprep.mubr.bf16.mxu0 0
      %2148 = vmatmul.mubr.bf16.gmra.mxu0 %v1093
      %v2149 = vpop.f32.mrf.mxu0
      %v2150 = vadd.f32 0.0, %v2149
      %v2151 = vpop.f32.mrf.mxu0
      %v2152 = vpop.f32.mrf.mxu0
      %v2153 = vadd.f32 0.0, %v2152
      %v2154 = vpop.f32.mrf.mxu0
      %2155 = vmatprep.mubr.bf16.mxu0 0
      %2156 = vmatmul.mubr.bf16.gmra.mxu0 %v1096
      %v2157 = vpop.f32.mrf.mxu0
      %v2158 = vadd.f32 0.0, %v2157
      %v2159 = vpop.f32.mrf.mxu0
      %v2160 = vpop.f32.mrf.mxu0
      %v2161 = vadd.f32 0.0, %v2160
      %v2162 = vpop.f32.mrf.mxu0
      %2163 = vmatprep.mubr.bf16.mxu0 0
      %2164 = vmatmul.mubr.bf16.gmra.mxu0 %v1099
      %v2165 = vpop.f32.mrf.mxu0
      %v2166 = vadd.f32 0.0, %v2165
      %v2167 = vpop.f32.mrf.mxu0
      %v2168 = vpop.f32.mrf.mxu0
      %v2169 = vadd.f32 0.0, %v2168
      %v2170 = vpop.f32.mrf.mxu0
      %2171 = vmatprep.mubr.bf16.mxu0 0
      %2172 = vmatmul.mubr.bf16.gmra.mxu0 %v1102
      %v2173 = vpop.f32.mrf.mxu0
      %v2174 = vadd.f32 0.0, %v2173
      %v2175 = vpop.f32.mrf.mxu0
      %v2176 = vpop.f32.mrf.mxu0
      %v2177 = vadd.f32 0.0, %v2176
      %v2178 = vpop.f32.mrf.mxu0
      %2179 = vmatprep.mubr.bf16.mxu0 0
      %2180 = vmatmul.mubr.bf16.gmra.mxu0 %v1105
      %v2181 = vpop.f32.mrf.mxu0
      %v2182 = vadd.f32 0.0, %v2181
      %v2183 = vpop.f32.mrf.mxu0
      %v2184 = vpop.f32.mrf.mxu0
      %v2185 = vadd.f32 0.0, %v2184
      %v2186 = vpop.f32.mrf.mxu0
      %2187 = vmatprep.mubr.bf16.mxu0 0
      %2188 = vmatmul.mubr.bf16.gmra.mxu0 %v1108
      %v2189 = vpop.f32.mrf.mxu0
      %v2190 = vadd.f32 0.0, %v2189
      %v2191 = vpop.f32.mrf.mxu0
      %v2192 = vpop.f32.mrf.mxu0
      %v2193 = vadd.f32 0.0, %v2192
      %v2194 = vpop.f32.mrf.mxu0
      %2195 = vmatprep.mubr.bf16.mxu0 0
      %2196 = vmatmul.mubr.bf16.gmra.mxu0 %v1111
      %v2197 = vpop.f32.mrf.mxu0
      %v2198 = vadd.f32 0.0, %v2197
      %v2199 = vpop.f32.mrf.mxu0
      %v2200 = vpop.f32.mrf.mxu0
      %v2201 = vadd.f32 0.0, %v2200
      %v2202 = vpop.f32.mrf.mxu0
      %2203 = vmatprep.mubr.bf16.mxu0 0
      %2204 = vmatmul.mubr.bf16.gmra.mxu0 %v1114
      %v2205 = vpop.f32.mrf.mxu0
      %v2206 = vadd.f32 0.0, %v2205
      %v2207 = vpop.f32.mrf.mxu0
      %v2208 = vpop.f32.mrf.mxu0
      %v2209 = vadd.f32 0.0, %v2208
      %v2210 = vpop.f32.mrf.mxu0
      %2211 = vmatprep.mubr.bf16.mxu0 0
      %2212 = vmatmul.mubr.bf16.gmra.mxu0 %v1117
      %v2213 = vpop.f32.mrf.mxu0
      %v2214 = vadd.f32 0.0, %v2213
      %v2215 = vpop.f32.mrf.mxu0
      %v2216 = vpop.f32.mrf.mxu0
      %v2217 = vadd.f32 0.0, %v2216
      %v2218 = vpop.f32.mrf.mxu0
      %2219 = vmatprep.mubr.bf16.mxu0 0
      %2220 = vmatmul.mubr.bf16.gmra.mxu0 %v1120
      %v2221 = vpop.f32.mrf.mxu0
      %v2222 = vadd.f32 0.0, %v2221
      %v2223 = vpop.f32.mrf.mxu0
      %v2224 = vpop.f32.mrf.mxu0
      %v2225 = vadd.f32 0.0, %v2224
      %v2226 = vpop.f32.mrf.mxu0
      %2227 = vmatprep.mubr.bf16.mxu0 0
      %2228 = vmatmul.mubr.bf16.gmra.mxu0 %v1123
      %v2229 = vpop.f32.mrf.mxu0
      %v2230 = vadd.f32 0.0, %v2229
      %v2231 = vpop.f32.mrf.mxu0
      %v2232 = vpop.f32.mrf.mxu0
      %v2233 = vadd.f32 0.0, %v2232
      %v2234 = vpop.f32.mrf.mxu0
      %2235 = vmatprep.mubr.bf16.mxu0 0
      %2236 = vmatmul.mubr.bf16.gmra.mxu0 %v1126
      %v2237 = vpop.f32.mrf.mxu0
      %v2238 = vadd.f32 0.0, %v2237
      %v2239 = vpop.f32.mrf.mxu0
      %v2240 = vpop.f32.mrf.mxu0
      %v2241 = vadd.f32 0.0, %v2240
      %v2242 = vpop.f32.mrf.mxu0
      %2243 = vmatprep.mubr.bf16.mxu0 0
      %2244 = vmatmul.mubr.bf16.gmra.mxu0 %v1129
      %v2245 = vpop.f32.mrf.mxu0
      %v2246 = vadd.f32 0.0, %v2245
      %v2247 = vpop.f32.mrf.mxu0
      %v2248 = vpop.f32.mrf.mxu0
      %v2249 = vadd.f32 0.0, %v2248
      %v2250 = vpop.f32.mrf.mxu0
      %2251 = vmatprep.mubr.bf16.mxu0 0
      %2252 = vmatmul.mubr.bf16.gmra.mxu0 %v1132
      %v2253 = vpop.f32.mrf.mxu0
      %v2254 = vadd.f32 0.0, %v2253
      %v2255 = vpop.f32.mrf.mxu0
      %v2256 = vpop.f32.mrf.mxu0
      %v2257 = vadd.f32 0.0, %v2256
      %v2258 = vpop.f32.mrf.mxu0
      %2259 = vmatprep.mubr.bf16.mxu0 0
      %2260 = vmatmul.mubr.bf16.gmra.mxu0 %v2102
      %v2261 = vpop.f32.mrf.mxu0
      %v2262 = vadd.f32 0.0, %v2261
      %v2263 = vpop.f32.mrf.mxu0
      %v2264 = vpop.f32.mrf.mxu0
      %v2265 = vadd.f32 0.0, %v2264
      %v2266 = vpop.f32.mrf.mxu0
      %2267 = vdwg.mxu0
      %v2268 = vadd.f32 %v2056, %v2142
      %v2269 = vadd.f32 %v2057, %v2145
      %v2270 = vadd.f32 %v2058, %v2150
      %v2271 = vadd.f32 %v2059, %v2153
      %v2272 = vadd.f32 %v2060, %v2158
      %v2273 = vadd.f32 %v2061, %v2161
      %v2274 = vadd.f32 %v2062, %v2166
      %v2275 = vadd.f32 %v2063, %v2169
      %v2276 = vadd.f32 %v2064, %v2174
      %v2277 = vadd.f32 %v2065, %v2177
      %v2278 = vadd.f32 %v2066, %v2182
      %v2279 = vadd.f32 %v2067, %v2185
      %v2280 = vadd.f32 %v2068, %v2190
      %v2281 = vadd.f32 %v2069, %v2193
      %v2282 = vadd.f32 %v2070, %v2198
      %v2283 = vadd.f32 %v2071, %v2201
      %v2284 = vadd.f32 %v2072, %v2206
      %v2285 = vadd.f32 %v2073, %v2209
      %v2286 = vadd.f32 %v2074, %v2214
      %v2287 = vadd.f32 %v2075, %v2217
      %v2288 = vadd.f32 %v2076, %v2222
      %v2289 = vadd.f32 %v2077, %v2225
      %v2290 = vadd.f32 %v2078, %v2230
      %v2291 = vadd.f32 %v2079, %v2233
      %v2292 = vadd.f32 %v2080, %v2238
      %v2293 = vadd.f32 %v2081, %v2241
      %v2294 = vadd.f32 %v2082, %v2246
      %v2295 = vadd.f32 %v2083, %v2249
      %v2296 = vadd.f32 %v2084, %v2254
      %v2297 = vadd.f32 %v2085, %v2257
      %v2298 = vadd.f32 %v2086, %v2262
      %v2299 = vadd.f32 %v2087, %v2265
      %v2300 = vrot.slane %v883, 2
      %v2301 = vrot.slane %v884, 2
      %v2302 = vsel %vm1511, %v2300, %v2301
      %v2303 = vrot.slane %v885, 2
      %v2304 = vsel %vm1511, %v2301, %v2303
      %v2307 = vpack.c.bf16 %v2304, %v2302
      %s2308 = scalar_lea.vmem %s2, 20
      %v2309 = vld [vmem:[%s2308] sm:$0xf]
      %v2311 = vsel %vm1085, %v2307, 0
      %v2314 = vsel %vm1134, %v2309, 0
      %2316 = vmatprep.subr.bf16.mxu0 0
      %2317 = vmatpush1.bf16.msra.mxu0 0
      %2318 = vmatprep.subr.bf16.mxu0 0
      %2319 = vmatpush1.bf16.msra.mxu0 0
      %2320 = vmatprep.subr.bf16.mxu0 0
      %2321 = vmatpush1.bf16.msra.mxu0 0
      %2322 = vmatprep.subr.bf16.mxu0 0
      %2323 = vmatpush1.bf16.msra.mxu0 0
      %2324 = vmatprep.subr.bf16.mxu0 0
      %2325 = vmatpush1.bf16.msra.mxu0 0
      %2326 = vmatprep.subr.bf16.mxu0 0
      %2327 = vmatpush1.bf16.msra.mxu0 0
      %2328 = vmatprep.subr.bf16.mxu0 0
      %2329 = vmatpush1.bf16.msra.mxu0 0
      %2330 = vmatprep.subr.bf16.mxu0 0
      %2331 = vmatpush1.bf16.msra.mxu0 %v2314
      %2332 = vmatprep.subr.bf16.mxu0 0
      %2333 = vmatpush2.bf16.msra.mxu0 0
      %2334 = vmatprep.subr.bf16.mxu0 0
      %2335 = vmatpush2.bf16.msra.mxu0 0
      %2336 = vmatprep.subr.bf16.mxu0 0
      %2337 = vmatpush2.bf16.msra.mxu0 0
      %2338 = vmatprep.subr.bf16.mxu0 0
      %2339 = vmatpush2.bf16.msra.mxu0 0
      %2340 = vmatprep.subr.bf16.mxu0 0
      %2341 = vmatpush2.bf16.msra.mxu0 0
      %2342 = vmatprep.subr.bf16.mxu0 0
      %2343 = vmatpush2.bf16.msra.mxu0 0
      %2344 = vmatprep.subr.bf16.mxu0 0
      %2345 = vmatpush2.bf16.msra.mxu0 0
      %2346 = vmatprep.subr.bf16.mxu0 0
      %2347 = vmatpush2.bf16.msra.mxu0 0
      %2348 = vmatprep.mubr.bf16.mxu0 0
      %2349 = vmatmul.mubr.bf16.gmra.mxu0 %v1646
      %v2350 = vpop.f32.mrf.mxu0
      %v2351 = vadd.f32 0.0, %v2350
      %v2352 = vpop.f32.mrf.mxu0
      %v2353 = vpop.f32.mrf.mxu0
      %v2354 = vadd.f32 0.0, %v2353
      %v2355 = vpop.f32.mrf.mxu0
      %2356 = vmatprep.mubr.bf16.mxu0 0
      %2357 = vmatmul.mubr.bf16.gmra.mxu0 %v1649
      %v2358 = vpop.f32.mrf.mxu0
      %v2359 = vadd.f32 0.0, %v2358
      %v2360 = vpop.f32.mrf.mxu0
      %v2361 = vpop.f32.mrf.mxu0
      %v2362 = vadd.f32 0.0, %v2361
      %v2363 = vpop.f32.mrf.mxu0
      %2364 = vmatprep.mubr.bf16.mxu0 0
      %2365 = vmatmul.mubr.bf16.gmra.mxu0 %v1652
      %v2366 = vpop.f32.mrf.mxu0
      %v2367 = vadd.f32 0.0, %v2366
      %v2368 = vpop.f32.mrf.mxu0
      %v2369 = vpop.f32.mrf.mxu0
      %v2370 = vadd.f32 0.0, %v2369
      %v2371 = vpop.f32.mrf.mxu0
      %2372 = vmatprep.mubr.bf16.mxu0 0
      %2373 = vmatmul.mubr.bf16.gmra.mxu0 %v1655
      %v2374 = vpop.f32.mrf.mxu0
      %v2375 = vadd.f32 0.0, %v2374
      %v2376 = vpop.f32.mrf.mxu0
      %v2377 = vpop.f32.mrf.mxu0
      %v2378 = vadd.f32 0.0, %v2377
      %v2379 = vpop.f32.mrf.mxu0
      %2380 = vmatprep.mubr.bf16.mxu0 0
      %2381 = vmatmul.mubr.bf16.gmra.mxu0 %v1658
      %v2382 = vpop.f32.mrf.mxu0
      %v2383 = vadd.f32 0.0, %v2382
      %v2384 = vpop.f32.mrf.mxu0
      %v2385 = vpop.f32.mrf.mxu0
      %v2386 = vadd.f32 0.0, %v2385
      %v2387 = vpop.f32.mrf.mxu0
      %2388 = vmatprep.mubr.bf16.mxu0 0
      %2389 = vmatmul.mubr.bf16.gmra.mxu0 %v1661
      %v2390 = vpop.f32.mrf.mxu0
      %v2391 = vadd.f32 0.0, %v2390
      %v2392 = vpop.f32.mrf.mxu0
      %v2393 = vpop.f32.mrf.mxu0
      %v2394 = vadd.f32 0.0, %v2393
      %v2395 = vpop.f32.mrf.mxu0
      %2396 = vmatprep.mubr.bf16.mxu0 0
      %2397 = vmatmul.mubr.bf16.gmra.mxu0 %v1664
      %v2398 = vpop.f32.mrf.mxu0
      %v2399 = vadd.f32 0.0, %v2398
      %v2400 = vpop.f32.mrf.mxu0
      %v2401 = vpop.f32.mrf.mxu0
      %v2402 = vadd.f32 0.0, %v2401
      %v2403 = vpop.f32.mrf.mxu0
      %2404 = vmatprep.mubr.bf16.mxu0 0
      %2405 = vmatmul.mubr.bf16.gmra.mxu0 %v1667
      %v2406 = vpop.f32.mrf.mxu0
      %v2407 = vadd.f32 0.0, %v2406
      %v2408 = vpop.f32.mrf.mxu0
      %v2409 = vpop.f32.mrf.mxu0
      %v2410 = vadd.f32 0.0, %v2409
      %v2411 = vpop.f32.mrf.mxu0
      %2412 = vmatprep.mubr.bf16.mxu0 0
      %2413 = vmatmul.mubr.bf16.gmra.mxu0 %v1670
      %v2414 = vpop.f32.mrf.mxu0
      %v2415 = vadd.f32 0.0, %v2414
      %v2416 = vpop.f32.mrf.mxu0
      %v2417 = vpop.f32.mrf.mxu0
      %v2418 = vadd.f32 0.0, %v2417
      %v2419 = vpop.f32.mrf.mxu0
      %2420 = vmatprep.mubr.bf16.mxu0 0
      %2421 = vmatmul.mubr.bf16.gmra.mxu0 %v1673
      %v2422 = vpop.f32.mrf.mxu0
      %v2423 = vadd.f32 0.0, %v2422
      %v2424 = vpop.f32.mrf.mxu0
      %v2425 = vpop.f32.mrf.mxu0
      %v2426 = vadd.f32 0.0, %v2425
      %v2427 = vpop.f32.mrf.mxu0
      %2428 = vmatprep.mubr.bf16.mxu0 0
      %2429 = vmatmul.mubr.bf16.gmra.mxu0 %v1676
      %v2430 = vpop.f32.mrf.mxu0
      %v2431 = vadd.f32 0.0, %v2430
      %v2432 = vpop.f32.mrf.mxu0
      %v2433 = vpop.f32.mrf.mxu0
      %v2434 = vadd.f32 0.0, %v2433
      %v2435 = vpop.f32.mrf.mxu0
      %2436 = vmatprep.mubr.bf16.mxu0 0
      %2437 = vmatmul.mubr.bf16.gmra.mxu0 %v1679
      %v2438 = vpop.f32.mrf.mxu0
      %v2439 = vadd.f32 0.0, %v2438
      %v2440 = vpop.f32.mrf.mxu0
      %v2441 = vpop.f32.mrf.mxu0
      %v2442 = vadd.f32 0.0, %v2441
      %v2443 = vpop.f32.mrf.mxu0
      %2444 = vmatprep.mubr.bf16.mxu0 0
      %2445 = vmatmul.mubr.bf16.gmra.mxu0 %v1682
      %v2446 = vpop.f32.mrf.mxu0
      %v2447 = vadd.f32 0.0, %v2446
      %v2448 = vpop.f32.mrf.mxu0
      %v2449 = vpop.f32.mrf.mxu0
      %v2450 = vadd.f32 0.0, %v2449
      %v2451 = vpop.f32.mrf.mxu0
      %2452 = vmatprep.mubr.bf16.mxu0 0
      %2453 = vmatmul.mubr.bf16.gmra.mxu0 %v1685
      %v2454 = vpop.f32.mrf.mxu0
      %v2455 = vadd.f32 0.0, %v2454
      %v2456 = vpop.f32.mrf.mxu0
      %v2457 = vpop.f32.mrf.mxu0
      %v2458 = vadd.f32 0.0, %v2457
      %v2459 = vpop.f32.mrf.mxu0
      %2460 = vmatprep.mubr.bf16.mxu0 0
      %2461 = vmatmul.mubr.bf16.gmra.mxu0 %v1688
      %v2462 = vpop.f32.mrf.mxu0
      %v2463 = vadd.f32 0.0, %v2462
      %v2464 = vpop.f32.mrf.mxu0
      %v2465 = vpop.f32.mrf.mxu0
      %v2466 = vadd.f32 0.0, %v2465
      %v2467 = vpop.f32.mrf.mxu0
      %2468 = vmatprep.mubr.bf16.mxu0 0
      %2469 = vmatmul.mubr.bf16.gmra.mxu0 %v2311
      %v2470 = vpop.f32.mrf.mxu0
      %v2471 = vadd.f32 0.0, %v2470
      %v2472 = vpop.f32.mrf.mxu0
      %v2473 = vpop.f32.mrf.mxu0
      %v2474 = vadd.f32 0.0, %v2473
      %v2475 = vpop.f32.mrf.mxu0
      %2476 = vdwg.mxu0
      %v2477 = vadd.f32 %v2268, %v2351
      %v2478 = vadd.f32 %v2269, %v2354
      %v2479 = vadd.f32 %v2270, %v2359
      %v2480 = vadd.f32 %v2271, %v2362
      %v2481 = vadd.f32 %v2272, %v2367
      %v2482 = vadd.f32 %v2273, %v2370
      %v2483 = vadd.f32 %v2274, %v2375
      %v2484 = vadd.f32 %v2275, %v2378
      %v2485 = vadd.f32 %v2276, %v2383
      %v2486 = vadd.f32 %v2277, %v2386
      %v2487 = vadd.f32 %v2278, %v2391
      %v2488 = vadd.f32 %v2279, %v2394
      %v2489 = vadd.f32 %v2280, %v2399
      %v2490 = vadd.f32 %v2281, %v2402
      %v2491 = vadd.f32 %v2282, %v2407
      %v2492 = vadd.f32 %v2283, %v2410
      %v2493 = vadd.f32 %v2284, %v2415
      %v2494 = vadd.f32 %v2285, %v2418
      %v2495 = vadd.f32 %v2286, %v2423
      %v2496 = vadd.f32 %v2287, %v2426
      %v2497 = vadd.f32 %v2288, %v2431
      %v2498 = vadd.f32 %v2289, %v2434
      %v2499 = vadd.f32 %v2290, %v2439
      %v2500 = vadd.f32 %v2291, %v2442
      %v2501 = vadd.f32 %v2292, %v2447
      %v2502 = vadd.f32 %v2293, %v2450
      %v2503 = vadd.f32 %v2294, %v2455
      %v2504 = vadd.f32 %v2295, %v2458
      %v2505 = vadd.f32 %v2296, %v2463
      %v2506 = vadd.f32 %v2297, %v2466
      %v2507 = vadd.f32 %v2298, %v2471
      %v2508 = vadd.f32 %v2299, %v2474
      %v2509 = vpack.c.bf16 %v887, %v886
      %s2510 = scalar_lea.vmem %s2, 24
      %v2511 = vld [vmem:[%s2510] sm:$0xf]
      %v2513 = vsel %vm1085, %v2509, 0
      %v2516 = vsel %vm1134, %v2511, 0
      %2518 = vmatprep.subr.bf16.mxu0 0
      %2519 = vmatpush1.bf16.msra.mxu0 0
      %2520 = vmatprep.subr.bf16.mxu0 0
      %2521 = vmatpush1.bf16.msra.mxu0 0
      %2522 = vmatprep.subr.bf16.mxu0 0
      %2523 = vmatpush1.bf16.msra.mxu0 0
      %2524 = vmatprep.subr.bf16.mxu0 0
      %2525 = vmatpush1.bf16.msra.mxu0 0
      %2526 = vmatprep.subr.bf16.mxu0 0
      %2527 = vmatpush1.bf16.msra.mxu0 0
      %2528 = vmatprep.subr.bf16.mxu0 0
      %2529 = vmatpush1.bf16.msra.mxu0 0
      %2530 = vmatprep.subr.bf16.mxu0 0
      %2531 = vmatpush1.bf16.msra.mxu0 0
      %2532 = vmatprep.subr.bf16.mxu0 0
      %2533 = vmatpush1.bf16.msra.mxu0 %v2516
      %2534 = vmatprep.subr.bf16.mxu0 0
      %2535 = vmatpush2.bf16.msra.mxu0 0
      %2536 = vmatprep.subr.bf16.mxu0 0
      %2537 = vmatpush2.bf16.msra.mxu0 0
      %2538 = vmatprep.subr.bf16.mxu0 0
      %2539 = vmatpush2.bf16.msra.mxu0 0
      %2540 = vmatprep.subr.bf16.mxu0 0
      %2541 = vmatpush2.bf16.msra.mxu0 0
      %2542 = vmatprep.subr.bf16.mxu0 0
      %2543 = vmatpush2.bf16.msra.mxu0 0
      %2544 = vmatprep.subr.bf16.mxu0 0
      %2545 = vmatpush2.bf16.msra.mxu0 0
      %2546 = vmatprep.subr.bf16.mxu0 0
      %2547 = vmatpush2.bf16.msra.mxu0 0
      %2548 = vmatprep.subr.bf16.mxu0 0
      %2549 = vmatpush2.bf16.msra.mxu0 0
      %2550 = vmatprep.mubr.bf16.mxu0 0
      %2551 = vmatmul.mubr.bf16.gmra.mxu0 %v1306
      %v2552 = vpop.f32.mrf.mxu0
      %v2553 = vadd.f32 0.0, %v2552
      %v2554 = vpop.f32.mrf.mxu0
      %v2555 = vpop.f32.mrf.mxu0
      %v2556 = vadd.f32 0.0, %v2555
      %v2557 = vpop.f32.mrf.mxu0
      %2558 = vmatprep.mubr.bf16.mxu0 0
      %2559 = vmatmul.mubr.bf16.gmra.mxu0 %v1309
      %v2560 = vpop.f32.mrf.mxu0
      %v2561 = vadd.f32 0.0, %v2560
      %v2562 = vpop.f32.mrf.mxu0
      %v2563 = vpop.f32.mrf.mxu0
      %v2564 = vadd.f32 0.0, %v2563
      %v2565 = vpop.f32.mrf.mxu0
      %2566 = vmatprep.mubr.bf16.mxu0 0
      %2567 = vmatmul.mubr.bf16.gmra.mxu0 %v1312
      %v2568 = vpop.f32.mrf.mxu0
      %v2569 = vadd.f32 0.0, %v2568
      %v2570 = vpop.f32.mrf.mxu0
      %v2571 = vpop.f32.mrf.mxu0
      %v2572 = vadd.f32 0.0, %v2571
      %v2573 = vpop.f32.mrf.mxu0
      %2574 = vmatprep.mubr.bf16.mxu0 0
      %2575 = vmatmul.mubr.bf16.gmra.mxu0 %v1315
      %v2576 = vpop.f32.mrf.mxu0
      %v2577 = vadd.f32 0.0, %v2576
      %v2578 = vpop.f32.mrf.mxu0
      %v2579 = vpop.f32.mrf.mxu0
      %v2580 = vadd.f32 0.0, %v2579
      %v2581 = vpop.f32.mrf.mxu0
      %2582 = vmatprep.mubr.bf16.mxu0 0
      %2583 = vmatmul.mubr.bf16.gmra.mxu0 %v1318
      %v2584 = vpop.f32.mrf.mxu0
      %v2585 = vadd.f32 0.0, %v2584
      %v2586 = vpop.f32.mrf.mxu0
      %v2587 = vpop.f32.mrf.mxu0
      %v2588 = vadd.f32 0.0, %v2587
      %v2589 = vpop.f32.mrf.mxu0
      %2590 = vmatprep.mubr.bf16.mxu0 0
      %2591 = vmatmul.mubr.bf16.gmra.mxu0 %v1321
      %v2592 = vpop.f32.mrf.mxu0
      %v2593 = vadd.f32 0.0, %v2592
      %v2594 = vpop.f32.mrf.mxu0
      %v2595 = vpop.f32.mrf.mxu0
      %v2596 = vadd.f32 0.0, %v2595
      %v2597 = vpop.f32.mrf.mxu0
      %2598 = vmatprep.mubr.bf16.mxu0 0
      %2599 = vmatmul.mubr.bf16.gmra.mxu0 %v1324
      %v2600 = vpop.f32.mrf.mxu0
      %v2601 = vadd.f32 0.0, %v2600
      %v2602 = vpop.f32.mrf.mxu0
      %v2603 = vpop.f32.mrf.mxu0
      %v2604 = vadd.f32 0.0, %v2603
      %v2605 = vpop.f32.mrf.mxu0
      %2606 = vmatprep.mubr.bf16.mxu0 0
      %2607 = vmatmul.mubr.bf16.gmra.mxu0 %v1327
      %v2608 = vpop.f32.mrf.mxu0
      %v2609 = vadd.f32 0.0, %v2608
      %v2610 = vpop.f32.mrf.mxu0
      %v2611 = vpop.f32.mrf.mxu0
      %v2612 = vadd.f32 0.0, %v2611
      %v2613 = vpop.f32.mrf.mxu0
      %2614 = vmatprep.mubr.bf16.mxu0 0
      %2615 = vmatmul.mubr.bf16.gmra.mxu0 %v1330
      %v2616 = vpop.f32.mrf.mxu0
      %v2617 = vadd.f32 0.0, %v2616
      %v2618 = vpop.f32.mrf.mxu0
      %v2619 = vpop.f32.mrf.mxu0
      %v2620 = vadd.f32 0.0, %v2619
      %v2621 = vpop.f32.mrf.mxu0
      %2622 = vmatprep.mubr.bf16.mxu0 0
      %2623 = vmatmul.mubr.bf16.gmra.mxu0 %v1333
      %v2624 = vpop.f32.mrf.mxu0
      %v2625 = vadd.f32 0.0, %v2624
      %v2626 = vpop.f32.mrf.mxu0
      %v2627 = vpop.f32.mrf.mxu0
      %v2628 = vadd.f32 0.0, %v2627
      %v2629 = vpop.f32.mrf.mxu0
      %2630 = vmatprep.mubr.bf16.mxu0 0
      %2631 = vmatmul.mubr.bf16.gmra.mxu0 %v1336
      %v2632 = vpop.f32.mrf.mxu0
      %v2633 = vadd.f32 0.0, %v2632
      %v2634 = vpop.f32.mrf.mxu0
      %v2635 = vpop.f32.mrf.mxu0
      %v2636 = vadd.f32 0.0, %v2635
      %v2637 = vpop.f32.mrf.mxu0
      %2638 = vmatprep.mubr.bf16.mxu0 0
      %2639 = vmatmul.mubr.bf16.gmra.mxu0 %v1339
      %v2640 = vpop.f32.mrf.mxu0
      %v2641 = vadd.f32 0.0, %v2640
      %v2642 = vpop.f32.mrf.mxu0
      %v2643 = vpop.f32.mrf.mxu0
      %v2644 = vadd.f32 0.0, %v2643
      %v2645 = vpop.f32.mrf.mxu0
      %2646 = vmatprep.mubr.bf16.mxu0 0
      %2647 = vmatmul.mubr.bf16.gmra.mxu0 %v1342
      %v2648 = vpop.f32.mrf.mxu0
      %v2649 = vadd.f32 0.0, %v2648
      %v2650 = vpop.f32.mrf.mxu0
      %v2651 = vpop.f32.mrf.mxu0
      %v2652 = vadd.f32 0.0, %v2651
      %v2653 = vpop.f32.mrf.mxu0
      %2654 = vmatprep.mubr.bf16.mxu0 0
      %2655 = vmatmul.mubr.bf16.gmra.mxu0 %v1345
      %v2656 = vpop.f32.mrf.mxu0
      %v2657 = vadd.f32 0.0, %v2656
      %v2658 = vpop.f32.mrf.mxu0
      %v2659 = vpop.f32.mrf.mxu0
      %v2660 = vadd.f32 0.0, %v2659
      %v2661 = vpop.f32.mrf.mxu0
      %2662 = vmatprep.mubr.bf16.mxu0 0
      %2663 = vmatmul.mubr.bf16.gmra.mxu0 %v1890
      %v2664 = vpop.f32.mrf.mxu0
      %v2665 = vadd.f32 0.0, %v2664
      %v2666 = vpop.f32.mrf.mxu0
      %v2667 = vpop.f32.mrf.mxu0
      %v2668 = vadd.f32 0.0, %v2667
      %v2669 = vpop.f32.mrf.mxu0
      %2670 = vmatprep.mubr.bf16.mxu0 0
      %2671 = vmatmul.mubr.bf16.gmra.mxu0 %v2513
      %v2672 = vpop.f32.mrf.mxu0
      %v2673 = vadd.f32 0.0, %v2672
      %v2674 = vpop.f32.mrf.mxu0
      %v2675 = vpop.f32.mrf.mxu0
      %v2676 = vadd.f32 0.0, %v2675
      %v2677 = vpop.f32.mrf.mxu0
      %2678 = vdwg.mxu0
      %v2679 = vadd.f32 %v2477, %v2553
      %v2680 = vadd.f32 %v2478, %v2556
      %v2681 = vadd.f32 %v2479, %v2561
      %v2682 = vadd.f32 %v2480, %v2564
      %v2683 = vadd.f32 %v2481, %v2569
      %v2684 = vadd.f32 %v2482, %v2572
      %v2685 = vadd.f32 %v2483, %v2577
      %v2686 = vadd.f32 %v2484, %v2580
      %v2687 = vadd.f32 %v2485, %v2585
      %v2688 = vadd.f32 %v2486, %v2588
      %v2689 = vadd.f32 %v2487, %v2593
      %v2690 = vadd.f32 %v2488, %v2596
      %v2691 = vadd.f32 %v2489, %v2601
      %v2692 = vadd.f32 %v2490, %v2604
      %v2693 = vadd.f32 %v2491, %v2609
      %v2694 = vadd.f32 %v2492, %v2612
      %v2695 = vadd.f32 %v2493, %v2617
      %v2696 = vadd.f32 %v2494, %v2620
      %v2697 = vadd.f32 %v2495, %v2625
      %v2698 = vadd.f32 %v2496, %v2628
      %v2699 = vadd.f32 %v2497, %v2633
      %v2700 = vadd.f32 %v2498, %v2636
      %v2701 = vadd.f32 %v2499, %v2641
      %v2702 = vadd.f32 %v2500, %v2644
      %v2703 = vadd.f32 %v2501, %v2649
      %v2704 = vadd.f32 %v2502, %v2652
      %v2705 = vadd.f32 %v2503, %v2657
      %v2706 = vadd.f32 %v2504, %v2660
      %v2707 = vadd.f32 %v2505, %v2665
      %v2708 = vadd.f32 %v2506, %v2668
      %v2709 = vadd.f32 %v2507, %v2673
      %v2710 = vadd.f32 %v2508, %v2676
      %v2714 = vrot.slane %v886, 1
      %v2715 = vrot.slane %v887, 1
      %v2716 = vsel %vm954, %v2714, %v2715
      %v2717 = vrot.slane %v888, 1
      %v2718 = vsel %vm954, %v2715, %v2717
      %v2721 = vpack.c.bf16 %v2718, %v2716
      %s2722 = scalar_lea.vmem %s2, 28
      %v2723 = vld [vmem:[%s2722] sm:$0xf]
      %v2725 = vsel %vm1085, %v2721, 0
      %v2728 = vsel %vm1134, %v2723, 0
      %2730 = vmatprep.subr.bf16.mxu0 0
      %2731 = vmatpush1.bf16.msra.mxu0 0
      %2732 = vmatprep.subr.bf16.mxu0 0
      %2733 = vmatpush1.bf16.msra.mxu0 0
      %2734 = vmatprep.subr.bf16.mxu0 0
      %2735 = vmatpush1.bf16.msra.mxu0 0
      %2736 = vmatprep.subr.bf16.mxu0 0
      %2737 = vmatpush1.bf16.msra.mxu0 0
      %2738 = vmatprep.subr.bf16.mxu0 0
      %2739 = vmatpush1.bf16.msra.mxu0 0
      %2740 = vmatprep.subr.bf16.mxu0 0
      %2741 = vmatpush1.bf16.msra.mxu0 0
      %2742 = vmatprep.subr.bf16.mxu0 0
      %2743 = vmatpush1.bf16.msra.mxu0 0
      %2744 = vmatprep.subr.bf16.mxu0 0
      %2745 = vmatpush1.bf16.msra.mxu0 %v2728
      %2746 = vmatprep.subr.bf16.mxu0 0
      %2747 = vmatpush2.bf16.msra.mxu0 0
      %2748 = vmatprep.subr.bf16.mxu0 0
      %2749 = vmatpush2.bf16.msra.mxu0 0
      %2750 = vmatprep.subr.bf16.mxu0 0
      %2751 = vmatpush2.bf16.msra.mxu0 0
      %2752 = vmatprep.subr.bf16.mxu0 0
      %2753 = vmatpush2.bf16.msra.mxu0 0
      %2754 = vmatprep.subr.bf16.mxu0 0
      %2755 = vmatpush2.bf16.msra.mxu0 0
      %2756 = vmatprep.subr.bf16.mxu0 0
      %2757 = vmatpush2.bf16.msra.mxu0 0
      %2758 = vmatprep.subr.bf16.mxu0 0
      %2759 = vmatpush2.bf16.msra.mxu0 0
      %2760 = vmatprep.subr.bf16.mxu0 0
      %2761 = vmatpush2.bf16.msra.mxu0 0
      %2762 = vmatprep.mubr.bf16.mxu0 0
      %2763 = vmatmul.mubr.bf16.gmra.mxu0 %v1093
      %v2764 = vpop.f32.mrf.mxu0
      %v2765 = vadd.f32 0.0, %v2764
      %v2766 = vpop.f32.mrf.mxu0
      %v2767 = vpop.f32.mrf.mxu0
      %v2768 = vadd.f32 0.0, %v2767
      %v2769 = vpop.f32.mrf.mxu0
      %2770 = vmatprep.mubr.bf16.mxu0 0
      %2771 = vmatmul.mubr.bf16.gmra.mxu0 %v1096
      %v2772 = vpop.f32.mrf.mxu0
      %v2773 = vadd.f32 0.0, %v2772
      %v2774 = vpop.f32.mrf.mxu0
      %v2775 = vpop.f32.mrf.mxu0
      %v2776 = vadd.f32 0.0, %v2775
      %v2777 = vpop.f32.mrf.mxu0
      %2778 = vmatprep.mubr.bf16.mxu0 0
      %2779 = vmatmul.mubr.bf16.gmra.mxu0 %v1099
      %v2780 = vpop.f32.mrf.mxu0
      %v2781 = vadd.f32 0.0, %v2780
      %v2782 = vpop.f32.mrf.mxu0
      %v2783 = vpop.f32.mrf.mxu0
      %v2784 = vadd.f32 0.0, %v2783
      %v2785 = vpop.f32.mrf.mxu0
      %2786 = vmatprep.mubr.bf16.mxu0 0
      %2787 = vmatmul.mubr.bf16.gmra.mxu0 %v1102
      %v2788 = vpop.f32.mrf.mxu0
      %v2789 = vadd.f32 0.0, %v2788
      %v2790 = vpop.f32.mrf.mxu0
      %v2791 = vpop.f32.mrf.mxu0
      %v2792 = vadd.f32 0.0, %v2791
      %v2793 = vpop.f32.mrf.mxu0
      %2794 = vmatprep.mubr.bf16.mxu0 0
      %2795 = vmatmul.mubr.bf16.gmra.mxu0 %v1105
      %v2796 = vpop.f32.mrf.mxu0
      %v2797 = vadd.f32 0.0, %v2796
      %v2798 = vpop.f32.mrf.mxu0
      %v2799 = vpop.f32.mrf.mxu0
      %v2800 = vadd.f32 0.0, %v2799
      %v2801 = vpop.f32.mrf.mxu0
      %2802 = vmatprep.mubr.bf16.mxu0 0
      %2803 = vmatmul.mubr.bf16.gmra.mxu0 %v1108
      %v2804 = vpop.f32.mrf.mxu0
      %v2805 = vadd.f32 0.0, %v2804
      %v2806 = vpop.f32.mrf.mxu0
      %v2807 = vpop.f32.mrf.mxu0
      %v2808 = vadd.f32 0.0, %v2807
      %v2809 = vpop.f32.mrf.mxu0
      %2810 = vmatprep.mubr.bf16.mxu0 0
      %2811 = vmatmul.mubr.bf16.gmra.mxu0 %v1111
      %v2812 = vpop.f32.mrf.mxu0
      %v2813 = vadd.f32 0.0, %v2812
      %v2814 = vpop.f32.mrf.mxu0
      %v2815 = vpop.f32.mrf.mxu0
      %v2816 = vadd.f32 0.0, %v2815
      %v2817 = vpop.f32.mrf.mxu0
      %2818 = vmatprep.mubr.bf16.mxu0 0
      %2819 = vmatmul.mubr.bf16.gmra.mxu0 %v1114
      %v2820 = vpop.f32.mrf.mxu0
      %v2821 = vadd.f32 0.0, %v2820
      %v2822 = vpop.f32.mrf.mxu0
      %v2823 = vpop.f32.mrf.mxu0
      %v2824 = vadd.f32 0.0, %v2823
      %v2825 = vpop.f32.mrf.mxu0
      %2826 = vmatprep.mubr.bf16.mxu0 0
      %2827 = vmatmul.mubr.bf16.gmra.mxu0 %v1117
      %v2828 = vpop.f32.mrf.mxu0
      %v2829 = vadd.f32 0.0, %v2828
      %v2830 = vpop.f32.mrf.mxu0
      %v2831 = vpop.f32.mrf.mxu0
      %v2832 = vadd.f32 0.0, %v2831
      %v2833 = vpop.f32.mrf.mxu0
      %2834 = vmatprep.mubr.bf16.mxu0 0
      %2835 = vmatmul.mubr.bf16.gmra.mxu0 %v1120
      %v2836 = vpop.f32.mrf.mxu0
      %v2837 = vadd.f32 0.0, %v2836
      %v2838 = vpop.f32.mrf.mxu0
      %v2839 = vpop.f32.mrf.mxu0
      %v2840 = vadd.f32 0.0, %v2839
      %v2841 = vpop.f32.mrf.mxu0
      %2842 = vmatprep.mubr.bf16.mxu0 0
      %2843 = vmatmul.mubr.bf16.gmra.mxu0 %v1123
      %v2844 = vpop.f32.mrf.mxu0
      %v2845 = vadd.f32 0.0, %v2844
      %v2846 = vpop.f32.mrf.mxu0
      %v2847 = vpop.f32.mrf.mxu0
      %v2848 = vadd.f32 0.0, %v2847
      %v2849 = vpop.f32.mrf.mxu0
      %2850 = vmatprep.mubr.bf16.mxu0 0
      %2851 = vmatmul.mubr.bf16.gmra.mxu0 %v1126
      %v2852 = vpop.f32.mrf.mxu0
      %v2853 = vadd.f32 0.0, %v2852
      %v2854 = vpop.f32.mrf.mxu0
      %v2855 = vpop.f32.mrf.mxu0
      %v2856 = vadd.f32 0.0, %v2855
      %v2857 = vpop.f32.mrf.mxu0
      %2858 = vmatprep.mubr.bf16.mxu0 0
      %2859 = vmatmul.mubr.bf16.gmra.mxu0 %v1129
      %v2860 = vpop.f32.mrf.mxu0
      %v2861 = vadd.f32 0.0, %v2860
      %v2862 = vpop.f32.mrf.mxu0
      %v2863 = vpop.f32.mrf.mxu0
      %v2864 = vadd.f32 0.0, %v2863
      %v2865 = vpop.f32.mrf.mxu0
      %2866 = vmatprep.mubr.bf16.mxu0 0
      %2867 = vmatmul.mubr.bf16.gmra.mxu0 %v1132
      %v2868 = vpop.f32.mrf.mxu0
      %v2869 = vadd.f32 0.0, %v2868
      %v2870 = vpop.f32.mrf.mxu0
      %v2871 = vpop.f32.mrf.mxu0
      %v2872 = vadd.f32 0.0, %v2871
      %v2873 = vpop.f32.mrf.mxu0
      %2874 = vmatprep.mubr.bf16.mxu0 0
      %2875 = vmatmul.mubr.bf16.gmra.mxu0 %v2102
      %v2876 = vpop.f32.mrf.mxu0
      %v2877 = vadd.f32 0.0, %v2876
      %v2878 = vpop.f32.mrf.mxu0
      %v2879 = vpop.f32.mrf.mxu0
      %v2880 = vadd.f32 0.0, %v2879
      %v2881 = vpop.f32.mrf.mxu0
      %2882 = vmatprep.mubr.bf16.mxu0 0
      %2883 = vmatmul.mubr.bf16.gmra.mxu0 %v2725
      %v2884 = vpop.f32.mrf.mxu0
      %v2885 = vadd.f32 0.0, %v2884
      %v2886 = vpop.f32.mrf.mxu0
      %v2887 = vpop.f32.mrf.mxu0
      %v2888 = vadd.f32 0.0, %v2887
      %v2889 = vpop.f32.mrf.mxu0
      %2890 = vdwg.mxu0
      %v2891 = vadd.f32 %v2679, %v2765
      %v2892 = vadd.f32 %v2680, %v2768
      %v2893 = vadd.f32 %v2681, %v2773
      %v2894 = vadd.f32 %v2682, %v2776
      %v2895 = vadd.f32 %v2683, %v2781
      %v2896 = vadd.f32 %v2684, %v2784
      %v2897 = vadd.f32 %v2685, %v2789
      %v2898 = vadd.f32 %v2686, %v2792
      %v2899 = vadd.f32 %v2687, %v2797
      %v2900 = vadd.f32 %v2688, %v2800
      %v2901 = vadd.f32 %v2689, %v2805
      %v2902 = vadd.f32 %v2690, %v2808
      %v2903 = vadd.f32 %v2691, %v2813
      %v2904 = vadd.f32 %v2692, %v2816
      %v2905 = vadd.f32 %v2693, %v2821
      %v2906 = vadd.f32 %v2694, %v2824
      %v2907 = vadd.f32 %v2695, %v2829
      %v2908 = vadd.f32 %v2696, %v2832
      %v2909 = vadd.f32 %v2697, %v2837
      %v2910 = vadd.f32 %v2698, %v2840
      %v2911 = vadd.f32 %v2699, %v2845
      %v2912 = vadd.f32 %v2700, %v2848
      %v2913 = vadd.f32 %v2701, %v2853
      %v2914 = vadd.f32 %v2702, %v2856
      %v2915 = vadd.f32 %v2703, %v2861
      %v2916 = vadd.f32 %v2704, %v2864
      %v2917 = vadd.f32 %v2705, %v2869
      %v2918 = vadd.f32 %v2706, %v2872
      %v2919 = vadd.f32 %v2707, %v2877
      %v2920 = vadd.f32 %v2708, %v2880
      %v2921 = vadd.f32 %v2709, %v2885
      %v2922 = vadd.f32 %v2710, %v2888
      %v2923 = vrot.slane %v886, 2
      %v2924 = vrot.slane %v887, 2
      %v2925 = vsel %vm1511, %v2923, %v2924
      %v2926 = vrot.slane %v888, 2
      %v2927 = vsel %vm1511, %v2924, %v2926
      %v2930 = vpack.c.bf16 %v2927, %v2925
      %s2931 = scalar_lea.vmem %s2, 32
      %v2932 = vld [vmem:[%s2931] sm:$0xf]
      %v2934 = vsel %vm1085, %v2930, 0
      %v2937 = vsel %vm1134, %v2932, 0
      %2939 = vmatprep.subr.bf16.mxu0 0
      %2940 = vmatpush1.bf16.msra.mxu0 0
      %2941 = vmatprep.subr.bf16.mxu0 0
      %2942 = vmatpush1.bf16.msra.mxu0 0
      %2943 = vmatprep.subr.bf16.mxu0 0
      %2944 = vmatpush1.bf16.msra.mxu0 0
      %2945 = vmatprep.subr.bf16.mxu0 0
      %2946 = vmatpush1.bf16.msra.mxu0 0
      %2947 = vmatprep.subr.bf16.mxu0 0
      %2948 = vmatpush1.bf16.msra.mxu0 0
      %2949 = vmatprep.subr.bf16.mxu0 0
      %2950 = vmatpush1.bf16.msra.mxu0 0
      %2951 = vmatprep.subr.bf16.mxu0 0
      %2952 = vmatpush1.bf16.msra.mxu0 0
      %2953 = vmatprep.subr.bf16.mxu0 0
      %2954 = vmatpush1.bf16.msra.mxu0 %v2937
      %2955 = vmatprep.subr.bf16.mxu0 0
      %2956 = vmatpush2.bf16.msra.mxu0 0
      %2957 = vmatprep.subr.bf16.mxu0 0
      %2958 = vmatpush2.bf16.msra.mxu0 0
      %2959 = vmatprep.subr.bf16.mxu0 0
      %2960 = vmatpush2.bf16.msra.mxu0 0
      %2961 = vmatprep.subr.bf16.mxu0 0
      %2962 = vmatpush2.bf16.msra.mxu0 0
      %2963 = vmatprep.subr.bf16.mxu0 0
      %2964 = vmatpush2.bf16.msra.mxu0 0
      %2965 = vmatprep.subr.bf16.mxu0 0
      %2966 = vmatpush2.bf16.msra.mxu0 0
      %2967 = vmatprep.subr.bf16.mxu0 0
      %2968 = vmatpush2.bf16.msra.mxu0 0
      %2969 = vmatprep.subr.bf16.mxu0 0
      %2970 = vmatpush2.bf16.msra.mxu0 0
      %2971 = vmatprep.mubr.bf16.mxu0 0
      %2972 = vmatmul.mubr.bf16.gmra.mxu0 %v1649
      %v2973 = vpop.f32.mrf.mxu0
      %v2974 = vadd.f32 0.0, %v2973
      %v2975 = vpop.f32.mrf.mxu0
      %v2976 = vpop.f32.mrf.mxu0
      %v2977 = vadd.f32 0.0, %v2976
      %v2978 = vpop.f32.mrf.mxu0
      %2979 = vmatprep.mubr.bf16.mxu0 0
      %2980 = vmatmul.mubr.bf16.gmra.mxu0 %v1652
      %v2981 = vpop.f32.mrf.mxu0
      %v2982 = vadd.f32 0.0, %v2981
      %v2983 = vpop.f32.mrf.mxu0
      %v2984 = vpop.f32.mrf.mxu0
      %v2985 = vadd.f32 0.0, %v2984
      %v2986 = vpop.f32.mrf.mxu0
      %2987 = vmatprep.mubr.bf16.mxu0 0
      %2988 = vmatmul.mubr.bf16.gmra.mxu0 %v1655
      %v2989 = vpop.f32.mrf.mxu0
      %v2990 = vadd.f32 0.0, %v2989
      %v2991 = vpop.f32.mrf.mxu0
      %v2992 = vpop.f32.mrf.mxu0
      %v2993 = vadd.f32 0.0, %v2992
      %v2994 = vpop.f32.mrf.mxu0
      %2995 = vmatprep.mubr.bf16.mxu0 0
      %2996 = vmatmul.mubr.bf16.gmra.mxu0 %v1658
      %v2997 = vpop.f32.mrf.mxu0
      %v2998 = vadd.f32 0.0, %v2997
      %v2999 = vpop.f32.mrf.mxu0
      %v3000 = vpop.f32.mrf.mxu0
      %v3001 = vadd.f32 0.0, %v3000
      %v3002 = vpop.f32.mrf.mxu0
      %3003 = vmatprep.mubr.bf16.mxu0 0
      %3004 = vmatmul.mubr.bf16.gmra.mxu0 %v1661
      %v3005 = vpop.f32.mrf.mxu0
      %v3006 = vadd.f32 0.0, %v3005
      %v3007 = vpop.f32.mrf.mxu0
      %v3008 = vpop.f32.mrf.mxu0
      %v3009 = vadd.f32 0.0, %v3008
      %v3010 = vpop.f32.mrf.mxu0
      %3011 = vmatprep.mubr.bf16.mxu0 0
      %3012 = vmatmul.mubr.bf16.gmra.mxu0 %v1664
      %v3013 = vpop.f32.mrf.mxu0
      %v3014 = vadd.f32 0.0, %v3013
      %v3015 = vpop.f32.mrf.mxu0
      %v3016 = vpop.f32.mrf.mxu0
      %v3017 = vadd.f32 0.0, %v3016
      %v3018 = vpop.f32.mrf.mxu0
      %3019 = vmatprep.mubr.bf16.mxu0 0
      %3020 = vmatmul.mubr.bf16.gmra.mxu0 %v1667
      %v3021 = vpop.f32.mrf.mxu0
      %v3022 = vadd.f32 0.0, %v3021
      %v3023 = vpop.f32.mrf.mxu0
      %v3024 = vpop.f32.mrf.mxu0
      %v3025 = vadd.f32 0.0, %v3024
      %v3026 = vpop.f32.mrf.mxu0
      %3027 = vmatprep.mubr.bf16.mxu0 0
      %3028 = vmatmul.mubr.bf16.gmra.mxu0 %v1670
      %v3029 = vpop.f32.mrf.mxu0
      %v3030 = vadd.f32 0.0, %v3029
      %v3031 = vpop.f32.mrf.mxu0
      %v3032 = vpop.f32.mrf.mxu0
      %v3033 = vadd.f32 0.0, %v3032
      %v3034 = vpop.f32.mrf.mxu0
      %3035 = vmatprep.mubr.bf16.mxu0 0
      %3036 = vmatmul.mubr.bf16.gmra.mxu0 %v1673
      %v3037 = vpop.f32.mrf.mxu0
      %v3038 = vadd.f32 0.0, %v3037
      %v3039 = vpop.f32.mrf.mxu0
      %v3040 = vpop.f32.mrf.mxu0
      %v3041 = vadd.f32 0.0, %v3040
      %v3042 = vpop.f32.mrf.mxu0
      %3043 = vmatprep.mubr.bf16.mxu0 0
      %3044 = vmatmul.mubr.bf16.gmra.mxu0 %v1676
      %v3045 = vpop.f32.mrf.mxu0
      %v3046 = vadd.f32 0.0, %v3045
      %v3047 = vpop.f32.mrf.mxu0
      %v3048 = vpop.f32.mrf.mxu0
      %v3049 = vadd.f32 0.0, %v3048
      %v3050 = vpop.f32.mrf.mxu0
      %3051 = vmatprep.mubr.bf16.mxu0 0
      %3052 = vmatmul.mubr.bf16.gmra.mxu0 %v1679
      %v3053 = vpop.f32.mrf.mxu0
      %v3054 = vadd.f32 0.0, %v3053
      %v3055 = vpop.f32.mrf.mxu0
      %v3056 = vpop.f32.mrf.mxu0
      %v3057 = vadd.f32 0.0, %v3056
      %v3058 = vpop.f32.mrf.mxu0
      %3059 = vmatprep.mubr.bf16.mxu0 0
      %3060 = vmatmul.mubr.bf16.gmra.mxu0 %v1682
      %v3061 = vpop.f32.mrf.mxu0
      %v3062 = vadd.f32 0.0, %v3061
      %v3063 = vpop.f32.mrf.mxu0
      %v3064 = vpop.f32.mrf.mxu0
      %v3065 = vadd.f32 0.0, %v3064
      %v3066 = vpop.f32.mrf.mxu0
      %3067 = vmatprep.mubr.bf16.mxu0 0
      %3068 = vmatmul.mubr.bf16.gmra.mxu0 %v1685
      %v3069 = vpop.f32.mrf.mxu0
      %v3070 = vadd.f32 0.0, %v3069
      %v3071 = vpop.f32.mrf.mxu0
      %v3072 = vpop.f32.mrf.mxu0
      %v3073 = vadd.f32 0.0, %v3072
      %v3074 = vpop.f32.mrf.mxu0
      %3075 = vmatprep.mubr.bf16.mxu0 0
      %3076 = vmatmul.mubr.bf16.gmra.mxu0 %v1688
      %v3077 = vpop.f32.mrf.mxu0
      %v3078 = vadd.f32 0.0, %v3077
      %v3079 = vpop.f32.mrf.mxu0
      %v3080 = vpop.f32.mrf.mxu0
      %v3081 = vadd.f32 0.0, %v3080
      %v3082 = vpop.f32.mrf.mxu0
      %3083 = vmatprep.mubr.bf16.mxu0 0
      %3084 = vmatmul.mubr.bf16.gmra.mxu0 %v2311
      %v3085 = vpop.f32.mrf.mxu0
      %v3086 = vadd.f32 0.0, %v3085
      %v3087 = vpop.f32.mrf.mxu0
      %v3088 = vpop.f32.mrf.mxu0
      %v3089 = vadd.f32 0.0, %v3088
      %v3090 = vpop.f32.mrf.mxu0
      %3091 = vmatprep.mubr.bf16.mxu0 0
      %3092 = vmatmul.mubr.bf16.gmra.mxu0 %v2934
      %v3093 = vpop.f32.mrf.mxu0
      %v3094 = vadd.f32 0.0, %v3093
      %v3095 = vpop.f32.mrf.mxu0
      %v3096 = vpop.f32.mrf.mxu0
      %v3097 = vadd.f32 0.0, %v3096
      %v3098 = vpop.f32.mrf.mxu0
      %3099 = vdwg.mxu0
      %v3100 = vadd.f32 %v2891, %v2974
      %v3101 = vadd.f32 %v2892, %v2977
      %v3102 = vadd.f32 %v2893, %v2982
      %v3103 = vadd.f32 %v2894, %v2985
      %v3104 = vadd.f32 %v2895, %v2990
      %v3105 = vadd.f32 %v2896, %v2993
      %v3106 = vadd.f32 %v2897, %v2998
      %v3107 = vadd.f32 %v2898, %v3001
      %v3108 = vadd.f32 %v2899, %v3006
      %v3109 = vadd.f32 %v2900, %v3009
      %v3110 = vadd.f32 %v2901, %v3014
      %v3111 = vadd.f32 %v2902, %v3017
      %v3112 = vadd.f32 %v2903, %v3022
      %v3113 = vadd.f32 %v2904, %v3025
      %v3114 = vadd.f32 %v2905, %v3030
      %v3115 = vadd.f32 %v2906, %v3033
      %v3116 = vadd.f32 %v2907, %v3038
      %v3117 = vadd.f32 %v2908, %v3041
      %v3118 = vadd.f32 %v2909, %v3046
      %v3119 = vadd.f32 %v2910, %v3049
      %v3120 = vadd.f32 %v2911, %v3054
      %v3121 = vadd.f32 %v2912, %v3057
      %v3122 = vadd.f32 %v2913, %v3062
      %v3123 = vadd.f32 %v2914, %v3065
      %v3124 = vadd.f32 %v2915, %v3070
      %v3125 = vadd.f32 %v2916, %v3073
      %v3126 = vadd.f32 %v2917, %v3078
      %v3127 = vadd.f32 %v2918, %v3081
      %v3128 = vadd.f32 %v2919, %v3086
      %v3129 = vadd.f32 %v2920, %v3089
      %v3130 = vadd.f32 %v2921, %v3094
      %v3131 = vadd.f32 %v2922, %v3097
      %vm3132 = vcmask 31744
      %3133 = vst.msk [vmem:[%s238] sm:$0xff] %vm3132, %v3100
      %3134 = vst.msk [vmem:[%s238 + $0x8] sm:$0xff] %vm3132, %v3101
      %3135 = vst.msk [vmem:[%s238 + $0x10] sm:$0xff] %vm3132, %v3102
      %3136 = vst.msk [vmem:[%s238 + $0x18] sm:$0xff] %vm3132, %v3103
      %3137 = vst.msk [vmem:[%s238 + $0x20] sm:$0xff] %vm3132, %v3104
      %3138 = vst.msk [vmem:[%s238 + $0x28] sm:$0xff] %vm3132, %v3105
      %3139 = vst.msk [vmem:[%s238 + $0x30] sm:$0xff] %vm3132, %v3106
      %3140 = vst.msk [vmem:[%s238 + $0x38] sm:$0xff] %vm3132, %v3107
      %3141 = vst.msk [vmem:[%s238 + $0x40] sm:$0xff] %vm3132, %v3108
      %3142 = vst.msk [vmem:[%s238 + $0x48] sm:$0xff] %vm3132, %v3109
      %3143 = vst.msk [vmem:[%s238 + $0x50] sm:$0xff] %vm3132, %v3110
      %3144 = vst.msk [vmem:[%s238 + $0x58] sm:$0xff] %vm3132, %v3111
      %3145 = vst.msk [vmem:[%s238 + $0x60] sm:$0xff] %vm3132, %v3112
      %3146 = vst.msk [vmem:[%s238 + $0x68] sm:$0xff] %vm3132, %v3113
      %3147 = vst.msk [vmem:[%s238 + $0x70] sm:$0xff] %vm3132, %v3114
      %3148 = vst.msk [vmem:[%s238 + $0x78] sm:$0xff] %vm3132, %v3115
      %3149 = vst.msk [vmem:[%s238 + $0x80] sm:$0xff] %vm3132, %v3116
      %3150 = vst.msk [vmem:[%s238 + $0x88] sm:$0xff] %vm3132, %v3117
      %3151 = vst.msk [vmem:[%s238 + $0x90] sm:$0xff] %vm3132, %v3118
      %3152 = vst.msk [vmem:[%s238 + $0x98] sm:$0xff] %vm3132, %v3119
      %3153 = vst.msk [vmem:[%s238 + $0xa0] sm:$0xff] %vm3132, %v3120
      %3154 = vst.msk [vmem:[%s238 + $0xa8] sm:$0xff] %vm3132, %v3121
      %3155 = vst.msk [vmem:[%s238 + $0xb0] sm:$0xff] %vm3132, %v3122
      %3156 = vst.msk [vmem:[%s238 + $0xb8] sm:$0xff] %vm3132, %v3123
      %3157 = vst.msk [vmem:[%s238 + $0xc0] sm:$0xff] %vm3132, %v3124
      %3158 = vst.msk [vmem:[%s238 + $0xc8] sm:$0xff] %vm3132, %v3125
      %3159 = vst.msk [vmem:[%s238 + $0xd0] sm:$0xff] %vm3132, %v3126
      %3160 = vst.msk [vmem:[%s238 + $0xd8] sm:$0xff] %vm3132, %v3127
      %3161 = vst.msk [vmem:[%s238 + $0xe0] sm:$0xff] %vm3132, %v3128
      %3162 = vst.msk [vmem:[%s238 + $0xe8] sm:$0xff] %vm3132, %v3129
      %3163 = vst.msk [vmem:[%s238 + $0xf0] sm:$0xff] %vm3132, %v3130
      %3164 = vst.msk [vmem:[%s238 + $0xf8] sm:$0xff] %vm3132, %v3131
      %v3165 = vsel %vm3132, %v3100, 0.0
      %v3166 = vsel %vm3132, %v3101, 0.0
      %v3167 = vadd.f32 %v3165, %v3166
      %v3168 = vsel %vm3132, %v3102, 0.0
      %v3169 = vadd.f32 %v3167, %v3168
      %v3170 = vsel %vm3132, %v3103, 0.0
      %v3171 = vadd.f32 %v3169, %v3170
      %v3172 = vsel %vm3132, %v3104, 0.0
      %v3173 = vadd.f32 %v3171, %v3172
      %v3174 = vsel %vm3132, %v3105, 0.0
      %v3175 = vadd.f32 %v3173, %v3174
      %v3176 = vsel %vm3132, %v3106, 0.0
      %v3177 = vadd.f32 %v3175, %v3176
      %v3178 = vsel %vm3132, %v3107, 0.0
      %v3179 = vadd.f32 %v3177, %v3178
      %v3180 = vsel %vm3132, %v3108, 0.0
      %v3181 = vadd.f32 %v3179, %v3180
      %v3182 = vsel %vm3132, %v3109, 0.0
      %v3183 = vadd.f32 %v3181, %v3182
      %v3184 = vsel %vm3132, %v3110, 0.0
      %v3185 = vadd.f32 %v3183, %v3184
      %v3186 = vsel %vm3132, %v3111, 0.0
      %v3187 = vadd.f32 %v3185, %v3186
      %v3188 = vsel %vm3132, %v3112, 0.0
      %v3189 = vadd.f32 %v3187, %v3188
      %v3190 = vsel %vm3132, %v3113, 0.0
      %v3191 = vadd.f32 %v3189, %v3190
      %v3192 = vsel %vm3132, %v3114, 0.0
      %v3193 = vadd.f32 %v3191, %v3192
      %v3194 = vsel %vm3132, %v3115, 0.0
      %v3195 = vadd.f32 %v3193, %v3194
      %v3196 = vsel %vm3132, %v3116, 0.0
      %v3197 = vadd.f32 %v3195, %v3196
      %v3198 = vsel %vm3132, %v3117, 0.0
      %v3199 = vadd.f32 %v3197, %v3198
      %v3200 = vsel %vm3132, %v3118, 0.0
      %v3201 = vadd.f32 %v3199, %v3200
      %v3202 = vsel %vm3132, %v3119, 0.0
      %v3203 = vadd.f32 %v3201, %v3202
      %v3204 = vsel %vm3132, %v3120, 0.0
      %v3205 = vadd.f32 %v3203, %v3204
      %v3206 = vsel %vm3132, %v3121, 0.0
      %v3207 = vadd.f32 %v3205, %v3206
      %v3208 = vsel %vm3132, %v3122, 0.0
      %v3209 = vadd.f32 %v3207, %v3208
      %v3210 = vsel %vm3132, %v3123, 0.0
      %v3211 = vadd.f32 %v3209, %v3210
      %v3212 = vsel %vm3132, %v3124, 0.0
      %v3213 = vadd.f32 %v3211, %v3212
      %v3214 = vsel %vm3132, %v3125, 0.0
      %v3215 = vadd.f32 %v3213, %v3214
      %v3216 = vsel %vm3132, %v3126, 0.0
      %v3217 = vadd.f32 %v3215, %v3216
      %v3218 = vsel %vm3132, %v3127, 0.0
      %v3219 = vadd.f32 %v3217, %v3218
      %v3220 = vsel %vm3132, %v3128, 0.0
      %v3221 = vadd.f32 %v3219, %v3220
      %v3222 = vsel %vm3132, %v3129, 0.0
      %v3223 = vadd.f32 %v3221, %v3222
      %v3224 = vsel %vm3132, %v3130, 0.0
      %v3225 = vadd.f32 %v3223, %v3224
      %v3226 = vsel %vm3132, %v3131, 0.0
      %v3227 = vadd.f32 %v3225, %v3226
      %v3228 = vrot.slane %v3227, 4
      %v3229 = vadd.f32 %v3227, %v3228
      %v3230 = vrot.slane %v3229, 2
      %v3231 = vadd.f32 %v3229, %v3230
      %v3232 = vrot.slane %v3231, 1
      %v3233 = vadd.f32 %v3231, %v3232
      %v3234 = vmul.f32 %v3100, %v3100
      %v3235 = vmul.f32 %v3101, %v3101
      %v3236 = vmul.f32 %v3102, %v3102
      %v3237 = vmul.f32 %v3103, %v3103
      %v3238 = vmul.f32 %v3104, %v3104
      %v3239 = vmul.f32 %v3105, %v3105
      %v3240 = vmul.f32 %v3106, %v3106
      %v3241 = vmul.f32 %v3107, %v3107
      %v3242 = vmul.f32 %v3108, %v3108
      %v3243 = vmul.f32 %v3109, %v3109
      %v3244 = vmul.f32 %v3110, %v3110
      %v3245 = vmul.f32 %v3111, %v3111
      %v3246 = vmul.f32 %v3112, %v3112
      %v3247 = vmul.f32 %v3113, %v3113
      %v3248 = vmul.f32 %v3114, %v3114
      %v3249 = vmul.f32 %v3115, %v3115
      %v3250 = vmul.f32 %v3116, %v3116
      %v3251 = vmul.f32 %v3117, %v3117
      %v3252 = vmul.f32 %v3118, %v3118
      %v3253 = vmul.f32 %v3119, %v3119
      %v3254 = vmul.f32 %v3120, %v3120
      %v3255 = vmul.f32 %v3121, %v3121
      %v3256 = vmul.f32 %v3122, %v3122
      %v3257 = vmul.f32 %v3123, %v3123
      %v3258 = vmul.f32 %v3124, %v3124
      %v3259 = vmul.f32 %v3125, %v3125
      %v3260 = vmul.f32 %v3126, %v3126
      %v3261 = vmul.f32 %v3127, %v3127
      %v3262 = vmul.f32 %v3128, %v3128
      %v3263 = vmul.f32 %v3129, %v3129
      %v3264 = vmul.f32 %v3130, %v3130
      %v3265 = vmul.f32 %v3131, %v3131
      %v3266 = vsel %vm3132, %v3234, 0.0
      %v3267 = vsel %vm3132, %v3235, 0.0
      %v3268 = vadd.f32 %v3266, %v3267
      %v3269 = vsel %vm3132, %v3236, 0.0
      %v3270 = vadd.f32 %v3268, %v3269
      %v3271 = vsel %vm3132, %v3237, 0.0
      %v3272 = vadd.f32 %v3270, %v3271
      %v3273 = vsel %vm3132, %v3238, 0.0
      %v3274 = vadd.f32 %v3272, %v3273
      %v3275 = vsel %vm3132, %v3239, 0.0
      %v3276 = vadd.f32 %v3274, %v3275
      %v3277 = vsel %vm3132, %v3240, 0.0
      %v3278 = vadd.f32 %v3276, %v3277
      %v3279 = vsel %vm3132, %v3241, 0.0
      %v3280 = vadd.f32 %v3278, %v3279
      %v3281 = vsel %vm3132, %v3242, 0.0
      %v3282 = vadd.f32 %v3280, %v3281
      %v3283 = vsel %vm3132, %v3243, 0.0
      %v3284 = vadd.f32 %v3282, %v3283
      %v3285 = vsel %vm3132, %v3244, 0.0
      %v3286 = vadd.f32 %v3284, %v3285
      %v3287 = vsel %vm3132, %v3245, 0.0
      %v3288 = vadd.f32 %v3286, %v3287
      %v3289 = vsel %vm3132, %v3246, 0.0
      %v3290 = vadd.f32 %v3288, %v3289
      %v3291 = vsel %vm3132, %v3247, 0.0
      %v3292 = vadd.f32 %v3290, %v3291
      %v3293 = vsel %vm3132, %v3248, 0.0
      %v3294 = vadd.f32 %v3292, %v3293
      %v3295 = vsel %vm3132, %v3249, 0.0
      %v3296 = vadd.f32 %v3294, %v3295
      %v3297 = vsel %vm3132, %v3250, 0.0
      %v3298 = vadd.f32 %v3296, %v3297
      %v3299 = vsel %vm3132, %v3251, 0.0
      %v3300 = vadd.f32 %v3298, %v3299
      %v3301 = vsel %vm3132, %v3252, 0.0
      %v3302 = vadd.f32 %v3300, %v3301
      %v3303 = vsel %vm3132, %v3253, 0.0
      %v3304 = vadd.f32 %v3302, %v3303
      %v3305 = vsel %vm3132, %v3254, 0.0
      %v3306 = vadd.f32 %v3304, %v3305
      %v3307 = vsel %vm3132, %v3255, 0.0
      %v3308 = vadd.f32 %v3306, %v3307
      %v3309 = vsel %vm3132, %v3256, 0.0
      %v3310 = vadd.f32 %v3308, %v3309
      %v3311 = vsel %vm3132, %v3257, 0.0
      %v3312 = vadd.f32 %v3310, %v3311
      %v3313 = vsel %vm3132, %v3258, 0.0
      %v3314 = vadd.f32 %v3312, %v3313
      %v3315 = vsel %vm3132, %v3259, 0.0
      %v3316 = vadd.f32 %v3314, %v3315
      %v3317 = vsel %vm3132, %v3260, 0.0
      %v3318 = vadd.f32 %v3316, %v3317
      %v3319 = vsel %vm3132, %v3261, 0.0
      %v3320 = vadd.f32 %v3318, %v3319
      %v3321 = vsel %vm3132, %v3262, 0.0
      %v3322 = vadd.f32 %v3320, %v3321
      %v3323 = vsel %vm3132, %v3263, 0.0
      %v3324 = vadd.f32 %v3322, %v3323
      %v3325 = vsel %vm3132, %v3264, 0.0
      %v3326 = vadd.f32 %v3324, %v3325
      %v3327 = vsel %vm3132, %v3265, 0.0
      %v3328 = vadd.f32 %v3326, %v3327
      %v3329 = vrot.slane %v3328, 4
      %v3330 = vadd.f32 %v3328, %v3329
      %v3331 = vrot.slane %v3330, 2
      %v3332 = vadd.f32 %v3330, %v3331
      %v3333 = vrot.slane %v3332, 1
      %v3334 = vadd.f32 %v3332, %v3333
      %vm3335 = vcmask 1040384
      %v3336 = vsel %vm3335, %v3233, %v3334
      %vm3337 = vcmask 25600
      %3338 = vst.msk [vmem:[%s244] sm:$0x3] %vm3337, %v3336
      %s3339 = smul.u32 16, %s21
      %p3340 = scmp.lt.s32.totalorder %s20, 1
      %s3341 = scalar_select %p3340, %s20, 1
      %p3342 = scmp.lt.s32.totalorder %s3339, 15
      %s3343 = scalar_select %p3342, %s3339, 15
      %s3344 = smul.addr %s3343, 2
      %s3345 = smul.addr %s3341, 32
      %s3346 = sadd.s32 %s3344, %s3345
      %s3347 = smul.addr %s3346, 8
      %s3348 = scalar_lea.vmem %s3, %s3347
      %s3349 = sadd.s32 %s20, %s21
      %p3350 = scmp.lt.s32.totalorder %s3349, 1
      %s3351 = scalar_select %p3350, %s3349, 1
      %s3352 = smul.addr %s3351, 2
      %s3353 = scalar_lea.vmem %s4, %s3352
      // Predicated region
      $region33: #{_lambda_.5} parent=31 // pred_check
        %p3354 = pneg %p118
      $region34: #{_lambda_.5} parent=31 // pred_check_branch
        %3356 = sbr.rel (%p3354) target = $region36
      $region35: #{_lambda_.5} parent=31 // pred_region
        %s3357 = smul.u32 16, %s21
      $region36: #{_lambda_.5} parent=31 // pred_fallthru
        _
      // Predicated region
      $region37: #{_lambda_.5} parent=31 // pred_check
        %p3358 = pneg %p146
      $region38: #{_lambda_.5} parent=31 // pred_check_branch
        %3360 = sbr.rel (%p3358) target = $region40
      $region39: #{_lambda_.5} parent=31 // pred_region
        %s3361 = sadd.s32 %s20, %s21
      $region40: #{_lambda_.5} parent=31 // pred_fallthru
        _
    $region32: #{_lambda_.5} parent=5 // pred_fallthru
      _
    %p3362 = scmp.le.s32.totalorder 2, %s11
    // Predicated region
    $region41: #{_lambda_.5} parent=5 // pred_check
      %p3363 = pneg %p3362
    $region42: #{_lambda_.5} parent=5 // pred_check_branch
      %3365 = sbr.rel (%p3363) target = $region44
    $region43: #{_lambda_.5} parent=5 // pred_region
      %s3366 = ssub.s32 %s11, 2
      // Predicated region
      $region45: #{_lambda_.5} parent=43 // pred_check
        %p3367 = pneg %p124
      $region46: #{_lambda_.5} parent=43 // pred_check_branch
        %3369 = sbr.rel (%p3367) target = $region48
      $region47: #{_lambda_.5} parent=43 // pred_region
        %s3370 = smul.u32 16, %s23
        %p3371 = scmp.lt.s32.totalorder %s22, 1
        %s3372 = scalar_select %p3371, %s22, 1
        %p3373 = scmp.lt.s32.totalorder %s3370, 15
        %s3374 = scalar_select %p3373, %s3370, 15
        %s3375 = smul.addr %s3374, 2
        %s3376 = smul.addr %s3372, 32
        %s3377 = sadd.s32 %s3375, %s3376
        %s3378 = smul.addr %s3377, 8
        %s3379 = scalar_lea.vmem %s3, %s3378
      $region48: #{_lambda_.5} parent=43 // pred_fallthru
        _
      // Predicated region
      $region49: #{_lambda_.5} parent=43 // pred_check
        %p3380 = pneg %p152
      $region50: #{_lambda_.5} parent=43 // pred_check_branch
        %3382 = sbr.rel (%p3380) target = $region52
      $region51: #{_lambda_.5} parent=43 // pred_region
        %s3383 = sadd.s32 %s22, %s23
        %p3384 = scmp.lt.s32.totalorder %s3383, 1
        %s3385 = scalar_select %p3384, %s3383, 1
        %s3386 = smul.addr %s3385, 2
        %s3387 = scalar_lea.vmem %s4, %s3386
      $region52: #{_lambda_.5} parent=43 // pred_fallthru
        _
    $region44: #{_lambda_.5} parent=5 // pred_fallthru
      _
  $region6: #{_lambda_.5} parent=0 // loop_footer
    %s15 = sadd.s32 1, %s11
  $region7: #{_lambda_.5} parent=0 // loop_footer_branch
    %10 = sbr.rel target = $region3
  $region8: #{_lambda_.5} parent=0 // loop_exit
    _

// kernel: _lambda_.9
$region0: #{_lambda_.9}
  #allocation0 [shape = 'u32[]', space=smem, size = 0x4, offset = 0x4, fixed_abs, tag = 'smem constant byte address 0x4 - core index']
  #allocation1 [shape = 'u32[144,128]{1,0:T(1,128)}', space=vmem, size = 0x12000, scoped, tag = 'internal scratch']
  %s0 = inlined_call_operand.vmem [shape: f32[2,16], index: 0, kind: input, shape index: {}]
  %s1 = inlined_call_operand.vmem [shape: f32[2,16,16,16], index: 1, kind: input, shape index: {}]
  %s2 = inlined_call_operand.vmem [shape: f32[2,16,16,8], index: 2, kind: input, shape index: {}]
  %s3 = inlined_call_operand.vmem [shape: bf16[8,16], index: 3, kind: input, shape index: {}]
  %s4 = inlined_call_operand.vmem [shape: f32[1,16], index: 4, kind: input, shape index: {}]
  %s5 = inlined_call_operand.vmem [shape: f32[2,16,16,16], index: 5, kind: output, shape index: {}]
  %s6 = sld [smem:[#allocation0]]
  $region53: #{_lambda_.9} parent=0
    _
  %s8 = ssub.s32 1, %s6
  %s9 = scalar_select 0, %s8, %s6
  loop: start=0, step=1, limit=4
  $region2: #{_lambda_.9} parent=0 // loop_pre_header
    _
  $region3: #{_lambda_.9} parent=0 // loop_header
    %s11 = sphi 0, %s15
    %p12 = scmp.ge.s32.totalorder %s11, 4
    %s18 = sphi 0, %s30
    %s19 = sphi 0, %s26
    %s20 = sphi 0, %s18
    %s21 = sphi 0, %s19
    %s22 = sphi 0, %s20
    %s23 = sphi 0, %s21
    %s31 = sphi 0, %s31
    %s33 = sphi 0, %s31
    %s34 = sphi 0, %s33
    %s48 = sphi 0, %s34
    %s56 = sphi 0, %s58
    %s59 = sphi 0, %s56
    %s60 = sphi 0, %s59
    %s76 = sphi 0, %s60
    %s84 = sphi 0, %s86
    %s87 = sphi 0, %s84
    %s88 = sphi 0, %s87
    %s104 = sphi 0, %s88
    %s108 = sphi 0, %s108
    %s110 = sphi 0, %s108
    %s111 = sphi 0, %s110
    %s125 = sphi 0, %s111
    %s129 = sphi 0, %s129
    %s131 = sphi 0, %s129
    %s132 = sphi 0, %s131
    %s146 = sphi 0, %s132
    %s154 = sphi 0, %s156
    %s157 = sphi 0, %s154
    %s158 = sphi 0, %s157
    %s174 = sphi 0, %s158
  $region4: #{_lambda_.9} parent=0 // loop_header_branch
    %14 = sbr.rel (%p12) target = $region8
  $region5: #{_lambda_.9} parent=0 // loop_body
    %s16 = ssub.s32 %s11, 1
    %s17 = ssub.s32 %s11, 2
    %s24 = sadd.s32 1, %s19
    %p25 = scmp.ge.s32.totalorder %s24, 1
    %s26 = scalar_select %p25, 0, %s24
    %s27 = sadd.s32 1, %s18
    %s28 = scalar_select %p25, %s27, %s18
    %p29 = scmp.ge.s32.totalorder %s28, 2
    %s30 = scalar_select %p29, 0, %s28
    %s32 = sadd.s32 %s31, 1
    %p35 = scmp.eq.s32.totalorder %s11, 1
    %p36 = scmp.ne.s32.totalorder %s31, %s33
    %p37 = scmp.eq.s32.totalorder %s11, 0
    %p38 = por %p36, %p37
    %p39 = scmp.ne.s32.totalorder %s31, %s33
    %p40 = scmp.eq.s32.totalorder %s16, 1
    %p41 = por %p39, %p40
    %p42 = scmp.ne.s32.totalorder %s33, %s34
    %p43 = scmp.eq.s32.totalorder %s16, 0
    %p44 = por %p42, %p43
    %p45 = scmp.ne.s32.totalorder %s33, %s34
    %p46 = scmp.eq.s32.totalorder %s17, 1
    %p47 = por %p45, %p46
    %p49 = scmp.ne.s32.totalorder %s34, %s48
    %p50 = scmp.eq.s32.totalorder %s17, 0
    %p51 = por %p49, %p50
    %s52 = ssub.s32 %s18, %s30
    %s53 = ssub.s32 %s19, %s26
    %s54 = sor.u32 %s52, %s53
    %p55 = scmp.eq.s32.totalorder %s54, 0
    %s57 = sadd.s32 %s56, 1
    %s58 = scalar_select %p55, %s56, %s57
    %p61 = pneg %p55
    %p62 = scmp.eq.s32.totalorder %s11, 1
    %p63 = por %p61, %p62
    %p64 = scmp.ne.s32.totalorder %s56, %s59
    %p65 = scmp.eq.s32.totalorder %s11, 0
    %p66 = por %p64, %p65
    %p67 = scmp.ne.s32.totalorder %s56, %s59
    %p68 = scmp.eq.s32.totalorder %s16, 1
    %p69 = por %p67, %p68
    %p70 = scmp.ne.s32.totalorder %s59, %s60
    %p71 = scmp.eq.s32.totalorder %s16, 0
    %p72 = por %p70, %p71
    %p73 = scmp.ne.s32.totalorder %s59, %s60
    %p74 = scmp.eq.s32.totalorder %s17, 1
    %p75 = por %p73, %p74
    %p77 = scmp.ne.s32.totalorder %s60, %s76
    %p78 = scmp.eq.s32.totalorder %s17, 0
    %p79 = por %p77, %p78
    %s80 = ssub.s32 %s18, %s30
    %s81 = ssub.s32 %s19, %s26
    %s82 = sor.u32 %s80, %s81
    %p83 = scmp.eq.s32.totalorder %s82, 0
    %s85 = sadd.s32 %s84, 1
    %s86 = scalar_select %p83, %s84, %s85
    %p89 = pneg %p83
    %p90 = scmp.eq.s32.totalorder %s11, 1
    %p91 = por %p89, %p90
    %p92 = scmp.ne.s32.totalorder %s84, %s87
    %p93 = scmp.eq.s32.totalorder %s11, 0
    %p94 = por %p92, %p93
    %p95 = scmp.ne.s32.totalorder %s84, %s87
    %p96 = scmp.eq.s32.totalorder %s16, 1
    %p97 = por %p95, %p96
    %p98 = scmp.ne.s32.totalorder %s87, %s88
    %p99 = scmp.eq.s32.totalorder %s16, 0
    %p100 = por %p98, %p99
    %p101 = scmp.ne.s32.totalorder %s87, %s88
    %p102 = scmp.eq.s32.totalorder %s17, 1
    %p103 = por %p101, %p102
    %p105 = scmp.ne.s32.totalorder %s88, %s104
    %p106 = scmp.eq.s32.totalorder %s17, 0
    %p107 = por %p105, %p106
    %s109 = sadd.s32 %s108, 1
    %p112 = scmp.eq.s32.totalorder %s11, 1
    %p113 = scmp.ne.s32.totalorder %s108, %s110
    %p114 = scmp.eq.s32.totalorder %s11, 0
    %p115 = por %p113, %p114
    %p116 = scmp.ne.s32.totalorder %s108, %s110
    %p117 = scmp.eq.s32.totalorder %s16, 1
    %p118 = por %p116, %p117
    %p119 = scmp.ne.s32.totalorder %s110, %s111
    %p120 = scmp.eq.s32.totalorder %s16, 0
    %p121 = por %p119, %p120
    %p122 = scmp.ne.s32.totalorder %s110, %s111
    %p123 = scmp.eq.s32.totalorder %s17, 1
    %p124 = por %p122, %p123
    %p126 = scmp.ne.s32.totalorder %s111, %s125
    %p127 = scmp.eq.s32.totalorder %s17, 0
    %p128 = por %p126, %p127
    %s130 = sadd.s32 %s129, 1
    %p133 = scmp.eq.s32.totalorder %s11, 1
    %p134 = scmp.ne.s32.totalorder %s129, %s131
    %p135 = scmp.eq.s32.totalorder %s11, 0
    %p136 = por %p134, %p135
    %p137 = scmp.ne.s32.totalorder %s129, %s131
    %p138 = scmp.eq.s32.totalorder %s16, 1
    %p139 = por %p137, %p138
    %p140 = scmp.ne.s32.totalorder %s131, %s132
    %p141 = scmp.eq.s32.totalorder %s16, 0
    %p142 = por %p140, %p141
    %p143 = scmp.ne.s32.totalorder %s131, %s132
    %p144 = scmp.eq.s32.totalorder %s17, 1
    %p145 = por %p143, %p144
    %p147 = scmp.ne.s32.totalorder %s132, %s146
    %p148 = scmp.eq.s32.totalorder %s17, 0
    %p149 = por %p147, %p148
    %s150 = ssub.s32 %s18, %s30
    %s151 = ssub.s32 %s19, %s26
    %s152 = sor.u32 %s150, %s151
    %p153 = scmp.eq.s32.totalorder %s152, 0
    %s155 = sadd.s32 %s154, 1
    %s156 = scalar_select %p153, %s154, %s155
    %p159 = pneg %p153
    %p160 = scmp.eq.s32.totalorder %s11, 1
    %p161 = por %p159, %p160
    %p162 = scmp.ne.s32.totalorder %s154, %s157
    %p163 = scmp.eq.s32.totalorder %s11, 0
    %p164 = por %p162, %p163
    %p165 = scmp.ne.s32.totalorder %s154, %s157
    %p166 = scmp.eq.s32.totalorder %s16, 1
    %p167 = por %p165, %p166
    %p168 = scmp.ne.s32.totalorder %s157, %s158
    %p169 = scmp.eq.s32.totalorder %s16, 0
    %p170 = por %p168, %p169
    %p171 = scmp.ne.s32.totalorder %s157, %s158
    %p172 = scmp.eq.s32.totalorder %s17, 1
    %p173 = por %p171, %p172
    %p175 = scmp.ne.s32.totalorder %s158, %s174
    %p176 = scmp.eq.s32.totalorder %s17, 0
    %p177 = por %p175, %p176
    %p178 = scmp.le.s32.totalorder 1, %s11
    %p179 = scmp.lt.s32.totalorder %s11, 3
    %p180 = pnand %p178, %p179
    %p181 = pneg %p180
    // Predicated region
    $region9: #{_lambda_.9} parent=5 // pred_check
      _
    $region10: #{_lambda_.9} parent=5 // pred_check_branch
      %183 = sbr.rel (%p180) target = $region12
    $region11: #{_lambda_.9} parent=5 // pred_region
      %s184 = ssub.s32 %s11, 1
      // Predicated region
      $region13: #{_lambda_.9} parent=11 // pred_check
        %p185 = pneg %p44
      $region14: #{_lambda_.9} parent=11 // pred_check_branch
        %187 = sbr.rel (%p185) target = $region16
      $region15: #{_lambda_.9} parent=11 // pred_region
        _
      $region16: #{_lambda_.9} parent=11 // pred_fallthru
        _
      // Predicated region
      $region17: #{_lambda_.9} parent=11 // pred_check
        %p188 = pneg %p121
      $region18: #{_lambda_.9} parent=11 // pred_check_branch
        %190 = sbr.rel (%p188) target = $region20
      $region19: #{_lambda_.9} parent=11 // pred_region
        _
      $region20: #{_lambda_.9} parent=11 // pred_fallthru
        _
      // Predicated region
      $region21: #{_lambda_.9} parent=11 // pred_check
        %p191 = pneg %p142
      $region22: #{_lambda_.9} parent=11 // pred_check_branch
        %193 = sbr.rel (%p191) target = $region24
      $region23: #{_lambda_.9} parent=11 // pred_region
        _
      $region24: #{_lambda_.9} parent=11 // pred_fallthru
        _
    $region12: #{_lambda_.9} parent=5 // pred_fallthru
      _
    %p194 = scmp.lt.s32.totalorder %s11, 2
    // Predicated region
    $region25: #{_lambda_.9} parent=5 // pred_check
      %p195 = pneg %p194
    $region26: #{_lambda_.9} parent=5 // pred_check_branch
      %197 = sbr.rel (%p195) target = $region28
    $region27: #{_lambda_.9} parent=5 // pred_region
      // Predicated region
      $region29: #{_lambda_.9} parent=27 // pred_check
        %p198 = pneg %p66
      $region30: #{_lambda_.9} parent=27 // pred_check_branch
        %200 = sbr.rel (%p198) target = $region32
      $region31: #{_lambda_.9} parent=27 // pred_region
        %s201 = smul.u32 16, %s19
        %p202 = scmp.lt.s32.totalorder %s18, 1
        %s203 = scalar_select %p202, %s18, 1
        %p204 = scmp.lt.s32.totalorder %s201, 15
        %s205 = scalar_select %p204, %s201, 15
        %s206 = smul.addr %s205, 2
        %s207 = smul.addr %s203, 32
        %s208 = sadd.s32 %s206, %s207
        %s209 = smul.addr %s208, 8
        %s210 = scalar_lea.vmem %s1, %s209
        %s211 = smul.u32 16, %s19
      $region32: #{_lambda_.9} parent=27 // pred_fallthru
        _
      // Predicated region
      $region33: #{_lambda_.9} parent=27 // pred_check
        %p212 = pneg %p94
      $region34: #{_lambda_.9} parent=27 // pred_check_branch
        %214 = sbr.rel (%p212) target = $region36
      $region35: #{_lambda_.9} parent=27 // pred_region
        %s215 = smul.u32 16, %s19
        %p216 = scmp.lt.s32.totalorder %s18, 1
        %s217 = scalar_select %p216, %s18, 1
        %p218 = scmp.lt.s32.totalorder %s215, 15
        %s219 = scalar_select %p218, %s215, 15
        %s220 = smul.addr %s219, 2
        %s221 = smul.addr %s217, 32
        %s222 = sadd.s32 %s220, %s221
        %s223 = smul.addr %s222, 8
        %s224 = scalar_lea.vmem %s2, %s223
        %s225 = smul.u32 16, %s19
      $region36: #{_lambda_.9} parent=27 // pred_fallthru
        _
    $region28: #{_lambda_.9} parent=5 // pred_fallthru
      _
    %p226 = scmp.le.s32.totalorder 1, %s11
    %p227 = scmp.lt.s32.totalorder %s11, 3
    %p228 = pnand %p226, %p227
    %p229 = pneg %p228
    // Predicated region
    $region37: #{_lambda_.9} parent=5 // pred_check
      _
    $region38: #{_lambda_.9} parent=5 // pred_check_branch
      %231 = sbr.rel (%p228) target = $region40
    $region39: #{_lambda_.9} parent=5 // pred_region
      %s232 = ssub.s32 %s11, 1
      %p233 = pneg %p44
      %p234 = pneg %p41
      %s235 = smul.u32 16, %s21
      %p236 = scmp.lt.s32.totalorder %s20, 1
      %s237 = scalar_select %p236, %s20, 1
      %p238 = scmp.lt.s32.totalorder %s235, 15
      %s239 = scalar_select %p238, %s235, 15
      %s240 = smul.addr %s239, 2
      %s241 = smul.addr %s237, 32
      %s242 = sadd.s32 %s240, %s241
      %s243 = smul.addr %s242, 8
      %s244 = scalar_lea.vmem %s1, %s243
      %p245 = pneg %p72
      %p246 = pneg %p69
      %s247 = smul.u32 16, %s21
      %p248 = scmp.lt.s32.totalorder %s20, 1
      %s249 = scalar_select %p248, %s20, 1
      %p250 = scmp.lt.s32.totalorder %s247, 15
      %s251 = scalar_select %p250, %s247, 15
      %s252 = smul.addr %s251, 2
      %s253 = smul.addr %s249, 32
      %s254 = sadd.s32 %s252, %s253
      %s255 = smul.addr %s254, 8
      %s256 = scalar_lea.vmem %s2, %s255
      %p257 = pneg %p100
      %p258 = pneg %p97
      %p259 = pneg %p121
      %p260 = pneg %p118
      %p261 = pneg %p142
      %p262 = pneg %p139
      %p263 = pneg %p170
      %p264 = pneg %p167
      %s265 = smul.u32 16, %s21
      %p266 = scmp.lt.s32.totalorder %s20, 1
      %s267 = scalar_select %p266, %s20, 1
      %p268 = scmp.lt.s32.totalorder %s265, 15
      %s269 = scalar_select %p268, %s265, 15
      %s270 = smul.addr %s269, 2
      %s271 = smul.addr %s267, 32
      %s272 = sadd.s32 %s270, %s271
      %s273 = smul.addr %s272, 8
      %s274 = scalar_lea.vmem %s5, %s273
      %s275 = smul.u32 16, %s21
      %p276 = scmp.lt.s32.totalorder %s20, 1
      %s277 = scalar_select %p276, %s20, 1
      %p278 = scmp.lt.s32.totalorder %s275, 15
      %s279 = scalar_select %p278, %s275, 15
      %s280 = smul.addr %s279, 2
      %s281 = smul.addr %s277, 32
      %s282 = sadd.s32 %s280, %s281
      %s283 = smul.addr %s282, 8
      %s284 = scalar_lea.vmem %s1, %s283
      %s285 = smul.u32 16, %s21
      %s286 = smul.u32 16, %s21
      %p287 = scmp.lt.s32.totalorder %s20, 1
      %s288 = scalar_select %p287, %s20, 1
      %p289 = scmp.lt.s32.totalorder %s286, 15
      %s290 = scalar_select %p289, %s286, 15
      %s291 = smul.addr %s290, 2
      %s292 = smul.addr %s288, 32
      %s293 = sadd.s32 %s291, %s292
      %s294 = smul.addr %s293, 8
      %s295 = scalar_lea.vmem %s2, %s294
      %s296 = smul.u32 16, %s21
      %s297 = smul.u32 16, %s21
      %p298 = scmp.lt.s32.totalorder %s20, 1
      %s299 = scalar_select %p298, %s20, 1
      %p300 = scmp.lt.s32.totalorder %s297, 15
      %s301 = scalar_select %p300, %s297, 15
      %s302 = smul.addr %s301, 2
      %s303 = smul.addr %s299, 32
      %s304 = sadd.s32 %s302, %s303
      %s305 = smul.addr %s304, 8
      %s306 = scalar_lea.vmem %s5, %s305
      %s307 = smul.u32 16, %s21
      %v309 = vld [vmem:[%s284] sm:$0xff]
      %v310 = vld [vmem:[%s284 + $0x8] sm:$0xff]
      %v311 = vld [vmem:[%s284 + $0x10] sm:$0xff]
      %v312 = vld [vmem:[%s284 + $0x18] sm:$0xff]
      %v313 = vld [vmem:[%s284 + $0x20] sm:$0xff]
      %v314 = vld [vmem:[%s284 + $0x28] sm:$0xff]
      %v315 = vld [vmem:[%s284 + $0x30] sm:$0xff]
      %v316 = vld [vmem:[%s284 + $0x38] sm:$0xff]
      %v317 = vld [vmem:[%s284 + $0x40] sm:$0xff]
      %v318 = vld [vmem:[%s284 + $0x48] sm:$0xff]
      %v319 = vld [vmem:[%s284 + $0x50] sm:$0xff]
      %v320 = vld [vmem:[%s284 + $0x58] sm:$0xff]
      %v321 = vld [vmem:[%s284 + $0x60] sm:$0xff]
      %v322 = vld [vmem:[%s284 + $0x68] sm:$0xff]
      %v323 = vld [vmem:[%s284 + $0x70] sm:$0xff]
      %v324 = vld [vmem:[%s284 + $0x78] sm:$0xff]
      %v325 = vld [vmem:[%s284 + $0x80] sm:$0xff]
      %v326 = vld [vmem:[%s284 + $0x88] sm:$0xff]
      %v327 = vld [vmem:[%s284 + $0x90] sm:$0xff]
      %v328 = vld [vmem:[%s284 + $0x98] sm:$0xff]
      %v329 = vld [vmem:[%s284 + $0xa0] sm:$0xff]
      %v330 = vld [vmem:[%s284 + $0xa8] sm:$0xff]
      %v331 = vld [vmem:[%s284 + $0xb0] sm:$0xff]
      %v332 = vld [vmem:[%s284 + $0xb8] sm:$0xff]
      %v333 = vld [vmem:[%s284 + $0xc0] sm:$0xff]
      %v334 = vld [vmem:[%s284 + $0xc8] sm:$0xff]
      %v335 = vld [vmem:[%s284 + $0xd0] sm:$0xff]
      %v336 = vld [vmem:[%s284 + $0xd8] sm:$0xff]
      %v337 = vld [vmem:[%s284 + $0xe0] sm:$0xff]
      %v338 = vld [vmem:[%s284 + $0xe8] sm:$0xff]
      %v339 = vld [vmem:[%s284 + $0xf0] sm:$0xff]
      %v340 = vld [vmem:[%s284 + $0xf8] sm:$0xff]
      %v341 = vld [vmem:[%s0] sm:$0x1]
      %v342 = vlaneseq
      %v343 = vshrl.u32 %v342, 7
      %v344 = vsub.s32 0, %v343
      %v345 = vrot.slane %v341, %v344
      %v346 = vmul.f32 %v309, %v345
      %v347 = vmul.f32 %v310, %v345
      %v348 = vmul.f32 %v311, %v345
      %v349 = vmul.f32 %v312, %v345
      %v350 = vmul.f32 %v313, %v345
      %v351 = vmul.f32 %v314, %v345
      %v352 = vmul.f32 %v315, %v345
      %v353 = vmul.f32 %v316, %v345
      %v354 = vmul.f32 %v317, %v345
      %v355 = vmul.f32 %v318, %v345
      %v356 = vmul.f32 %v319, %v345
      %v357 = vmul.f32 %v320, %v345
      %v358 = vmul.f32 %v321, %v345
      %v359 = vmul.f32 %v322, %v345
      %v360 = vmul.f32 %v323, %v345
      %v361 = vmul.f32 %v324, %v345
      %v362 = vmul.f32 %v325, %v345
      %v363 = vmul.f32 %v326, %v345
      %v364 = vmul.f32 %v327, %v345
      %v365 = vmul.f32 %v328, %v345
      %v366 = vmul.f32 %v329, %v345
      %v367 = vmul.f32 %v330, %v345
      %v368 = vmul.f32 %v331, %v345
      %v369 = vmul.f32 %v332, %v345
      %v370 = vmul.f32 %v333, %v345
      %v371 = vmul.f32 %v334, %v345
      %v372 = vmul.f32 %v335, %v345
      %v373 = vmul.f32 %v336, %v345
      %v374 = vmul.f32 %v337, %v345
      %v375 = vmul.f32 %v338, %v345
      %v376 = vmul.f32 %v339, %v345
      %v377 = vmul.f32 %v340, %v345
      %v378 = vld [vmem:[%s0 + $0x1] sm:$0x1]
      %v379 = vlaneseq
      %v380 = vshrl.u32 %v379, 7
      %v381 = vsub.s32 0, %v380
      %v382 = vrot.slane %v378, %v381
      %v383 = vadd.f32 %v346, %v382
      %v384 = vadd.f32 %v347, %v382
      %v385 = vadd.f32 %v348, %v382
      %v386 = vadd.f32 %v349, %v382
      %v387 = vadd.f32 %v350, %v382
      %v388 = vadd.f32 %v351, %v382
      %v389 = vadd.f32 %v352, %v382
      %v390 = vadd.f32 %v353, %v382
      %v391 = vadd.f32 %v354, %v382
      %v392 = vadd.f32 %v355, %v382
      %v393 = vadd.f32 %v356, %v382
      %v394 = vadd.f32 %v357, %v382
      %v395 = vadd.f32 %v358, %v382
      %v396 = vadd.f32 %v359, %v382
      %v397 = vadd.f32 %v360, %v382
      %v398 = vadd.f32 %v361, %v382
      %v399 = vadd.f32 %v362, %v382
      %v400 = vadd.f32 %v363, %v382
      %v401 = vadd.f32 %v364, %v382
      %v402 = vadd.f32 %v365, %v382
      %v403 = vadd.f32 %v366, %v382
      %v404 = vadd.f32 %v367, %v382
      %v405 = vadd.f32 %v368, %v382
      %v406 = vadd.f32 %v369, %v382
      %v407 = vadd.f32 %v370, %v382
      %v408 = vadd.f32 %v371, %v382
      %v409 = vadd.f32 %v372, %v382
      %v410 = vadd.f32 %v373, %v382
      %v411 = vadd.f32 %v374, %v382
      %v412 = vadd.f32 %v375, %v382
      %v413 = vadd.f32 %v376, %v382
      %v414 = vadd.f32 %v377, %v382
      %v415 = vld [vmem:[%s295] sm:$0xff]
      %v416 = vld [vmem:[%s295 + $0x8] sm:$0xff]
      %v417 = vld [vmem:[%s295 + $0x10] sm:$0xff]
      %v418 = vld [vmem:[%s295 + $0x18] sm:$0xff]
      %v419 = vld [vmem:[%s295 + $0x20] sm:$0xff]
      %v420 = vld [vmem:[%s295 + $0x28] sm:$0xff]
      %v421 = vld [vmem:[%s295 + $0x30] sm:$0xff]
      %v422 = vld [vmem:[%s295 + $0x38] sm:$0xff]
      %v423 = vld [vmem:[%s295 + $0x40] sm:$0xff]
      %v424 = vld [vmem:[%s295 + $0x48] sm:$0xff]
      %v425 = vld [vmem:[%s295 + $0x50] sm:$0xff]
      %v426 = vld [vmem:[%s295 + $0x58] sm:$0xff]
      %v427 = vld [vmem:[%s295 + $0x60] sm:$0xff]
      %v428 = vld [vmem:[%s295 + $0x68] sm:$0xff]
      %v429 = vld [vmem:[%s295 + $0x70] sm:$0xff]
      %v430 = vld [vmem:[%s295 + $0x78] sm:$0xff]
      %v431 = vld [vmem:[%s295 + $0x80] sm:$0xff]
      %v432 = vld [vmem:[%s295 + $0x88] sm:$0xff]
      %v433 = vld [vmem:[%s295 + $0x90] sm:$0xff]
      %v434 = vld [vmem:[%s295 + $0x98] sm:$0xff]
      %v435 = vld [vmem:[%s295 + $0xa0] sm:$0xff]
      %v436 = vld [vmem:[%s295 + $0xa8] sm:$0xff]
      %v437 = vld [vmem:[%s295 + $0xb0] sm:$0xff]
      %v438 = vld [vmem:[%s295 + $0xb8] sm:$0xff]
      %v439 = vld [vmem:[%s295 + $0xc0] sm:$0xff]
      %v440 = vld [vmem:[%s295 + $0xc8] sm:$0xff]
      %v441 = vld [vmem:[%s295 + $0xd0] sm:$0xff]
      %v442 = vld [vmem:[%s295 + $0xd8] sm:$0xff]
      %v443 = vld [vmem:[%s295 + $0xe0] sm:$0xff]
      %v444 = vld [vmem:[%s295 + $0xe8] sm:$0xff]
      %v445 = vld [vmem:[%s295 + $0xf0] sm:$0xff]
      %v446 = vld [vmem:[%s295 + $0xf8] sm:$0xff]
      %v447 = vpack.c.bf16 %v416, %v415
      %v448 = vpack.c.bf16 %v418, %v417
      %v449 = vpack.c.bf16 %v420, %v419
      %v450 = vpack.c.bf16 %v422, %v421
      %v451 = vpack.c.bf16 %v424, %v423
      %v452 = vpack.c.bf16 %v426, %v425
      %v453 = vpack.c.bf16 %v428, %v427
      %v454 = vpack.c.bf16 %v430, %v429
      %v455 = vpack.c.bf16 %v432, %v431
      %v456 = vpack.c.bf16 %v434, %v433
      %v457 = vpack.c.bf16 %v436, %v435
      %v458 = vpack.c.bf16 %v438, %v437
      %v459 = vpack.c.bf16 %v440, %v439
      %v460 = vpack.c.bf16 %v442, %v441
      %v461 = vpack.c.bf16 %v444, %v443
      %v462 = vpack.c.bf16 %v446, %v445
      %v463 = vld [vmem:[%s3] sm:$0xf]
      %v464 = vld [vmem:[%s4] sm:$0x1]
      %v466 = vlaneseq
      %v467 = vshrl.u32 %v466, 7
      %v468 = vsub.s32 0, %v467
      %v469 = vrot.slane %v464, %v468
      %vm471 = vcmask 64512
      %v473 = vsel %vm471, %v447, 0
      %v476 = vsel %vm471, %v448, 0
      %v479 = vsel %vm471, %v449, 0
      %v482 = vsel %vm471, %v450, 0
      %v485 = vsel %vm471, %v451, 0
      %v488 = vsel %vm471, %v452, 0
      %v491 = vsel %vm471, %v453, 0
      %v494 = vsel %vm471, %v454, 0
      %v497 = vsel %vm471, %v455, 0
      %v500 = vsel %vm471, %v456, 0
      %v503 = vsel %vm471, %v457, 0
      %v506 = vsel %vm471, %v458, 0
      %v509 = vsel %vm471, %v459, 0
      %v512 = vsel %vm471, %v460, 0
      %v515 = vsel %vm471, %v461, 0
      %v518 = vsel %vm471, %v462, 0
      %vm520 = vcmask 1043456
      %v522 = vsel %vm520, %v463, 0
      %524 = vmatprep.subr.bf16.mxu0 0
      %525 = vmatpush1.bf16.msra.mxu0 0
      %526 = vmatprep.subr.bf16.mxu0 0
      %527 = vmatpush1.bf16.msra.mxu0 0
      %528 = vmatprep.subr.bf16.mxu0 0
      %529 = vmatpush1.bf16.msra.mxu0 0
      %530 = vmatprep.subr.bf16.mxu0 0
      %531 = vmatpush1.bf16.msra.mxu0 0
      %532 = vmatprep.subr.bf16.mxu0 0
      %533 = vmatpush1.bf16.msra.mxu0 0
      %534 = vmatprep.subr.bf16.mxu0 0
      %535 = vmatpush1.bf16.msra.mxu0 0
      %536 = vmatprep.subr.bf16.mxu0 0
      %537 = vmatpush1.bf16.msra.mxu0 0
      %538 = vmatprep.subr.bf16.mxu0 0
      %539 = vmatpush1.bf16.msra.mxu0 %v522
      %540 = vmatprep.subr.bf16.mxu0 0
      %541 = vmatpush2.bf16.msra.mxu0 0
      %542 = vmatprep.subr.bf16.mxu0 0
      %543 = vmatpush2.bf16.msra.mxu0 0
      %544 = vmatprep.subr.bf16.mxu0 0
      %545 = vmatpush2.bf16.msra.mxu0 0
      %546 = vmatprep.subr.bf16.mxu0 0
      %547 = vmatpush2.bf16.msra.mxu0 0
      %548 = vmatprep.subr.bf16.mxu0 0
      %549 = vmatpush2.bf16.msra.mxu0 0
      %550 = vmatprep.subr.bf16.mxu0 0
      %551 = vmatpush2.bf16.msra.mxu0 0
      %552 = vmatprep.subr.bf16.mxu0 0
      %553 = vmatpush2.bf16.msra.mxu0 0
      %554 = vmatprep.subr.bf16.mxu0 0
      %555 = vmatpush2.bf16.msra.mxu0 0
      %556 = vmatprep.mubr.bf16.mxu0 0
      %557 = vmatmul.mubr.bf16.gmra.mxu0 %v473
      %v558 = vpop.f32.mrf.mxu0
      %v559 = vadd.f32 %v469, %v558
      %v560 = vpop.f32.mrf.mxu0
      %v561 = vpop.f32.mrf.mxu0
      %v562 = vadd.f32 %v469, %v561
      %v563 = vpop.f32.mrf.mxu0
      %564 = vmatprep.mubr.bf16.mxu0 0
      %565 = vmatmul.mubr.bf16.gmra.mxu0 %v476
      %v566 = vpop.f32.mrf.mxu0
      %v567 = vadd.f32 %v469, %v566
      %v568 = vpop.f32.mrf.mxu0
      %v569 = vpop.f32.mrf.mxu0
      %v570 = vadd.f32 %v469, %v569
      %v571 = vpop.f32.mrf.mxu0
      %572 = vmatprep.mubr.bf16.mxu0 0
      %573 = vmatmul.mubr.bf16.gmra.mxu0 %v479
      %v574 = vpop.f32.mrf.mxu0
      %v575 = vadd.f32 %v469, %v574
      %v576 = vpop.f32.mrf.mxu0
      %v577 = vpop.f32.mrf.mxu0
      %v578 = vadd.f32 %v469, %v577
      %v579 = vpop.f32.mrf.mxu0
      %580 = vmatprep.mubr.bf16.mxu0 0
      %581 = vmatmul.mubr.bf16.gmra.mxu0 %v482
      %v582 = vpop.f32.mrf.mxu0
      %v583 = vadd.f32 %v469, %v582
      %v584 = vpop.f32.mrf.mxu0
      %v585 = vpop.f32.mrf.mxu0
      %v586 = vadd.f32 %v469, %v585
      %v587 = vpop.f32.mrf.mxu0
      %588 = vmatprep.mubr.bf16.mxu0 0
      %589 = vmatmul.mubr.bf16.gmra.mxu0 %v485
      %v590 = vpop.f32.mrf.mxu0
      %v591 = vadd.f32 %v469, %v590
      %v592 = vpop.f32.mrf.mxu0
      %v593 = vpop.f32.mrf.mxu0
      %v594 = vadd.f32 %v469, %v593
      %v595 = vpop.f32.mrf.mxu0
      %596 = vmatprep.mubr.bf16.mxu0 0
      %597 = vmatmul.mubr.bf16.gmra.mxu0 %v488
      %v598 = vpop.f32.mrf.mxu0
      %v599 = vadd.f32 %v469, %v598
      %v600 = vpop.f32.mrf.mxu0
      %v601 = vpop.f32.mrf.mxu0
      %v602 = vadd.f32 %v469, %v601
      %v603 = vpop.f32.mrf.mxu0
      %604 = vmatprep.mubr.bf16.mxu0 0
      %605 = vmatmul.mubr.bf16.gmra.mxu0 %v491
      %v606 = vpop.f32.mrf.mxu0
      %v607 = vadd.f32 %v469, %v606
      %v608 = vpop.f32.mrf.mxu0
      %v609 = vpop.f32.mrf.mxu0
      %v610 = vadd.f32 %v469, %v609
      %v611 = vpop.f32.mrf.mxu0
      %612 = vmatprep.mubr.bf16.mxu0 0
      %613 = vmatmul.mubr.bf16.gmra.mxu0 %v494
      %v614 = vpop.f32.mrf.mxu0
      %v615 = vadd.f32 %v469, %v614
      %v616 = vpop.f32.mrf.mxu0
      %v617 = vpop.f32.mrf.mxu0
      %v618 = vadd.f32 %v469, %v617
      %v619 = vpop.f32.mrf.mxu0
      %620 = vmatprep.mubr.bf16.mxu0 0
      %621 = vmatmul.mubr.bf16.gmra.mxu0 %v497
      %v622 = vpop.f32.mrf.mxu0
      %v623 = vadd.f32 %v469, %v622
      %v624 = vpop.f32.mrf.mxu0
      %v625 = vpop.f32.mrf.mxu0
      %v626 = vadd.f32 %v469, %v625
      %v627 = vpop.f32.mrf.mxu0
      %628 = vmatprep.mubr.bf16.mxu0 0
      %629 = vmatmul.mubr.bf16.gmra.mxu0 %v500
      %v630 = vpop.f32.mrf.mxu0
      %v631 = vadd.f32 %v469, %v630
      %v632 = vpop.f32.mrf.mxu0
      %v633 = vpop.f32.mrf.mxu0
      %v634 = vadd.f32 %v469, %v633
      %v635 = vpop.f32.mrf.mxu0
      %636 = vmatprep.mubr.bf16.mxu0 0
      %637 = vmatmul.mubr.bf16.gmra.mxu0 %v503
      %v638 = vpop.f32.mrf.mxu0
      %v639 = vadd.f32 %v469, %v638
      %v640 = vpop.f32.mrf.mxu0
      %v641 = vpop.f32.mrf.mxu0
      %v642 = vadd.f32 %v469, %v641
      %v643 = vpop.f32.mrf.mxu0
      %644 = vmatprep.mubr.bf16.mxu0 0
      %645 = vmatmul.mubr.bf16.gmra.mxu0 %v506
      %v646 = vpop.f32.mrf.mxu0
      %v647 = vadd.f32 %v469, %v646
      %v648 = vpop.f32.mrf.mxu0
      %v649 = vpop.f32.mrf.mxu0
      %v650 = vadd.f32 %v469, %v649
      %v651 = vpop.f32.mrf.mxu0
      %652 = vmatprep.mubr.bf16.mxu0 0
      %653 = vmatmul.mubr.bf16.gmra.mxu0 %v509
      %v654 = vpop.f32.mrf.mxu0
      %v655 = vadd.f32 %v469, %v654
      %v656 = vpop.f32.mrf.mxu0
      %v657 = vpop.f32.mrf.mxu0
      %v658 = vadd.f32 %v469, %v657
      %v659 = vpop.f32.mrf.mxu0
      %660 = vmatprep.mubr.bf16.mxu0 0
      %661 = vmatmul.mubr.bf16.gmra.mxu0 %v512
      %v662 = vpop.f32.mrf.mxu0
      %v663 = vadd.f32 %v469, %v662
      %v664 = vpop.f32.mrf.mxu0
      %v665 = vpop.f32.mrf.mxu0
      %v666 = vadd.f32 %v469, %v665
      %v667 = vpop.f32.mrf.mxu0
      %668 = vmatprep.mubr.bf16.mxu0 0
      %669 = vmatmul.mubr.bf16.gmra.mxu0 %v515
      %v670 = vpop.f32.mrf.mxu0
      %v671 = vadd.f32 %v469, %v670
      %v672 = vpop.f32.mrf.mxu0
      %v673 = vpop.f32.mrf.mxu0
      %v674 = vadd.f32 %v469, %v673
      %v675 = vpop.f32.mrf.mxu0
      %676 = vmatprep.mubr.bf16.mxu0 0
      %677 = vmatmul.mubr.bf16.gmra.mxu0 %v518
      %v678 = vpop.f32.mrf.mxu0
      %v679 = vadd.f32 %v469, %v678
      %v680 = vpop.f32.mrf.mxu0
      %v681 = vpop.f32.mrf.mxu0
      %v682 = vadd.f32 %v469, %v681
      %v683 = vpop.f32.mrf.mxu0
      %684 = vdwg.mxu0
      %v685 = vadd.f32 %v383, %v559
      %v686 = vadd.f32 %v384, %v562
      %v687 = vadd.f32 %v385, %v567
      %v688 = vadd.f32 %v386, %v570
      %v689 = vadd.f32 %v387, %v575
      %v690 = vadd.f32 %v388, %v578
      %v691 = vadd.f32 %v389, %v583
      %v692 = vadd.f32 %v390, %v586
      %v693 = vadd.f32 %v391, %v591
      %v694 = vadd.f32 %v392, %v594
      %v695 = vadd.f32 %v393, %v599
      %v696 = vadd.f32 %v394, %v602
      %v697 = vadd.f32 %v395, %v607
      %v698 = vadd.f32 %v396, %v610
      %v699 = vadd.f32 %v397, %v615
      %v700 = vadd.f32 %v398, %v618
      %v701 = vadd.f32 %v399, %v623
      %v702 = vadd.f32 %v400, %v626
      %v703 = vadd.f32 %v401, %v631
      %v704 = vadd.f32 %v402, %v634
      %v705 = vadd.f32 %v403, %v639
      %v706 = vadd.f32 %v404, %v642
      %v707 = vadd.f32 %v405, %v647
      %v708 = vadd.f32 %v406, %v650
      %v709 = vadd.f32 %v407, %v655
      %v710 = vadd.f32 %v408, %v658
      %v711 = vadd.f32 %v409, %v663
      %v712 = vadd.f32 %v410, %v666
      %v713 = vadd.f32 %v411, %v671
      %v714 = vadd.f32 %v412, %v674
      %v715 = vadd.f32 %v413, %v679
      %v716 = vadd.f32 %v414, %v682
      %vm717 = vcmask 130048
      %718 = vst.msk [vmem:[%s306] sm:$0xff] %vm717, %v685
      %719 = vst.msk [vmem:[%s306 + $0x8] sm:$0xff] %vm717, %v686
      %720 = vst.msk [vmem:[%s306 + $0x10] sm:$0xff] %vm717, %v687
      %721 = vst.msk [vmem:[%s306 + $0x18] sm:$0xff] %vm717, %v688
      %722 = vst.msk [vmem:[%s306 + $0x20] sm:$0xff] %vm717, %v689
      %723 = vst.msk [vmem:[%s306 + $0x28] sm:$0xff] %vm717, %v690
      %724 = vst.msk [vmem:[%s306 + $0x30] sm:$0xff] %vm717, %v691
      %725 = vst.msk [vmem:[%s306 + $0x38] sm:$0xff] %vm717, %v692
      %726 = vst.msk [vmem:[%s306 + $0x40] sm:$0xff] %vm717, %v693
      %727 = vst.msk [vmem:[%s306 + $0x48] sm:$0xff] %vm717, %v694
      %728 = vst.msk [vmem:[%s306 + $0x50] sm:$0xff] %vm717, %v695
      %729 = vst.msk [vmem:[%s306 + $0x58] sm:$0xff] %vm717, %v696
      %730 = vst.msk [vmem:[%s306 + $0x60] sm:$0xff] %vm717, %v697
      %731 = vst.msk [vmem:[%s306 + $0x68] sm:$0xff] %vm717, %v698
      %732 = vst.msk [vmem:[%s306 + $0x70] sm:$0xff] %vm717, %v699
      %733 = vst.msk [vmem:[%s306 + $0x78] sm:$0xff] %vm717, %v700
      %734 = vst.msk [vmem:[%s306 + $0x80] sm:$0xff] %vm717, %v701
      %735 = vst.msk [vmem:[%s306 + $0x88] sm:$0xff] %vm717, %v702
      %736 = vst.msk [vmem:[%s306 + $0x90] sm:$0xff] %vm717, %v703
      %737 = vst.msk [vmem:[%s306 + $0x98] sm:$0xff] %vm717, %v704
      %738 = vst.msk [vmem:[%s306 + $0xa0] sm:$0xff] %vm717, %v705
      %739 = vst.msk [vmem:[%s306 + $0xa8] sm:$0xff] %vm717, %v706
      %740 = vst.msk [vmem:[%s306 + $0xb0] sm:$0xff] %vm717, %v707
      %741 = vst.msk [vmem:[%s306 + $0xb8] sm:$0xff] %vm717, %v708
      %742 = vst.msk [vmem:[%s306 + $0xc0] sm:$0xff] %vm717, %v709
      %743 = vst.msk [vmem:[%s306 + $0xc8] sm:$0xff] %vm717, %v710
      %744 = vst.msk [vmem:[%s306 + $0xd0] sm:$0xff] %vm717, %v711
      %745 = vst.msk [vmem:[%s306 + $0xd8] sm:$0xff] %vm717, %v712
      %746 = vst.msk [vmem:[%s306 + $0xe0] sm:$0xff] %vm717, %v713
      %747 = vst.msk [vmem:[%s306 + $0xe8] sm:$0xff] %vm717, %v714
      %748 = vst.msk [vmem:[%s306 + $0xf0] sm:$0xff] %vm717, %v715
      %749 = vst.msk [vmem:[%s306 + $0xf8] sm:$0xff] %vm717, %v716
      %s750 = smul.u32 16, %s21
      %p751 = scmp.lt.s32.totalorder %s20, 1
      %s752 = scalar_select %p751, %s20, 1
      %p753 = scmp.lt.s32.totalorder %s750, 15
      %s754 = scalar_select %p753, %s750, 15
      %s755 = smul.addr %s754, 2
      %s756 = smul.addr %s752, 32
      %s757 = sadd.s32 %s755, %s756
      %s758 = smul.addr %s757, 8
      %s759 = scalar_lea.vmem %s5, %s758
      // Predicated region
      $region41: #{_lambda_.9} parent=39 // pred_check
        %p760 = pneg %p167
      $region42: #{_lambda_.9} parent=39 // pred_check_branch
        %762 = sbr.rel (%p760) target = $region44
      $region43: #{_lambda_.9} parent=39 // pred_region
        %s763 = smul.u32 16, %s21
      $region44: #{_lambda_.9} parent=39 // pred_fallthru
        _
    $region40: #{_lambda_.9} parent=5 // pred_fallthru
      _
    %p764 = scmp.le.s32.totalorder 2, %s11
    // Predicated region
    $region45: #{_lambda_.9} parent=5 // pred_check
      %p765 = pneg %p764
    $region46: #{_lambda_.9} parent=5 // pred_check_branch
      %767 = sbr.rel (%p765) target = $region48
    $region47: #{_lambda_.9} parent=5 // pred_region
      %s768 = ssub.s32 %s11, 2
      // Predicated region
      $region49: #{_lambda_.9} parent=47 // pred_check
        %p769 = pneg %p173
      $region50: #{_lambda_.9} parent=47 // pred_check_branch
        %771 = sbr.rel (%p769) target = $region52
      $region51: #{_lambda_.9} parent=47 // pred_region
        %s772 = smul.u32 16, %s23
        %p773 = scmp.lt.s32.totalorder %s22, 1
        %s774 = scalar_select %p773, %s22, 1
        %p775 = scmp.lt.s32.totalorder %s772, 15
        %s776 = scalar_select %p775, %s772, 15
        %s777 = smul.addr %s776, 2
        %s778 = smul.addr %s774, 32
        %s779 = sadd.s32 %s777, %s778
        %s780 = smul.addr %s779, 8
        %s781 = scalar_lea.vmem %s5, %s780
      $region52: #{_lambda_.9} parent=47 // pred_fallthru
        _
    $region48: #{_lambda_.9} parent=5 // pred_fallthru
      _
  $region6: #{_lambda_.9} parent=0 // loop_footer
    %s15 = sadd.s32 1, %s11
  $region7: #{_lambda_.9} parent=0 // loop_footer_branch
    %10 = sbr.rel target = $region3
  $region8: #{_lambda_.9} parent=0 // loop_exit
    _

// kernel: _lambda_.6
$region0: #{_lambda_.6}
  #allocation0 [shape = 'u32[]', space=smem, size = 0x4, offset = 0x4, fixed_abs, tag = 'smem constant byte address 0x4 - core index']
  #allocation1 [shape = 'u32[144,128]{1,0:T(1,128)}', space=vmem, size = 0x12000, scoped, tag = 'internal scratch']
  %s0 = inlined_call_operand.vmem [shape: f32[2,4], index: 0, kind: input, shape index: {}]
  %s1 = inlined_call_operand.vmem [shape: f32[2,18,18,4], index: 1, kind: input, shape index: {}]
  %s2 = inlined_call_operand.vmem [shape: bf16[9,4,4], index: 2, kind: input, shape index: {}]
  %s3 = inlined_call_operand.vmem [shape: f32[2,16,16,4], index: 3, kind: output, shape index: {0}]
  %s4 = inlined_call_operand.vmem [shape: f32[2,2,4], index: 4, kind: output, shape index: {1}]
  %5 = xla_tuple %s3, %s4
  %s6 = sld [smem:[#allocation0]]
  $region53: #{_lambda_.6} parent=0
    _
  %s8 = ssub.s32 1, %s6
  %s9 = scalar_select 0, %s8, %s6
  loop: start=0, step=1, limit=4
  $region2: #{_lambda_.6} parent=0 // loop_pre_header
    _
  $region3: #{_lambda_.6} parent=0 // loop_header
    %s11 = sphi 0, %s15
    %p12 = scmp.ge.s32.totalorder %s11, 4
    %s18 = sphi 0, %s30
    %s19 = sphi 0, %s26
    %s20 = sphi 0, %s18
    %s21 = sphi 0, %s19
    %s22 = sphi 0, %s20
    %s23 = sphi 0, %s21
    %s31 = sphi 0, %s31
    %s33 = sphi 0, %s31
    %s34 = sphi 0, %s33
    %s48 = sphi 0, %s34
    %s56 = sphi 0, %s58
    %s59 = sphi 0, %s56
    %s60 = sphi 0, %s59
    %s76 = sphi 0, %s60
    %s80 = sphi 0, %s80
    %s82 = sphi 0, %s80
    %s83 = sphi 0, %s82
    %s97 = sphi 0, %s83
    %s105 = sphi 0, %s107
    %s108 = sphi 0, %s105
    %s109 = sphi 0, %s108
    %s125 = sphi 0, %s109
    %s133 = sphi 0, %s135
    %s136 = sphi 0, %s133
    %s137 = sphi 0, %s136
    %s153 = sphi 0, %s137
  $region4: #{_lambda_.6} parent=0 // loop_header_branch
    %14 = sbr.rel (%p12) target = $region8
  $region5: #{_lambda_.6} parent=0 // loop_body
    %s16 = ssub.s32 %s11, 1
    %s17 = ssub.s32 %s11, 2
    %s24 = sadd.s32 1, %s19
    %p25 = scmp.ge.s32.totalorder %s24, 1
    %s26 = scalar_select %p25, 0, %s24
    %s27 = sadd.s32 1, %s18
    %s28 = scalar_select %p25, %s27, %s18
    %p29 = scmp.ge.s32.totalorder %s28, 2
    %s30 = scalar_select %p29, 0, %s28
    %s32 = sadd.s32 %s31, 1
    %p35 = scmp.eq.s32.totalorder %s11, 1
    %p36 = scmp.ne.s32.totalorder %s31, %s33
    %p37 = scmp.eq.s32.totalorder %s11, 0
    %p38 = por %p36, %p37
    %p39 = scmp.ne.s32.totalorder %s31, %s33
    %p40 = scmp.eq.s32.totalorder %s16, 1
    %p41 = por %p39, %p40
    %p42 = scmp.ne.s32.totalorder %s33, %s34
    %p43 = scmp.eq.s32.totalorder %s16, 0
    %p44 = por %p42, %p43
    %p45 = scmp.ne.s32.totalorder %s33, %s34
    %p46 = scmp.eq.s32.totalorder %s17, 1
    %p47 = por %p45, %p46
    %p49 = scmp.ne.s32.totalorder %s34, %s48
    %p50 = scmp.eq.s32.totalorder %s17, 0
    %p51 = por %p49, %p50
    %s52 = sadd.s32 %s18, %s19
    %s53 = sadd.s32 %s30, %s26
    %s54 = ssub.s32 %s52, %s53
    %p55 = scmp.eq.s32.totalorder %s54, 0
    %s57 = sadd.s32 %s56, 1
    %s58 = scalar_select %p55, %s56, %s57
    %p61 = pneg %p55
    %p62 = scmp.eq.s32.totalorder %s11, 1
    %p63 = por %p61, %p62
    %p64 = scmp.ne.s32.totalorder %s56, %s59
    %p65 = scmp.eq.s32.totalorder %s11, 0
    %p66 = por %p64, %p65
    %p67 = scmp.ne.s32.totalorder %s56, %s59
    %p68 = scmp.eq.s32.totalorder %s16, 1
    %p69 = por %p67, %p68
    %p70 = scmp.ne.s32.totalorder %s59, %s60
    %p71 = scmp.eq.s32.totalorder %s16, 0
    %p72 = por %p70, %p71
    %p73 = scmp.ne.s32.totalorder %s59, %s60
    %p74 = scmp.eq.s32.totalorder %s17, 1
    %p75 = por %p73, %p74
    %p77 = scmp.ne.s32.totalorder %s60, %s76
    %p78 = scmp.eq.s32.totalorder %s17, 0
    %p79 = por %p77, %p78
    %s81 = sadd.s32 %s80, 1
    %p84 = scmp.eq.s32.totalorder %s11, 1
    %p85 = scmp.ne.s32.totalorder %s80, %s82
    %p86 = scmp.eq.s32.totalorder %s11, 0
    %p87 = por %p85, %p86
    %p88 = scmp.ne.s32.totalorder %s80, %s82
    %p89 = scmp.eq.s32.totalorder %s16, 1
    %p90 = por %p88, %p89
    %p91 = scmp.ne.s32.totalorder %s82, %s83
    %p92 = scmp.eq.s32.totalorder %s16, 0
    %p93 = por %p91, %p92
    %p94 = scmp.ne.s32.totalorder %s82, %s83
    %p95 = scmp.eq.s32.totalorder %s17, 1
    %p96 = por %p94, %p95
    %p98 = scmp.ne.s32.totalorder %s83, %s97
    %p99 = scmp.eq.s32.totalorder %s17, 0
    %p100 = por %p98, %p99
    %s101 = ssub.s32 %s18, %s30
    %s102 = ssub.s32 %s19, %s26
    %s103 = sor.u32 %s101, %s102
    %p104 = scmp.eq.s32.totalorder %s103, 0
    %s106 = sadd.s32 %s105, 1
    %s107 = scalar_select %p104, %s105, %s106
    %p110 = pneg %p104
    %p111 = scmp.eq.s32.totalorder %s11, 1
    %p112 = por %p110, %p111
    %p113 = scmp.ne.s32.totalorder %s105, %s108
    %p114 = scmp.eq.s32.totalorder %s11, 0
    %p115 = por %p113, %p114
    %p116 = scmp.ne.s32.totalorder %s105, %s108
    %p117 = scmp.eq.s32.totalorder %s16, 1
    %p118 = por %p116, %p117
    %p119 = scmp.ne.s32.totalorder %s108, %s109
    %p120 = scmp.eq.s32.totalorder %s16, 0
    %p121 = por %p119, %p120
    %p122 = scmp.ne.s32.totalorder %s108, %s109
    %p123 = scmp.eq.s32.totalorder %s17, 1
    %p124 = por %p122, %p123
    %p126 = scmp.ne.s32.totalorder %s109, %s125
    %p127 = scmp.eq.s32.totalorder %s17, 0
    %p128 = por %p126, %p127
    %s129 = sadd.s32 %s18, %s19
    %s130 = sadd.s32 %s30, %s26
    %s131 = ssub.s32 %s129, %s130
    %p132 = scmp.eq.s32.totalorder %s131, 0
    %s134 = sadd.s32 %s133, 1
    %s135 = scalar_select %p132, %s133, %s134
    %p138 = pneg %p132
    %p139 = scmp.eq.s32.totalorder %s11, 1
    %p140 = por %p138, %p139
    %p141 = scmp.ne.s32.totalorder %s133, %s136
    %p142 = scmp.eq.s32.totalorder %s11, 0
    %p143 = por %p141, %p142
    %p144 = scmp.ne.s32.totalorder %s133, %s136
    %p145 = scmp.eq.s32.totalorder %s16, 1
    %p146 = por %p144, %p145
    %p147 = scmp.ne.s32.totalorder %s136, %s137
    %p148 = scmp.eq.s32.totalorder %s16, 0
    %p149 = por %p147, %p148
    %p150 = scmp.ne.s32.totalorder %s136, %s137
    %p151 = scmp.eq.s32.totalorder %s17, 1
    %p152 = por %p150, %p151
    %p154 = scmp.ne.s32.totalorder %s137, %s153
    %p155 = scmp.eq.s32.totalorder %s17, 0
    %p156 = por %p154, %p155
    %p157 = scmp.le.s32.totalorder 1, %s11
    %p158 = scmp.lt.s32.totalorder %s11, 3
    %p159 = pnand %p157, %p158
    %p160 = pneg %p159
    // Predicated region
    $region9: #{_lambda_.6} parent=5 // pred_check
      _
    $region10: #{_lambda_.6} parent=5 // pred_check_branch
      %162 = sbr.rel (%p159) target = $region12
    $region11: #{_lambda_.6} parent=5 // pred_region
      %s163 = ssub.s32 %s11, 1
      // Predicated region
      $region13: #{_lambda_.6} parent=11 // pred_check
        %p164 = pneg %p44
      $region14: #{_lambda_.6} parent=11 // pred_check_branch
        %166 = sbr.rel (%p164) target = $region16
      $region15: #{_lambda_.6} parent=11 // pred_region
        _
      $region16: #{_lambda_.6} parent=11 // pred_fallthru
        _
      // Predicated region
      $region17: #{_lambda_.6} parent=11 // pred_check
        %p167 = pneg %p93
      $region18: #{_lambda_.6} parent=11 // pred_check_branch
        %169 = sbr.rel (%p167) target = $region20
      $region19: #{_lambda_.6} parent=11 // pred_region
        _
      $region20: #{_lambda_.6} parent=11 // pred_fallthru
        _
    $region12: #{_lambda_.6} parent=5 // pred_fallthru
      _
    %p170 = scmp.lt.s32.totalorder %s11, 2
    // Predicated region
    $region21: #{_lambda_.6} parent=5 // pred_check
      %p171 = pneg %p170
    $region22: #{_lambda_.6} parent=5 // pred_check_branch
      %173 = sbr.rel (%p171) target = $region24
    $region23: #{_lambda_.6} parent=5 // pred_region
      // Predicated region
      $region25: #{_lambda_.6} parent=23 // pred_check
        %p174 = pneg %p66
      $region26: #{_lambda_.6} parent=23 // pred_check_branch
        %176 = sbr.rel (%p174) target = $region28
      $region27: #{_lambda_.6} parent=23 // pred_region
        %s177 = sadd.s32 %s18, %s19
        %p178 = scmp.lt.s32.totalorder %s177, 1
        %s179 = scalar_select %p178, %s177, 1
        %s180 = smul.addr %s179, 54
        %s181 = smul.addr %s180, 8
        %s182 = scalar_lea.vmem %s1, %s181
        %s183 = sadd.s32 %s18, %s19
      $region28: #{_lambda_.6} parent=23 // pred_fallthru
        _
    $region24: #{_lambda_.6} parent=5 // pred_fallthru
      _
    %p184 = scmp.le.s32.totalorder 1, %s11
    %p185 = scmp.lt.s32.totalorder %s11, 3
    %p186 = pnand %p184, %p185
    %p187 = pneg %p186
    // Predicated region
    $region29: #{_lambda_.6} parent=5 // pred_check
      _
    $region30: #{_lambda_.6} parent=5 // pred_check_branch
      %189 = sbr.rel (%p186) target = $region32
    $region31: #{_lambda_.6} parent=5 // pred_region
      %s190 = ssub.s32 %s11, 1
      %p191 = pneg %p44
      %p192 = pneg %p41
      %s193 = sadd.s32 %s20, %s21
      %p194 = scmp.lt.s32.totalorder %s193, 1
      %s195 = scalar_select %p194, %s193, 1
      %s196 = smul.addr %s195, 54
      %s197 = smul.addr %s196, 8
      %s198 = scalar_lea.vmem %s1, %s197
      %p199 = pneg %p72
      %p200 = pneg %p69
      %p201 = pneg %p93
      %p202 = pneg %p90
      %p203 = pneg %p121
      %p204 = pneg %p118
      %s205 = smul.u32 16, %s21
      %p206 = scmp.lt.s32.totalorder %s20, 1
      %s207 = scalar_select %p206, %s20, 1
      %p208 = scmp.lt.s32.totalorder %s205, 15
      %s209 = scalar_select %p208, %s205, 15
      %s210 = smul.addr %s209, 2
      %s211 = smul.addr %s207, 32
      %s212 = sadd.s32 %s210, %s211
      %s213 = smul.addr %s212, 8
      %s214 = scalar_lea.vmem %s3, %s213
      %p215 = pneg %p149
      %p216 = pneg %p146
      %s217 = sadd.s32 %s20, %s21
      %p218 = scmp.lt.s32.totalorder %s217, 1
      %s219 = scalar_select %p218, %s217, 1
      %s220 = smul.addr %s219, 2
      %s221 = scalar_lea.vmem %s4, %s220
      %s222 = sadd.s32 %s20, %s21
      %p223 = scmp.lt.s32.totalorder %s222, 1
      %s224 = scalar_select %p223, %s222, 1
      %s225 = smul.addr %s224, 54
      %s226 = smul.addr %s225, 8
      %s227 = scalar_lea.vmem %s1, %s226
      %s228 = sadd.s32 %s20, %s21
      %s229 = smul.u32 16, %s21
      %p230 = scmp.lt.s32.totalorder %s20, 1
      %s231 = scalar_select %p230, %s20, 1
      %p232 = scmp.lt.s32.totalorder %s229, 15
      %s233 = scalar_select %p232, %s229, 15
      %s234 = smul.addr %s233, 2
      %s235 = smul.addr %s231, 32
      %s236 = sadd.s32 %s234, %s235
      %s237 = smul.addr %s236, 8
      %s238 = scalar_lea.vmem %s3, %s237
      %s239 = smul.u32 16, %s21
      %s240 = sadd.s32 %s20, %s21
      %p241 = scmp.lt.s32.totalorder %s240, 1
      %s242 = scalar_select %p241, %s240, 1
      %s243 = smul.addr %s242, 2
      %s244 = scalar_lea.vmem %s4, %s243
      %s245 = sadd.s32 %s20, %s21
      %v247 = vld [vmem:[%s0] sm:$0x1]
      %v248 = vld [vmem:[%s0 + $0x1] sm:$0x1]
      %v249 = vld [vmem:[%s227] sm:$0xff]
      %v250 = vld [vmem:[%s227 + $0x8] sm:$0xff]
      %v251 = vld [vmem:[%s227 + $0x10] sm:$0x3]
      %v252 = vld [vmem:[%s227 + $0x18] sm:$0xff]
      %v253 = vld [vmem:[%s227 + $0x20] sm:$0xff]
      %v254 = vld [vmem:[%s227 + $0x28] sm:$0x3]
      %v255 = vld [vmem:[%s227 + $0x30] sm:$0xff]
      %v256 = vld [vmem:[%s227 + $0x38] sm:$0xff]
      %v257 = vld [vmem:[%s227 + $0x40] sm:$0x3]
      %v258 = vld [vmem:[%s227 + $0x48] sm:$0xff]
      %v259 = vld [vmem:[%s227 + $0x50] sm:$0xff]
      %v260 = vld [vmem:[%s227 + $0x58] sm:$0x3]
      %v261 = vld [vmem:[%s227 + $0x60] sm:$0xff]
      %v262 = vld [vmem:[%s227 + $0x68] sm:$0xff]
      %v263 = vld [vmem:[%s227 + $0x70] sm:$0x3]
      %v264 = vld [vmem:[%s227 + $0x78] sm:$0xff]
      %v265 = vld [vmem:[%s227 + $0x80] sm:$0xff]
      %v266 = vld [vmem:[%s227 + $0x88] sm:$0x3]
      %v267 = vld [vmem:[%s227 + $0x90] sm:$0xff]
      %v268 = vld [vmem:[%s227 + $0x98] sm:$0xff]
      %v269 = vld [vmem:[%s227 + $0xa0] sm:$0x3]
      %v270 = vld [vmem:[%s227 + $0xa8] sm:$0xff]
      %v271 = vld [vmem:[%s227 + $0xb0] sm:$0xff]
      %v272 = vld [vmem:[%s227 + $0xb8] sm:$0x3]
      %v273 = vld [vmem:[%s227 + $0xc0] sm:$0xff]
      %v274 = vld [vmem:[%s227 + $0xc8] sm:$0xff]
      %v275 = vld [vmem:[%s227 + $0xd0] sm:$0x3]
      %v276 = vld [vmem:[%s227 + $0xd8] sm:$0xff]
      %v277 = vld [vmem:[%s227 + $0xe0] sm:$0xff]
      %v278 = vld [vmem:[%s227 + $0xe8] sm:$0x3]
      %v279 = vld [vmem:[%s227 + $0xf0] sm:$0xff]
      %v280 = vld [vmem:[%s227 + $0xf8] sm:$0xff]
      %v281 = vld [vmem:[%s227 + $0x100] sm:$0x3]
      %v282 = vld [vmem:[%s227 + $0x108] sm:$0xff]
      %v283 = vld [vmem:[%s227 + $0x110] sm:$0xff]
      %v284 = vld [vmem:[%s227 + $0x118] sm:$0x3]
      %v285 = vld [vmem:[%s227 + $0x120] sm:$0xff]
      %v286 = vld [vmem:[%s227 + $0x128] sm:$0xff]
      %v287 = vld [vmem:[%s227 + $0x130] sm:$0x3]
      %v288 = vld [vmem:[%s227 + $0x138] sm:$0xff]
      %v289 = vld [vmem:[%s227 + $0x140] sm:$0xff]
      %v290 = vld [vmem:[%s227 + $0x148] sm:$0x3]
      %v291 = vld [vmem:[%s227 + $0x150] sm:$0xff]
      %v292 = vld [vmem:[%s227 + $0x158] sm:$0xff]
      %v293 = vld [vmem:[%s227 + $0x160] sm:$0x3]
      %v294 = vld [vmem:[%s227 + $0x168] sm:$0xff]
      %v295 = vld [vmem:[%s227 + $0x170] sm:$0xff]
      %v296 = vld [vmem:[%s227 + $0x178] sm:$0x3]
      %v297 = vld [vmem:[%s227 + $0x180] sm:$0xff]
      %v298 = vld [vmem:[%s227 + $0x188] sm:$0xff]
      %v299 = vld [vmem:[%s227 + $0x190] sm:$0x3]
      %v300 = vld [vmem:[%s227 + $0x198] sm:$0xff]
      %v301 = vld [vmem:[%s227 + $0x1a0] sm:$0xff]
      %v302 = vld [vmem:[%s227 + $0x1a8] sm:$0x3]
      %v303 = vlaneseq
      %v304 = vshrl.u32 %v303, 7
      %v305 = vsub.s32 0, %v304
      %v306 = vrot.slane %v247, %v305
      %v307 = vmul.f32 %v249, %v306
      %v308 = vmul.f32 %v250, %v306
      %v309 = vmul.f32 %v251, %v306
      %v310 = vmul.f32 %v252, %v306
      %v311 = vmul.f32 %v253, %v306
      %v312 = vmul.f32 %v254, %v306
      %v313 = vmul.f32 %v255, %v306
      %v314 = vmul.f32 %v256, %v306
      %v315 = vmul.f32 %v257, %v306
      %v316 = vmul.f32 %v258, %v306
      %v317 = vmul.f32 %v259, %v306
      %v318 = vmul.f32 %v260, %v306
      %v319 = vmul.f32 %v261, %v306
      %v320 = vmul.f32 %v262, %v306
      %v321 = vmul.f32 %v263, %v306
      %v322 = vmul.f32 %v264, %v306
      %v323 = vmul.f32 %v265, %v306
      %v324 = vmul.f32 %v266, %v306
      %v325 = vmul.f32 %v267, %v306
      %v326 = vmul.f32 %v268, %v306
      %v327 = vmul.f32 %v269, %v306
      %v328 = vmul.f32 %v270, %v306
      %v329 = vmul.f32 %v271, %v306
      %v330 = vmul.f32 %v272, %v306
      %v331 = vmul.f32 %v273, %v306
      %v332 = vmul.f32 %v274, %v306
      %v333 = vmul.f32 %v275, %v306
      %v334 = vmul.f32 %v276, %v306
      %v335 = vmul.f32 %v277, %v306
      %v336 = vmul.f32 %v278, %v306
      %v337 = vmul.f32 %v279, %v306
      %v338 = vmul.f32 %v280, %v306
      %v339 = vmul.f32 %v281, %v306
      %v340 = vmul.f32 %v282, %v306
      %v341 = vmul.f32 %v283, %v306
      %v342 = vmul.f32 %v284, %v306
      %v343 = vmul.f32 %v285, %v306
      %v344 = vmul.f32 %v286, %v306
      %v345 = vmul.f32 %v287, %v306
      %v346 = vmul.f32 %v288, %v306
      %v347 = vmul.f32 %v289, %v306
      %v348 = vmul.f32 %v290, %v306
      %v349 = vmul.f32 %v291, %v306
      %v350 = vmul.f32 %v292, %v306
      %v351 = vmul.f32 %v293, %v306
      %v352 = vmul.f32 %v294, %v306
      %v353 = vmul.f32 %v295, %v306
      %v354 = vmul.f32 %v296, %v306
      %v355 = vmul.f32 %v297, %v306
      %v356 = vmul.f32 %v298, %v306
      %v357 = vmul.f32 %v299, %v306
      %v358 = vmul.f32 %v300, %v306
      %v359 = vmul.f32 %v301, %v306
      %v360 = vmul.f32 %v302, %v306
      %v361 = vlaneseq
      %v362 = vshrl.u32 %v361, 7
      %v363 = vsub.s32 0, %v362
      %v364 = vrot.slane %v248, %v363
      %v365 = vadd.f32 %v307, %v364
      %v366 = vadd.f32 %v308, %v364
      %v367 = vadd.f32 %v309, %v364
      %v368 = vadd.f32 %v310, %v364
      %v369 = vadd.f32 %v311, %v364
      %v370 = vadd.f32 %v312, %v364
      %v371 = vadd.f32 %v313, %v364
      %v372 = vadd.f32 %v314, %v364
      %v373 = vadd.f32 %v315, %v364
      %v374 = vadd.f32 %v316, %v364
      %v375 = vadd.f32 %v317, %v364
      %v376 = vadd.f32 %v318, %v364
      %v377 = vadd.f32 %v319, %v364
      %v378 = vadd.f32 %v320, %v364
      %v379 = vadd.f32 %v321, %v364
      %v380 = vadd.f32 %v322, %v364
      %v381 = vadd.f32 %v323, %v364
      %v382 = vadd.f32 %v324, %v364
      %v383 = vadd.f32 %v325, %v364
      %v384 = vadd.f32 %v326, %v364
      %v385 = vadd.f32 %v327, %v364
      %v386 = vadd.f32 %v328, %v364
      %v387 = vadd.f32 %v329, %v364
      %v388 = vadd.f32 %v330, %v364
      %v389 = vadd.f32 %v331, %v364
      %v390 = vadd.f32 %v332, %v364
      %v391 = vadd.f32 %v333, %v364
      %v392 = vadd.f32 %v334, %v364
      %v393 = vadd.f32 %v335, %v364
      %v394 = vadd.f32 %v336, %v364
      %v395 = vadd.f32 %v337, %v364
      %v396 = vadd.f32 %v338, %v364
      %v397 = vadd.f32 %v339, %v364
      %v398 = vadd.f32 %v340, %v364
      %v399 = vadd.f32 %v341, %v364
      %v400 = vadd.f32 %v342, %v364
      %v401 = vadd.f32 %v343, %v364
      %v402 = vadd.f32 %v344, %v364
      %v403 = vadd.f32 %v345, %v364
      %v404 = vadd.f32 %v346, %v364
      %v405 = vadd.f32 %v347, %v364
      %v406 = vadd.f32 %v348, %v364
      %v407 = vadd.f32 %v349, %v364
      %v408 = vadd.f32 %v350, %v364
      %v409 = vadd.f32 %v351, %v364
      %v410 = vadd.f32 %v352, %v364
      %v411 = vadd.f32 %v353, %v364
      %v412 = vadd.f32 %v354, %v364
      %v413 = vadd.f32 %v355, %v364
      %v414 = vadd.f32 %v356, %v364
      %v415 = vadd.f32 %v357, %v364
      %v416 = vadd.f32 %v358, %v364
      %v417 = vadd.f32 %v359, %v364
      %v418 = vadd.f32 %v360, %v364
      %v419 = vmax.f32 %v365, 0.0
      %v420 = vmax.f32 %v366, 0.0
      %v421 = vmax.f32 %v367, 0.0
      %v422 = vmax.f32 %v368, 0.0
      %v423 = vmax.f32 %v369, 0.0
      %v424 = vmax.f32 %v370, 0.0
      %v425 = vmax.f32 %v371, 0.0
      %v426 = vmax.f32 %v372, 0.0
      %v427 = vmax.f32 %v373, 0.0
      %v428 = vmax.f32 %v374, 0.0
      %v429 = vmax.f32 %v375, 0.0
      %v430 = vmax.f32 %v376, 0.0
      %v431 = vmax.f32 %v377, 0.0
      %v432 = vmax.f32 %v378, 0.0
      %v433 = vmax.f32 %v379, 0.0
      %v434 = vmax.f32 %v380, 0.0
      %v435 = vmax.f32 %v381, 0.0
      %v436 = vmax.f32 %v382, 0.0
      %v437 = vmax.f32 %v383, 0.0
      %v438 = vmax.f32 %v384, 0.0
      %v439 = vmax.f32 %v385, 0.0
      %v440 = vmax.f32 %v386, 0.0
      %v441 = vmax.f32 %v387, 0.0
      %v442 = vmax.f32 %v388, 0.0
      %v443 = vmax.f32 %v389, 0.0
      %v444 = vmax.f32 %v390, 0.0
      %v445 = vmax.f32 %v391, 0.0
      %v446 = vmax.f32 %v392, 0.0
      %v447 = vmax.f32 %v393, 0.0
      %v448 = vmax.f32 %v394, 0.0
      %v449 = vmax.f32 %v395, 0.0
      %v450 = vmax.f32 %v396, 0.0
      %v451 = vmax.f32 %v397, 0.0
      %v452 = vmax.f32 %v398, 0.0
      %v453 = vmax.f32 %v399, 0.0
      %v454 = vmax.f32 %v400, 0.0
      %v455 = vmax.f32 %v401, 0.0
      %v456 = vmax.f32 %v402, 0.0
      %v457 = vmax.f32 %v403, 0.0
      %v458 = vmax.f32 %v404, 0.0
      %v459 = vmax.f32 %v405, 0.0
      %v460 = vmax.f32 %v406, 0.0
      %v461 = vmax.f32 %v407, 0.0
      %v462 = vmax.f32 %v408, 0.0
      %v463 = vmax.f32 %v409, 0.0
      %v464 = vmax.f32 %v410, 0.0
      %v465 = vmax.f32 %v411, 0.0
      %v466 = vmax.f32 %v412, 0.0
      %v467 = vmax.f32 %v413, 0.0
      %v468 = vmax.f32 %v414, 0.0
      %v469 = vmax.f32 %v415, 0.0
      %v470 = vmax.f32 %v416, 0.0
      %v471 = vmax.f32 %v417, 0.0
      %v472 = vmax.f32 %v418, 0.0
      %v473 = vlaneseq
      %v474 = vshrl.u32 %v473, 7
      %v475 = vadd.s32 %v474, 8
      %v476 = vadd.s32 %v474, 16
      %s477 = smul.u32 %s21, 16
      %v478 = vstv %s477
      %v479 = vadd.s32 %v478, 1
      %v480 = vadd.s32 %v478, 2
      %v481 = vadd.s32 %v478, 3
      %v482 = vadd.s32 %v478, 4
      %v483 = vadd.s32 %v478, 5
      %v484 = vadd.s32 %v478, 6
      %v485 = vadd.s32 %v478, 7
      %v486 = vadd.s32 %v478, 8
      %v487 = vadd.s32 %v478, 9
      %v488 = vadd.s32 %v478, 10
      %v489 = vadd.s32 %v478, 11
      %v490 = vadd.s32 %v478, 12
      %v491 = vadd.s32 %v478, 13
      %v492 = vadd.s32 %v478, 14
      %v493 = vadd.s32 %v478, 15
      %v494 = vadd.s32 %v478, 16
      %v495 = vadd.s32 %v478, 17
      %vm496 = vcmp.ge.s32.totalorder %v474, 1
      %vm497 = vcmp.ge.s32.totalorder %v475, 1
      %vm498 = vcmp.ge.s32.totalorder %v476, 1
      %vm499 = vcmp.lt.s32.totalorder %v474, 17
      %vm500 = vcmp.lt.s32.totalorder %v475, 17
      %vm501 = vcmp.lt.s32.totalorder %v476, 17
      %vm502 = vmand %vm496, %vm499
      %vm503 = vmand %vm497, %vm500
      %vm504 = vmand %vm498, %vm501
      %vm505 = vcmp.ge.s32.totalorder %v478, 1
      %vm506 = vcmp.ge.s32.totalorder %v479, 1
      %vm507 = vcmp.ge.s32.totalorder %v480, 1
      %vm508 = vcmp.ge.s32.totalorder %v481, 1
      %vm509 = vcmp.ge.s32.totalorder %v482, 1
      %vm510 = vcmp.ge.s32.totalorder %v483, 1
      %vm511 = vcmp.ge.s32.totalorder %v484, 1
      %vm512 = vcmp.ge.s32.totalorder %v485, 1
      %vm513 = vcmp.ge.s32.totalorder %v486, 1
      %vm514 = vcmp.ge.s32.totalorder %v487, 1
      %vm515 = vcmp.ge.s32.totalorder %v488, 1
      %vm516 = vcmp.ge.s32.totalorder %v489, 1
      %vm517 = vcmp.ge.s32.totalorder %v490, 1
      %vm518 = vcmp.ge.s32.totalorder %v491, 1
      %vm519 = vcmp.ge.s32.totalorder %v492, 1
      %vm520 = vcmp.ge.s32.totalorder %v493, 1
      %vm521 = vcmp.ge.s32.totalorder %v494, 1
      %vm522 = vcmp.ge.s32.totalorder %v495, 1
      %v523 = vsel %vm502, 1, 0
      %v524 = vsel %vm503, 1, 0
      %v525 = vsel %vm504, 1, 0
      %vm526 = vcmp.eq.s32.totalorder %v523, 1
      %vm527 = vcmp.eq.s32.totalorder %v524, 1
      %vm528 = vcmp.eq.s32.totalorder %v525, 1
      %v529 = vsel %vm505, 1, 0
      %v530 = vsel %vm506, 1, 0
      %v531 = vsel %vm507, 1, 0
      %v532 = vsel %vm508, 1, 0
      %v533 = vsel %vm509, 1, 0
      %v534 = vsel %vm510, 1, 0
      %v535 = vsel %vm511, 1, 0
      %v536 = vsel %vm512, 1, 0
      %v537 = vsel %vm513, 1, 0
      %v538 = vsel %vm514, 1, 0
      %v539 = vsel %vm515, 1, 0
      %v540 = vsel %vm516, 1, 0
      %v541 = vsel %vm517, 1, 0
      %v542 = vsel %vm518, 1, 0
      %v543 = vsel %vm519, 1, 0
      %v544 = vsel %vm520, 1, 0
      %v545 = vsel %vm521, 1, 0
      %v546 = vsel %vm522, 1, 0
      %vm547 = vcmp.eq.s32.totalorder %v529, 1
      %vm548 = vcmp.eq.s32.totalorder %v530, 1
      %vm549 = vcmp.eq.s32.totalorder %v531, 1
      %vm550 = vcmp.eq.s32.totalorder %v532, 1
      %vm551 = vcmp.eq.s32.totalorder %v533, 1
      %vm552 = vcmp.eq.s32.totalorder %v534, 1
      %vm553 = vcmp.eq.s32.totalorder %v535, 1
      %vm554 = vcmp.eq.s32.totalorder %v536, 1
      %vm555 = vcmp.eq.s32.totalorder %v537, 1
      %vm556 = vcmp.eq.s32.totalorder %v538, 1
      %vm557 = vcmp.eq.s32.totalorder %v539, 1
      %vm558 = vcmp.eq.s32.totalorder %v540, 1
      %vm559 = vcmp.eq.s32.totalorder %v541, 1
      %vm560 = vcmp.eq.s32.totalorder %v542, 1
      %vm561 = vcmp.eq.s32.totalorder %v543, 1
      %vm562 = vcmp.eq.s32.totalorder %v544, 1
      %vm563 = vcmp.eq.s32.totalorder %v545, 1
      %vm564 = vcmp.eq.s32.totalorder %v546, 1
      %vm565 = vmand %vm526, %vm547
      %vm566 = vmand %vm527, %vm547
      %vm567 = vmand %vm528, %vm547
      %vm568 = vmand %vm526, %vm548
      %vm569 = vmand %vm527, %vm548
      %vm570 = vmand %vm528, %vm548
      %vm571 = vmand %vm526, %vm549
      %vm572 = vmand %vm527, %vm549
      %vm573 = vmand %vm528, %vm549
      %vm574 = vmand %vm526, %vm550
      %vm575 = vmand %vm527, %vm550
      %vm576 = vmand %vm528, %vm550
      %vm577 = vmand %vm526, %vm551
      %vm578 = vmand %vm527, %vm551
      %vm579 = vmand %vm528, %vm551
      %vm580 = vmand %vm526, %vm552
      %vm581 = vmand %vm527, %vm552
      %vm582 = vmand %vm528, %vm552
      %vm583 = vmand %vm526, %vm553
      %vm584 = vmand %vm527, %vm553
      %vm585 = vmand %vm528, %vm553
      %vm586 = vmand %vm526, %vm554
      %vm587 = vmand %vm527, %vm554
      %vm588 = vmand %vm528, %vm554
      %vm589 = vmand %vm526, %vm555
      %vm590 = vmand %vm527, %vm555
      %vm591 = vmand %vm528, %vm555
      %vm592 = vmand %vm526, %vm556
      %vm593 = vmand %vm527, %vm556
      %vm594 = vmand %vm528, %vm556
      %vm595 = vmand %vm526, %vm557
      %vm596 = vmand %vm527, %vm557
      %vm597 = vmand %vm528, %vm557
      %vm598 = vmand %vm526, %vm558
      %vm599 = vmand %vm527, %vm558
      %vm600 = vmand %vm528, %vm558
      %vm601 = vmand %vm526, %vm559
      %vm602 = vmand %vm527, %vm559
      %vm603 = vmand %vm528, %vm559
      %vm604 = vmand %vm526, %vm560
      %vm605 = vmand %vm527, %vm560
      %vm606 = vmand %vm528, %vm560
      %vm607 = vmand %vm526, %vm561
      %vm608 = vmand %vm527, %vm561
      %vm609 = vmand %vm528, %vm561
      %vm610 = vmand %vm526, %vm562
      %vm611 = vmand %vm527, %vm562
      %vm612 = vmand %vm528, %vm562
      %vm613 = vmand %vm526, %vm563
      %vm614 = vmand %vm527, %vm563
      %vm615 = vmand %vm528, %vm563
      %vm616 = vmand %vm526, %vm564
      %vm617 = vmand %vm527, %vm564
      %vm618 = vmand %vm528, %vm564
      %vm619 = vcmp.lt.s32.totalorder %v478, 17
      %vm620 = vcmp.lt.s32.totalorder %v479, 17
      %vm621 = vcmp.lt.s32.totalorder %v480, 17
      %vm622 = vcmp.lt.s32.totalorder %v481, 17
      %vm623 = vcmp.lt.s32.totalorder %v482, 17
      %vm624 = vcmp.lt.s32.totalorder %v483, 17
      %vm625 = vcmp.lt.s32.totalorder %v484, 17
      %vm626 = vcmp.lt.s32.totalorder %v485, 17
      %vm627 = vcmp.lt.s32.totalorder %v486, 17
      %vm628 = vcmp.lt.s32.totalorder %v487, 17
      %vm629 = vcmp.lt.s32.totalorder %v488, 17
      %vm630 = vcmp.lt.s32.totalorder %v489, 17
      %vm631 = vcmp.lt.s32.totalorder %v490, 17
      %vm632 = vcmp.lt.s32.totalorder %v491, 17
      %vm633 = vcmp.lt.s32.totalorder %v492, 17
      %vm634 = vcmp.lt.s32.totalorder %v493, 17
      %vm635 = vcmp.lt.s32.totalorder %v494, 17
      %vm636 = vcmp.lt.s32.totalorder %v495, 17
      %v637 = vsel %vm619, 1, 0
      %v638 = vsel %vm620, 1, 0
      %v639 = vsel %vm621, 1, 0
      %v640 = vsel %vm622, 1, 0
      %v641 = vsel %vm623, 1, 0
      %v642 = vsel %vm624, 1, 0
      %v643 = vsel %vm625, 1, 0
      %v644 = vsel %vm626, 1, 0
      %v645 = vsel %vm627, 1, 0
      %v646 = vsel %vm628, 1, 0
      %v647 = vsel %vm629, 1, 0
      %v648 = vsel %vm630, 1, 0
      %v649 = vsel %vm631, 1, 0
      %v650 = vsel %vm632, 1, 0
      %v651 = vsel %vm633, 1, 0
      %v652 = vsel %vm634, 1, 0
      %v653 = vsel %vm635, 1, 0
      %v654 = vsel %vm636, 1, 0
      %vm655 = vcmp.eq.s32.totalorder %v637, 1
      %vm656 = vcmp.eq.s32.totalorder %v638, 1
      %vm657 = vcmp.eq.s32.totalorder %v639, 1
      %vm658 = vcmp.eq.s32.totalorder %v640, 1
      %vm659 = vcmp.eq.s32.totalorder %v641, 1
      %vm660 = vcmp.eq.s32.totalorder %v642, 1
      %vm661 = vcmp.eq.s32.totalorder %v643, 1
      %vm662 = vcmp.eq.s32.totalorder %v644, 1
      %vm663 = vcmp.eq.s32.totalorder %v645, 1
      %vm664 = vcmp.eq.s32.totalorder %v646, 1
      %vm665 = vcmp.eq.s32.totalorder %v647, 1
      %vm666 = vcmp.eq.s32.totalorder %v648, 1
      %vm667 = vcmp.eq.s32.totalorder %v649, 1
      %vm668 = vcmp.eq.s32.totalorder %v650, 1
      %vm669 = vcmp.eq.s32.totalorder %v651, 1
      %vm670 = vcmp.eq.s32.totalorder %v652, 1
      %vm671 = vcmp.eq.s32.totalorder %v653, 1
      %vm672 = vcmp.eq.s32.totalorder %v654, 1
      %vm673 = vmand %vm565, %vm655
      %vm674 = vmand %vm566, %vm655
      %vm675 = vmand %vm567, %vm655
      %vm676 = vmand %vm568, %vm656
      %vm677 = vmand %vm569, %vm656
      %vm678 = vmand %vm570, %vm656
      %vm679 = vmand %vm571, %vm657
      %vm680 = vmand %vm572, %vm657
      %vm681 = vmand %vm573, %vm657
      %vm682 = vmand %vm574, %vm658
      %vm683 = vmand %vm575, %vm658
      %vm684 = vmand %vm576, %vm658
      %vm685 = vmand %vm577, %vm659
      %vm686 = vmand %vm578, %vm659
      %vm687 = vmand %vm579, %vm659
      %vm688 = vmand %vm580, %vm660
      %vm689 = vmand %vm581, %vm660
      %vm690 = vmand %vm582, %vm660
      %vm691 = vmand %vm583, %vm661
      %vm692 = vmand %vm584, %vm661
      %vm693 = vmand %vm585, %vm661
      %vm694 = vmand %vm586, %vm662
      %vm695 = vmand %vm587, %vm662
      %vm696 = vmand %vm588, %vm662
      %vm697 = vmand %vm589, %vm663
      %vm698 = vmand %vm590, %vm663
      %vm699 = vmand %vm591, %vm663
      %vm700 = vmand %vm592, %vm664
      %vm701 = vmand %vm593, %vm664
      %vm702 = vmand %vm594, %vm664
      %vm703 = vmand %vm595, %vm665
      %vm704 = vmand %vm596, %vm665
      %vm705 = vmand %vm597, %vm665
      %vm706 = vmand %vm598, %vm666
      %vm707 = vmand %vm599, %vm666
      %vm708 = vmand %vm600, %vm666
      %vm709 = vmand %vm601, %vm667
      %vm710 = vmand %vm602, %vm667
      %vm711 = vmand %vm603, %vm667
      %vm712 = vmand %vm604, %vm668
      %vm713 = vmand %vm605, %vm668
      %vm714 = vmand %vm606, %vm668
      %vm715 = vmand %vm607, %vm669
      %vm716 = vmand %vm608, %vm669
      %vm717 = vmand %vm609, %vm669
      %vm718 = vmand %vm610, %vm670
      %vm719 = vmand %vm611, %vm670
      %vm720 = vmand %vm612, %vm670
      %vm721 = vmand %vm613, %vm671
      %vm722 = vmand %vm614, %vm671
      %vm723 = vmand %vm615, %vm671
      %vm724 = vmand %vm616, %vm672
      %vm725 = vmand %vm617, %vm672
      %vm726 = vmand %vm618, %vm672
      %v727 = vsel %vm673, 1, 0
      %v728 = vsel %vm674, 1, 0
      %v729 = vsel %vm675, 1, 0
      %v730 = vsel %vm676, 1, 0
      %v731 = vsel %vm677, 1, 0
      %v732 = vsel %vm678, 1, 0
      %v733 = vsel %vm679, 1, 0
      %v734 = vsel %vm680, 1, 0
      %v735 = vsel %vm681, 1, 0
      %v736 = vsel %vm682, 1, 0
      %v737 = vsel %vm683, 1, 0
      %v738 = vsel %vm684, 1, 0
      %v739 = vsel %vm685, 1, 0
      %v740 = vsel %vm686, 1, 0
      %v741 = vsel %vm687, 1, 0
      %v742 = vsel %vm688, 1, 0
      %v743 = vsel %vm689, 1, 0
      %v744 = vsel %vm690, 1, 0
      %v745 = vsel %vm691, 1, 0
      %v746 = vsel %vm692, 1, 0
      %v747 = vsel %vm693, 1, 0
      %v748 = vsel %vm694, 1, 0
      %v749 = vsel %vm695, 1, 0
      %v750 = vsel %vm696, 1, 0
      %v751 = vsel %vm697, 1, 0
      %v752 = vsel %vm698, 1, 0
      %v753 = vsel %vm699, 1, 0
      %v754 = vsel %vm700, 1, 0
      %v755 = vsel %vm701, 1, 0
      %v756 = vsel %vm702, 1, 0
      %v757 = vsel %vm703, 1, 0
      %v758 = vsel %vm704, 1, 0
      %v759 = vsel %vm705, 1, 0
      %v760 = vsel %vm706, 1, 0
      %v761 = vsel %vm707, 1, 0
      %v762 = vsel %vm708, 1, 0
      %v763 = vsel %vm709, 1, 0
      %v764 = vsel %vm710, 1, 0
      %v765 = vsel %vm711, 1, 0
      %v766 = vsel %vm712, 1, 0
      %v767 = vsel %vm713, 1, 0
      %v768 = vsel %vm714, 1, 0
      %v769 = vsel %vm715, 1, 0
      %v770 = vsel %vm716, 1, 0
      %v771 = vsel %vm717, 1, 0
      %v772 = vsel %vm718, 1, 0
      %v773 = vsel %vm719, 1, 0
      %v774 = vsel %vm720, 1, 0
      %v775 = vsel %vm721, 1, 0
      %v776 = vsel %vm722, 1, 0
      %v777 = vsel %vm723, 1, 0
      %v778 = vsel %vm724, 1, 0
      %v779 = vsel %vm725, 1, 0
      %v780 = vsel %vm726, 1, 0
      %vm781 = vcmp.eq.s32.totalorder %v727, 1
      %vm782 = vcmp.eq.s32.totalorder %v728, 1
      %vm783 = vcmp.eq.s32.totalorder %v729, 1
      %vm784 = vcmp.eq.s32.totalorder %v730, 1
      %vm785 = vcmp.eq.s32.totalorder %v731, 1
      %vm786 = vcmp.eq.s32.totalorder %v732, 1
      %vm787 = vcmp.eq.s32.totalorder %v733, 1
      %vm788 = vcmp.eq.s32.totalorder %v734, 1
      %vm789 = vcmp.eq.s32.totalorder %v735, 1
      %vm790 = vcmp.eq.s32.totalorder %v736, 1
      %vm791 = vcmp.eq.s32.totalorder %v737, 1
      %vm792 = vcmp.eq.s32.totalorder %v738, 1
      %vm793 = vcmp.eq.s32.totalorder %v739, 1
      %vm794 = vcmp.eq.s32.totalorder %v740, 1
      %vm795 = vcmp.eq.s32.totalorder %v741, 1
      %vm796 = vcmp.eq.s32.totalorder %v742, 1
      %vm797 = vcmp.eq.s32.totalorder %v743, 1
      %vm798 = vcmp.eq.s32.totalorder %v744, 1
      %vm799 = vcmp.eq.s32.totalorder %v745, 1
      %vm800 = vcmp.eq.s32.totalorder %v746, 1
      %vm801 = vcmp.eq.s32.totalorder %v747, 1
      %vm802 = vcmp.eq.s32.totalorder %v748, 1
      %vm803 = vcmp.eq.s32.totalorder %v749, 1
      %vm804 = vcmp.eq.s32.totalorder %v750, 1
      %vm805 = vcmp.eq.s32.totalorder %v751, 1
      %vm806 = vcmp.eq.s32.totalorder %v752, 1
      %vm807 = vcmp.eq.s32.totalorder %v753, 1
      %vm808 = vcmp.eq.s32.totalorder %v754, 1
      %vm809 = vcmp.eq.s32.totalorder %v755, 1
      %vm810 = vcmp.eq.s32.totalorder %v756, 1
      %vm811 = vcmp.eq.s32.totalorder %v757, 1
      %vm812 = vcmp.eq.s32.totalorder %v758, 1
      %vm813 = vcmp.eq.s32.totalorder %v759, 1
      %vm814 = vcmp.eq.s32.totalorder %v760, 1
      %vm815 = vcmp.eq.s32.totalorder %v761, 1
      %vm816 = vcmp.eq.s32.totalorder %v762, 1
      %vm817 = vcmp.eq.s32.totalorder %v763, 1
      %vm818 = vcmp.eq.s32.totalorder %v764, 1
      %vm819 = vcmp.eq.s32.totalorder %v765, 1
      %vm820 = vcmp.eq.s32.totalorder %v766, 1
      %vm821 = vcmp.eq.s32.totalorder %v767, 1
      %vm822 = vcmp.eq.s32.totalorder %v768, 1
      %vm823 = vcmp.eq.s32.totalorder %v769, 1
      %vm824 = vcmp.eq.s32.totalorder %v770, 1
      %vm825 = vcmp.eq.s32.totalorder %v771, 1
      %vm826 = vcmp.eq.s32.totalorder %v772, 1
      %vm827 = vcmp.eq.s32.totalorder %v773, 1
      %vm828 = vcmp.eq.s32.totalorder %v774, 1
      %vm829 = vcmp.eq.s32.totalorder %v775, 1
      %vm830 = vcmp.eq.s32.totalorder %v776, 1
      %vm831 = vcmp.eq.s32.totalorder %v777, 1
      %vm832 = vcmp.eq.s32.totalorder %v778, 1
      %vm833 = vcmp.eq.s32.totalorder %v779, 1
      %vm834 = vcmp.eq.s32.totalorder %v780, 1
      %v835 = vsel %vm781, %v419, 0.0
      %v836 = vsel %vm782, %v420, 0.0
      %v837 = vsel %vm783, %v421, 0.0
      %v838 = vsel %vm784, %v422, 0.0
      %v839 = vsel %vm785, %v423, 0.0
      %v840 = vsel %vm786, %v424, 0.0
      %v841 = vsel %vm787, %v425, 0.0
      %v842 = vsel %vm788, %v426, 0.0
      %v843 = vsel %vm789, %v427, 0.0
      %v844 = vsel %vm790, %v428, 0.0
      %v845 = vsel %vm791, %v429, 0.0
      %v846 = vsel %vm792, %v430, 0.0
      %v847 = vsel %vm793, %v431, 0.0
      %v848 = vsel %vm794, %v432, 0.0
      %v849 = vsel %vm795, %v433, 0.0
      %v850 = vsel %vm796, %v434, 0.0
      %v851 = vsel %vm797, %v435, 0.0
      %v852 = vsel %vm798, %v436, 0.0
      %v853 = vsel %vm799, %v437, 0.0
      %v854 = vsel %vm800, %v438, 0.0
      %v855 = vsel %vm801, %v439, 0.0
      %v856 = vsel %vm802, %v440, 0.0
      %v857 = vsel %vm803, %v441, 0.0
      %v858 = vsel %vm804, %v442, 0.0
      %v859 = vsel %vm805, %v443, 0.0
      %v860 = vsel %vm806, %v444, 0.0
      %v861 = vsel %vm807, %v445, 0.0
      %v862 = vsel %vm808, %v446, 0.0
      %v863 = vsel %vm809, %v447, 0.0
      %v864 = vsel %vm810, %v448, 0.0
      %v865 = vsel %vm811, %v449, 0.0
      %v866 = vsel %vm812, %v450, 0.0
      %v867 = vsel %vm813, %v451, 0.0
      %v868 = vsel %vm814, %v452, 0.0
      %v869 = vsel %vm815, %v453, 0.0
      %v870 = vsel %vm816, %v454, 0.0
      %v871 = vsel %vm817, %v455, 0.0
      %v872 = vsel %vm818, %v456, 0.0
      %v873 = vsel %vm819, %v457, 0.0
      %v874 = vsel %vm820, %v458, 0.0
      %v875 = vsel %vm821, %v459, 0.0
      %v876 = vsel %vm822, %v460, 0.0
      %v877 = vsel %vm823, %v461, 0.0
      %v878 = vsel %vm824, %v462, 0.0
      %v879 = vsel %vm825, %v463, 0.0
      %v880 = vsel %vm826, %v464, 0.0
      %v881 = vsel %vm827, %v465, 0.0
      %v882 = vsel %vm828, %v466, 0.0
      %v883 = vsel %vm829, %v467, 0.0
      %v884 = vsel %vm830, %v468, 0.0
      %v885 = vsel %vm831, %v469, 0.0
      %v886 = vsel %vm832, %v470, 0.0
      %v887 = vsel %vm833, %v471, 0.0
      %v888 = vsel %vm834, %v472, 0.0
      %v889 = vpack.c.bf16 %v836, %v835
      %v890 = vpack.c.bf16 %v839, %v838
      %v891 = vpack.c.bf16 %v842, %v841
      %v892 = vpack.c.bf16 %v845, %v844
      %v893 = vpack.c.bf16 %v848, %v847
      %v894 = vpack.c.bf16 %v851, %v850
      %v895 = vpack.c.bf16 %v854, %v853
      %v896 = vpack.c.bf16 %v857, %v856
      %v897 = vpack.c.bf16 %v860, %v859
      %v898 = vpack.c.bf16 %v863, %v862
      %v899 = vpack.c.bf16 %v866, %v865
      %v900 = vpack.c.bf16 %v869, %v868
      %v901 = vpack.c.bf16 %v872, %v871
      %v902 = vpack.c.bf16 %v875, %v874
      %v903 = vpack.c.bf16 %v878, %v877
      %v904 = vpack.c.bf16 %v881, %v880
      %v905 = vld [vmem:[%s2] sm:$0x3]
      %vm954 = vcmask 1046528
      %v955 = vrot.slane %v835, 1
      %v956 = vrot.slane %v836, 1
      %v957 = vsel %vm954, %v955, %v956
      %v958 = vrot.slane %v837, 1
      %v959 = vsel %vm954, %v956, %v958
      %v960 = vrot.slane %v838, 1
      %v961 = vrot.slane %v839, 1
      %v962 = vsel %vm954, %v960, %v961
      %v963 = vrot.slane %v840, 1
      %v964 = vsel %vm954, %v961, %v963
      %v965 = vrot.slane %v841, 1
      %v966 = vrot.slane %v842, 1
      %v967 = vsel %vm954, %v965, %v966
      %v968 = vrot.slane %v843, 1
      %v969 = vsel %vm954, %v966, %v968
      %v970 = vrot.slane %v844, 1
      %v971 = vrot.slane %v845, 1
      %v972 = vsel %vm954, %v970, %v971
      %v973 = vrot.slane %v846, 1
      %v974 = vsel %vm954, %v971, %v973
      %v975 = vrot.slane %v847, 1
      %v976 = vrot.slane %v848, 1
      %v977 = vsel %vm954, %v975, %v976
      %v978 = vrot.slane %v849, 1
      %v979 = vsel %vm954, %v976, %v978
      %v980 = vrot.slane %v850, 1
      %v981 = vrot.slane %v851, 1
      %v982 = vsel %vm954, %v980, %v981
      %v983 = vrot.slane %v852, 1
      %v984 = vsel %vm954, %v981, %v983
      %v985 = vrot.slane %v853, 1
      %v986 = vrot.slane %v854, 1
      %v987 = vsel %vm954, %v985, %v986
      %v988 = vrot.slane %v855, 1
      %v989 = vsel %vm954, %v986, %v988
      %v990 = vrot.slane %v856, 1
      %v991 = vrot.slane %v857, 1
      %v992 = vsel %vm954, %v990, %v991
      %v993 = vrot.slane %v858, 1
      %v994 = vsel %vm954, %v991, %v993
      %v995 = vrot.slane %v859, 1
      %v996 = vrot.slane %v860, 1
      %v997 = vsel %vm954, %v995, %v996
      %v998 = vrot.slane %v861, 1
      %v999 = vsel %vm954, %v996, %v998
      %v1000 = vrot.slane %v862, 1
      %v1001 = vrot.slane %v863, 1
      %v1002 = vsel %vm954, %v1000, %v1001
      %v1003 = vrot.slane %v864, 1
      %v1004 = vsel %vm954, %v1001, %v1003
      %v1005 = vrot.slane %v865, 1
      %v1006 = vrot.slane %v866, 1
      %v1007 = vsel %vm954, %v1005, %v1006
      %v1008 = vrot.slane %v867, 1
      %v1009 = vsel %vm954, %v1006, %v1008
      %v1010 = vrot.slane %v868, 1
      %v1011 = vrot.slane %v869, 1
      %v1012 = vsel %vm954, %v1010, %v1011
      %v1013 = vrot.slane %v870, 1
      %v1014 = vsel %vm954, %v1011, %v1013
      %v1015 = vrot.slane %v871, 1
      %v1016 = vrot.slane %v872, 1
      %v1017 = vsel %vm954, %v1015, %v1016
      %v1018 = vrot.slane %v873, 1
      %v1019 = vsel %vm954, %v1016, %v1018
      %v1020 = vrot.slane %v874, 1
      %v1021 = vrot.slane %v875, 1
      %v1022 = vsel %vm954, %v1020, %v1021
      %v1023 = vrot.slane %v876, 1
      %v1024 = vsel %vm954, %v1021, %v1023
      %v1025 = vrot.slane %v877, 1
      %v1026 = vrot.slane %v878, 1
      %v1027 = vsel %vm954, %v1025, %v1026
      %v1028 = vrot.slane %v879, 1
      %v1029 = vsel %vm954, %v1026, %v1028
      %v1030 = vrot.slane %v880, 1
      %v1031 = vrot.slane %v881, 1
      %v1032 = vsel %vm954, %v1030, %v1031
      %v1033 = vrot.slane %v882, 1
      %v1034 = vsel %vm954, %v1031, %v1033
      %v1067 = vpack.c.bf16 %v959, %v957
      %v1068 = vpack.c.bf16 %v964, %v962
      %v1069 = vpack.c.bf16 %v969, %v967
      %v1070 = vpack.c.bf16 %v974, %v972
      %v1071 = vpack.c.bf16 %v979, %v977
      %v1072 = vpack.c.bf16 %v984, %v982
      %v1073 = vpack.c.bf16 %v989, %v987
      %v1074 = vpack.c.bf16 %v994, %v992
      %v1075 = vpack.c.bf16 %v999, %v997
      %v1076 = vpack.c.bf16 %v1004, %v1002
      %v1077 = vpack.c.bf16 %v1009, %v1007
      %v1078 = vpack.c.bf16 %v1014, %v1012
      %v1079 = vpack.c.bf16 %v1019, %v1017
      %v1080 = vpack.c.bf16 %v1024, %v1022
      %v1081 = vpack.c.bf16 %v1029, %v1027
      %v1082 = vpack.c.bf16 %v1034, %v1032
      %s1083 = scalar_lea.vmem %s2, 2
      %v1084 = vld [vmem:[%s1083] sm:$0x3]
      %vm1085 = vcmask 31744
      %v1087 = vsel %vm1085, %v1067, 0
      %v1090 = vsel %vm1085, %v1068, 0
      %v1093 = vsel %vm1085, %v1069, 0
      %v1096 = vsel %vm1085, %v1070, 0
      %v1099 = vsel %vm1085, %v1071, 0
      %v1102 = vsel %vm1085, %v1072, 0
      %v1105 = vsel %vm1085, %v1073, 0
      %v1108 = vsel %vm1085, %v1074, 0
      %v1111 = vsel %vm1085, %v1075, 0
      %v1114 = vsel %vm1085, %v1076, 0
      %v1117 = vsel %vm1085, %v1077, 0
      %v1120 = vsel %vm1085, %v1078, 0
      %v1123 = vsel %vm1085, %v1079, 0
      %v1126 = vsel %vm1085, %v1080, 0
      %v1129 = vsel %vm1085, %v1081, 0
      %v1132 = vsel %vm1085, %v1082, 0
      %vm1134 = vcmask 1041408
      %v1136 = vsel %vm1134, %v1084, 0
      %1138 = vmatprep.subr.bf16.mxu0 0
      %1139 = vmatpush1.bf16.msra.mxu0 0
      %1140 = vmatprep.subr.bf16.mxu0 0
      %1141 = vmatpush1.bf16.msra.mxu0 0
      %1142 = vmatprep.subr.bf16.mxu0 0
      %1143 = vmatpush1.bf16.msra.mxu0 0
      %1144 = vmatprep.subr.bf16.mxu0 0
      %1145 = vmatpush1.bf16.msra.mxu0 0
      %1146 = vmatprep.subr.bf16.mxu0 0
      %1147 = vmatpush1.bf16.msra.mxu0 0
      %1148 = vmatprep.subr.bf16.mxu0 0
      %1149 = vmatpush1.bf16.msra.mxu0 0
      %1150 = vmatprep.subr.bf16.mxu0 0
      %1151 = vmatpush1.bf16.msra.mxu0 0
      %1152 = vmatprep.subr.bf16.mxu0 0
      %1153 = vmatpush1.bf16.msra.mxu0 %v1136
      %1154 = vmatprep.subr.bf16.mxu0 0
      %1155 = vmatpush2.bf16.msra.mxu0 0
      %1156 = vmatprep.subr.bf16.mxu0 0
      %1157 = vmatpush2.bf16.msra.mxu0 0
      %1158 = vmatprep.subr.bf16.mxu0 0
      %1159 = vmatpush2.bf16.msra.mxu0 0
      %1160 = vmatprep.subr.bf16.mxu0 0
      %1161 = vmatpush2.bf16.msra.mxu0 0
      %1162 = vmatprep.subr.bf16.mxu0 0
      %1163 = vmatpush2.bf16.msra.mxu0 0
      %1164 = vmatprep.subr.bf16.mxu0 0
      %1165 = vmatpush2.bf16.msra.mxu0 0
      %1166 = vmatprep.subr.bf16.mxu0 0
      %1167 = vmatpush2.bf16.msra.mxu0 0
      %1168 = vmatprep.subr.bf16.mxu0 0
      %1169 = vmatpush2.bf16.msra.mxu0 0
      %1170 = vmatprep.mubr.bf16.mxu0 0
      %1171 = vmatmul.mubr.bf16.gmra.mxu0 %v1087
      %v1172 = vpop.f32.mrf.mxu0
      %v1173 = vadd.f32 0.0, %v1172
      %v1174 = vpop.f32.mrf.mxu0
      %v1175 = vpop.f32.mrf.mxu0
      %v1176 = vadd.f32 0.0, %v1175
      %v1177 = vpop.f32.mrf.mxu0
      %1178 = vmatprep.mubr.bf16.mxu0 0
      %1179 = vmatmul.mubr.bf16.gmra.mxu0 %v1090
      %v1180 = vpop.f32.mrf.mxu0
      %v1181 = vadd.f32 0.0, %v1180
      %v1182 = vpop.f32.mrf.mxu0
      %v1183 = vpop.f32.mrf.mxu0
      %v1184 = vadd.f32 0.0, %v1183
      %v1185 = vpop.f32.mrf.mxu0
      %1186 = vmatprep.mubr.bf16.mxu0 0
      %1187 = vmatmul.mubr.bf16.gmra.mxu0 %v1093
      %v1188 = vpop.f32.mrf.mxu0
      %v1189 = vadd.f32 0.0, %v1188
      %v1190 = vpop.f32.mrf.mxu0
      %v1191 = vpop.f32.mrf.mxu0
      %v1192 = vadd.f32 0.0, %v1191
      %v1193 = vpop.f32.mrf.mxu0
      %1194 = vmatprep.mubr.bf16.mxu0 0
      %1195 = vmatmul.mubr.bf16.gmra.mxu0 %v1096
      %v1196 = vpop.f32.mrf.mxu0
      %v1197 = vadd.f32 0.0, %v1196
      %v1198 = vpop.f32.mrf.mxu0
      %v1199 = vpop.f32.mrf.mxu0
      %v1200 = vadd.f32 0.0, %v1199
      %v1201 = vpop.f32.mrf.mxu0
      %1202 = vmatprep.mubr.bf16.mxu0 0
      %1203 = vmatmul.mubr.bf16.gmra.mxu0 %v1099
      %v1204 = vpop.f32.mrf.mxu0
      %v1205 = vadd.f32 0.0, %v1204
      %v1206 = vpop.f32.mrf.mxu0
      %v1207 = vpop.f32.mrf.mxu0
      %v1208 = vadd.f32 0.0, %v1207
      %v1209 = vpop.f32.mrf.mxu0
      %1210 = vmatprep.mubr.bf16.mxu0 0
      %1211 = vmatmul.mubr.bf16.gmra.mxu0 %v1102
      %v1212 = vpop.f32.mrf.mxu0
      %v1213 = vadd.f32 0.0, %v1212
      %v1214 = vpop.f32.mrf.mxu0
      %v1215 = vpop.f32.mrf.mxu0
      %v1216 = vadd.f32 0.0, %v1215
      %v1217 = vpop.f32.mrf.mxu0
      %1218 = vmatprep.mubr.bf16.mxu0 0
      %1219 = vmatmul.mubr.bf16.gmra.mxu0 %v1105
      %v1220 = vpop.f32.mrf.mxu0
      %v1221 = vadd.f32 0.0, %v1220
      %v1222 = vpop.f32.mrf.mxu0
      %v1223 = vpop.f32.mrf.mxu0
      %v1224 = vadd.f32 0.0, %v1223
      %v1225 = vpop.f32.mrf.mxu0
      %1226 = vmatprep.mubr.bf16.mxu0 0
      %1227 = vmatmul.mubr.bf16.gmra.mxu0 %v1108
      %v1228 = vpop.f32.mrf.mxu0
      %v1229 = vadd.f32 0.0, %v1228
      %v1230 = vpop.f32.mrf.mxu0
      %v1231 = vpop.f32.mrf.mxu0
      %v1232 = vadd.f32 0.0, %v1231
      %v1233 = vpop.f32.mrf.mxu0
      %1234 = vmatprep.mubr.bf16.mxu0 0
      %1235 = vmatmul.mubr.bf16.gmra.mxu0 %v1111
      %v1236 = vpop.f32.mrf.mxu0
      %v1237 = vadd.f32 0.0, %v1236
      %v1238 = vpop.f32.mrf.mxu0
      %v1239 = vpop.f32.mrf.mxu0
      %v1240 = vadd.f32 0.0, %v1239
      %v1241 = vpop.f32.mrf.mxu0
      %1242 = vmatprep.mubr.bf16.mxu0 0
      %1243 = vmatmul.mubr.bf16.gmra.mxu0 %v1114
      %v1244 = vpop.f32.mrf.mxu0
      %v1245 = vadd.f32 0.0, %v1244
      %v1246 = vpop.f32.mrf.mxu0
      %v1247 = vpop.f32.mrf.mxu0
      %v1248 = vadd.f32 0.0, %v1247
      %v1249 = vpop.f32.mrf.mxu0
      %1250 = vmatprep.mubr.bf16.mxu0 0
      %1251 = vmatmul.mubr.bf16.gmra.mxu0 %v1117
      %v1252 = vpop.f32.mrf.mxu0
      %v1253 = vadd.f32 0.0, %v1252
      %v1254 = vpop.f32.mrf.mxu0
      %v1255 = vpop.f32.mrf.mxu0
      %v1256 = vadd.f32 0.0, %v1255
      %v1257 = vpop.f32.mrf.mxu0
      %1258 = vmatprep.mubr.bf16.mxu0 0
      %1259 = vmatmul.mubr.bf16.gmra.mxu0 %v1120
      %v1260 = vpop.f32.mrf.mxu0
      %v1261 = vadd.f32 0.0, %v1260
      %v1262 = vpop.f32.mrf.mxu0
      %v1263 = vpop.f32.mrf.mxu0
      %v1264 = vadd.f32 0.0, %v1263
      %v1265 = vpop.f32.mrf.mxu0
      %1266 = vmatprep.mubr.bf16.mxu0 0
      %1267 = vmatmul.mubr.bf16.gmra.mxu0 %v1123
      %v1268 = vpop.f32.mrf.mxu0
      %v1269 = vadd.f32 0.0, %v1268
      %v1270 = vpop.f32.mrf.mxu0
      %v1271 = vpop.f32.mrf.mxu0
      %v1272 = vadd.f32 0.0, %v1271
      %v1273 = vpop.f32.mrf.mxu0
      %1274 = vmatprep.mubr.bf16.mxu0 0
      %1275 = vmatmul.mubr.bf16.gmra.mxu0 %v1126
      %v1276 = vpop.f32.mrf.mxu0
      %v1277 = vadd.f32 0.0, %v1276
      %v1278 = vpop.f32.mrf.mxu0
      %v1279 = vpop.f32.mrf.mxu0
      %v1280 = vadd.f32 0.0, %v1279
      %v1281 = vpop.f32.mrf.mxu0
      %1282 = vmatprep.mubr.bf16.mxu0 0
      %1283 = vmatmul.mubr.bf16.gmra.mxu0 %v1129
      %v1284 = vpop.f32.mrf.mxu0
      %v1285 = vadd.f32 0.0, %v1284
      %v1286 = vpop.f32.mrf.mxu0
      %v1287 = vpop.f32.mrf.mxu0
      %v1288 = vadd.f32 0.0, %v1287
      %v1289 = vpop.f32.mrf.mxu0
      %1290 = vmatprep.mubr.bf16.mxu0 0
      %1291 = vmatmul.mubr.bf16.gmra.mxu0 %v1132
      %v1292 = vpop.f32.mrf.mxu0
      %v1293 = vadd.f32 0.0, %v1292
      %v1294 = vpop.f32.mrf.mxu0
      %v1295 = vpop.f32.mrf.mxu0
      %v1296 = vadd.f32 0.0, %v1295
      %v1297 = vpop.f32.mrf.mxu0
      %1298 = vdwg.mxu0
      %v1300 = vsel %vm1085, %v889, 0
      %v1303 = vsel %vm1085, %v890, 0
      %v1306 = vsel %vm1085, %v891, 0
      %v1309 = vsel %vm1085, %v892, 0
      %v1312 = vsel %vm1085, %v893, 0
      %v1315 = vsel %vm1085, %v894, 0
      %v1318 = vsel %vm1085, %v895, 0
      %v1321 = vsel %vm1085, %v896, 0
      %v1324 = vsel %vm1085, %v897, 0
      %v1327 = vsel %vm1085, %v898, 0
      %v1330 = vsel %vm1085, %v899, 0
      %v1333 = vsel %vm1085, %v900, 0
      %v1336 = vsel %vm1085, %v901, 0
      %v1339 = vsel %vm1085, %v902, 0
      %v1342 = vsel %vm1085, %v903, 0
      %v1345 = vsel %vm1085, %v904, 0
      %v1348 = vsel %vm1134, %v905, 0
      %1350 = vmatprep.subr.bf16.mxu0 0
      %1351 = vmatpush1.bf16.msra.mxu0 0
      %1352 = vmatprep.subr.bf16.mxu0 0
      %1353 = vmatpush1.bf16.msra.mxu0 0
      %1354 = vmatprep.subr.bf16.mxu0 0
      %1355 = vmatpush1.bf16.msra.mxu0 0
      %1356 = vmatprep.subr.bf16.mxu0 0
      %1357 = vmatpush1.bf16.msra.mxu0 0
      %1358 = vmatprep.subr.bf16.mxu0 0
      %1359 = vmatpush1.bf16.msra.mxu0 0
      %1360 = vmatprep.subr.bf16.mxu0 0
      %1361 = vmatpush1.bf16.msra.mxu0 0
      %1362 = vmatprep.subr.bf16.mxu0 0
      %1363 = vmatpush1.bf16.msra.mxu0 0
      %1364 = vmatprep.subr.bf16.mxu0 0
      %1365 = vmatpush1.bf16.msra.mxu0 %v1348
      %1366 = vmatprep.subr.bf16.mxu0 0
      %1367 = vmatpush2.bf16.msra.mxu0 0
      %1368 = vmatprep.subr.bf16.mxu0 0
      %1369 = vmatpush2.bf16.msra.mxu0 0
      %1370 = vmatprep.subr.bf16.mxu0 0
      %1371 = vmatpush2.bf16.msra.mxu0 0
      %1372 = vmatprep.subr.bf16.mxu0 0
      %1373 = vmatpush2.bf16.msra.mxu0 0
      %1374 = vmatprep.subr.bf16.mxu0 0
      %1375 = vmatpush2.bf16.msra.mxu0 0
      %1376 = vmatprep.subr.bf16.mxu0 0
      %1377 = vmatpush2.bf16.msra.mxu0 0
      %1378 = vmatprep.subr.bf16.mxu0 0
      %1379 = vmatpush2.bf16.msra.mxu0 0
      %1380 = vmatprep.subr.bf16.mxu0 0
      %1381 = vmatpush2.bf16.msra.mxu0 0
      %1382 = vmatprep.mubr.bf16.mxu0 0
      %1383 = vmatmul.mubr.bf16.gmra.mxu0 %v1300
      %v1384 = vpop.f32.mrf.mxu0
      %v1385 = vadd.f32 %v1173, %v1384
      %v1386 = vpop.f32.mrf.mxu0
      %v1387 = vpop.f32.mrf.mxu0
      %v1388 = vadd.f32 %v1176, %v1387
      %v1389 = vpop.f32.mrf.mxu0
      %1390 = vmatprep.mubr.bf16.mxu0 0
      %1391 = vmatmul.mubr.bf16.gmra.mxu0 %v1303
      %v1392 = vpop.f32.mrf.mxu0
      %v1393 = vadd.f32 %v1181, %v1392
      %v1394 = vpop.f32.mrf.mxu0
      %v1395 = vpop.f32.mrf.mxu0
      %v1396 = vadd.f32 %v1184, %v1395
      %v1397 = vpop.f32.mrf.mxu0
      %1398 = vmatprep.mubr.bf16.mxu0 0
      %1399 = vmatmul.mubr.bf16.gmra.mxu0 %v1306
      %v1400 = vpop.f32.mrf.mxu0
      %v1401 = vadd.f32 %v1189, %v1400
      %v1402 = vpop.f32.mrf.mxu0
      %v1403 = vpop.f32.mrf.mxu0
      %v1404 = vadd.f32 %v1192, %v1403
      %v1405 = vpop.f32.mrf.mxu0
      %1406 = vmatprep.mubr.bf16.mxu0 0
      %1407 = vmatmul.mubr.bf16.gmra.mxu0 %v1309
      %v1408 = vpop.f32.mrf.mxu0
      %v1409 = vadd.f32 %v1197, %v1408
      %v1410 = vpop.f32.mrf.mxu0
      %v1411 = vpop.f32.mrf.mxu0
      %v1412 = vadd.f32 %v1200, %v1411
      %v1413 = vpop.f32.mrf.mxu0
      %1414 = vmatprep.mubr.bf16.mxu0 0
      %1415 = vmatmul.mubr.bf16.gmra.mxu0 %v1312
      %v1416 = vpop.f32.mrf.mxu0
      %v1417 = vadd.f32 %v1205, %v1416
      %v1418 = vpop.f32.mrf.mxu0
      %v1419 = vpop.f32.mrf.mxu0
      %v1420 = vadd.f32 %v1208, %v1419
      %v1421 = vpop.f32.mrf.mxu0
      %1422 = vmatprep.mubr.bf16.mxu0 0
      %1423 = vmatmul.mubr.bf16.gmra.mxu0 %v1315
      %v1424 = vpop.f32.mrf.mxu0
      %v1425 = vadd.f32 %v1213, %v1424
      %v1426 = vpop.f32.mrf.mxu0
      %v1427 = vpop.f32.mrf.mxu0
      %v1428 = vadd.f32 %v1216, %v1427
      %v1429 = vpop.f32.mrf.mxu0
      %1430 = vmatprep.mubr.bf16.mxu0 0
      %1431 = vmatmul.mubr.bf16.gmra.mxu0 %v1318
      %v1432 = vpop.f32.mrf.mxu0
      %v1433 = vadd.f32 %v1221, %v1432
      %v1434 = vpop.f32.mrf.mxu0
      %v1435 = vpop.f32.mrf.mxu0
      %v1436 = vadd.f32 %v1224, %v1435
      %v1437 = vpop.f32.mrf.mxu0
      %1438 = vmatprep.mubr.bf16.mxu0 0
      %1439 = vmatmul.mubr.bf16.gmra.mxu0 %v1321
      %v1440 = vpop.f32.mrf.mxu0
      %v1441 = vadd.f32 %v1229, %v1440
      %v1442 = vpop.f32.mrf.mxu0
      %v1443 = vpop.f32.mrf.mxu0
      %v1444 = vadd.f32 %v1232, %v1443
      %v1445 = vpop.f32.mrf.mxu0
      %1446 = vmatprep.mubr.bf16.mxu0 0
      %1447 = vmatmul.mubr.bf16.gmra.mxu0 %v1324
      %v1448 = vpop.f32.mrf.mxu0
      %v1449 = vadd.f32 %v1237, %v1448
      %v1450 = vpop.f32.mrf.mxu0
      %v1451 = vpop.f32.mrf.mxu0
      %v1452 = vadd.f32 %v1240, %v1451
      %v1453 = vpop.f32.mrf.mxu0
      %1454 = vmatprep.mubr.bf16.mxu0 0
      %1455 = vmatmul.mubr.bf16.gmra.mxu0 %v1327
      %v1456 = vpop.f32.mrf.mxu0
      %v1457 = vadd.f32 %v1245, %v1456
      %v1458 = vpop.f32.mrf.mxu0
      %v1459 = vpop.f32.mrf.mxu0
      %v1460 = vadd.f32 %v1248, %v1459
      %v1461 = vpop.f32.mrf.mxu0
      %1462 = vmatprep.mubr.bf16.mxu0 0
      %1463 = vmatmul.mubr.bf16.gmra.mxu0 %v1330
      %v1464 = vpop.f32.mrf.mxu0
      %v1465 = vadd.f32 %v1253, %v1464
      %v1466 = vpop.f32.mrf.mxu0
      %v1467 = vpop.f32.mrf.mxu0
      %v1468 = vadd.f32 %v1256, %v1467
      %v1469 = vpop.f32.mrf.mxu0
      %1470 = vmatprep.mubr.bf16.mxu0 0
      %1471 = vmatmul.mubr.bf16.gmra.mxu0 %v1333
      %v1472 = vpop.f32.mrf.mxu0
      %v1473 = vadd.f32 %v1261, %v1472
      %v1474 = vpop.f32.mrf.mxu0
      %v1475 = vpop.f32.mrf.mxu0
      %v1476 = vadd.f32 %v1264, %v1475
      %v1477 = vpop.f32.mrf.mxu0
      %1478 = vmatprep.mubr.bf16.mxu0 0
      %1479 = vmatmul.mubr.bf16.gmra.mxu0 %v1336
      %v1480 = vpop.f32.mrf.mxu0
      %v1481 = vadd.f32 %v1269, %v1480
      %v1482 = vpop.f32.mrf.mxu0
      %v1483 = vpop.f32.mrf.mxu0
      %v1484 = vadd.f32 %v1272, %v1483
      %v1485 = vpop.f32.mrf.mxu0
      %1486 = vmatprep.mubr.bf16.mxu0 0
      %1487 = vmatmul.mubr.bf16.gmra.mxu0 %v1339
      %v1488 = vpop.f32.mrf.mxu0
      %v1489 = vadd.f32 %v1277, %v1488
      %v1490 = vpop.f32.mrf.mxu0
      %v1491 = vpop.f32.mrf.mxu0
      %v1492 = vadd.f32 %v1280, %v1491
      %v1493 = vpop.f32.mrf.mxu0
      %1494 = vmatprep.mubr.bf16.mxu0 0
      %1495 = vmatmul.mubr.bf16.gmra.mxu0 %v1342
      %v1496 = vpop.f32.mrf.mxu0
      %v1497 = vadd.f32 %v1285, %v1496
      %v1498 = vpop.f32.mrf.mxu0
      %v1499 = vpop.f32.mrf.mxu0
      %v1500 = vadd.f32 %v1288, %v1499
      %v1501 = vpop.f32.mrf.mxu0
      %1502 = vmatprep.mubr.bf16.mxu0 0
      %1503 = vmatmul.mubr.bf16.gmra.mxu0 %v1345
      %v1504 = vpop.f32.mrf.mxu0
      %v1505 = vadd.f32 %v1293, %v1504
      %v1506 = vpop.f32.mrf.mxu0
      %v1507 = vpop.f32.mrf.mxu0
      %v1508 = vadd.f32 %v1296, %v1507
      %v1509 = vpop.f32.mrf.mxu0
      %1510 = vdwg.mxu0
      %vm1511 = vcmask 1045504
      %v1512 = vrot.slane %v835, 2
      %v1513 = vrot.slane %v836, 2
      %v1514 = vsel %vm1511, %v1512, %v1513
      %v1515 = vrot.slane %v837, 2
      %v1516 = vsel %vm1511, %v1513, %v1515
      %v1517 = vrot.slane %v838, 2
      %v1518 = vrot.slane %v839, 2
      %v1519 = vsel %vm1511, %v1517, %v1518
      %v1520 = vrot.slane %v840, 2
      %v1521 = vsel %vm1511, %v1518, %v1520
      %v1522 = vrot.slane %v841, 2
      %v1523 = vrot.slane %v842, 2
      %v1524 = vsel %vm1511, %v1522, %v1523
      %v1525 = vrot.slane %v843, 2
      %v1526 = vsel %vm1511, %v1523, %v1525
      %v1527 = vrot.slane %v844, 2
      %v1528 = vrot.slane %v845, 2
      %v1529 = vsel %vm1511, %v1527, %v1528
      %v1530 = vrot.slane %v846, 2
      %v1531 = vsel %vm1511, %v1528, %v1530
      %v1532 = vrot.slane %v847, 2
      %v1533 = vrot.slane %v848, 2
      %v1534 = vsel %vm1511, %v1532, %v1533
      %v1535 = vrot.slane %v849, 2
      %v1536 = vsel %vm1511, %v1533, %v1535
      %v1537 = vrot.slane %v850, 2
      %v1538 = vrot.slane %v851, 2
      %v1539 = vsel %vm1511, %v1537, %v1538
      %v1540 = vrot.slane %v852, 2
      %v1541 = vsel %vm1511, %v1538, %v1540
      %v1542 = vrot.slane %v853, 2
      %v1543 = vrot.slane %v854, 2
      %v1544 = vsel %vm1511, %v1542, %v1543
      %v1545 = vrot.slane %v855, 2
      %v1546 = vsel %vm1511, %v1543, %v1545
      %v1547 = vrot.slane %v856, 2
      %v1548 = vrot.slane %v857, 2
      %v1549 = vsel %vm1511, %v1547, %v1548
      %v1550 = vrot.slane %v858, 2
      %v1551 = vsel %vm1511, %v1548, %v1550
      %v1552 = vrot.slane %v859, 2
      %v1553 = vrot.slane %v860, 2
      %v1554 = vsel %vm1511, %v1552, %v1553
      %v1555 = vrot.slane %v861, 2
      %v1556 = vsel %vm1511, %v1553, %v1555
      %v1557 = vrot.slane %v862, 2
      %v1558 = vrot.slane %v863, 2
      %v1559 = vsel %vm1511, %v1557, %v1558
      %v1560 = vrot.slane %v864, 2
      %v1561 = vsel %vm1511, %v1558, %v1560
      %v1562 = vrot.slane %v865, 2
      %v1563 = vrot.slane %v866, 2
      %v1564 = vsel %vm1511, %v1562, %v1563
      %v1565 = vrot.slane %v867, 2
      %v1566 = vsel %vm1511, %v1563, %v1565
      %v1567 = vrot.slane %v868, 2
      %v1568 = vrot.slane %v869, 2
      %v1569 = vsel %vm1511, %v1567, %v1568
      %v1570 = vrot.slane %v870, 2
      %v1571 = vsel %vm1511, %v1568, %v1570
      %v1572 = vrot.slane %v871, 2
      %v1573 = vrot.slane %v872, 2
      %v1574 = vsel %vm1511, %v1572, %v1573
      %v1575 = vrot.slane %v873, 2
      %v1576 = vsel %vm1511, %v1573, %v1575
      %v1577 = vrot.slane %v874, 2
      %v1578 = vrot.slane %v875, 2
      %v1579 = vsel %vm1511, %v1577, %v1578
      %v1580 = vrot.slane %v876, 2
      %v1581 = vsel %vm1511, %v1578, %v1580
      %v1582 = vrot.slane %v877, 2
      %v1583 = vrot.slane %v878, 2
      %v1584 = vsel %vm1511, %v1582, %v1583
      %v1585 = vrot.slane %v879, 2
      %v1586 = vsel %vm1511, %v1583, %v1585
      %v1587 = vrot.slane %v880, 2
      %v1588 = vrot.slane %v881, 2
      %v1589 = vsel %vm1511, %v1587, %v1588
      %v1590 = vrot.slane %v882, 2
      %v1591 = vsel %vm1511, %v1588, %v1590
      %v1624 = vpack.c.bf16 %v1516, %v1514
      %v1625 = vpack.c.bf16 %v1521, %v1519
      %v1626 = vpack.c.bf16 %v1526, %v1524
      %v1627 = vpack.c.bf16 %v1531, %v1529
      %v1628 = vpack.c.bf16 %v1536, %v1534
      %v1629 = vpack.c.bf16 %v1541, %v1539
      %v1630 = vpack.c.bf16 %v1546, %v1544
      %v1631 = vpack.c.bf16 %v1551, %v1549
      %v1632 = vpack.c.bf16 %v1556, %v1554
      %v1633 = vpack.c.bf16 %v1561, %v1559
      %v1634 = vpack.c.bf16 %v1566, %v1564
      %v1635 = vpack.c.bf16 %v1571, %v1569
      %v1636 = vpack.c.bf16 %v1576, %v1574
      %v1637 = vpack.c.bf16 %v1581, %v1579
      %v1638 = vpack.c.bf16 %v1586, %v1584
      %v1639 = vpack.c.bf16 %v1591, %v1589
      %s1640 = scalar_lea.vmem %s2, 4
      %v1641 = vld [vmem:[%s1640] sm:$0x3]
      %v1643 = vsel %vm1085, %v1624, 0
      %v1646 = vsel %vm1085, %v1625, 0
      %v1649 = vsel %vm1085, %v1626, 0
      %v1652 = vsel %vm1085, %v1627, 0
      %v1655 = vsel %vm1085, %v1628, 0
      %v1658 = vsel %vm1085, %v1629, 0
      %v1661 = vsel %vm1085, %v1630, 0
      %v1664 = vsel %vm1085, %v1631, 0
      %v1667 = vsel %vm1085, %v1632, 0
      %v1670 = vsel %vm1085, %v1633, 0
      %v1673 = vsel %vm1085, %v1634, 0
      %v1676 = vsel %vm1085, %v1635, 0
      %v1679 = vsel %vm1085, %v1636, 0
      %v1682 = vsel %vm1085, %v1637, 0
      %v1685 = vsel %vm1085, %v1638, 0
      %v1688 = vsel %vm1085, %v1639, 0
      %v1691 = vsel %vm1134, %v1641, 0
      %1693 = vmatprep.subr.bf16.mxu0 0
      %1694 = vmatpush1.bf16.msra.mxu0 0
      %1695 = vmatprep.subr.bf16.mxu0 0
      %1696 = vmatpush1.bf16.msra.mxu0 0
      %1697 = vmatprep.subr.bf16.mxu0 0
      %1698 = vmatpush1.bf16.msra.mxu0 0
      %1699 = vmatprep.subr.bf16.mxu0 0
      %1700 = vmatpush1.bf16.msra.mxu0 0
      %1701 = vmatprep.subr.bf16.mxu0 0
      %1702 = vmatpush1.bf16.msra.mxu0 0
      %1703 = vmatprep.subr.bf16.mxu0 0
      %1704 = vmatpush1.bf16.msra.mxu0 0
      %1705 = vmatprep.subr.bf16.mxu0 0
      %1706 = vmatpush1.bf16.msra.mxu0 0
      %1707 = vmatprep.subr.bf16.mxu0 0
      %1708 = vmatpush1.bf16.msra.mxu0 %v1691
      %1709 = vmatprep.subr.bf16.mxu0 0
      %1710 = vmatpush2.bf16.msra.mxu0 0
      %1711 = vmatprep.subr.bf16.mxu0 0
      %1712 = vmatpush2.bf16.msra.mxu0 0
      %1713 = vmatprep.subr.bf16.mxu0 0
      %1714 = vmatpush2.bf16.msra.mxu0 0
      %1715 = vmatprep.subr.bf16.mxu0 0
      %1716 = vmatpush2.bf16.msra.mxu0 0
      %1717 = vmatprep.subr.bf16.mxu0 0
      %1718 = vmatpush2.bf16.msra.mxu0 0
      %1719 = vmatprep.subr.bf16.mxu0 0
      %1720 = vmatpush2.bf16.msra.mxu0 0
      %1721 = vmatprep.subr.bf16.mxu0 0
      %1722 = vmatpush2.bf16.msra.mxu0 0
      %1723 = vmatprep.subr.bf16.mxu0 0
      %1724 = vmatpush2.bf16.msra.mxu0 0
      %1725 = vmatprep.mubr.bf16.mxu0 0
      %1726 = vmatmul.mubr.bf16.gmra.mxu0 %v1643
      %v1727 = vpop.f32.mrf.mxu0
      %v1728 = vadd.f32 0.0, %v1727
      %v1729 = vpop.f32.mrf.mxu0
      %v1730 = vpop.f32.mrf.mxu0
      %v1731 = vadd.f32 0.0, %v1730
      %v1732 = vpop.f32.mrf.mxu0
      %1733 = vmatprep.mubr.bf16.mxu0 0
      %1734 = vmatmul.mubr.bf16.gmra.mxu0 %v1646
      %v1735 = vpop.f32.mrf.mxu0
      %v1736 = vadd.f32 0.0, %v1735
      %v1737 = vpop.f32.mrf.mxu0
      %v1738 = vpop.f32.mrf.mxu0
      %v1739 = vadd.f32 0.0, %v1738
      %v1740 = vpop.f32.mrf.mxu0
      %1741 = vmatprep.mubr.bf16.mxu0 0
      %1742 = vmatmul.mubr.bf16.gmra.mxu0 %v1649
      %v1743 = vpop.f32.mrf.mxu0
      %v1744 = vadd.f32 0.0, %v1743
      %v1745 = vpop.f32.mrf.mxu0
      %v1746 = vpop.f32.mrf.mxu0
      %v1747 = vadd.f32 0.0, %v1746
      %v1748 = vpop.f32.mrf.mxu0
      %1749 = vmatprep.mubr.bf16.mxu0 0
      %1750 = vmatmul.mubr.bf16.gmra.mxu0 %v1652
      %v1751 = vpop.f32.mrf.mxu0
      %v1752 = vadd.f32 0.0, %v1751
      %v1753 = vpop.f32.mrf.mxu0
      %v1754 = vpop.f32.mrf.mxu0
      %v1755 = vadd.f32 0.0, %v1754
      %v1756 = vpop.f32.mrf.mxu0
      %1757 = vmatprep.mubr.bf16.mxu0 0
      %1758 = vmatmul.mubr.bf16.gmra.mxu0 %v1655
      %v1759 = vpop.f32.mrf.mxu0
      %v1760 = vadd.f32 0.0, %v1759
      %v1761 = vpop.f32.mrf.mxu0
      %v1762 = vpop.f32.mrf.mxu0
      %v1763 = vadd.f32 0.0, %v1762
      %v1764 = vpop.f32.mrf.mxu0
      %1765 = vmatprep.mubr.bf16.mxu0 0
      %1766 = vmatmul.mubr.bf16.gmra.mxu0 %v1658
      %v1767 = vpop.f32.mrf.mxu0
      %v1768 = vadd.f32 0.0, %v1767
      %v1769 = vpop.f32.mrf.mxu0
      %v1770 = vpop.f32.mrf.mxu0
      %v1771 = vadd.f32 0.0, %v1770
      %v1772 = vpop.f32.mrf.mxu0
      %1773 = vmatprep.mubr.bf16.mxu0 0
      %1774 = vmatmul.mubr.bf16.gmra.mxu0 %v1661
      %v1775 = vpop.f32.mrf.mxu0
      %v1776 = vadd.f32 0.0, %v1775
      %v1777 = vpop.f32.mrf.mxu0
      %v1778 = vpop.f32.mrf.mxu0
      %v1779 = vadd.f32 0.0, %v1778
      %v1780 = vpop.f32.mrf.mxu0
      %1781 = vmatprep.mubr.bf16.mxu0 0
      %1782 = vmatmul.mubr.bf16.gmra.mxu0 %v1664
      %v1783 = vpop.f32.mrf.mxu0
      %v1784 = vadd.f32 0.0, %v1783
      %v1785 = vpop.f32.mrf.mxu0
      %v1786 = vpop.f32.mrf.mxu0
      %v1787 = vadd.f32 0.0, %v1786
      %v1788 = vpop.f32.mrf.mxu0
      %1789 = vmatprep.mubr.bf16.mxu0 0
      %1790 = vmatmul.mubr.bf16.gmra.mxu0 %v1667
      %v1791 = vpop.f32.mrf.mxu0
      %v1792 = vadd.f32 0.0, %v1791
      %v1793 = vpop.f32.mrf.mxu0
      %v1794 = vpop.f32.mrf.mxu0
      %v1795 = vadd.f32 0.0, %v1794
      %v1796 = vpop.f32.mrf.mxu0
      %1797 = vmatprep.mubr.bf16.mxu0 0
      %1798 = vmatmul.mubr.bf16.gmra.mxu0 %v1670
      %v1799 = vpop.f32.mrf.mxu0
      %v1800 = vadd.f32 0.0, %v1799
      %v1801 = vpop.f32.mrf.mxu0
      %v1802 = vpop.f32.mrf.mxu0
      %v1803 = vadd.f32 0.0, %v1802
      %v1804 = vpop.f32.mrf.mxu0
      %1805 = vmatprep.mubr.bf16.mxu0 0
      %1806 = vmatmul.mubr.bf16.gmra.mxu0 %v1673
      %v1807 = vpop.f32.mrf.mxu0
      %v1808 = vadd.f32 0.0, %v1807
      %v1809 = vpop.f32.mrf.mxu0
      %v1810 = vpop.f32.mrf.mxu0
      %v1811 = vadd.f32 0.0, %v1810
      %v1812 = vpop.f32.mrf.mxu0
      %1813 = vmatprep.mubr.bf16.mxu0 0
      %1814 = vmatmul.mubr.bf16.gmra.mxu0 %v1676
      %v1815 = vpop.f32.mrf.mxu0
      %v1816 = vadd.f32 0.0, %v1815
      %v1817 = vpop.f32.mrf.mxu0
      %v1818 = vpop.f32.mrf.mxu0
      %v1819 = vadd.f32 0.0, %v1818
      %v1820 = vpop.f32.mrf.mxu0
      %1821 = vmatprep.mubr.bf16.mxu0 0
      %1822 = vmatmul.mubr.bf16.gmra.mxu0 %v1679
      %v1823 = vpop.f32.mrf.mxu0
      %v1824 = vadd.f32 0.0, %v1823
      %v1825 = vpop.f32.mrf.mxu0
      %v1826 = vpop.f32.mrf.mxu0
      %v1827 = vadd.f32 0.0, %v1826
      %v1828 = vpop.f32.mrf.mxu0
      %1829 = vmatprep.mubr.bf16.mxu0 0
      %1830 = vmatmul.mubr.bf16.gmra.mxu0 %v1682
      %v1831 = vpop.f32.mrf.mxu0
      %v1832 = vadd.f32 0.0, %v1831
      %v1833 = vpop.f32.mrf.mxu0
      %v1834 = vpop.f32.mrf.mxu0
      %v1835 = vadd.f32 0.0, %v1834
      %v1836 = vpop.f32.mrf.mxu0
      %1837 = vmatprep.mubr.bf16.mxu0 0
      %1838 = vmatmul.mubr.bf16.gmra.mxu0 %v1685
      %v1839 = vpop.f32.mrf.mxu0
      %v1840 = vadd.f32 0.0, %v1839
      %v1841 = vpop.f32.mrf.mxu0
      %v1842 = vpop.f32.mrf.mxu0
      %v1843 = vadd.f32 0.0, %v1842
      %v1844 = vpop.f32.mrf.mxu0
      %1845 = vmatprep.mubr.bf16.mxu0 0
      %1846 = vmatmul.mubr.bf16.gmra.mxu0 %v1688
      %v1847 = vpop.f32.mrf.mxu0
      %v1848 = vadd.f32 0.0, %v1847
      %v1849 = vpop.f32.mrf.mxu0
      %v1850 = vpop.f32.mrf.mxu0
      %v1851 = vadd.f32 0.0, %v1850
      %v1852 = vpop.f32.mrf.mxu0
      %1853 = vdwg.mxu0
      %v1854 = vadd.f32 %v1385, %v1728
      %v1855 = vadd.f32 %v1388, %v1731
      %v1856 = vadd.f32 %v1393, %v1736
      %v1857 = vadd.f32 %v1396, %v1739
      %v1858 = vadd.f32 %v1401, %v1744
      %v1859 = vadd.f32 %v1404, %v1747
      %v1860 = vadd.f32 %v1409, %v1752
      %v1861 = vadd.f32 %v1412, %v1755
      %v1862 = vadd.f32 %v1417, %v1760
      %v1863 = vadd.f32 %v1420, %v1763
      %v1864 = vadd.f32 %v1425, %v1768
      %v1865 = vadd.f32 %v1428, %v1771
      %v1866 = vadd.f32 %v1433, %v1776
      %v1867 = vadd.f32 %v1436, %v1779
      %v1868 = vadd.f32 %v1441, %v1784
      %v1869 = vadd.f32 %v1444, %v1787
      %v1870 = vadd.f32 %v1449, %v1792
      %v1871 = vadd.f32 %v1452, %v1795
      %v1872 = vadd.f32 %v1457, %v1800
      %v1873 = vadd.f32 %v1460, %v1803
      %v1874 = vadd.f32 %v1465, %v1808
      %v1875 = vadd.f32 %v1468, %v1811
      %v1876 = vadd.f32 %v1473, %v1816
      %v1877 = vadd.f32 %v1476, %v1819
      %v1878 = vadd.f32 %v1481, %v1824
      %v1879 = vadd.f32 %v1484, %v1827
      %v1880 = vadd.f32 %v1489, %v1832
      %v1881 = vadd.f32 %v1492, %v1835
      %v1882 = vadd.f32 %v1497, %v1840
      %v1883 = vadd.f32 %v1500, %v1843
      %v1884 = vadd.f32 %v1505, %v1848
      %v1885 = vadd.f32 %v1508, %v1851
      %v1886 = vpack.c.bf16 %v884, %v883
      %s1887 = scalar_lea.vmem %s2, 6
      %v1888 = vld [vmem:[%s1887] sm:$0x3]
      %v1890 = vsel %vm1085, %v1886, 0
      %v1893 = vsel %vm1134, %v1888, 0
      %1895 = vmatprep.subr.bf16.mxu0 0
      %1896 = vmatpush1.bf16.msra.mxu0 0
      %1897 = vmatprep.subr.bf16.mxu0 0
      %1898 = vmatpush1.bf16.msra.mxu0 0
      %1899 = vmatprep.subr.bf16.mxu0 0
      %1900 = vmatpush1.bf16.msra.mxu0 0
      %1901 = vmatprep.subr.bf16.mxu0 0
      %1902 = vmatpush1.bf16.msra.mxu0 0
      %1903 = vmatprep.subr.bf16.mxu0 0
      %1904 = vmatpush1.bf16.msra.mxu0 0
      %1905 = vmatprep.subr.bf16.mxu0 0
      %1906 = vmatpush1.bf16.msra.mxu0 0
      %1907 = vmatprep.subr.bf16.mxu0 0
      %1908 = vmatpush1.bf16.msra.mxu0 0
      %1909 = vmatprep.subr.bf16.mxu0 0
      %1910 = vmatpush1.bf16.msra.mxu0 %v1893
      %1911 = vmatprep.subr.bf16.mxu0 0
      %1912 = vmatpush2.bf16.msra.mxu0 0
      %1913 = vmatprep.subr.bf16.mxu0 0
      %1914 = vmatpush2.bf16.msra.mxu0 0
      %1915 = vmatprep.subr.bf16.mxu0 0
      %1916 = vmatpush2.bf16.msra.mxu0 0
      %1917 = vmatprep.subr.bf16.mxu0 0
      %1918 = vmatpush2.bf16.msra.mxu0 0
      %1919 = vmatprep.subr.bf16.mxu0 0
      %1920 = vmatpush2.bf16.msra.mxu0 0
      %1921 = vmatprep.subr.bf16.mxu0 0
      %1922 = vmatpush2.bf16.msra.mxu0 0
      %1923 = vmatprep.subr.bf16.mxu0 0
      %1924 = vmatpush2.bf16.msra.mxu0 0
      %1925 = vmatprep.subr.bf16.mxu0 0
      %1926 = vmatpush2.bf16.msra.mxu0 0
      %1927 = vmatprep.mubr.bf16.mxu0 0
      %1928 = vmatmul.mubr.bf16.gmra.mxu0 %v1303
      %v1929 = vpop.f32.mrf.mxu0
      %v1930 = vadd.f32 0.0, %v1929
      %v1931 = vpop.f32.mrf.mxu0
      %v1932 = vpop.f32.mrf.mxu0
      %v1933 = vadd.f32 0.0, %v1932
      %v1934 = vpop.f32.mrf.mxu0
      %1935 = vmatprep.mubr.bf16.mxu0 0
      %1936 = vmatmul.mubr.bf16.gmra.mxu0 %v1306
      %v1937 = vpop.f32.mrf.mxu0
      %v1938 = vadd.f32 0.0, %v1937
      %v1939 = vpop.f32.mrf.mxu0
      %v1940 = vpop.f32.mrf.mxu0
      %v1941 = vadd.f32 0.0, %v1940
      %v1942 = vpop.f32.mrf.mxu0
      %1943 = vmatprep.mubr.bf16.mxu0 0
      %1944 = vmatmul.mubr.bf16.gmra.mxu0 %v1309
      %v1945 = vpop.f32.mrf.mxu0
      %v1946 = vadd.f32 0.0, %v1945
      %v1947 = vpop.f32.mrf.mxu0
      %v1948 = vpop.f32.mrf.mxu0
      %v1949 = vadd.f32 0.0, %v1948
      %v1950 = vpop.f32.mrf.mxu0
      %1951 = vmatprep.mubr.bf16.mxu0 0
      %1952 = vmatmul.mubr.bf16.gmra.mxu0 %v1312
      %v1953 = vpop.f32.mrf.mxu0
      %v1954 = vadd.f32 0.0, %v1953
      %v1955 = vpop.f32.mrf.mxu0
      %v1956 = vpop.f32.mrf.mxu0
      %v1957 = vadd.f32 0.0, %v1956
      %v1958 = vpop.f32.mrf.mxu0
      %1959 = vmatprep.mubr.bf16.mxu0 0
      %1960 = vmatmul.mubr.bf16.gmra.mxu0 %v1315
      %v1961 = vpop.f32.mrf.mxu0
      %v1962 = vadd.f32 0.0, %v1961
      %v1963 = vpop.f32.mrf.mxu0
      %v1964 = vpop.f32.mrf.mxu0
      %v1965 = vadd.f32 0.0, %v1964
      %v1966 = vpop.f32.mrf.mxu0
      %1967 = vmatprep.mubr.bf16.mxu0 0
      %1968 = vmatmul.mubr.bf16.gmra.mxu0 %v1318
      %v1969 = vpop.f32.mrf.mxu0
      %v1970 = vadd.f32 0.0, %v1969
      %v1971 = vpop.f32.mrf.mxu0
      %v1972 = vpop.f32.mrf.mxu0
      %v1973 = vadd.f32 0.0, %v1972
      %v1974 = vpop.f32.mrf.mxu0
      %1975 = vmatprep.mubr.bf16.mxu0 0
      %1976 = vmatmul.mubr.bf16.gmra.mxu0 %v1321
      %v1977 = vpop.f32.mrf.mxu0
      %v1978 = vadd.f32 0.0, %v1977
      %v1979 = vpop.f32.mrf.mxu0
      %v1980 = vpop.f32.mrf.mxu0
      %v1981 = vadd.f32 0.0, %v1980
      %v1982 = vpop.f32.mrf.mxu0
      %1983 = vmatprep.mubr.bf16.mxu0 0
      %1984 = vmatmul.mubr.bf16.gmra.mxu0 %v1324
      %v1985 = vpop.f32.mrf.mxu0
      %v1986 = vadd.f32 0.0, %v1985
      %v1987 = vpop.f32.mrf.mxu0
      %v1988 = vpop.f32.mrf.mxu0
      %v1989 = vadd.f32 0.0, %v1988
      %v1990 = vpop.f32.mrf.mxu0
      %1991 = vmatprep.mubr.bf16.mxu0 0
      %1992 = vmatmul.mubr.bf16.gmra.mxu0 %v1327
      %v1993 = vpop.f32.mrf.mxu0
      %v1994 = vadd.f32 0.0, %v1993
      %v1995 = vpop.f32.mrf.mxu0
      %v1996 = vpop.f32.mrf.mxu0
      %v1997 = vadd.f32 0.0, %v1996
      %v1998 = vpop.f32.mrf.mxu0
      %1999 = vmatprep.mubr.bf16.mxu0 0
      %2000 = vmatmul.mubr.bf16.gmra.mxu0 %v1330
      %v2001 = vpop.f32.mrf.mxu0
      %v2002 = vadd.f32 0.0, %v2001
      %v2003 = vpop.f32.mrf.mxu0
      %v2004 = vpop.f32.mrf.mxu0
      %v2005 = vadd.f32 0.0, %v2004
      %v2006 = vpop.f32.mrf.mxu0
      %2007 = vmatprep.mubr.bf16.mxu0 0
      %2008 = vmatmul.mubr.bf16.gmra.mxu0 %v1333
      %v2009 = vpop.f32.mrf.mxu0
      %v2010 = vadd.f32 0.0, %v2009
      %v2011 = vpop.f32.mrf.mxu0
      %v2012 = vpop.f32.mrf.mxu0
      %v2013 = vadd.f32 0.0, %v2012
      %v2014 = vpop.f32.mrf.mxu0
      %2015 = vmatprep.mubr.bf16.mxu0 0
      %2016 = vmatmul.mubr.bf16.gmra.mxu0 %v1336
      %v2017 = vpop.f32.mrf.mxu0
      %v2018 = vadd.f32 0.0, %v2017
      %v2019 = vpop.f32.mrf.mxu0
      %v2020 = vpop.f32.mrf.mxu0
      %v2021 = vadd.f32 0.0, %v2020
      %v2022 = vpop.f32.mrf.mxu0
      %2023 = vmatprep.mubr.bf16.mxu0 0
      %2024 = vmatmul.mubr.bf16.gmra.mxu0 %v1339
      %v2025 = vpop.f32.mrf.mxu0
      %v2026 = vadd.f32 0.0, %v2025
      %v2027 = vpop.f32.mrf.mxu0
      %v2028 = vpop.f32.mrf.mxu0
      %v2029 = vadd.f32 0.0, %v2028
      %v2030 = vpop.f32.mrf.mxu0
      %2031 = vmatprep.mubr.bf16.mxu0 0
      %2032 = vmatmul.mubr.bf16.gmra.mxu0 %v1342
      %v2033 = vpop.f32.mrf.mxu0
      %v2034 = vadd.f32 0.0, %v2033
      %v2035 = vpop.f32.mrf.mxu0
      %v2036 = vpop.f32.mrf.mxu0
      %v2037 = vadd.f32 0.0, %v2036
      %v2038 = vpop.f32.mrf.mxu0
      %2039 = vmatprep.mubr.bf16.mxu0 0
      %2040 = vmatmul.mubr.bf16.gmra.mxu0 %v1345
      %v2041 = vpop.f32.mrf.mxu0
      %v2042 = vadd.f32 0.0, %v2041
      %v2043 = vpop.f32.mrf.mxu0
      %v2044 = vpop.f32.mrf.mxu0
      %v2045 = vadd.f32 0.0, %v2044
      %v2046 = vpop.f32.mrf.mxu0
      %2047 = vmatprep.mubr.bf16.mxu0 0
      %2048 = vmatmul.mubr.bf16.gmra.mxu0 %v1890
      %v2049 = vpop.f32.mrf.mxu0
      %v2050 = vadd.f32 0.0, %v2049
      %v2051 = vpop.f32.mrf.mxu0
      %v2052 = vpop.f32.mrf.mxu0
      %v2053 = vadd.f32 0.0, %v2052
      %v2054 = vpop.f32.mrf.mxu0
      %2055 = vdwg.mxu0
      %v2056 = vadd.f32 %v1854, %v1930
      %v2057 = vadd.f32 %v1855, %v1933
      %v2058 = vadd.f32 %v1856, %v1938
      %v2059 = vadd.f32 %v1857, %v1941
      %v2060 = vadd.f32 %v1858, %v1946
      %v2061 = vadd.f32 %v1859, %v1949
      %v2062 = vadd.f32 %v1860, %v1954
      %v2063 = vadd.f32 %v1861, %v1957
      %v2064 = vadd.f32 %v1862, %v1962
      %v2065 = vadd.f32 %v1863, %v1965
      %v2066 = vadd.f32 %v1864, %v1970
      %v2067 = vadd.f32 %v1865, %v1973
      %v2068 = vadd.f32 %v1866, %v1978
      %v2069 = vadd.f32 %v1867, %v1981
      %v2070 = vadd.f32 %v1868, %v1986
      %v2071 = vadd.f32 %v1869, %v1989
      %v2072 = vadd.f32 %v1870, %v1994
      %v2073 = vadd.f32 %v1871, %v1997
      %v2074 = vadd.f32 %v1872, %v2002
      %v2075 = vadd.f32 %v1873, %v2005
      %v2076 = vadd.f32 %v1874, %v2010
      %v2077 = vadd.f32 %v1875, %v2013
      %v2078 = vadd.f32 %v1876, %v2018
      %v2079 = vadd.f32 %v1877, %v2021
      %v2080 = vadd.f32 %v1878, %v2026
      %v2081 = vadd.f32 %v1879, %v2029
      %v2082 = vadd.f32 %v1880, %v2034
      %v2083 = vadd.f32 %v1881, %v2037
      %v2084 = vadd.f32 %v1882, %v2042
      %v2085 = vadd.f32 %v1883, %v2045
      %v2086 = vadd.f32 %v1884, %v2050
      %v2087 = vadd.f32 %v1885, %v2053
      %v2091 = vrot.slane %v883, 1
      %v2092 = vrot.slane %v884, 1
      %v2093 = vsel %vm954, %v2091, %v2092
      %v2094 = vrot.slane %v885, 1
      %v2095 = vsel %vm954, %v2092, %v2094
      %v2098 = vpack.c.bf16 %v2095, %v2093
      %s2099 = scalar_lea.vmem %s2, 8
      %v2100 = vld [vmem:[%s2099] sm:$0x3]
      %v2102 = vsel %vm1085, %v2098, 0
      %v2105 = vsel %vm1134, %v2100, 0
      %2107 = vmatprep.subr.bf16.mxu0 0
      %2108 = vmatpush1.bf16.msra.mxu0 0
      %2109 = vmatprep.subr.bf16.mxu0 0
      %2110 = vmatpush1.bf16.msra.mxu0 0
      %2111 = vmatprep.subr.bf16.mxu0 0
      %2112 = vmatpush1.bf16.msra.mxu0 0
      %2113 = vmatprep.subr.bf16.mxu0 0
      %2114 = vmatpush1.bf16.msra.mxu0 0
      %2115 = vmatprep.subr.bf16.mxu0 0
      %2116 = vmatpush1.bf16.msra.mxu0 0
      %2117 = vmatprep.subr.bf16.mxu0 0
      %2118 = vmatpush1.bf16.msra.mxu0 0
      %2119 = vmatprep.subr.bf16.mxu0 0
      %2120 = vmatpush1.bf16.msra.mxu0 0
      %2121 = vmatprep.subr.bf16.mxu0 0
      %2122 = vmatpush1.bf16.msra.mxu0 %v2105
      %2123 = vmatprep.subr.bf16.mxu0 0
      %2124 = vmatpush2.bf16.msra.mxu0 0
      %2125 = vmatprep.subr.bf16.mxu0 0
      %2126 = vmatpush2.bf16.msra.mxu0 0
      %2127 = vmatprep.subr.bf16.mxu0 0
      %2128 = vmatpush2.bf16.msra.mxu0 0
      %2129 = vmatprep.subr.bf16.mxu0 0
      %2130 = vmatpush2.bf16.msra.mxu0 0
      %2131 = vmatprep.subr.bf16.mxu0 0
      %2132 = vmatpush2.bf16.msra.mxu0 0
      %2133 = vmatprep.subr.bf16.mxu0 0
      %2134 = vmatpush2.bf16.msra.mxu0 0
      %2135 = vmatprep.subr.bf16.mxu0 0
      %2136 = vmatpush2.bf16.msra.mxu0 0
      %2137 = vmatprep.subr.bf16.mxu0 0
      %2138 = vmatpush2.bf16.msra.mxu0 0
      %2139 = vmatprep.mubr.bf16.mxu0 0
      %2140 = vmatmul.mubr.bf16.gmra.mxu0 %v1090
      %v2141 = vpop.f32.mrf.mxu0
      %v2142 = vadd.f32 0.0, %v2141
      %v2143 = vpop.f32.mrf.mxu0
      %v2144 = vpop.f32.mrf.mxu0
      %v2145 = vadd.f32 0.0, %v2144
      %v2146 = vpop.f32.mrf.mxu0
      %2147 = vmatprep.mubr.bf16.mxu0 0
      %2148 = vmatmul.mubr.bf16.gmra.mxu0 %v1093
      %v2149 = vpop.f32.mrf.mxu0
      %v2150 = vadd.f32 0.0, %v2149
      %v2151 = vpop.f32.mrf.mxu0
      %v2152 = vpop.f32.mrf.mxu0
      %v2153 = vadd.f32 0.0, %v2152
      %v2154 = vpop.f32.mrf.mxu0
      %2155 = vmatprep.mubr.bf16.mxu0 0
      %2156 = vmatmul.mubr.bf16.gmra.mxu0 %v1096
      %v2157 = vpop.f32.mrf.mxu0
      %v2158 = vadd.f32 0.0, %v2157
      %v2159 = vpop.f32.mrf.mxu0
      %v2160 = vpop.f32.mrf.mxu0
      %v2161 = vadd.f32 0.0, %v2160
      %v2162 = vpop.f32.mrf.mxu0
      %2163 = vmatprep.mubr.bf16.mxu0 0
      %2164 = vmatmul.mubr.bf16.gmra.mxu0 %v1099
      %v2165 = vpop.f32.mrf.mxu0
      %v2166 = vadd.f32 0.0, %v2165
      %v2167 = vpop.f32.mrf.mxu0
      %v2168 = vpop.f32.mrf.mxu0
      %v2169 = vadd.f32 0.0, %v2168
      %v2170 = vpop.f32.mrf.mxu0
      %2171 = vmatprep.mubr.bf16.mxu0 0
      %2172 = vmatmul.mubr.bf16.gmra.mxu0 %v1102
      %v2173 = vpop.f32.mrf.mxu0
      %v2174 = vadd.f32 0.0, %v2173
      %v2175 = vpop.f32.mrf.mxu0
      %v2176 = vpop.f32.mrf.mxu0
      %v2177 = vadd.f32 0.0, %v2176
      %v2178 = vpop.f32.mrf.mxu0
      %2179 = vmatprep.mubr.bf16.mxu0 0
      %2180 = vmatmul.mubr.bf16.gmra.mxu0 %v1105
      %v2181 = vpop.f32.mrf.mxu0
      %v2182 = vadd.f32 0.0, %v2181
      %v2183 = vpop.f32.mrf.mxu0
      %v2184 = vpop.f32.mrf.mxu0
      %v2185 = vadd.f32 0.0, %v2184
      %v2186 = vpop.f32.mrf.mxu0
      %2187 = vmatprep.mubr.bf16.mxu0 0
      %2188 = vmatmul.mubr.bf16.gmra.mxu0 %v1108
      %v2189 = vpop.f32.mrf.mxu0
      %v2190 = vadd.f32 0.0, %v2189
      %v2191 = vpop.f32.mrf.mxu0
      %v2192 = vpop.f32.mrf.mxu0
      %v2193 = vadd.f32 0.0, %v2192
      %v2194 = vpop.f32.mrf.mxu0
      %2195 = vmatprep.mubr.bf16.mxu0 0
      %2196 = vmatmul.mubr.bf16.gmra.mxu0 %v1111
      %v2197 = vpop.f32.mrf.mxu0
      %v2198 = vadd.f32 0.0, %v2197
      %v2199 = vpop.f32.mrf.mxu0
      %v2200 = vpop.f32.mrf.mxu0
      %v2201 = vadd.f32 0.0, %v2200
      %v2202 = vpop.f32.mrf.mxu0
      %2203 = vmatprep.mubr.bf16.mxu0 0
      %2204 = vmatmul.mubr.bf16.gmra.mxu0 %v1114
      %v2205 = vpop.f32.mrf.mxu0
      %v2206 = vadd.f32 0.0, %v2205
      %v2207 = vpop.f32.mrf.mxu0
      %v2208 = vpop.f32.mrf.mxu0
      %v2209 = vadd.f32 0.0, %v2208
      %v2210 = vpop.f32.mrf.mxu0
      %2211 = vmatprep.mubr.bf16.mxu0 0
      %2212 = vmatmul.mubr.bf16.gmra.mxu0 %v1117
      %v2213 = vpop.f32.mrf.mxu0
      %v2214 = vadd.f32 0.0, %v2213
      %v2215 = vpop.f32.mrf.mxu0
      %v2216 = vpop.f32.mrf.mxu0
      %v2217 = vadd.f32 0.0, %v2216
      %v2218 = vpop.f32.mrf.mxu0
      %2219 = vmatprep.mubr.bf16.mxu0 0
      %2220 = vmatmul.mubr.bf16.gmra.mxu0 %v1120
      %v2221 = vpop.f32.mrf.mxu0
      %v2222 = vadd.f32 0.0, %v2221
      %v2223 = vpop.f32.mrf.mxu0
      %v2224 = vpop.f32.mrf.mxu0
      %v2225 = vadd.f32 0.0, %v2224
      %v2226 = vpop.f32.mrf.mxu0
      %2227 = vmatprep.mubr.bf16.mxu0 0
      %2228 = vmatmul.mubr.bf16.gmra.mxu0 %v1123
      %v2229 = vpop.f32.mrf.mxu0
      %v2230 = vadd.f32 0.0, %v2229
      %v2231 = vpop.f32.mrf.mxu0
      %v2232 = vpop.f32.mrf.mxu0
      %v2233 = vadd.f32 0.0, %v2232
      %v2234 = vpop.f32.mrf.mxu0
      %2235 = vmatprep.mubr.bf16.mxu0 0
      %2236 = vmatmul.mubr.bf16.gmra.mxu0 %v1126
      %v2237 = vpop.f32.mrf.mxu0
      %v2238 = vadd.f32 0.0, %v2237
      %v2239 = vpop.f32.mrf.mxu0
      %v2240 = vpop.f32.mrf.mxu0
      %v2241 = vadd.f32 0.0, %v2240
      %v2242 = vpop.f32.mrf.mxu0
      %2243 = vmatprep.mubr.bf16.mxu0 0
      %2244 = vmatmul.mubr.bf16.gmra.mxu0 %v1129
      %v2245 = vpop.f32.mrf.mxu0
      %v2246 = vadd.f32 0.0, %v2245
      %v2247 = vpop.f32.mrf.mxu0
      %v2248 = vpop.f32.mrf.mxu0
      %v2249 = vadd.f32 0.0, %v2248
      %v2250 = vpop.f32.mrf.mxu0
      %2251 = vmatprep.mubr.bf16.mxu0 0
      %2252 = vmatmul.mubr.bf16.gmra.mxu0 %v1132
      %v2253 = vpop.f32.mrf.mxu0
      %v2254 = vadd.f32 0.0, %v2253
      %v2255 = vpop.f32.mrf.mxu0
      %v2256 = vpop.f32.mrf.mxu0
      %v2257 = vadd.f32 0.0, %v2256
      %v2258 = vpop.f32.mrf.mxu0
      %2259 = vmatprep.mubr.bf16.mxu0 0
      %2260 = vmatmul.mubr.bf16.gmra.mxu0 %v2102
      %v2261 = vpop.f32.mrf.mxu0
      %v2262 = vadd.f32 0.0, %v2261
      %v2263 = vpop.f32.mrf.mxu0
      %v2264 = vpop.f32.mrf.mxu0
      %v2265 = vadd.f32 0.0, %v2264
      %v2266 = vpop.f32.mrf.mxu0
      %2267 = vdwg.mxu0
      %v2268 = vadd.f32 %v2056, %v2142
      %v2269 = vadd.f32 %v2057, %v2145
      %v2270 = vadd.f32 %v2058, %v2150
      %v2271 = vadd.f32 %v2059, %v2153
      %v2272 = vadd.f32 %v2060, %v2158
      %v2273 = vadd.f32 %v2061, %v2161
      %v2274 = vadd.f32 %v2062, %v2166
      %v2275 = vadd.f32 %v2063, %v2169
      %v2276 = vadd.f32 %v2064, %v2174
      %v2277 = vadd.f32 %v2065, %v2177
      %v2278 = vadd.f32 %v2066, %v2182
      %v2279 = vadd.f32 %v2067, %v2185
      %v2280 = vadd.f32 %v2068, %v2190
      %v2281 = vadd.f32 %v2069, %v2193
      %v2282 = vadd.f32 %v2070, %v2198
      %v2283 = vadd.f32 %v2071, %v2201
      %v2284 = vadd.f32 %v2072, %v2206
      %v2285 = vadd.f32 %v2073, %v2209
      %v2286 = vadd.f32 %v2074, %v2214
      %v2287 = vadd.f32 %v2075, %v2217
      %v2288 = vadd.f32 %v2076, %v2222
      %v2289 = vadd.f32 %v2077, %v2225
      %v2290 = vadd.f32 %v2078, %v2230
      %v2291 = vadd.f32 %v2079, %v2233
      %v2292 = vadd.f32 %v2080, %v2238
      %v2293 = vadd.f32 %v2081, %v2241
      %v2294 = vadd.f32 %v2082, %v2246
      %v2295 = vadd.f32 %v2083, %v2249
      %v2296 = vadd.f32 %v2084, %v2254
      %v2297 = vadd.f32 %v2085, %v2257
      %v2298 = vadd.f32 %v2086, %v2262
      %v2299 = vadd.f32 %v2087, %v2265
      %v2300 = vrot.slane %v883, 2
      %v2301 = vrot.slane %v884, 2
      %v2302 = vsel %vm1511, %v2300, %v2301
      %v2303 = vrot.slane %v885, 2
      %v2304 = vsel %vm1511, %v2301, %v2303
      %v2307 = vpack.c.bf16 %v2304, %v2302
      %s2308 = scalar_lea.vmem %s2, 10
      %v2309 = vld [vmem:[%s2308] sm:$0x3]
      %v2311 = vsel %vm1085, %v2307, 0
      %v2314 = vsel %vm1134, %v2309, 0
      %2316 = vmatprep.subr.bf16.mxu0 0
      %2317 = vmatpush1.bf16.msra.mxu0 0
      %2318 = vmatprep.subr.bf16.mxu0 0
      %2319 = vmatpush1.bf16.msra.mxu0 0
      %2320 = vmatprep.subr.bf16.mxu0 0
      %2321 = vmatpush1.bf16.msra.mxu0 0
      %2322 = vmatprep.subr.bf16.mxu0 0
      %2323 = vmatpush1.bf16.msra.mxu0 0
      %2324 = vmatprep.subr.bf16.mxu0 0
      %2325 = vmatpush1.bf16.msra.mxu0 0
      %2326 = vmatprep.subr.bf16.mxu0 0
      %2327 = vmatpush1.bf16.msra.mxu0 0
      %2328 = vmatprep.subr.bf16.mxu0 0
      %2329 = vmatpush1.bf16.msra.mxu0 0
      %2330 = vmatprep.subr.bf16.mxu0 0
      %2331 = vmatpush1.bf16.msra.mxu0 %v2314
      %2332 = vmatprep.subr.bf16.mxu0 0
      %2333 = vmatpush2.bf16.msra.mxu0 0
      %2334 = vmatprep.subr.bf16.mxu0 0
      %2335 = vmatpush2.bf16.msra.mxu0 0
      %2336 = vmatprep.subr.bf16.mxu0 0
      %2337 = vmatpush2.bf16.msra.mxu0 0
      %2338 = vmatprep.subr.bf16.mxu0 0
      %2339 = vmatpush2.bf16.msra.mxu0 0
      %2340 = vmatprep.subr.bf16.mxu0 0
      %2341 = vmatpush2.bf16.msra.mxu0 0
      %2342 = vmatprep.subr.bf16.mxu0 0
      %2343 = vmatpush2.bf16.msra.mxu0 0
      %2344 = vmatprep.subr.bf16.mxu0 0
      %2345 = vmatpush2.bf16.msra.mxu0 0
      %2346 = vmatprep.subr.bf16.mxu0 0
      %2347 = vmatpush2.bf16.msra.mxu0 0
      %2348 = vmatprep.mubr.bf16.mxu0 0
      %2349 = vmatmul.mubr.bf16.gmra.mxu0 %v1646
      %v2350 = vpop.f32.mrf.mxu0
      %v2351 = vadd.f32 0.0, %v2350
      %v2352 = vpop.f32.mrf.mxu0
      %v2353 = vpop.f32.mrf.mxu0
      %v2354 = vadd.f32 0.0, %v2353
      %v2355 = vpop.f32.mrf.mxu0
      %2356 = vmatprep.mubr.bf16.mxu0 0
      %2357 = vmatmul.mubr.bf16.gmra.mxu0 %v1649
      %v2358 = vpop.f32.mrf.mxu0
      %v2359 = vadd.f32 0.0, %v2358
      %v2360 = vpop.f32.mrf.mxu0
      %v2361 = vpop.f32.mrf.mxu0
      %v2362 = vadd.f32 0.0, %v2361
      %v2363 = vpop.f32.mrf.mxu0
      %2364 = vmatprep.mubr.bf16.mxu0 0
      %2365 = vmatmul.mubr.bf16.gmra.mxu0 %v1652
      %v2366 = vpop.f32.mrf.mxu0
      %v2367 = vadd.f32 0.0, %v2366
      %v2368 = vpop.f32.mrf.mxu0
      %v2369 = vpop.f32.mrf.mxu0
      %v2370 = vadd.f32 0.0, %v2369
      %v2371 = vpop.f32.mrf.mxu0
      %2372 = vmatprep.mubr.bf16.mxu0 0
      %2373 = vmatmul.mubr.bf16.gmra.mxu0 %v1655
      %v2374 = vpop.f32.mrf.mxu0
      %v2375 = vadd.f32 0.0, %v2374
      %v2376 = vpop.f32.mrf.mxu0
      %v2377 = vpop.f32.mrf.mxu0
      %v2378 = vadd.f32 0.0, %v2377
      %v2379 = vpop.f32.mrf.mxu0
      %2380 = vmatprep.mubr.bf16.mxu0 0
      %2381 = vmatmul.mubr.bf16.gmra.mxu0 %v1658
      %v2382 = vpop.f32.mrf.mxu0
      %v2383 = vadd.f32 0.0, %v2382
      %v2384 = vpop.f32.mrf.mxu0
      %v2385 = vpop.f32.mrf.mxu0
      %v2386 = vadd.f32 0.0, %v2385
      %v2387 = vpop.f32.mrf.mxu0
      %2388 = vmatprep.mubr.bf16.mxu0 0
      %2389 = vmatmul.mubr.bf16.gmra.mxu0 %v1661
      %v2390 = vpop.f32.mrf.mxu0
      %v2391 = vadd.f32 0.0, %v2390
      %v2392 = vpop.f32.mrf.mxu0
      %v2393 = vpop.f32.mrf.mxu0
      %v2394 = vadd.f32 0.0, %v2393
      %v2395 = vpop.f32.mrf.mxu0
      %2396 = vmatprep.mubr.bf16.mxu0 0
      %2397 = vmatmul.mubr.bf16.gmra.mxu0 %v1664
      %v2398 = vpop.f32.mrf.mxu0
      %v2399 = vadd.f32 0.0, %v2398
      %v2400 = vpop.f32.mrf.mxu0
      %v2401 = vpop.f32.mrf.mxu0
      %v2402 = vadd.f32 0.0, %v2401
      %v2403 = vpop.f32.mrf.mxu0
      %2404 = vmatprep.mubr.bf16.mxu0 0
      %2405 = vmatmul.mubr.bf16.gmra.mxu0 %v1667
      %v2406 = vpop.f32.mrf.mxu0
      %v2407 = vadd.f32 0.0, %v2406
      %v2408 = vpop.f32.mrf.mxu0
      %v2409 = vpop.f32.mrf.mxu0
      %v2410 = vadd.f32 0.0, %v2409
      %v2411 = vpop.f32.mrf.mxu0
      %2412 = vmatprep.mubr.bf16.mxu0 0
      %2413 = vmatmul.mubr.bf16.gmra.mxu0 %v1670
      %v2414 = vpop.f32.mrf.mxu0
      %v2415 = vadd.f32 0.0, %v2414
      %v2416 = vpop.f32.mrf.mxu0
      %v2417 = vpop.f32.mrf.mxu0
      %v2418 = vadd.f32 0.0, %v2417
      %v2419 = vpop.f32.mrf.mxu0
      %2420 = vmatprep.mubr.bf16.mxu0 0
      %2421 = vmatmul.mubr.bf16.gmra.mxu0 %v1673
      %v2422 = vpop.f32.mrf.mxu0
      %v2423 = vadd.f32 0.0, %v2422
      %v2424 = vpop.f32.mrf.mxu0
      %v2425 = vpop.f32.mrf.mxu0
      %v2426 = vadd.f32 0.0, %v2425
      %v2427 = vpop.f32.mrf.mxu0
      %2428 = vmatprep.mubr.bf16.mxu0 0
      %2429 = vmatmul.mubr.bf16.gmra.mxu0 %v1676
      %v2430 = vpop.f32.mrf.mxu0
      %v2431 = vadd.f32 0.0, %v2430
      %v2432 = vpop.f32.mrf.mxu0
      %v2433 = vpop.f32.mrf.mxu0
      %v2434 = vadd.f32 0.0, %v2433
      %v2435 = vpop.f32.mrf.mxu0
      %2436 = vmatprep.mubr.bf16.mxu0 0
      %2437 = vmatmul.mubr.bf16.gmra.mxu0 %v1679
      %v2438 = vpop.f32.mrf.mxu0
      %v2439 = vadd.f32 0.0, %v2438
      %v2440 = vpop.f32.mrf.mxu0
      %v2441 = vpop.f32.mrf.mxu0
      %v2442 = vadd.f32 0.0, %v2441
      %v2443 = vpop.f32.mrf.mxu0
      %2444 = vmatprep.mubr.bf16.mxu0 0
      %2445 = vmatmul.mubr.bf16.gmra.mxu0 %v1682
      %v2446 = vpop.f32.mrf.mxu0
      %v2447 = vadd.f32 0.0, %v2446
      %v2448 = vpop.f32.mrf.mxu0
      %v2449 = vpop.f32.mrf.mxu0
      %v2450 = vadd.f32 0.0, %v2449
      %v2451 = vpop.f32.mrf.mxu0
      %2452 = vmatprep.mubr.bf16.mxu0 0
      %2453 = vmatmul.mubr.bf16.gmra.mxu0 %v1685
      %v2454 = vpop.f32.mrf.mxu0
      %v2455 = vadd.f32 0.0, %v2454
      %v2456 = vpop.f32.mrf.mxu0
      %v2457 = vpop.f32.mrf.mxu0
      %v2458 = vadd.f32 0.0, %v2457
      %v2459 = vpop.f32.mrf.mxu0
      %2460 = vmatprep.mubr.bf16.mxu0 0
      %2461 = vmatmul.mubr.bf16.gmra.mxu0 %v1688
      %v2462 = vpop.f32.mrf.mxu0
      %v2463 = vadd.f32 0.0, %v2462
      %v2464 = vpop.f32.mrf.mxu0
      %v2465 = vpop.f32.mrf.mxu0
      %v2466 = vadd.f32 0.0, %v2465
      %v2467 = vpop.f32.mrf.mxu0
      %2468 = vmatprep.mubr.bf16.mxu0 0
      %2469 = vmatmul.mubr.bf16.gmra.mxu0 %v2311
      %v2470 = vpop.f32.mrf.mxu0
      %v2471 = vadd.f32 0.0, %v2470
      %v2472 = vpop.f32.mrf.mxu0
      %v2473 = vpop.f32.mrf.mxu0
      %v2474 = vadd.f32 0.0, %v2473
      %v2475 = vpop.f32.mrf.mxu0
      %2476 = vdwg.mxu0
      %v2477 = vadd.f32 %v2268, %v2351
      %v2478 = vadd.f32 %v2269, %v2354
      %v2479 = vadd.f32 %v2270, %v2359
      %v2480 = vadd.f32 %v2271, %v2362
      %v2481 = vadd.f32 %v2272, %v2367
      %v2482 = vadd.f32 %v2273, %v2370
      %v2483 = vadd.f32 %v2274, %v2375
      %v2484 = vadd.f32 %v2275, %v2378
      %v2485 = vadd.f32 %v2276, %v2383
      %v2486 = vadd.f32 %v2277, %v2386
      %v2487 = vadd.f32 %v2278, %v2391
      %v2488 = vadd.f32 %v2279, %v2394
      %v2489 = vadd.f32 %v2280, %v2399
      %v2490 = vadd.f32 %v2281, %v2402
      %v2491 = vadd.f32 %v2282, %v2407
      %v2492 = vadd.f32 %v2283, %v2410
      %v2493 = vadd.f32 %v2284, %v2415
      %v2494 = vadd.f32 %v2285, %v2418
      %v2495 = vadd.f32 %v2286, %v2423
      %v2496 = vadd.f32 %v2287, %v2426
      %v2497 = vadd.f32 %v2288, %v2431
      %v2498 = vadd.f32 %v2289, %v2434
      %v2499 = vadd.f32 %v2290, %v2439
      %v2500 = vadd.f32 %v2291, %v2442
      %v2501 = vadd.f32 %v2292, %v2447
      %v2502 = vadd.f32 %v2293, %v2450
      %v2503 = vadd.f32 %v2294, %v2455
      %v2504 = vadd.f32 %v2295, %v2458
      %v2505 = vadd.f32 %v2296, %v2463
      %v2506 = vadd.f32 %v2297, %v2466
      %v2507 = vadd.f32 %v2298, %v2471
      %v2508 = vadd.f32 %v2299, %v2474
      %v2509 = vpack.c.bf16 %v887, %v886
      %s2510 = scalar_lea.vmem %s2, 12
      %v2511 = vld [vmem:[%s2510] sm:$0x3]
      %v2513 = vsel %vm1085, %v2509, 0
      %v2516 = vsel %vm1134, %v2511, 0
      %2518 = vmatprep.subr.bf16.mxu0 0
      %2519 = vmatpush1.bf16.msra.mxu0 0
      %2520 = vmatprep.subr.bf16.mxu0 0
      %2521 = vmatpush1.bf16.msra.mxu0 0
      %2522 = vmatprep.subr.bf16.mxu0 0
      %2523 = vmatpush1.bf16.msra.mxu0 0
      %2524 = vmatprep.subr.bf16.mxu0 0
      %2525 = vmatpush1.bf16.msra.mxu0 0
      %2526 = vmatprep.subr.bf16.mxu0 0
      %2527 = vmatpush1.bf16.msra.mxu0 0
      %2528 = vmatprep.subr.bf16.mxu0 0
      %2529 = vmatpush1.bf16.msra.mxu0 0
      %2530 = vmatprep.subr.bf16.mxu0 0
      %2531 = vmatpush1.bf16.msra.mxu0 0
      %2532 = vmatprep.subr.bf16.mxu0 0
      %2533 = vmatpush1.bf16.msra.mxu0 %v2516
      %2534 = vmatprep.subr.bf16.mxu0 0
      %2535 = vmatpush2.bf16.msra.mxu0 0
      %2536 = vmatprep.subr.bf16.mxu0 0
      %2537 = vmatpush2.bf16.msra.mxu0 0
      %2538 = vmatprep.subr.bf16.mxu0 0
      %2539 = vmatpush2.bf16.msra.mxu0 0
      %2540 = vmatprep.subr.bf16.mxu0 0
      %2541 = vmatpush2.bf16.msra.mxu0 0
      %2542 = vmatprep.subr.bf16.mxu0 0
      %2543 = vmatpush2.bf16.msra.mxu0 0
      %2544 = vmatprep.subr.bf16.mxu0 0
      %2545 = vmatpush2.bf16.msra.mxu0 0
      %2546 = vmatprep.subr.bf16.mxu0 0
      %2547 = vmatpush2.bf16.msra.mxu0 0
      %2548 = vmatprep.subr.bf16.mxu0 0
      %2549 = vmatpush2.bf16.msra.mxu0 0
      %2550 = vmatprep.mubr.bf16.mxu0 0
      %2551 = vmatmul.mubr.bf16.gmra.mxu0 %v1306
      %v2552 = vpop.f32.mrf.mxu0
      %v2553 = vadd.f32 0.0, %v2552
      %v2554 = vpop.f32.mrf.mxu0
      %v2555 = vpop.f32.mrf.mxu0
      %v2556 = vadd.f32 0.0, %v2555
      %v2557 = vpop.f32.mrf.mxu0
      %2558 = vmatprep.mubr.bf16.mxu0 0
      %2559 = vmatmul.mubr.bf16.gmra.mxu0 %v1309
      %v2560 = vpop.f32.mrf.mxu0
      %v2561 = vadd.f32 0.0, %v2560
      %v2562 = vpop.f32.mrf.mxu0
      %v2563 = vpop.f32.mrf.mxu0
      %v2564 = vadd.f32 0.0, %v2563
      %v2565 = vpop.f32.mrf.mxu0
      %2566 = vmatprep.mubr.bf16.mxu0 0
      %2567 = vmatmul.mubr.bf16.gmra.mxu0 %v1312
      %v2568 = vpop.f32.mrf.mxu0
      %v2569 = vadd.f32 0.0, %v2568
      %v2570 = vpop.f32.mrf.mxu0
      %v2571 = vpop.f32.mrf.mxu0
      %v2572 = vadd.f32 0.0, %v2571
      %v2573 = vpop.f32.mrf.mxu0
      %2574 = vmatprep.mubr.bf16.mxu0 0
      %2575 = vmatmul.mubr.bf16.gmra.mxu0 %v1315
      %v2576 = vpop.f32.mrf.mxu0
      %v2577 = vadd.f32 0.0, %v2576
      %v2578 = vpop.f32.mrf.mxu0
      %v2579 = vpop.f32.mrf.mxu0
      %v2580 = vadd.f32 0.0, %v2579
      %v2581 = vpop.f32.mrf.mxu0
      %2582 = vmatprep.mubr.bf16.mxu0 0
      %2583 = vmatmul.mubr.bf16.gmra.mxu0 %v1318
      %v2584 = vpop.f32.mrf.mxu0
      %v2585 = vadd.f32 0.0, %v2584
      %v2586 = vpop.f32.mrf.mxu0
      %v2587 = vpop.f32.mrf.mxu0
      %v2588 = vadd.f32 0.0, %v2587
      %v2589 = vpop.f32.mrf.mxu0
      %2590 = vmatprep.mubr.bf16.mxu0 0
      %2591 = vmatmul.mubr.bf16.gmra.mxu0 %v1321
      %v2592 = vpop.f32.mrf.mxu0
      %v2593 = vadd.f32 0.0, %v2592
      %v2594 = vpop.f32.mrf.mxu0
      %v2595 = vpop.f32.mrf.mxu0
      %v2596 = vadd.f32 0.0, %v2595
      %v2597 = vpop.f32.mrf.mxu0
      %2598 = vmatprep.mubr.bf16.mxu0 0
      %2599 = vmatmul.mubr.bf16.gmra.mxu0 %v1324
      %v2600 = vpop.f32.mrf.mxu0
      %v2601 = vadd.f32 0.0, %v2600
      %v2602 = vpop.f32.mrf.mxu0
      %v2603 = vpop.f32.mrf.mxu0
      %v2604 = vadd.f32 0.0, %v2603
      %v2605 = vpop.f32.mrf.mxu0
      %2606 = vmatprep.mubr.bf16.mxu0 0
      %2607 = vmatmul.mubr.bf16.gmra.mxu0 %v1327
      %v2608 = vpop.f32.mrf.mxu0
      %v2609 = vadd.f32 0.0, %v2608
      %v2610 = vpop.f32.mrf.mxu0
      %v2611 = vpop.f32.mrf.mxu0
      %v2612 = vadd.f32 0.0, %v2611
      %v2613 = vpop.f32.mrf.mxu0
      %2614 = vmatprep.mubr.bf16.mxu0 0
      %2615 = vmatmul.mubr.bf16.gmra.mxu0 %v1330
      %v2616 = vpop.f32.mrf.mxu0
      %v2617 = vadd.f32 0.0, %v2616
      %v2618 = vpop.f32.mrf.mxu0
      %v2619 = vpop.f32.mrf.mxu0
      %v2620 = vadd.f32 0.0, %v2619
      %v2621 = vpop.f32.mrf.mxu0
      %2622 = vmatprep.mubr.bf16.mxu0 0
      %2623 = vmatmul.mubr.bf16.gmra.mxu0 %v1333
      %v2624 = vpop.f32.mrf.mxu0
      %v2625 = vadd.f32 0.0, %v2624
      %v2626 = vpop.f32.mrf.mxu0
      %v2627 = vpop.f32.mrf.mxu0
      %v2628 = vadd.f32 0.0, %v2627
      %v2629 = vpop.f32.mrf.mxu0
      %2630 = vmatprep.mubr.bf16.mxu0 0
      %2631 = vmatmul.mubr.bf16.gmra.mxu0 %v1336
      %v2632 = vpop.f32.mrf.mxu0
      %v2633 = vadd.f32 0.0, %v2632
      %v2634 = vpop.f32.mrf.mxu0
      %v2635 = vpop.f32.mrf.mxu0
      %v2636 = vadd.f32 0.0, %v2635
      %v2637 = vpop.f32.mrf.mxu0
      %2638 = vmatprep.mubr.bf16.mxu0 0
      %2639 = vmatmul.mubr.bf16.gmra.mxu0 %v1339
      %v2640 = vpop.f32.mrf.mxu0
      %v2641 = vadd.f32 0.0, %v2640
      %v2642 = vpop.f32.mrf.mxu0
      %v2643 = vpop.f32.mrf.mxu0
      %v2644 = vadd.f32 0.0, %v2643
      %v2645 = vpop.f32.mrf.mxu0
      %2646 = vmatprep.mubr.bf16.mxu0 0
      %2647 = vmatmul.mubr.bf16.gmra.mxu0 %v1342
      %v2648 = vpop.f32.mrf.mxu0
      %v2649 = vadd.f32 0.0, %v2648
      %v2650 = vpop.f32.mrf.mxu0
      %v2651 = vpop.f32.mrf.mxu0
      %v2652 = vadd.f32 0.0, %v2651
      %v2653 = vpop.f32.mrf.mxu0
      %2654 = vmatprep.mubr.bf16.mxu0 0
      %2655 = vmatmul.mubr.bf16.gmra.mxu0 %v1345
      %v2656 = vpop.f32.mrf.mxu0
      %v2657 = vadd.f32 0.0, %v2656
      %v2658 = vpop.f32.mrf.mxu0
      %v2659 = vpop.f32.mrf.mxu0
      %v2660 = vadd.f32 0.0, %v2659
      %v2661 = vpop.f32.mrf.mxu0
      %2662 = vmatprep.mubr.bf16.mxu0 0
      %2663 = vmatmul.mubr.bf16.gmra.mxu0 %v1890
      %v2664 = vpop.f32.mrf.mxu0
      %v2665 = vadd.f32 0.0, %v2664
      %v2666 = vpop.f32.mrf.mxu0
      %v2667 = vpop.f32.mrf.mxu0
      %v2668 = vadd.f32 0.0, %v2667
      %v2669 = vpop.f32.mrf.mxu0
      %2670 = vmatprep.mubr.bf16.mxu0 0
      %2671 = vmatmul.mubr.bf16.gmra.mxu0 %v2513
      %v2672 = vpop.f32.mrf.mxu0
      %v2673 = vadd.f32 0.0, %v2672
      %v2674 = vpop.f32.mrf.mxu0
      %v2675 = vpop.f32.mrf.mxu0
      %v2676 = vadd.f32 0.0, %v2675
      %v2677 = vpop.f32.mrf.mxu0
      %2678 = vdwg.mxu0
      %v2679 = vadd.f32 %v2477, %v2553
      %v2680 = vadd.f32 %v2478, %v2556
      %v2681 = vadd.f32 %v2479, %v2561
      %v2682 = vadd.f32 %v2480, %v2564
      %v2683 = vadd.f32 %v2481, %v2569
      %v2684 = vadd.f32 %v2482, %v2572
      %v2685 = vadd.f32 %v2483, %v2577
      %v2686 = vadd.f32 %v2484, %v2580
      %v2687 = vadd.f32 %v2485, %v2585
      %v2688 = vadd.f32 %v2486, %v2588
      %v2689 = vadd.f32 %v2487, %v2593
      %v2690 = vadd.f32 %v2488, %v2596
      %v2691 = vadd.f32 %v2489, %v2601
      %v2692 = vadd.f32 %v2490, %v2604
      %v2693 = vadd.f32 %v2491, %v2609
      %v2694 = vadd.f32 %v2492, %v2612
      %v2695 = vadd.f32 %v2493, %v2617
      %v2696 = vadd.f32 %v2494, %v2620
      %v2697 = vadd.f32 %v2495, %v2625
      %v2698 = vadd.f32 %v2496, %v2628
      %v2699 = vadd.f32 %v2497, %v2633
      %v2700 = vadd.f32 %v2498, %v2636
      %v2701 = vadd.f32 %v2499, %v2641
      %v2702 = vadd.f32 %v2500, %v2644
      %v2703 = vadd.f32 %v2501, %v2649
      %v2704 = vadd.f32 %v2502, %v2652
      %v2705 = vadd.f32 %v2503, %v2657
      %v2706 = vadd.f32 %v2504, %v2660
      %v2707 = vadd.f32 %v2505, %v2665
      %v2708 = vadd.f32 %v2506, %v2668
      %v2709 = vadd.f32 %v2507, %v2673
      %v2710 = vadd.f32 %v2508, %v2676
      %v2714 = vrot.slane %v886, 1
      %v2715 = vrot.slane %v887, 1
      %v2716 = vsel %vm954, %v2714, %v2715
      %v2717 = vrot.slane %v888, 1
      %v2718 = vsel %vm954, %v2715, %v2717
      %v2721 = vpack.c.bf16 %v2718, %v2716
      %s2722 = scalar_lea.vmem %s2, 14
      %v2723 = vld [vmem:[%s2722] sm:$0x3]
      %v2725 = vsel %vm1085, %v2721, 0
      %v2728 = vsel %vm1134, %v2723, 0
      %2730 = vmatprep.subr.bf16.mxu0 0
      %2731 = vmatpush1.bf16.msra.mxu0 0
      %2732 = vmatprep.subr.bf16.mxu0 0
      %2733 = vmatpush1.bf16.msra.mxu0 0
      %2734 = vmatprep.subr.bf16.mxu0 0
      %2735 = vmatpush1.bf16.msra.mxu0 0
      %2736 = vmatprep.subr.bf16.mxu0 0
      %2737 = vmatpush1.bf16.msra.mxu0 0
      %2738 = vmatprep.subr.bf16.mxu0 0
      %2739 = vmatpush1.bf16.msra.mxu0 0
      %2740 = vmatprep.subr.bf16.mxu0 0
      %2741 = vmatpush1.bf16.msra.mxu0 0
      %2742 = vmatprep.subr.bf16.mxu0 0
      %2743 = vmatpush1.bf16.msra.mxu0 0
      %2744 = vmatprep.subr.bf16.mxu0 0
      %2745 = vmatpush1.bf16.msra.mxu0 %v2728
      %2746 = vmatprep.subr.bf16.mxu0 0
      %2747 = vmatpush2.bf16.msra.mxu0 0
      %2748 = vmatprep.subr.bf16.mxu0 0
      %2749 = vmatpush2.bf16.msra.mxu0 0
      %2750 = vmatprep.subr.bf16.mxu0 0
      %2751 = vmatpush2.bf16.msra.mxu0 0
      %2752 = vmatprep.subr.bf16.mxu0 0
      %2753 = vmatpush2.bf16.msra.mxu0 0
      %2754 = vmatprep.subr.bf16.mxu0 0
      %2755 = vmatpush2.bf16.msra.mxu0 0
      %2756 = vmatprep.subr.bf16.mxu0 0
      %2757 = vmatpush2.bf16.msra.mxu0 0
      %2758 = vmatprep.subr.bf16.mxu0 0
      %2759 = vmatpush2.bf16.msra.mxu0 0
      %2760 = vmatprep.subr.bf16.mxu0 0
      %2761 = vmatpush2.bf16.msra.mxu0 0
      %2762 = vmatprep.mubr.bf16.mxu0 0
      %2763 = vmatmul.mubr.bf16.gmra.mxu0 %v1093
      %v2764 = vpop.f32.mrf.mxu0
      %v2765 = vadd.f32 0.0, %v2764
      %v2766 = vpop.f32.mrf.mxu0
      %v2767 = vpop.f32.mrf.mxu0
      %v2768 = vadd.f32 0.0, %v2767
      %v2769 = vpop.f32.mrf.mxu0
      %2770 = vmatprep.mubr.bf16.mxu0 0
      %2771 = vmatmul.mubr.bf16.gmra.mxu0 %v1096
      %v2772 = vpop.f32.mrf.mxu0
      %v2773 = vadd.f32 0.0, %v2772
      %v2774 = vpop.f32.mrf.mxu0
      %v2775 = vpop.f32.mrf.mxu0
      %v2776 = vadd.f32 0.0, %v2775
      %v2777 = vpop.f32.mrf.mxu0
      %2778 = vmatprep.mubr.bf16.mxu0 0
      %2779 = vmatmul.mubr.bf16.gmra.mxu0 %v1099
      %v2780 = vpop.f32.mrf.mxu0
      %v2781 = vadd.f32 0.0, %v2780
      %v2782 = vpop.f32.mrf.mxu0
      %v2783 = vpop.f32.mrf.mxu0
      %v2784 = vadd.f32 0.0, %v2783
      %v2785 = vpop.f32.mrf.mxu0
      %2786 = vmatprep.mubr.bf16.mxu0 0
      %2787 = vmatmul.mubr.bf16.gmra.mxu0 %v1102
      %v2788 = vpop.f32.mrf.mxu0
      %v2789 = vadd.f32 0.0, %v2788
      %v2790 = vpop.f32.mrf.mxu0
      %v2791 = vpop.f32.mrf.mxu0
      %v2792 = vadd.f32 0.0, %v2791
      %v2793 = vpop.f32.mrf.mxu0
      %2794 = vmatprep.mubr.bf16.mxu0 0
      %2795 = vmatmul.mubr.bf16.gmra.mxu0 %v1105
      %v2796 = vpop.f32.mrf.mxu0
      %v2797 = vadd.f32 0.0, %v2796
      %v2798 = vpop.f32.mrf.mxu0
      %v2799 = vpop.f32.mrf.mxu0
      %v2800 = vadd.f32 0.0, %v2799
      %v2801 = vpop.f32.mrf.mxu0
      %2802 = vmatprep.mubr.bf16.mxu0 0
      %2803 = vmatmul.mubr.bf16.gmra.mxu0 %v1108
      %v2804 = vpop.f32.mrf.mxu0
      %v2805 = vadd.f32 0.0, %v2804
      %v2806 = vpop.f32.mrf.mxu0
      %v2807 = vpop.f32.mrf.mxu0
      %v2808 = vadd.f32 0.0, %v2807
      %v2809 = vpop.f32.mrf.mxu0
      %2810 = vmatprep.mubr.bf16.mxu0 0
      %2811 = vmatmul.mubr.bf16.gmra.mxu0 %v1111
      %v2812 = vpop.f32.mrf.mxu0
      %v2813 = vadd.f32 0.0, %v2812
      %v2814 = vpop.f32.mrf.mxu0
      %v2815 = vpop.f32.mrf.mxu0
      %v2816 = vadd.f32 0.0, %v2815
      %v2817 = vpop.f32.mrf.mxu0
      %2818 = vmatprep.mubr.bf16.mxu0 0
      %2819 = vmatmul.mubr.bf16.gmra.mxu0 %v1114
      %v2820 = vpop.f32.mrf.mxu0
      %v2821 = vadd.f32 0.0, %v2820
      %v2822 = vpop.f32.mrf.mxu0
      %v2823 = vpop.f32.mrf.mxu0
      %v2824 = vadd.f32 0.0, %v2823
      %v2825 = vpop.f32.mrf.mxu0
      %2826 = vmatprep.mubr.bf16.mxu0 0
      %2827 = vmatmul.mubr.bf16.gmra.mxu0 %v1117
      %v2828 = vpop.f32.mrf.mxu0
      %v2829 = vadd.f32 0.0, %v2828
      %v2830 = vpop.f32.mrf.mxu0
      %v2831 = vpop.f32.mrf.mxu0
      %v2832 = vadd.f32 0.0, %v2831
      %v2833 = vpop.f32.mrf.mxu0
      %2834 = vmatprep.mubr.bf16.mxu0 0
      %2835 = vmatmul.mubr.bf16.gmra.mxu0 %v1120
      %v2836 = vpop.f32.mrf.mxu0
      %v2837 = vadd.f32 0.0, %v2836
      %v2838 = vpop.f32.mrf.mxu0
      %v2839 = vpop.f32.mrf.mxu0
      %v2840 = vadd.f32 0.0, %v2839
      %v2841 = vpop.f32.mrf.mxu0
      %2842 = vmatprep.mubr.bf16.mxu0 0
      %2843 = vmatmul.mubr.bf16.gmra.mxu0 %v1123
      %v2844 = vpop.f32.mrf.mxu0
      %v2845 = vadd.f32 0.0, %v2844
      %v2846 = vpop.f32.mrf.mxu0
      %v2847 = vpop.f32.mrf.mxu0
      %v2848 = vadd.f32 0.0, %v2847
      %v2849 = vpop.f32.mrf.mxu0
      %2850 = vmatprep.mubr.bf16.mxu0 0
      %2851 = vmatmul.mubr.bf16.gmra.mxu0 %v1126
      %v2852 = vpop.f32.mrf.mxu0
      %v2853 = vadd.f32 0.0, %v2852
      %v2854 = vpop.f32.mrf.mxu0
      %v2855 = vpop.f32.mrf.mxu0
      %v2856 = vadd.f32 0.0, %v2855
      %v2857 = vpop.f32.mrf.mxu0
      %2858 = vmatprep.mubr.bf16.mxu0 0
      %2859 = vmatmul.mubr.bf16.gmra.mxu0 %v1129
      %v2860 = vpop.f32.mrf.mxu0
      %v2861 = vadd.f32 0.0, %v2860
      %v2862 = vpop.f32.mrf.mxu0
      %v2863 = vpop.f32.mrf.mxu0
      %v2864 = vadd.f32 0.0, %v2863
      %v2865 = vpop.f32.mrf.mxu0
      %2866 = vmatprep.mubr.bf16.mxu0 0
      %2867 = vmatmul.mubr.bf16.gmra.mxu0 %v1132
      %v2868 = vpop.f32.mrf.mxu0
      %v2869 = vadd.f32 0.0, %v2868
      %v2870 = vpop.f32.mrf.mxu0
      %v2871 = vpop.f32.mrf.mxu0
      %v2872 = vadd.f32 0.0, %v2871
      %v2873 = vpop.f32.mrf.mxu0
      %2874 = vmatprep.mubr.bf16.mxu0 0
      %2875 = vmatmul.mubr.bf16.gmra.mxu0 %v2102
      %v2876 = vpop.f32.mrf.mxu0
      %v2877 = vadd.f32 0.0, %v2876
      %v2878 = vpop.f32.mrf.mxu0
      %v2879 = vpop.f32.mrf.mxu0
      %v2880 = vadd.f32 0.0, %v2879
      %v2881 = vpop.f32.mrf.mxu0
      %2882 = vmatprep.mubr.bf16.mxu0 0
      %2883 = vmatmul.mubr.bf16.gmra.mxu0 %v2725
      %v2884 = vpop.f32.mrf.mxu0
      %v2885 = vadd.f32 0.0, %v2884
      %v2886 = vpop.f32.mrf.mxu0
      %v2887 = vpop.f32.mrf.mxu0
      %v2888 = vadd.f32 0.0, %v2887
      %v2889 = vpop.f32.mrf.mxu0
      %2890 = vdwg.mxu0
      %v2891 = vadd.f32 %v2679, %v2765
      %v2892 = vadd.f32 %v2680, %v2768
      %v2893 = vadd.f32 %v2681, %v2773
      %v2894 = vadd.f32 %v2682, %v2776
      %v2895 = vadd.f32 %v2683, %v2781
      %v2896 = vadd.f32 %v2684, %v2784
      %v2897 = vadd.f32 %v2685, %v2789
      %v2898 = vadd.f32 %v2686, %v2792
      %v2899 = vadd.f32 %v2687, %v2797
      %v2900 = vadd.f32 %v2688, %v2800
      %v2901 = vadd.f32 %v2689, %v2805
      %v2902 = vadd.f32 %v2690, %v2808
      %v2903 = vadd.f32 %v2691, %v2813
      %v2904 = vadd.f32 %v2692, %v2816
      %v2905 = vadd.f32 %v2693, %v2821
      %v2906 = vadd.f32 %v2694, %v2824
      %v2907 = vadd.f32 %v2695, %v2829
      %v2908 = vadd.f32 %v2696, %v2832
      %v2909 = vadd.f32 %v2697, %v2837
      %v2910 = vadd.f32 %v2698, %v2840
      %v2911 = vadd.f32 %v2699, %v2845
      %v2912 = vadd.f32 %v2700, %v2848
      %v2913 = vadd.f32 %v2701, %v2853
      %v2914 = vadd.f32 %v2702, %v2856
      %v2915 = vadd.f32 %v2703, %v2861
      %v2916 = vadd.f32 %v2704, %v2864
      %v2917 = vadd.f32 %v2705, %v2869
      %v2918 = vadd.f32 %v2706, %v2872
      %v2919 = vadd.f32 %v2707, %v2877
      %v2920 = vadd.f32 %v2708, %v2880
      %v2921 = vadd.f32 %v2709, %v2885
      %v2922 = vadd.f32 %v2710, %v2888
      %v2923 = vrot.slane %v886, 2
      %v2924 = vrot.slane %v887, 2
      %v2925 = vsel %vm1511, %v2923, %v2924
      %v2926 = vrot.slane %v888, 2
      %v2927 = vsel %vm1511, %v2924, %v2926
      %v2930 = vpack.c.bf16 %v2927, %v2925
      %s2931 = scalar_lea.vmem %s2, 16
      %v2932 = vld [vmem:[%s2931] sm:$0x3]
      %v2934 = vsel %vm1085, %v2930, 0
      %v2937 = vsel %vm1134, %v2932, 0
      %2939 = vmatprep.subr.bf16.mxu0 0
      %2940 = vmatpush1.bf16.msra.mxu0 0
      %2941 = vmatprep.subr.bf16.mxu0 0
      %2942 = vmatpush1.bf16.msra.mxu0 0
      %2943 = vmatprep.subr.bf16.mxu0 0
      %2944 = vmatpush1.bf16.msra.mxu0 0
      %2945 = vmatprep.subr.bf16.mxu0 0
      %2946 = vmatpush1.bf16.msra.mxu0 0
      %2947 = vmatprep.subr.bf16.mxu0 0
      %2948 = vmatpush1.bf16.msra.mxu0 0
      %2949 = vmatprep.subr.bf16.mxu0 0
      %2950 = vmatpush1.bf16.msra.mxu0 0
      %2951 = vmatprep.subr.bf16.mxu0 0
      %2952 = vmatpush1.bf16.msra.mxu0 0
      %2953 = vmatprep.subr.bf16.mxu0 0
      %2954 = vmatpush1.bf16.msra.mxu0 %v2937
      %2955 = vmatprep.subr.bf16.mxu0 0
      %2956 = vmatpush2.bf16.msra.mxu0 0
      %2957 = vmatprep.subr.bf16.mxu0 0
      %2958 = vmatpush2.bf16.msra.mxu0 0
      %2959 = vmatprep.subr.bf16.mxu0 0
      %2960 = vmatpush2.bf16.msra.mxu0 0
      %2961 = vmatprep.subr.bf16.mxu0 0
      %2962 = vmatpush2.bf16.msra.mxu0 0
      %2963 = vmatprep.subr.bf16.mxu0 0
      %2964 = vmatpush2.bf16.msra.mxu0 0
      %2965 = vmatprep.subr.bf16.mxu0 0
      %2966 = vmatpush2.bf16.msra.mxu0 0
      %2967 = vmatprep.subr.bf16.mxu0 0
      %2968 = vmatpush2.bf16.msra.mxu0 0
      %2969 = vmatprep.subr.bf16.mxu0 0
      %2970 = vmatpush2.bf16.msra.mxu0 0
      %2971 = vmatprep.mubr.bf16.mxu0 0
      %2972 = vmatmul.mubr.bf16.gmra.mxu0 %v1649
      %v2973 = vpop.f32.mrf.mxu0
      %v2974 = vadd.f32 0.0, %v2973
      %v2975 = vpop.f32.mrf.mxu0
      %v2976 = vpop.f32.mrf.mxu0
      %v2977 = vadd.f32 0.0, %v2976
      %v2978 = vpop.f32.mrf.mxu0
      %2979 = vmatprep.mubr.bf16.mxu0 0
      %2980 = vmatmul.mubr.bf16.gmra.mxu0 %v1652
      %v2981 = vpop.f32.mrf.mxu0
      %v2982 = vadd.f32 0.0, %v2981
      %v2983 = vpop.f32.mrf.mxu0
      %v2984 = vpop.f32.mrf.mxu0
      %v2985 = vadd.f32 0.0, %v2984
      %v2986 = vpop.f32.mrf.mxu0
      %2987 = vmatprep.mubr.bf16.mxu0 0
      %2988 = vmatmul.mubr.bf16.gmra.mxu0 %v1655
      %v2989 = vpop.f32.mrf.mxu0
      %v2990 = vadd.f32 0.0, %v2989
      %v2991 = vpop.f32.mrf.mxu0
      %v2992 = vpop.f32.mrf.mxu0
      %v2993 = vadd.f32 0.0, %v2992
      %v2994 = vpop.f32.mrf.mxu0
      %2995 = vmatprep.mubr.bf16.mxu0 0
      %2996 = vmatmul.mubr.bf16.gmra.mxu0 %v1658
      %v2997 = vpop.f32.mrf.mxu0
      %v2998 = vadd.f32 0.0, %v2997
      %v2999 = vpop.f32.mrf.mxu0
      %v3000 = vpop.f32.mrf.mxu0
      %v3001 = vadd.f32 0.0, %v3000
      %v3002 = vpop.f32.mrf.mxu0
      %3003 = vmatprep.mubr.bf16.mxu0 0
      %3004 = vmatmul.mubr.bf16.gmra.mxu0 %v1661
      %v3005 = vpop.f32.mrf.mxu0
      %v3006 = vadd.f32 0.0, %v3005
      %v3007 = vpop.f32.mrf.mxu0
      %v3008 = vpop.f32.mrf.mxu0
      %v3009 = vadd.f32 0.0, %v3008
      %v3010 = vpop.f32.mrf.mxu0
      %3011 = vmatprep.mubr.bf16.mxu0 0
      %3012 = vmatmul.mubr.bf16.gmra.mxu0 %v1664
      %v3013 = vpop.f32.mrf.mxu0
      %v3014 = vadd.f32 0.0, %v3013
      %v3015 = vpop.f32.mrf.mxu0
      %v3016 = vpop.f32.mrf.mxu0
      %v3017 = vadd.f32 0.0, %v3016
      %v3018 = vpop.f32.mrf.mxu0
      %3019 = vmatprep.mubr.bf16.mxu0 0
      %3020 = vmatmul.mubr.bf16.gmra.mxu0 %v1667
      %v3021 = vpop.f32.mrf.mxu0
      %v3022 = vadd.f32 0.0, %v3021
      %v3023 = vpop.f32.mrf.mxu0
      %v3024 = vpop.f32.mrf.mxu0
      %v3025 = vadd.f32 0.0, %v3024
      %v3026 = vpop.f32.mrf.mxu0
      %3027 = vmatprep.mubr.bf16.mxu0 0
      %3028 = vmatmul.mubr.bf16.gmra.mxu0 %v1670
      %v3029 = vpop.f32.mrf.mxu0
      %v3030 = vadd.f32 0.0, %v3029
      %v3031 = vpop.f32.mrf.mxu0
      %v3032 = vpop.f32.mrf.mxu0
      %v3033 = vadd.f32 0.0, %v3032
      %v3034 = vpop.f32.mrf.mxu0
      %3035 = vmatprep.mubr.bf16.mxu0 0
      %3036 = vmatmul.mubr.bf16.gmra.mxu0 %v1673
      %v3037 = vpop.f32.mrf.mxu0
      %v3038 = vadd.f32 0.0, %v3037
      %v3039 = vpop.f32.mrf.mxu0
      %v3040 = vpop.f32.mrf.mxu0
      %v3041 = vadd.f32 0.0, %v3040
      %v3042 = vpop.f32.mrf.mxu0
      %3043 = vmatprep.mubr.bf16.mxu0 0
      %3044 = vmatmul.mubr.bf16.gmra.mxu0 %v1676
      %v3045 = vpop.f32.mrf.mxu0
      %v3046 = vadd.f32 0.0, %v3045
      %v3047 = vpop.f32.mrf.mxu0
      %v3048 = vpop.f32.mrf.mxu0
      %v3049 = vadd.f32 0.0, %v3048
      %v3050 = vpop.f32.mrf.mxu0
      %3051 = vmatprep.mubr.bf16.mxu0 0
      %3052 = vmatmul.mubr.bf16.gmra.mxu0 %v1679
      %v3053 = vpop.f32.mrf.mxu0
      %v3054 = vadd.f32 0.0, %v3053
      %v3055 = vpop.f32.mrf.mxu0
      %v3056 = vpop.f32.mrf.mxu0
      %v3057 = vadd.f32 0.0, %v3056
      %v3058 = vpop.f32.mrf.mxu0
      %3059 = vmatprep.mubr.bf16.mxu0 0
      %3060 = vmatmul.mubr.bf16.gmra.mxu0 %v1682
      %v3061 = vpop.f32.mrf.mxu0
      %v3062 = vadd.f32 0.0, %v3061
      %v3063 = vpop.f32.mrf.mxu0
      %v3064 = vpop.f32.mrf.mxu0
      %v3065 = vadd.f32 0.0, %v3064
      %v3066 = vpop.f32.mrf.mxu0
      %3067 = vmatprep.mubr.bf16.mxu0 0
      %3068 = vmatmul.mubr.bf16.gmra.mxu0 %v1685
      %v3069 = vpop.f32.mrf.mxu0
      %v3070 = vadd.f32 0.0, %v3069
      %v3071 = vpop.f32.mrf.mxu0
      %v3072 = vpop.f32.mrf.mxu0
      %v3073 = vadd.f32 0.0, %v3072
      %v3074 = vpop.f32.mrf.mxu0
      %3075 = vmatprep.mubr.bf16.mxu0 0
      %3076 = vmatmul.mubr.bf16.gmra.mxu0 %v1688
      %v3077 = vpop.f32.mrf.mxu0
      %v3078 = vadd.f32 0.0, %v3077
      %v3079 = vpop.f32.mrf.mxu0
      %v3080 = vpop.f32.mrf.mxu0
      %v3081 = vadd.f32 0.0, %v3080
      %v3082 = vpop.f32.mrf.mxu0
      %3083 = vmatprep.mubr.bf16.mxu0 0
      %3084 = vmatmul.mubr.bf16.gmra.mxu0 %v2311
      %v3085 = vpop.f32.mrf.mxu0
      %v3086 = vadd.f32 0.0, %v3085
      %v3087 = vpop.f32.mrf.mxu0
      %v3088 = vpop.f32.mrf.mxu0
      %v3089 = vadd.f32 0.0, %v3088
      %v3090 = vpop.f32.mrf.mxu0
      %3091 = vmatprep.mubr.bf16.mxu0 0
      %3092 = vmatmul.mubr.bf16.gmra.mxu0 %v2934
      %v3093 = vpop.f32.mrf.mxu0
      %v3094 = vadd.f32 0.0, %v3093
      %v3095 = vpop.f32.mrf.mxu0
      %v3096 = vpop.f32.mrf.mxu0
      %v3097 = vadd.f32 0.0, %v3096
      %v3098 = vpop.f32.mrf.mxu0
      %3099 = vdwg.mxu0
      %v3100 = vadd.f32 %v2891, %v2974
      %v3101 = vadd.f32 %v2892, %v2977
      %v3102 = vadd.f32 %v2893, %v2982
      %v3103 = vadd.f32 %v2894, %v2985
      %v3104 = vadd.f32 %v2895, %v2990
      %v3105 = vadd.f32 %v2896, %v2993
      %v3106 = vadd.f32 %v2897, %v2998
      %v3107 = vadd.f32 %v2898, %v3001
      %v3108 = vadd.f32 %v2899, %v3006
      %v3109 = vadd.f32 %v2900, %v3009
      %v3110 = vadd.f32 %v2901, %v3014
      %v3111 = vadd.f32 %v2902, %v3017
      %v3112 = vadd.f32 %v2903, %v3022
      %v3113 = vadd.f32 %v2904, %v3025
      %v3114 = vadd.f32 %v2905, %v3030
      %v3115 = vadd.f32 %v2906, %v3033
      %v3116 = vadd.f32 %v2907, %v3038
      %v3117 = vadd.f32 %v2908, %v3041
      %v3118 = vadd.f32 %v2909, %v3046
      %v3119 = vadd.f32 %v2910, %v3049
      %v3120 = vadd.f32 %v2911, %v3054
      %v3121 = vadd.f32 %v2912, %v3057
      %v3122 = vadd.f32 %v2913, %v3062
      %v3123 = vadd.f32 %v2914, %v3065
      %v3124 = vadd.f32 %v2915, %v3070
      %v3125 = vadd.f32 %v2916, %v3073
      %v3126 = vadd.f32 %v2917, %v3078
      %v3127 = vadd.f32 %v2918, %v3081
      %v3128 = vadd.f32 %v2919, %v3086
      %v3129 = vadd.f32 %v2920, %v3089
      %v3130 = vadd.f32 %v2921, %v3094
      %v3131 = vadd.f32 %v2922, %v3097
      %3132 = vst.msk [vmem:[%s238] sm:$0xff] %vm1085, %v3100
      %3133 = vst.msk [vmem:[%s238 + $0x8] sm:$0xff] %vm1085, %v3101
      %3134 = vst.msk [vmem:[%s238 + $0x10] sm:$0xff] %vm1085, %v3102
      %3135 = vst.msk [vmem:[%s238 + $0x18] sm:$0xff] %vm1085, %v3103
      %3136 = vst.msk [vmem:[%s238 + $0x20] sm:$0xff] %vm1085, %v3104
      %3137 = vst.msk [vmem:[%s238 + $0x28] sm:$0xff] %vm1085, %v3105
      %3138 = vst.msk [vmem:[%s238 + $0x30] sm:$0xff] %vm1085, %v3106
      %3139 = vst.msk [vmem:[%s238 + $0x38] sm:$0xff] %vm1085, %v3107
      %3140 = vst.msk [vmem:[%s238 + $0x40] sm:$0xff] %vm1085, %v3108
      %3141 = vst.msk [vmem:[%s238 + $0x48] sm:$0xff] %vm1085, %v3109
      %3142 = vst.msk [vmem:[%s238 + $0x50] sm:$0xff] %vm1085, %v3110
      %3143 = vst.msk [vmem:[%s238 + $0x58] sm:$0xff] %vm1085, %v3111
      %3144 = vst.msk [vmem:[%s238 + $0x60] sm:$0xff] %vm1085, %v3112
      %3145 = vst.msk [vmem:[%s238 + $0x68] sm:$0xff] %vm1085, %v3113
      %3146 = vst.msk [vmem:[%s238 + $0x70] sm:$0xff] %vm1085, %v3114
      %3147 = vst.msk [vmem:[%s238 + $0x78] sm:$0xff] %vm1085, %v3115
      %3148 = vst.msk [vmem:[%s238 + $0x80] sm:$0xff] %vm1085, %v3116
      %3149 = vst.msk [vmem:[%s238 + $0x88] sm:$0xff] %vm1085, %v3117
      %3150 = vst.msk [vmem:[%s238 + $0x90] sm:$0xff] %vm1085, %v3118
      %3151 = vst.msk [vmem:[%s238 + $0x98] sm:$0xff] %vm1085, %v3119
      %3152 = vst.msk [vmem:[%s238 + $0xa0] sm:$0xff] %vm1085, %v3120
      %3153 = vst.msk [vmem:[%s238 + $0xa8] sm:$0xff] %vm1085, %v3121
      %3154 = vst.msk [vmem:[%s238 + $0xb0] sm:$0xff] %vm1085, %v3122
      %3155 = vst.msk [vmem:[%s238 + $0xb8] sm:$0xff] %vm1085, %v3123
      %3156 = vst.msk [vmem:[%s238 + $0xc0] sm:$0xff] %vm1085, %v3124
      %3157 = vst.msk [vmem:[%s238 + $0xc8] sm:$0xff] %vm1085, %v3125
      %3158 = vst.msk [vmem:[%s238 + $0xd0] sm:$0xff] %vm1085, %v3126
      %3159 = vst.msk [vmem:[%s238 + $0xd8] sm:$0xff] %vm1085, %v3127
      %3160 = vst.msk [vmem:[%s238 + $0xe0] sm:$0xff] %vm1085, %v3128
      %3161 = vst.msk [vmem:[%s238 + $0xe8] sm:$0xff] %vm1085, %v3129
      %3162 = vst.msk [vmem:[%s238 + $0xf0] sm:$0xff] %vm1085, %v3130
      %3163 = vst.msk [vmem:[%s238 + $0xf8] sm:$0xff] %vm1085, %v3131
      %v3164 = vsel %vm1085, %v3100, 0.0
      %v3165 = vsel %vm1085, %v3101, 0.0
      %v3166 = vadd.f32 %v3164, %v3165
      %v3167 = vsel %vm1085, %v3102, 0.0
      %v3168 = vadd.f32 %v3166, %v3167
      %v3169 = vsel %vm1085, %v3103, 0.0
      %v3170 = vadd.f32 %v3168, %v3169
      %v3171 = vsel %vm1085, %v3104, 0.0
      %v3172 = vadd.f32 %v3170, %v3171
      %v3173 = vsel %vm1085, %v3105, 0.0
      %v3174 = vadd.f32 %v3172, %v3173
      %v3175 = vsel %vm1085, %v3106, 0.0
      %v3176 = vadd.f32 %v3174, %v3175
      %v3177 = vsel %vm1085, %v3107, 0.0
      %v3178 = vadd.f32 %v3176, %v3177
      %v3179 = vsel %vm1085, %v3108, 0.0
      %v3180 = vadd.f32 %v3178, %v3179
      %v3181 = vsel %vm1085, %v3109, 0.0
      %v3182 = vadd.f32 %v3180, %v3181
      %v3183 = vsel %vm1085, %v3110, 0.0
      %v3184 = vadd.f32 %v3182, %v3183
      %v3185 = vsel %vm1085, %v3111, 0.0
      %v3186 = vadd.f32 %v3184, %v3185
      %v3187 = vsel %vm1085, %v3112, 0.0
      %v3188 = vadd.f32 %v3186, %v3187
      %v3189 = vsel %vm1085, %v3113, 0.0
      %v3190 = vadd.f32 %v3188, %v3189
      %v3191 = vsel %vm1085, %v3114, 0.0
      %v3192 = vadd.f32 %v3190, %v3191
      %v3193 = vsel %vm1085, %v3115, 0.0
      %v3194 = vadd.f32 %v3192, %v3193
      %v3195 = vsel %vm1085, %v3116, 0.0
      %v3196 = vadd.f32 %v3194, %v3195
      %v3197 = vsel %vm1085, %v3117, 0.0
      %v3198 = vadd.f32 %v3196, %v3197
      %v3199 = vsel %vm1085, %v3118, 0.0
      %v3200 = vadd.f32 %v3198, %v3199
      %v3201 = vsel %vm1085, %v3119, 0.0
      %v3202 = vadd.f32 %v3200, %v3201
      %v3203 = vsel %vm1085, %v3120, 0.0
      %v3204 = vadd.f32 %v3202, %v3203
      %v3205 = vsel %vm1085, %v3121, 0.0
      %v3206 = vadd.f32 %v3204, %v3205
      %v3207 = vsel %vm1085, %v3122, 0.0
      %v3208 = vadd.f32 %v3206, %v3207
      %v3209 = vsel %vm1085, %v3123, 0.0
      %v3210 = vadd.f32 %v3208, %v3209
      %v3211 = vsel %vm1085, %v3124, 0.0
      %v3212 = vadd.f32 %v3210, %v3211
      %v3213 = vsel %vm1085, %v3125, 0.0
      %v3214 = vadd.f32 %v3212, %v3213
      %v3215 = vsel %vm1085, %v3126, 0.0
      %v3216 = vadd.f32 %v3214, %v3215
      %v3217 = vsel %vm1085, %v3127, 0.0
      %v3218 = vadd.f32 %v3216, %v3217
      %v3219 = vsel %vm1085, %v3128, 0.0
      %v3220 = vadd.f32 %v3218, %v3219
      %v3221 = vsel %vm1085, %v3129, 0.0
      %v3222 = vadd.f32 %v3220, %v3221
      %v3223 = vsel %vm1085, %v3130, 0.0
      %v3224 = vadd.f32 %v3222, %v3223
      %v3225 = vsel %vm1085, %v3131, 0.0
      %v3226 = vadd.f32 %v3224, %v3225
      %v3227 = vrot.slane %v3226, 4
      %v3228 = vadd.f32 %v3226, %v3227
      %v3229 = vrot.slane %v3228, 2
      %v3230 = vadd.f32 %v3228, %v3229
      %v3231 = vrot.slane %v3230, 1
      %v3232 = vadd.f32 %v3230, %v3231
      %v3233 = vmul.f32 %v3100, %v3100
      %v3234 = vmul.f32 %v3101, %v3101
      %v3235 = vmul.f32 %v3102, %v3102
      %v3236 = vmul.f32 %v3103, %v3103
      %v3237 = vmul.f32 %v3104, %v3104
      %v3238 = vmul.f32 %v3105, %v3105
      %v3239 = vmul.f32 %v3106, %v3106
      %v3240 = vmul.f32 %v3107, %v3107
      %v3241 = vmul.f32 %v3108, %v3108
      %v3242 = vmul.f32 %v3109, %v3109
      %v3243 = vmul.f32 %v3110, %v3110
      %v3244 = vmul.f32 %v3111, %v3111
      %v3245 = vmul.f32 %v3112, %v3112
      %v3246 = vmul.f32 %v3113, %v3113
      %v3247 = vmul.f32 %v3114, %v3114
      %v3248 = vmul.f32 %v3115, %v3115
      %v3249 = vmul.f32 %v3116, %v3116
      %v3250 = vmul.f32 %v3117, %v3117
      %v3251 = vmul.f32 %v3118, %v3118
      %v3252 = vmul.f32 %v3119, %v3119
      %v3253 = vmul.f32 %v3120, %v3120
      %v3254 = vmul.f32 %v3121, %v3121
      %v3255 = vmul.f32 %v3122, %v3122
      %v3256 = vmul.f32 %v3123, %v3123
      %v3257 = vmul.f32 %v3124, %v3124
      %v3258 = vmul.f32 %v3125, %v3125
      %v3259 = vmul.f32 %v3126, %v3126
      %v3260 = vmul.f32 %v3127, %v3127
      %v3261 = vmul.f32 %v3128, %v3128
      %v3262 = vmul.f32 %v3129, %v3129
      %v3263 = vmul.f32 %v3130, %v3130
      %v3264 = vmul.f32 %v3131, %v3131
      %v3265 = vsel %vm1085, %v3233, 0.0
      %v3266 = vsel %vm1085, %v3234, 0.0
      %v3267 = vadd.f32 %v3265, %v3266
      %v3268 = vsel %vm1085, %v3235, 0.0
      %v3269 = vadd.f32 %v3267, %v3268
      %v3270 = vsel %vm1085, %v3236, 0.0
      %v3271 = vadd.f32 %v3269, %v3270
      %v3272 = vsel %vm1085, %v3237, 0.0
      %v3273 = vadd.f32 %v3271, %v3272
      %v3274 = vsel %vm1085, %v3238, 0.0
      %v3275 = vadd.f32 %v3273, %v3274
      %v3276 = vsel %vm1085, %v3239, 0.0
      %v3277 = vadd.f32 %v3275, %v3276
      %v3278 = vsel %vm1085, %v3240, 0.0
      %v3279 = vadd.f32 %v3277, %v3278
      %v3280 = vsel %vm1085, %v3241, 0.0
      %v3281 = vadd.f32 %v3279, %v3280
      %v3282 = vsel %vm1085, %v3242, 0.0
      %v3283 = vadd.f32 %v3281, %v3282
      %v3284 = vsel %vm1085, %v3243, 0.0
      %v3285 = vadd.f32 %v3283, %v3284
      %v3286 = vsel %vm1085, %v3244, 0.0
      %v3287 = vadd.f32 %v3285, %v3286
      %v3288 = vsel %vm1085, %v3245, 0.0
      %v3289 = vadd.f32 %v3287, %v3288
      %v3290 = vsel %vm1085, %v3246, 0.0
      %v3291 = vadd.f32 %v3289, %v3290
      %v3292 = vsel %vm1085, %v3247, 0.0
      %v3293 = vadd.f32 %v3291, %v3292
      %v3294 = vsel %vm1085, %v3248, 0.0
      %v3295 = vadd.f32 %v3293, %v3294
      %v3296 = vsel %vm1085, %v3249, 0.0
      %v3297 = vadd.f32 %v3295, %v3296
      %v3298 = vsel %vm1085, %v3250, 0.0
      %v3299 = vadd.f32 %v3297, %v3298
      %v3300 = vsel %vm1085, %v3251, 0.0
      %v3301 = vadd.f32 %v3299, %v3300
      %v3302 = vsel %vm1085, %v3252, 0.0
      %v3303 = vadd.f32 %v3301, %v3302
      %v3304 = vsel %vm1085, %v3253, 0.0
      %v3305 = vadd.f32 %v3303, %v3304
      %v3306 = vsel %vm1085, %v3254, 0.0
      %v3307 = vadd.f32 %v3305, %v3306
      %v3308 = vsel %vm1085, %v3255, 0.0
      %v3309 = vadd.f32 %v3307, %v3308
      %v3310 = vsel %vm1085, %v3256, 0.0
      %v3311 = vadd.f32 %v3309, %v3310
      %v3312 = vsel %vm1085, %v3257, 0.0
      %v3313 = vadd.f32 %v3311, %v3312
      %v3314 = vsel %vm1085, %v3258, 0.0
      %v3315 = vadd.f32 %v3313, %v3314
      %v3316 = vsel %vm1085, %v3259, 0.0
      %v3317 = vadd.f32 %v3315, %v3316
      %v3318 = vsel %vm1085, %v3260, 0.0
      %v3319 = vadd.f32 %v3317, %v3318
      %v3320 = vsel %vm1085, %v3261, 0.0
      %v3321 = vadd.f32 %v3319, %v3320
      %v3322 = vsel %vm1085, %v3262, 0.0
      %v3323 = vadd.f32 %v3321, %v3322
      %v3324 = vsel %vm1085, %v3263, 0.0
      %v3325 = vadd.f32 %v3323, %v3324
      %v3326 = vsel %vm1085, %v3264, 0.0
      %v3327 = vadd.f32 %v3325, %v3326
      %v3328 = vrot.slane %v3327, 4
      %v3329 = vadd.f32 %v3327, %v3328
      %v3330 = vrot.slane %v3329, 2
      %v3331 = vadd.f32 %v3329, %v3330
      %v3332 = vrot.slane %v3331, 1
      %v3333 = vadd.f32 %v3331, %v3332
      %vm3334 = vcmask 1040384
      %v3335 = vsel %vm3334, %v3232, %v3333
      %vm3336 = vcmask 25600
      %3337 = vst.msk [vmem:[%s244] sm:$0x3] %vm3336, %v3335
      %s3338 = smul.u32 16, %s21
      %p3339 = scmp.lt.s32.totalorder %s20, 1
      %s3340 = scalar_select %p3339, %s20, 1
      %p3341 = scmp.lt.s32.totalorder %s3338, 15
      %s3342 = scalar_select %p3341, %s3338, 15
      %s3343 = smul.addr %s3342, 2
      %s3344 = smul.addr %s3340, 32
      %s3345 = sadd.s32 %s3343, %s3344
      %s3346 = smul.addr %s3345, 8
      %s3347 = scalar_lea.vmem %s3, %s3346
      %s3348 = sadd.s32 %s20, %s21
      %p3349 = scmp.lt.s32.totalorder %s3348, 1
      %s3350 = scalar_select %p3349, %s3348, 1
      %s3351 = smul.addr %s3350, 2
      %s3352 = scalar_lea.vmem %s4, %s3351
      // Predicated region
      $region33: #{_lambda_.6} parent=31 // pred_check
        %p3353 = pneg %p118
      $region34: #{_lambda_.6} parent=31 // pred_check_branch
        %3355 = sbr.rel (%p3353) target = $region36
      $region35: #{_lambda_.6} parent=31 // pred_region
        %s3356 = smul.u32 16, %s21
      $region36: #{_lambda_.6} parent=31 // pred_fallthru
        _
      // Predicated region
      $region37: #{_lambda_.6} parent=31 // pred_check
        %p3357 = pneg %p146
      $region38: #{_lambda_.6} parent=31 // pred_check_branch
        %3359 = sbr.rel (%p3357) target = $region40
      $region39: #{_lambda_.6} parent=31 // pred_region
        %s3360 = sadd.s32 %s20, %s21
      $region40: #{_lambda_.6} parent=31 // pred_fallthru
        _
    $region32: #{_lambda_.6} parent=5 // pred_fallthru
      _
    %p3361 = scmp.le.s32.totalorder 2, %s11
    // Predicated region
    $region41: #{_lambda_.6} parent=5 // pred_check
      %p3362 = pneg %p3361
    $region42: #{_lambda_.6} parent=5 // pred_check_branch
      %3364 = sbr.rel (%p3362) target = $region44
    $region43: #{_lambda_.6} parent=5 // pred_region
      %s3365 = ssub.s32 %s11, 2
      // Predicated region
      $region45: #{_lambda_.6} parent=43 // pred_check
        %p3366 = pneg %p124
      $region46: #{_lambda_.6} parent=43 // pred_check_branch
        %3368 = sbr.rel (%p3366) target = $region48
      $region47: #{_lambda_.6} parent=43 // pred_region
        %s3369 = smul.u32 16, %s23
        %p3370 = scmp.lt.s32.totalorder %s22, 1
        %s3371 = scalar_select %p3370, %s22, 1
        %p3372 = scmp.lt.s32.totalorder %s3369, 15
        %s3373 = scalar_select %p3372, %s3369, 15
        %s3374 = smul.addr %s3373, 2
        %s3375 = smul.addr %s3371, 32
        %s3376 = sadd.s32 %s3374, %s3375
        %s3377 = smul.addr %s3376, 8
        %s3378 = scalar_lea.vmem %s3, %s3377
      $region48: #{_lambda_.6} parent=43 // pred_fallthru
        _
      // Predicated region
      $region49: #{_lambda_.6} parent=43 // pred_check
        %p3379 = pneg %p152
      $region50: #{_lambda_.6} parent=43 // pred_check_branch
        %3381 = sbr.rel (%p3379) target = $region52
      $region51: #{_lambda_.6} parent=43 // pred_region
        %s3382 = sadd.s32 %s22, %s23
        %p3383 = scmp.lt.s32.totalorder %s3382, 1
        %s3384 = scalar_select %p3383, %s3382, 1
        %s3385 = smul.addr %s3384, 2
        %s3386 = scalar_lea.vmem %s4, %s3385
      $region52: #{_lambda_.6} parent=43 // pred_fallthru
        _
    $region44: #{_lambda_.6} parent=5 // pred_fallthru
      _
  $region6: #{_lambda_.6} parent=0 // loop_footer
    %s15 = sadd.s32 1, %s11
  $region7: #{_lambda_.6} parent=0 // loop_footer_branch
    %10 = sbr.rel target = $region3
  $region8: #{_lambda_.6} parent=0 // loop_exit
    _

</llo_original>
